<compile_context>
chip_gen: v5e
topology: v5e:2x2
jax: 0.10.0
libtpu: 0.0.40
codegen_flags: <defaults>
</compile_context>

<pallas_src>
import jax
import jax.numpy as jnp
from jax.experimental import pallas as pl
from jax.experimental.pallas import tpu as pltpu

LANE = 128


def _round_up(x, m):
    return ((x + m - 1) // m) * m


# ----------------------------------------------------------------------------
# Pallas kernels
# ----------------------------------------------------------------------------
def _conv_stack_kernel(xp_ref, t1_ref, b1_ref, t2_ref, b2_ref, o_ref):
    """conv1 + ReLU + pool2x2 + conv2 + ReLU + pool2x2, fully in VMEM.

    xp_ref : (8, Bt*8, 28) bf16 row-shifted mod-4 image planes:
             plane m, flat row (n, a) = image row 4*a + m of sample n.
    t1_ref : (5, 2, 28, 12*c1p) bf16 conv1 Toeplitz [ki, dj, w, pw1*c1p+co].
    t2_ref : (5, 2, 12*c1p, 4*c2p) bf16 conv2 Toeplitz [ki, dj, pw1*c1p+ci, pw2*c2p+co].
    o_ref  : (Bt*8, 4*c2p) bf16; flat rows (n, ph2) -- ph2 in 0..3 valid, 4..7 junk
             (the junk rows are dropped by a cheap reshape/slice outside).
    """
    xp = xp_ref[...]
    t1 = t1_ref[...]
    t2 = t2_ref[...]
    b1 = b1_ref[...]
    b2 = b2_ref[...]

    # ---- conv1 + bias + ReLU + 2x2 maxpool --------------------------------
    # acc_{rho,di,dj}[(n,a), pw1*c1p+co] = conv1 output at spatial position
    # (row 2*(2a+rho)+di, col 2*pw1+dj); max over (di,dj) == the 2x2 max-pool.
    pooled1 = []
    for rho in range(2):
        qmax = None
        for di in range(2):
            for dj in range(2):
                acc = None
                for ki in range(5):
                    part = jnp.dot(xp[2 * rho + di + ki], t1[ki, dj],
                                   preferred_element_type=jnp.float32)
                    acc = part if acc is None else acc + part
                qmax = acc if qmax is None else jnp.maximum(qmax, acc)
        # rows (n, a): pooled row ph1 = 2a + rho; a in 0..5 valid, 6..7 junk
        pooled1.append(jnp.maximum(qmax + b1, 0.0))

    def shift_rows_up(v, k):
        if k == 0:
            return v
        return jnp.concatenate([v[k:], v[:k]], axis=0)

    # Pre-shift the pooled conv1 maps so every conv2 row offset is a direct,
    # row-aligned matmul operand (shifted-in junk only ever lands in junk rows).
    lhs2 = [shift_rows_up(pooled1[m % 2], m // 2).astype(jnp.bfloat16)
            for m in range(6)]

    # ---- conv2 + bias + ReLU + 2x2 maxpool --------------------------------
    qmax2 = None
    for di in range(2):
        for dj in range(2):
            acc = None
            for ki in range(5):
                part = jnp.dot(lhs2[di + ki], t2[ki, dj],
                               preferred_element_type=jnp.float32)
                acc = part if acc is None else acc + part
            qmax2 = acc if qmax2 is None else jnp.maximum(qmax2, acc)

    feat = jnp.maximum(qmax2 + b2, 0.0)   # rows (n, ph2); ph2 in 0..3 valid
    o_ref[...] = feat.astype(o_ref.dtype)


def _fc_fused_kernel(x_ref, w1_ref, b1_ref, w2_ref, b2_ref, o_ref):
    """fc1 + ReLU + fc2 + log_softmax.  Padded class lanes carry a -1e9 bias."""
    h = jnp.dot(x_ref[...], w1_ref[...], preferred_element_type=jnp.float32)
    h = jnp.maximum(h + b1_ref[...], 0.0).astype(w2_ref.dtype)
    logits = jnp.dot(h, w2_ref[...], preferred_element_type=jnp.float32)
    logits = logits + b2_ref[...]
    m = jnp.max(logits, axis=-1, keepdims=True)
    z = logits - m
    lse = jnp.log(jnp.sum(jnp.exp(z), axis=-1, keepdims=True))
    o_ref[...] = z - lse


# ----------------------------------------------------------------------------
# Pallas wrappers
# ----------------------------------------------------------------------------
def _pick_batch_tile(n, target=64):
    """Batch tile for the conv kernel: fits comfortably in VMEM and prefers
    >= 2 grid steps (v7x has 2 TensorCores) when the batch allows it."""
    bt = min(target, max(2, n))
    if n >= 4 and _round_up(n, bt) == bt:      # would be a single grid step
        bt = max(2, _round_up((n + 1) // 2, 2))
    if bt % 2:                                  # keep Bt*8 a multiple of 16
        bt += 1
    return bt


def _conv_stack(planes, t1, b1, t2, b2, *, bt):
    n8, k1 = planes.shape[1], planes.shape[2]
    n2 = t2.shape[-1]
    grid = (n8 // (bt * 8),)
    return pl.pallas_call(
        _conv_stack_kernel,
        out_shape=jax.ShapeDtypeStruct((n8, n2), jnp.bfloat16),
        grid=grid,
        in_specs=[
            pl.BlockSpec((8, bt * 8, k1), lambda i: (0, i, 0)),
            pl.BlockSpec(t1.shape, lambda i: (0, 0, 0, 0)),
            pl.BlockSpec(b1.shape, lambda i: (0, 0)),
            pl.BlockSpec(t2.shape, lambda i: (0, 0, 0, 0)),
            pl.BlockSpec(b2.shape, lambda i: (0, 0)),
        ],
        out_specs=pl.BlockSpec((bt * 8, n2), lambda i: (i, 0)),
        compiler_params=pltpu.CompilerParams(
            dimension_semantics=("parallel",),
            vmem_limit_bytes=48 * 1024 * 1024,
        ),
    )(planes, t1, b1, t2, b2)


def fc_fused(x, w1, b1, w2, b2, *, tile_target=256):
    M, K = x.shape
    K1, F1P = w1.shape
    F1P2, NCP = w2.shape
    assert K == K1 and F1P == F1P2 and F1P % LANE == 0 and NCP % LANE == 0
    tile = min(tile_target, _round_up(M, 16))
    # prefer >= 2 grid steps when the batch is big enough (v7x: 2 TensorCores)
    if M >= 32 and _round_up(M, tile) == tile:
        tile = _round_up((M + 1) // 2, 16)
    Mp = _round_up(M, tile)
    xp = x.astype(jnp.bfloat16)
    if Mp != M:
        xp = jnp.pad(xp, ((0, Mp - M), (0, 0)))
    out = pl.pallas_call(
        _fc_fused_kernel,
        out_shape=jax.ShapeDtypeStruct((Mp, NCP), jnp.float32),
        grid=(Mp // tile,),
        in_specs=[
            pl.BlockSpec((tile, K), lambda i: (i, 0)),
            pl.BlockSpec((K, F1P), lambda i: (0, 0)),
            pl.BlockSpec((1, F1P), lambda i: (0, 0)),
            pl.BlockSpec((F1P, NCP), lambda i: (0, 0)),
            pl.BlockSpec((1, NCP), lambda i: (0, 0)),
        ],
        out_specs=pl.BlockSpec((tile, NCP), lambda i: (i, 0)),
        compiler_params=pltpu.CompilerParams(
            dimension_semantics=("parallel",),
            vmem_limit_bytes=32 * 1024 * 1024,
        ),
    )(xp, w1, b1, w2, b2)
    return out[:M]


# ----------------------------------------------------------------------------
# Glue: row-shifted mod-4 image planes (bytes ~2.3x the raw image, no im2col)
# ----------------------------------------------------------------------------
def _make_shifted_planes(x_nchw, bt):
    """(N,1,28,28) f32 images -> (8, Np*8, 28) bf16 planes; plane m, flat row
    (n, a) holds image row 4*a + m of sample n (zeros past the image)."""
    N = x_nchw.shape[0]
    Np = _round_up(N, bt)
    x = x_nchw[:, 0].astype(jnp.bfloat16)                    # early bf16 cast
    x = jnp.pad(x, ((0, Np - N), (0, 8), (0, 0)))            # (Np, 36, 28)
    planes = [x[:, m::4, :][:, :8, :] for m in range(8)]     # each (Np, 8, 28)
    planes = jnp.stack(planes, axis=0)                       # (8, Np, 8, 28)
    return planes.reshape(8, Np * 8, 28), Np


# ----------------------------------------------------------------------------
# Parameters: torch-layout init + conversion to Toeplitz / padded Pallas layouts
# ----------------------------------------------------------------------------
def init_torch_params(key, n_classes=10, conv_expand=1, fc_expand=1):
    """Random params in the PyTorch layouts (Conv2d: OIHW, Linear: (out, in))."""
    c1 = 20 * conv_expand
    c2 = 50 * conv_expand
    f1 = 500 * fc_expand
    ks = jax.random.split(key, 8)

    def u(k, shape, fan_in):
        bound = 1.0 / float(fan_in) ** 0.5
        return jax.random.uniform(k, shape, jnp.float32, -bound, bound)

    return {
        "conv1_w": u(ks[0], (c1, 1, 5, 5), 5 * 5 * 1),
        "conv1_b": u(ks[1], (c1,), 5 * 5 * 1),
        "conv2_w": u(ks[2], (c2, c1, 5, 5), 5 * 5 * c1),
        "conv2_b": u(ks[3], (c2,), 5 * 5 * c1),
        "fc1_w": u(ks[4], (f1, 4 * 4 * c2), 4 * 4 * c2),
        "fc1_b": u(ks[5], (f1,), 4 * 4 * c2),
        "fc2_w": u(ks[6], (n_classes, f1), f1),
        "fc2_b": u(ks[7], (n_classes,), f1),
    }


def prepare_params(tp, n_classes=10, conv_expand=1, fc_expand=1):
    """Convert torch-layout params to bf16 Toeplitz / lane-padded Pallas layouts."""
    c1 = 20 * conv_expand
    c2 = 50 * conv_expand
    f1 = 500 * fc_expand
    c1p = _round_up(c1, 32)
    c2p = _round_up(c2, 64)
    f1p = _round_up(f1, LANE)
    ncp = _round_up(n_classes, LANE)

    # conv1 Toeplitz: T1[ki, dj, w, pw1*c1p+co] = w1[co,0,ki, w-(2*pw1+dj)]
    w1e = jnp.transpose(tp["conv1_w"][:, 0], (1, 2, 0))          # (5, 5, c1)
    w1e = jnp.pad(w1e, ((0, 0), (0, 0), (0, c1p - c1)))
    t1 = jnp.zeros((5, 2, 28, 12, c1p), jnp.float32)
    for dj in range(2):
        for pw in range(12):
            for kj in range(5):
                w = 2 * pw + dj + kj
                t1 = t1.at[:, dj, w, pw, :].set(w1e[:, kj, :])
    t1 = t1.reshape(5, 2, 28, 12 * c1p).astype(jnp.bfloat16)
    b1row = jnp.tile(jnp.pad(tp["conv1_b"], (0, c1p - c1)), 12)
    b1row = b1row.reshape(1, 12 * c1p).astype(jnp.float32)

    # conv2 Toeplitz: T2[ki, dj, pw1*c1p+ci, pw2*c2p+co] = w2[co,ci,ki, pw1-(2*pw2+dj)]
    w2e = jnp.transpose(tp["conv2_w"], (2, 3, 1, 0))             # (5, 5, c1, c2)
    w2e = jnp.pad(w2e, ((0, 0), (0, 0), (0, c1p - c1), (0, c2p - c2)))
    t2 = jnp.zeros((5, 2, 12, c1p, 4, c2p), jnp.float32)
    for dj in range(2):
        for pw2 in range(4):
            for kj in range(5):
                pw1 = 2 * pw2 + dj + kj
                t2 = t2.at[:, dj, pw1, :, pw2, :].set(w2e[:, kj, :, :])
    t2 = t2.reshape(5, 2, 12 * c1p, 4 * c2p).astype(jnp.bfloat16)
    b2row = jnp.tile(jnp.pad(tp["conv2_b"], (0, c2p - c2)), 4)
    b2row = b2row.reshape(1, 4 * c2p).astype(jnp.float32)

    # fc1: torch flatten order is (co, ph2, pw2); kernel feature order is (ph2, pw2, co_pad)
    fw1 = tp["fc1_w"].reshape(f1, c2, 4, 4)                      # (f1, co, ph2, pw2)
    fw1 = jnp.transpose(fw1, (2, 3, 1, 0))                       # (ph2, pw2, co, f1)
    fw1 = jnp.pad(fw1, ((0, 0), (0, 0), (0, c2p - c2), (0, f1p - f1)))
    fw1 = fw1.reshape(16 * c2p, f1p).astype(jnp.bfloat16)
    fb1 = jnp.pad(tp["fc1_b"], (0, f1p - f1)).reshape(1, f1p).astype(jnp.float32)

    fw2 = jnp.pad(tp["fc2_w"].T,
                  ((0, f1p - f1), (0, ncp - n_classes))).astype(jnp.bfloat16)
    # padded class lanes get a huge negative bias -> exp() == 0 in the softmax
    fb2 = jnp.pad(tp["fc2_b"], (0, ncp - n_classes), constant_values=-1e9)
    fb2 = fb2.reshape(1, ncp).astype(jnp.float32)

    return {"t1": t1, "b1": b1row, "t2": t2, "b2": b2row,
            "fw1": fw1, "fb1": fb1, "fw2": fw2, "fb2": fb2}


# ----------------------------------------------------------------------------
# Forward pass
# ----------------------------------------------------------------------------
def cnn_3l_forward(x_nchw, params, *, n_classes=10, conv_expand=1, fc_expand=1):
    assert x_nchw.shape[1:] == (1, 28, 28), "fc1 dims pin the input to 1x28x28"
    N = x_nchw.shape[0]
    c2 = 50 * conv_expand
    c2p = _round_up(c2, 64)

    bt = _pick_batch_tile(N)
    planes, Np = _make_shifted_planes(x_nchw, bt)

    # conv1 + ReLU + pool + conv2 + ReLU + pool, one fused batch-tiled kernel
    feat8 = _conv_stack(planes, params["t1"], params["b1"],
                        params["t2"], params["b2"], bt=bt)        # (Np*8, 4*c2p)

    # drop the 4 junk rows per sample and flatten (only inter-kernel copy:
    # ~2 KB/sample of real data vs the old ~37 KB/sample padded intermediate)
    feat = feat8.reshape(Np, 8, 4 * c2p)[:N, :4, :].reshape(N, 16 * c2p)

    # fc1 + ReLU + fc2 + log_softmax (fused), then strip class-lane padding
    out = fc_fused(feat, params["fw1"], params["fb1"],
                   params["fw2"], params["fb2"])
    return out[:, :n_classes]


# ----------------------------------------------------------------------------
# Pure-JAX f32 reference (mirrors the PyTorch module) for a correctness check
# ----------------------------------------------------------------------------
def _reference_forward(x_nchw, tp):
    x = x_nchw.astype(jnp.float32)

    def conv(z, w, b):
        y = jax.lax.conv_general_dilated(
            z, w, (1, 1), "VALID", dimension_numbers=("NCHW", "OIHW", "NCHW"))
        return y + b.reshape(1, -1, 1, 1)

    def pool(z):
        return jax.lax.reduce_window(z, -jnp.inf, jax.lax.max,
                                     (1, 1, 2, 2), (1, 1, 2, 2), "VALID")

    y = pool(jax.nn.relu(conv(x, tp["conv1_w"], tp["conv1_b"])))
    y = pool(jax.nn.relu(conv(y, tp["conv2_w"], tp["conv2_b"])))
    y = y.reshape(x.shape[0], -1)                      # NCHW flatten, like torch
    y = jax.nn.relu(y @ tp["fc1_w"].T + tp["fc1_b"])
    y = y @ tp["fc2_w"].T + tp["fc2_b"]
    return jax.nn.log_softmax(y, axis=1)


# ----------------------------------------------------------------------------
if __name__ == "__main__":
    key = jax.random.PRNGKey(0)
    k_x, k_p = jax.random.split(key)

    # MNIST-shaped input: the fc1 dimension (4*4*50) pins the spatial size to 28.
    x = jax.random.normal(k_x, (2, 1, 28, 28), dtype=jnp.float32)

    torch_params = init_torch_params(k_p, n_classes=10, conv_expand=1, fc_expand=1)
    params = prepare_params(torch_params, n_classes=10, conv_expand=1, fc_expand=1)

    fwd = jax.jit(lambda xx, pp: cnn_3l_forward(
        xx, pp, n_classes=10, conv_expand=1, fc_expand=1))
    out = jax.block_until_ready(fwd(x, params))

    assert out.shape == (2, 10), out.shape
    # log_softmax sanity: probabilities per row sum to 1
    row_sums = jnp.sum(jnp.exp(out), axis=1)
    assert bool(jnp.all(jnp.abs(row_sums - 1.0) < 1e-3)), row_sums

    # bf16 matmuls vs f32 reference: allow a small absolute drift on log-probs
    ref = _reference_forward(x, torch_params)
    err = float(jnp.max(jnp.abs(out - ref)))
    assert err < 1e-1, f"max |pallas - reference| = {err}"

    print("KERNEL_OK")
</pallas_src>

<mosaic_0001>
module attributes {stable_mosaic.version = 11 : i64} {
  func.func @_conv_stack_kernel(%arg0: i32, %arg1: memref<8x16x28xbf16, #tpu.memory_space<vmem>>, %arg2: memref<5x2x28x384xbf16, #tpu.memory_space<vmem>>, %arg3: memref<1x384xf32, #tpu.memory_space<vmem>>, %arg4: memref<5x2x384x256xbf16, #tpu.memory_space<vmem>>, %arg5: memref<1x256xf32, #tpu.memory_space<vmem>>, %arg6: memref<16x256xbf16, #tpu.memory_space<vmem>>) attributes {dimension_semantics = [#tpu.dimension_semantics<parallel>], iteration_bounds = array<i64: 1>, scalar_prefetch = 0 : i64, scratch_operands = 0 : i64, tpu.core_type = #tpu.core_type<tc>, window_params = [{transform_indices = @transform_0, window_bounds = array<i64: 8, 16, 28>}, {pipeline_mode = #tpu.pipeline_mode<synchronous>, transform_indices = @transform_1, window_bounds = array<i64: 5, 2, 28, 384>}, {pipeline_mode = #tpu.pipeline_mode<synchronous>, transform_indices = @transform_2, window_bounds = array<i64: 1, 384>}, {pipeline_mode = #tpu.pipeline_mode<synchronous>, transform_indices = @transform_3, window_bounds = array<i64: 5, 2, 384, 256>}, {pipeline_mode = #tpu.pipeline_mode<synchronous>, transform_indices = @transform_4, window_bounds = array<i64: 1, 256>}, {transform_indices = @transform_5, window_bounds = array<i64: 16, 256>}]} {
    %c0 = arith.constant 0 : index
    %c0_0 = arith.constant 0 : index
    %c0_1 = arith.constant 0 : index
    %0 = vector.load %arg1[%c0, %c0_0, %c0_1] : memref<8x16x28xbf16, #tpu.memory_space<vmem>>, vector<8x16x28xbf16>
    %c0_2 = arith.constant 0 : index
    %c0_3 = arith.constant 0 : index
    %c0_4 = arith.constant 0 : index
    %c0_5 = arith.constant 0 : index
    %1 = vector.load %arg2[%c0_2, %c0_3, %c0_4, %c0_5] : memref<5x2x28x384xbf16, #tpu.memory_space<vmem>>, vector<5x2x28x384xbf16>
    %c0_6 = arith.constant 0 : index
    %c0_7 = arith.constant 0 : index
    %c0_8 = arith.constant 0 : index
    %c0_9 = arith.constant 0 : index
    %2 = vector.load %arg4[%c0_6, %c0_7, %c0_8, %c0_9] : memref<5x2x384x256xbf16, #tpu.memory_space<vmem>>, vector<5x2x384x256xbf16>
    %c0_10 = arith.constant 0 : index
    %c0_11 = arith.constant 0 : index
    %3 = vector.load %arg3[%c0_10, %c0_11] : memref<1x384xf32, #tpu.memory_space<vmem>>, vector<1x384xf32>
    %c0_12 = arith.constant 0 : index
    %c0_13 = arith.constant 0 : index
    %4 = vector.load %arg5[%c0_12, %c0_13] : memref<1x256xf32, #tpu.memory_space<vmem>>, vector<1x256xf32>
    %5 = vector.extract_strided_slice %0 {offsets = [0, 0, 0], sizes = [1, 16, 28], strides = [1, 1, 1]} : vector<8x16x28xbf16> to vector<1x16x28xbf16>
    %6 = vector.shape_cast %5 : vector<1x16x28xbf16> to vector<16x28xbf16>
    %7 = vector.extract_strided_slice %1 {offsets = [0, 0, 0, 0], sizes = [1, 1, 28, 384], strides = [1, 1, 1, 1]} : vector<5x2x28x384xbf16> to vector<1x1x28x384xbf16>
    %8 = vector.shape_cast %7 : vector<1x1x28x384xbf16> to vector<28x384xbf16>
    %cst = arith.constant dense<0.000000e+00> : vector<16x384xf32>
    %9 = tpu.matmul %6, %8, %cst {dimension_numbers = #tpu.dot_dimension_numbers<[1], [0], [0], [1], [0, 0, 1, 1], [], []>} : vector<16x28xbf16>, vector<28x384xbf16>, vector<16x384xf32> -> vector<16x384xf32>
    %10 = vector.extract_strided_slice %0 {offsets = [1, 0, 0], sizes = [1, 16, 28], strides = [1, 1, 1]} : vector<8x16x28xbf16> to vector<1x16x28xbf16>
    %11 = vector.shape_cast %10 : vector<1x16x28xbf16> to vector<16x28xbf16>
    %12 = vector.extract_strided_slice %1 {offsets = [1, 0, 0, 0], sizes = [1, 1, 28, 384], strides = [1, 1, 1, 1]} : vector<5x2x28x384xbf16> to vector<1x1x28x384xbf16>
    %13 = vector.shape_cast %12 : vector<1x1x28x384xbf16> to vector<28x384xbf16>
    %cst_14 = arith.constant dense<0.000000e+00> : vector<16x384xf32>
    %14 = tpu.matmul %11, %13, %cst_14 {dimension_numbers = #tpu.dot_dimension_numbers<[1], [0], [0], [1], [0, 0, 1, 1], [], []>} : vector<16x28xbf16>, vector<28x384xbf16>, vector<16x384xf32> -> vector<16x384xf32>
    %15 = arith.addf %9, %14 : vector<16x384xf32>
    %16 = vector.extract_strided_slice %0 {offsets = [2, 0, 0], sizes = [1, 16, 28], strides = [1, 1, 1]} : vector<8x16x28xbf16> to vector<1x16x28xbf16>
    %17 = vector.shape_cast %16 : vector<1x16x28xbf16> to vector<16x28xbf16>
    %18 = vector.extract_strided_slice %1 {offsets = [2, 0, 0, 0], sizes = [1, 1, 28, 384], strides = [1, 1, 1, 1]} : vector<5x2x28x384xbf16> to vector<1x1x28x384xbf16>
    %19 = vector.shape_cast %18 : vector<1x1x28x384xbf16> to vector<28x384xbf16>
    %cst_15 = arith.constant dense<0.000000e+00> : vector<16x384xf32>
    %20 = tpu.matmul %17, %19, %cst_15 {dimension_numbers = #tpu.dot_dimension_numbers<[1], [0], [0], [1], [0, 0, 1, 1], [], []>} : vector<16x28xbf16>, vector<28x384xbf16>, vector<16x384xf32> -> vector<16x384xf32>
    %21 = arith.addf %15, %20 : vector<16x384xf32>
    %22 = vector.extract_strided_slice %0 {offsets = [3, 0, 0], sizes = [1, 16, 28], strides = [1, 1, 1]} : vector<8x16x28xbf16> to vector<1x16x28xbf16>
    %23 = vector.shape_cast %22 : vector<1x16x28xbf16> to vector<16x28xbf16>
    %24 = vector.extract_strided_slice %1 {offsets = [3, 0, 0, 0], sizes = [1, 1, 28, 384], strides = [1, 1, 1, 1]} : vector<5x2x28x384xbf16> to vector<1x1x28x384xbf16>
    %25 = vector.shape_cast %24 : vector<1x1x28x384xbf16> to vector<28x384xbf16>
    %cst_16 = arith.constant dense<0.000000e+00> : vector<16x384xf32>
    %26 = tpu.matmul %23, %25, %cst_16 {dimension_numbers = #tpu.dot_dimension_numbers<[1], [0], [0], [1], [0, 0, 1, 1], [], []>} : vector<16x28xbf16>, vector<28x384xbf16>, vector<16x384xf32> -> vector<16x384xf32>
    %27 = arith.addf %21, %26 : vector<16x384xf32>
    %28 = vector.extract_strided_slice %0 {offsets = [4, 0, 0], sizes = [1, 16, 28], strides = [1, 1, 1]} : vector<8x16x28xbf16> to vector<1x16x28xbf16>
    %29 = vector.shape_cast %28 : vector<1x16x28xbf16> to vector<16x28xbf16>
    %30 = vector.extract_strided_slice %1 {offsets = [4, 0, 0, 0], sizes = [1, 1, 28, 384], strides = [1, 1, 1, 1]} : vector<5x2x28x384xbf16> to vector<1x1x28x384xbf16>
    %31 = vector.shape_cast %30 : vector<1x1x28x384xbf16> to vector<28x384xbf16>
    %cst_17 = arith.constant dense<0.000000e+00> : vector<16x384xf32>
    %32 = tpu.matmul %29, %31, %cst_17 {dimension_numbers = #tpu.dot_dimension_numbers<[1], [0], [0], [1], [0, 0, 1, 1], [], []>} : vector<16x28xbf16>, vector<28x384xbf16>, vector<16x384xf32> -> vector<16x384xf32>
    %33 = arith.addf %27, %32 : vector<16x384xf32>
    %34 = vector.extract_strided_slice %0 {offsets = [0, 0, 0], sizes = [1, 16, 28], strides = [1, 1, 1]} : vector<8x16x28xbf16> to vector<1x16x28xbf16>
    %35 = vector.shape_cast %34 : vector<1x16x28xbf16> to vector<16x28xbf16>
    %36 = vector.extract_strided_slice %1 {offsets = [0, 1, 0, 0], sizes = [1, 1, 28, 384], strides = [1, 1, 1, 1]} : vector<5x2x28x384xbf16> to vector<1x1x28x384xbf16>
    %37 = vector.shape_cast %36 : vector<1x1x28x384xbf16> to vector<28x384xbf16>
    %cst_18 = arith.constant dense<0.000000e+00> : vector<16x384xf32>
    %38 = tpu.matmul %35, %37, %cst_18 {dimension_numbers = #tpu.dot_dimension_numbers<[1], [0], [0], [1], [0, 0, 1, 1], [], []>} : vector<16x28xbf16>, vector<28x384xbf16>, vector<16x384xf32> -> vector<16x384xf32>
    %39 = vector.extract_strided_slice %0 {offsets = [1, 0, 0], sizes = [1, 16, 28], strides = [1, 1, 1]} : vector<8x16x28xbf16> to vector<1x16x28xbf16>
    %40 = vector.shape_cast %39 : vector<1x16x28xbf16> to vector<16x28xbf16>
    %41 = vector.extract_strided_slice %1 {offsets = [1, 1, 0, 0], sizes = [1, 1, 28, 384], strides = [1, 1, 1, 1]} : vector<5x2x28x384xbf16> to vector<1x1x28x384xbf16>
    %42 = vector.shape_cast %41 : vector<1x1x28x384xbf16> to vector<28x384xbf16>
    %cst_19 = arith.constant dense<0.000000e+00> : vector<16x384xf32>
    %43 = tpu.matmul %40, %42, %cst_19 {dimension_numbers = #tpu.dot_dimension_numbers<[1], [0], [0], [1], [0, 0, 1, 1], [], []>} : vector<16x28xbf16>, vector<28x384xbf16>, vector<16x384xf32> -> vector<16x384xf32>
    %44 = arith.addf %38, %43 : vector<16x384xf32>
    %45 = vector.extract_strided_slice %0 {offsets = [2, 0, 0], sizes = [1, 16, 28], strides = [1, 1, 1]} : vector<8x16x28xbf16> to vector<1x16x28xbf16>
    %46 = vector.shape_cast %45 : vector<1x16x28xbf16> to vector<16x28xbf16>
    %47 = vector.extract_strided_slice %1 {offsets = [2, 1, 0, 0], sizes = [1, 1, 28, 384], strides = [1, 1, 1, 1]} : vector<5x2x28x384xbf16> to vector<1x1x28x384xbf16>
    %48 = vector.shape_cast %47 : vector<1x1x28x384xbf16> to vector<28x384xbf16>
    %cst_20 = arith.constant dense<0.000000e+00> : vector<16x384xf32>
    %49 = tpu.matmul %46, %48, %cst_20 {dimension_numbers = #tpu.dot_dimension_numbers<[1], [0], [0], [1], [0, 0, 1, 1], [], []>} : vector<16x28xbf16>, vector<28x384xbf16>, vector<16x384xf32> -> vector<16x384xf32>
    %50 = arith.addf %44, %49 : vector<16x384xf32>
    %51 = vector.extract_strided_slice %0 {offsets = [3, 0, 0], sizes = [1, 16, 28], strides = [1, 1, 1]} : vector<8x16x28xbf16> to vector<1x16x28xbf16>
    %52 = vector.shape_cast %51 : vector<1x16x28xbf16> to vector<16x28xbf16>
    %53 = vector.extract_strided_slice %1 {offsets = [3, 1, 0, 0], sizes = [1, 1, 28, 384], strides = [1, 1, 1, 1]} : vector<5x2x28x384xbf16> to vector<1x1x28x384xbf16>
    %54 = vector.shape_cast %53 : vector<1x1x28x384xbf16> to vector<28x384xbf16>
    %cst_21 = arith.constant dense<0.000000e+00> : vector<16x384xf32>
    %55 = tpu.matmul %52, %54, %cst_21 {dimension_numbers = #tpu.dot_dimension_numbers<[1], [0], [0], [1], [0, 0, 1, 1], [], []>} : vector<16x28xbf16>, vector<28x384xbf16>, vector<16x384xf32> -> vector<16x384xf32>
    %56 = arith.addf %50, %55 : vector<16x384xf32>
    %57 = vector.extract_strided_slice %0 {offsets = [4, 0, 0], sizes = [1, 16, 28], strides = [1, 1, 1]} : vector<8x16x28xbf16> to vector<1x16x28xbf16>
    %58 = vector.shape_cast %57 : vector<1x16x28xbf16> to vector<16x28xbf16>
    %59 = vector.extract_strided_slice %1 {offsets = [4, 1, 0, 0], sizes = [1, 1, 28, 384], strides = [1, 1, 1, 1]} : vector<5x2x28x384xbf16> to vector<1x1x28x384xbf16>
    %60 = vector.shape_cast %59 : vector<1x1x28x384xbf16> to vector<28x384xbf16>
    %cst_22 = arith.constant dense<0.000000e+00> : vector<16x384xf32>
    %61 = tpu.matmul %58, %60, %cst_22 {dimension_numbers = #tpu.dot_dimension_numbers<[1], [0], [0], [1], [0, 0, 1, 1], [], []>} : vector<16x28xbf16>, vector<28x384xbf16>, vector<16x384xf32> -> vector<16x384xf32>
    %62 = arith.addf %56, %61 : vector<16x384xf32>
    %63 = arith.maximumf %33, %62 : vector<16x384xf32>
    %64 = vector.extract_strided_slice %0 {offsets = [1, 0, 0], sizes = [1, 16, 28], strides = [1, 1, 1]} : vector<8x16x28xbf16> to vector<1x16x28xbf16>
    %65 = vector.shape_cast %64 : vector<1x16x28xbf16> to vector<16x28xbf16>
    %66 = vector.extract_strided_slice %1 {offsets = [0, 0, 0, 0], sizes = [1, 1, 28, 384], strides = [1, 1, 1, 1]} : vector<5x2x28x384xbf16> to vector<1x1x28x384xbf16>
    %67 = vector.shape_cast %66 : vector<1x1x28x384xbf16> to vector<28x384xbf16>
    %cst_23 = arith.constant dense<0.000000e+00> : vector<16x384xf32>
    %68 = tpu.matmul %65, %67, %cst_23 {dimension_numbers = #tpu.dot_dimension_numbers<[1], [0], [0], [1], [0, 0, 1, 1], [], []>} : vector<16x28xbf16>, vector<28x384xbf16>, vector<16x384xf32> -> vector<16x384xf32>
    %69 = vector.extract_strided_slice %0 {offsets = [2, 0, 0], sizes = [1, 16, 28], strides = [1, 1, 1]} : vector<8x16x28xbf16> to vector<1x16x28xbf16>
    %70 = vector.shape_cast %69 : vector<1x16x28xbf16> to vector<16x28xbf16>
    %71 = vector.extract_strided_slice %1 {offsets = [1, 0, 0, 0], sizes = [1, 1, 28, 384], strides = [1, 1, 1, 1]} : vector<5x2x28x384xbf16> to vector<1x1x28x384xbf16>
    %72 = vector.shape_cast %71 : vector<1x1x28x384xbf16> to vector<28x384xbf16>
    %cst_24 = arith.constant dense<0.000000e+00> : vector<16x384xf32>
    %73 = tpu.matmul %70, %72, %cst_24 {dimension_numbers = #tpu.dot_dimension_numbers<[1], [0], [0], [1], [0, 0, 1, 1], [], []>} : vector<16x28xbf16>, vector<28x384xbf16>, vector<16x384xf32> -> vector<16x384xf32>
    %74 = arith.addf %68, %73 : vector<16x384xf32>
    %75 = vector.extract_strided_slice %0 {offsets = [3, 0, 0], sizes = [1, 16, 28], strides = [1, 1, 1]} : vector<8x16x28xbf16> to vector<1x16x28xbf16>
    %76 = vector.shape_cast %75 : vector<1x16x28xbf16> to vector<16x28xbf16>
    %77 = vector.extract_strided_slice %1 {offsets = [2, 0, 0, 0], sizes = [1, 1, 28, 384], strides = [1, 1, 1, 1]} : vector<5x2x28x384xbf16> to vector<1x1x28x384xbf16>
    %78 = vector.shape_cast %77 : vector<1x1x28x384xbf16> to vector<28x384xbf16>
    %cst_25 = arith.constant dense<0.000000e+00> : vector<16x384xf32>
    %79 = tpu.matmul %76, %78, %cst_25 {dimension_numbers = #tpu.dot_dimension_numbers<[1], [0], [0], [1], [0, 0, 1, 1], [], []>} : vector<16x28xbf16>, vector<28x384xbf16>, vector<16x384xf32> -> vector<16x384xf32>
    %80 = arith.addf %74, %79 : vector<16x384xf32>
    %81 = vector.extract_strided_slice %0 {offsets = [4, 0, 0], sizes = [1, 16, 28], strides = [1, 1, 1]} : vector<8x16x28xbf16> to vector<1x16x28xbf16>
    %82 = vector.shape_cast %81 : vector<1x16x28xbf16> to vector<16x28xbf16>
    %83 = vector.extract_strided_slice %1 {offsets = [3, 0, 0, 0], sizes = [1, 1, 28, 384], strides = [1, 1, 1, 1]} : vector<5x2x28x384xbf16> to vector<1x1x28x384xbf16>
    %84 = vector.shape_cast %83 : vector<1x1x28x384xbf16> to vector<28x384xbf16>
    %cst_26 = arith.constant dense<0.000000e+00> : vector<16x384xf32>
    %85 = tpu.matmul %82, %84, %cst_26 {dimension_numbers = #tpu.dot_dimension_numbers<[1], [0], [0], [1], [0, 0, 1, 1], [], []>} : vector<16x28xbf16>, vector<28x384xbf16>, vector<16x384xf32> -> vector<16x384xf32>
    %86 = arith.addf %80, %85 : vector<16x384xf32>
    %87 = vector.extract_strided_slice %0 {offsets = [5, 0, 0], sizes = [1, 16, 28], strides = [1, 1, 1]} : vector<8x16x28xbf16> to vector<1x16x28xbf16>
    %88 = vector.shape_cast %87 : vector<1x16x28xbf16> to vector<16x28xbf16>
    %89 = vector.extract_strided_slice %1 {offsets = [4, 0, 0, 0], sizes = [1, 1, 28, 384], strides = [1, 1, 1, 1]} : vector<5x2x28x384xbf16> to vector<1x1x28x384xbf16>
    %90 = vector.shape_cast %89 : vector<1x1x28x384xbf16> to vector<28x384xbf16>
    %cst_27 = arith.constant dense<0.000000e+00> : vector<16x384xf32>
    %91 = tpu.matmul %88, %90, %cst_27 {dimension_numbers = #tpu.dot_dimension_numbers<[1], [0], [0], [1], [0, 0, 1, 1], [], []>} : vector<16x28xbf16>, vector<28x384xbf16>, vector<16x384xf32> -> vector<16x384xf32>
    %92 = arith.addf %86, %91 : vector<16x384xf32>
    %93 = arith.maximumf %63, %92 : vector<16x384xf32>
    %94 = vector.extract_strided_slice %0 {offsets = [1, 0, 0], sizes = [1, 16, 28], strides = [1, 1, 1]} : vector<8x16x28xbf16> to vector<1x16x28xbf16>
    %95 = vector.shape_cast %94 : vector<1x16x28xbf16> to vector<16x28xbf16>
    %96 = vector.extract_strided_slice %1 {offsets = [0, 1, 0, 0], sizes = [1, 1, 28, 384], strides = [1, 1, 1, 1]} : vector<5x2x28x384xbf16> to vector<1x1x28x384xbf16>
    %97 = vector.shape_cast %96 : vector<1x1x28x384xbf16> to vector<28x384xbf16>
    %cst_28 = arith.constant dense<0.000000e+00> : vector<16x384xf32>
    %98 = tpu.matmul %95, %97, %cst_28 {dimension_numbers = #tpu.dot_dimension_numbers<[1], [0], [0], [1], [0, 0, 1, 1], [], []>} : vector<16x28xbf16>, vector<28x384xbf16>, vector<16x384xf32> -> vector<16x384xf32>
    %99 = vector.extract_strided_slice %0 {offsets = [2, 0, 0], sizes = [1, 16, 28], strides = [1, 1, 1]} : vector<8x16x28xbf16> to vector<1x16x28xbf16>
    %100 = vector.shape_cast %99 : vector<1x16x28xbf16> to vector<16x28xbf16>
    %101 = vector.extract_strided_slice %1 {offsets = [1, 1, 0, 0], sizes = [1, 1, 28, 384], strides = [1, 1, 1, 1]} : vector<5x2x28x384xbf16> to vector<1x1x28x384xbf16>
    %102 = vector.shape_cast %101 : vector<1x1x28x384xbf16> to vector<28x384xbf16>
    %cst_29 = arith.constant dense<0.000000e+00> : vector<16x384xf32>
    %103 = tpu.matmul %100, %102, %cst_29 {dimension_numbers = #tpu.dot_dimension_numbers<[1], [0], [0], [1], [0, 0, 1, 1], [], []>} : vector<16x28xbf16>, vector<28x384xbf16>, vector<16x384xf32> -> vector<16x384xf32>
    %104 = arith.addf %98, %103 : vector<16x384xf32>
    %105 = vector.extract_strided_slice %0 {offsets = [3, 0, 0], sizes = [1, 16, 28], strides = [1, 1, 1]} : vector<8x16x28xbf16> to vector<1x16x28xbf16>
    %106 = vector.shape_cast %105 : vector<1x16x28xbf16> to vector<16x28xbf16>
    %107 = vector.extract_strided_slice %1 {offsets = [2, 1, 0, 0], sizes = [1, 1, 28, 384], strides = [1, 1, 1, 1]} : vector<5x2x28x384xbf16> to vector<1x1x28x384xbf16>
    %108 = vector.shape_cast %107 : vector<1x1x28x384xbf16> to vector<28x384xbf16>
    %cst_30 = arith.constant dense<0.000000e+00> : vector<16x384xf32>
    %109 = tpu.matmul %106, %108, %cst_30 {dimension_numbers = #tpu.dot_dimension_numbers<[1], [0], [0], [1], [0, 0, 1, 1], [], []>} : vector<16x28xbf16>, vector<28x384xbf16>, vector<16x384xf32> -> vector<16x384xf32>
    %110 = arith.addf %104, %109 : vector<16x384xf32>
    %111 = vector.extract_strided_slice %0 {offsets = [4, 0, 0], sizes = [1, 16, 28], strides = [1, 1, 1]} : vector<8x16x28xbf16> to vector<1x16x28xbf16>
    %112 = vector.shape_cast %111 : vector<1x16x28xbf16> to vector<16x28xbf16>
    %113 = vector.extract_strided_slice %1 {offsets = [3, 1, 0, 0], sizes = [1, 1, 28, 384], strides = [1, 1, 1, 1]} : vector<5x2x28x384xbf16> to vector<1x1x28x384xbf16>
    %114 = vector.shape_cast %113 : vector<1x1x28x384xbf16> to vector<28x384xbf16>
    %cst_31 = arith.constant dense<0.000000e+00> : vector<16x384xf32>
    %115 = tpu.matmul %112, %114, %cst_31 {dimension_numbers = #tpu.dot_dimension_numbers<[1], [0], [0], [1], [0, 0, 1, 1], [], []>} : vector<16x28xbf16>, vector<28x384xbf16>, vector<16x384xf32> -> vector<16x384xf32>
    %116 = arith.addf %110, %115 : vector<16x384xf32>
    %117 = vector.extract_strided_slice %0 {offsets = [5, 0, 0], sizes = [1, 16, 28], strides = [1, 1, 1]} : vector<8x16x28xbf16> to vector<1x16x28xbf16>
    %118 = vector.shape_cast %117 : vector<1x16x28xbf16> to vector<16x28xbf16>
    %119 = vector.extract_strided_slice %1 {offsets = [4, 1, 0, 0], sizes = [1, 1, 28, 384], strides = [1, 1, 1, 1]} : vector<5x2x28x384xbf16> to vector<1x1x28x384xbf16>
    %120 = vector.shape_cast %119 : vector<1x1x28x384xbf16> to vector<28x384xbf16>
    %cst_32 = arith.constant dense<0.000000e+00> : vector<16x384xf32>
    %121 = tpu.matmul %118, %120, %cst_32 {dimension_numbers = #tpu.dot_dimension_numbers<[1], [0], [0], [1], [0, 0, 1, 1], [], []>} : vector<16x28xbf16>, vector<28x384xbf16>, vector<16x384xf32> -> vector<16x384xf32>
    %122 = arith.addf %116, %121 : vector<16x384xf32>
    %123 = arith.maximumf %93, %122 : vector<16x384xf32>
    %124 = vector.broadcast %3 : vector<1x384xf32> to vector<16x384xf32>
    %125 = arith.addf %123, %124 : vector<16x384xf32>
    %cst_33 = arith.constant 0.000000e+00 : f32
    %126 = vector.broadcast %cst_33 : f32 to vector<16x384xf32>
    %127 = arith.maximumf %125, %126 : vector<16x384xf32>
    %128 = vector.extract_strided_slice %0 {offsets = [2, 0, 0], sizes = [1, 16, 28], strides = [1, 1, 1]} : vector<8x16x28xbf16> to vector<1x16x28xbf16>
    %129 = vector.shape_cast %128 : vector<1x16x28xbf16> to vector<16x28xbf16>
    %130 = vector.extract_strided_slice %1 {offsets = [0, 0, 0, 0], sizes = [1, 1, 28, 384], strides = [1, 1, 1, 1]} : vector<5x2x28x384xbf16> to vector<1x1x28x384xbf16>
    %131 = vector.shape_cast %130 : vector<1x1x28x384xbf16> to vector<28x384xbf16>
    %cst_34 = arith.constant dense<0.000000e+00> : vector<16x384xf32>
    %132 = tpu.matmul %129, %131, %cst_34 {dimension_numbers = #tpu.dot_dimension_numbers<[1], [0], [0], [1], [0, 0, 1, 1], [], []>} : vector<16x28xbf16>, vector<28x384xbf16>, vector<16x384xf32> -> vector<16x384xf32>
    %133 = vector.extract_strided_slice %0 {offsets = [3, 0, 0], sizes = [1, 16, 28], strides = [1, 1, 1]} : vector<8x16x28xbf16> to vector<1x16x28xbf16>
    %134 = vector.shape_cast %133 : vector<1x16x28xbf16> to vector<16x28xbf16>
    %135 = vector.extract_strided_slice %1 {offsets = [1, 0, 0, 0], sizes = [1, 1, 28, 384], strides = [1, 1, 1, 1]} : vector<5x2x28x384xbf16> to vector<1x1x28x384xbf16>
    %136 = vector.shape_cast %135 : vector<1x1x28x384xbf16> to vector<28x384xbf16>
    %cst_35 = arith.constant dense<0.000000e+00> : vector<16x384xf32>
    %137 = tpu.matmul %134, %136, %cst_35 {dimension_numbers = #tpu.dot_dimension_numbers<[1], [0], [0], [1], [0, 0, 1, 1], [], []>} : vector<16x28xbf16>, vector<28x384xbf16>, vector<16x384xf32> -> vector<16x384xf32>
    %138 = arith.addf %132, %137 : vector<16x384xf32>
    %139 = vector.extract_strided_slice %0 {offsets = [4, 0, 0], sizes = [1, 16, 28], strides = [1, 1, 1]} : vector<8x16x28xbf16> to vector<1x16x28xbf16>
    %140 = vector.shape_cast %139 : vector<1x16x28xbf16> to vector<16x28xbf16>
    %141 = vector.extract_strided_slice %1 {offsets = [2, 0, 0, 0], sizes = [1, 1, 28, 384], strides = [1, 1, 1, 1]} : vector<5x2x28x384xbf16> to vector<1x1x28x384xbf16>
    %142 = vector.shape_cast %141 : vector<1x1x28x384xbf16> to vector<28x384xbf16>
    %cst_36 = arith.constant dense<0.000000e+00> : vector<16x384xf32>
    %143 = tpu.matmul %140, %142, %cst_36 {dimension_numbers = #tpu.dot_dimension_numbers<[1], [0], [0], [1], [0, 0, 1, 1], [], []>} : vector<16x28xbf16>, vector<28x384xbf16>, vector<16x384xf32> -> vector<16x384xf32>
    %144 = arith.addf %138, %143 : vector<16x384xf32>
    %145 = vector.extract_strided_slice %0 {offsets = [5, 0, 0], sizes = [1, 16, 28], strides = [1, 1, 1]} : vector<8x16x28xbf16> to vector<1x16x28xbf16>
    %146 = vector.shape_cast %145 : vector<1x16x28xbf16> to vector<16x28xbf16>
    %147 = vector.extract_strided_slice %1 {offsets = [3, 0, 0, 0], sizes = [1, 1, 28, 384], strides = [1, 1, 1, 1]} : vector<5x2x28x384xbf16> to vector<1x1x28x384xbf16>
    %148 = vector.shape_cast %147 : vector<1x1x28x384xbf16> to vector<28x384xbf16>
    %cst_37 = arith.constant dense<0.000000e+00> : vector<16x384xf32>
    %149 = tpu.matmul %146, %148, %cst_37 {dimension_numbers = #tpu.dot_dimension_numbers<[1], [0], [0], [1], [0, 0, 1, 1], [], []>} : vector<16x28xbf16>, vector<28x384xbf16>, vector<16x384xf32> -> vector<16x384xf32>
    %150 = arith.addf %144, %149 : vector<16x384xf32>
    %151 = vector.extract_strided_slice %0 {offsets = [6, 0, 0], sizes = [1, 16, 28], strides = [1, 1, 1]} : vector<8x16x28xbf16> to vector<1x16x28xbf16>
    %152 = vector.shape_cast %151 : vector<1x16x28xbf16> to vector<16x28xbf16>
    %153 = vector.extract_strided_slice %1 {offsets = [4, 0, 0, 0], sizes = [1, 1, 28, 384], strides = [1, 1, 1, 1]} : vector<5x2x28x384xbf16> to vector<1x1x28x384xbf16>
    %154 = vector.shape_cast %153 : vector<1x1x28x384xbf16> to vector<28x384xbf16>
    %cst_38 = arith.constant dense<0.000000e+00> : vector<16x384xf32>
    %155 = tpu.matmul %152, %154, %cst_38 {dimension_numbers = #tpu.dot_dimension_numbers<[1], [0], [0], [1], [0, 0, 1, 1], [], []>} : vector<16x28xbf16>, vector<28x384xbf16>, vector<16x384xf32> -> vector<16x384xf32>
    %156 = arith.addf %150, %155 : vector<16x384xf32>
    %157 = vector.extract_strided_slice %0 {offsets = [2, 0, 0], sizes = [1, 16, 28], strides = [1, 1, 1]} : vector<8x16x28xbf16> to vector<1x16x28xbf16>
    %158 = vector.shape_cast %157 : vector<1x16x28xbf16> to vector<16x28xbf16>
    %159 = vector.extract_strided_slice %1 {offsets = [0, 1, 0, 0], sizes = [1, 1, 28, 384], strides = [1, 1, 1, 1]} : vector<5x2x28x384xbf16> to vector<1x1x28x384xbf16>
    %160 = vector.shape_cast %159 : vector<1x1x28x384xbf16> to vector<28x384xbf16>
    %cst_39 = arith.constant dense<0.000000e+00> : vector<16x384xf32>
    %161 = tpu.matmul %158, %160, %cst_39 {dimension_numbers = #tpu.dot_dimension_numbers<[1], [0], [0], [1], [0, 0, 1, 1], [], []>} : vector<16x28xbf16>, vector<28x384xbf16>, vector<16x384xf32> -> vector<16x384xf32>
    %162 = vector.extract_strided_slice %0 {offsets = [3, 0, 0], sizes = [1, 16, 28], strides = [1, 1, 1]} : vector<8x16x28xbf16> to vector<1x16x28xbf16>
    %163 = vector.shape_cast %162 : vector<1x16x28xbf16> to vector<16x28xbf16>
    %164 = vector.extract_strided_slice %1 {offsets = [1, 1, 0, 0], sizes = [1, 1, 28, 384], strides = [1, 1, 1, 1]} : vector<5x2x28x384xbf16> to vector<1x1x28x384xbf16>
    %165 = vector.shape_cast %164 : vector<1x1x28x384xbf16> to vector<28x384xbf16>
    %cst_40 = arith.constant dense<0.000000e+00> : vector<16x384xf32>
    %166 = tpu.matmul %163, %165, %cst_40 {dimension_numbers = #tpu.dot_dimension_numbers<[1], [0], [0], [1], [0, 0, 1, 1], [], []>} : vector<16x28xbf16>, vector<28x384xbf16>, vector<16x384xf32> -> vector<16x384xf32>
    %167 = arith.addf %161, %166 : vector<16x384xf32>
    %168 = vector.extract_strided_slice %0 {offsets = [4, 0, 0], sizes = [1, 16, 28], strides = [1, 1, 1]} : vector<8x16x28xbf16> to vector<1x16x28xbf16>
    %169 = vector.shape_cast %168 : vector<1x16x28xbf16> to vector<16x28xbf16>
    %170 = vector.extract_strided_slice %1 {offsets = [2, 1, 0, 0], sizes = [1, 1, 28, 384], strides = [1, 1, 1, 1]} : vector<5x2x28x384xbf16> to vector<1x1x28x384xbf16>
    %171 = vector.shape_cast %170 : vector<1x1x28x384xbf16> to vector<28x384xbf16>
    %cst_41 = arith.constant dense<0.000000e+00> : vector<16x384xf32>
    %172 = tpu.matmul %169, %171, %cst_41 {dimension_numbers = #tpu.dot_dimension_numbers<[1], [0], [0], [1], [0, 0, 1, 1], [], []>} : vector<16x28xbf16>, vector<28x384xbf16>, vector<16x384xf32> -> vector<16x384xf32>
    %173 = arith.addf %167, %172 : vector<16x384xf32>
    %174 = vector.extract_strided_slice %0 {offsets = [5, 0, 0], sizes = [1, 16, 28], strides = [1, 1, 1]} : vector<8x16x28xbf16> to vector<1x16x28xbf16>
    %175 = vector.shape_cast %174 : vector<1x16x28xbf16> to vector<16x28xbf16>
    %176 = vector.extract_strided_slice %1 {offsets = [3, 1, 0, 0], sizes = [1, 1, 28, 384], strides = [1, 1, 1, 1]} : vector<5x2x28x384xbf16> to vector<1x1x28x384xbf16>
    %177 = vector.shape_cast %176 : vector<1x1x28x384xbf16> to vector<28x384xbf16>
    %cst_42 = arith.constant dense<0.000000e+00> : vector<16x384xf32>
    %178 = tpu.matmul %175, %177, %cst_42 {dimension_numbers = #tpu.dot_dimension_numbers<[1], [0], [0], [1], [0, 0, 1, 1], [], []>} : vector<16x28xbf16>, vector<28x384xbf16>, vector<16x384xf32> -> vector<16x384xf32>
    %179 = arith.addf %173, %178 : vector<16x384xf32>
    %180 = vector.extract_strided_slice %0 {offsets = [6, 0, 0], sizes = [1, 16, 28], strides = [1, 1, 1]} : vector<8x16x28xbf16> to vector<1x16x28xbf16>
    %181 = vector.shape_cast %180 : vector<1x16x28xbf16> to vector<16x28xbf16>
    %182 = vector.extract_strided_slice %1 {offsets = [4, 1, 0, 0], sizes = [1, 1, 28, 384], strides = [1, 1, 1, 1]} : vector<5x2x28x384xbf16> to vector<1x1x28x384xbf16>
    %183 = vector.shape_cast %182 : vector<1x1x28x384xbf16> to vector<28x384xbf16>
    %cst_43 = arith.constant dense<0.000000e+00> : vector<16x384xf32>
    %184 = tpu.matmul %181, %183, %cst_43 {dimension_numbers = #tpu.dot_dimension_numbers<[1], [0], [0], [1], [0, 0, 1, 1], [], []>} : vector<16x28xbf16>, vector<28x384xbf16>, vector<16x384xf32> -> vector<16x384xf32>
    %185 = arith.addf %179, %184 : vector<16x384xf32>
    %186 = arith.maximumf %156, %185 : vector<16x384xf32>
    %187 = vector.extract_strided_slice %0 {offsets = [3, 0, 0], sizes = [1, 16, 28], strides = [1, 1, 1]} : vector<8x16x28xbf16> to vector<1x16x28xbf16>
    %188 = vector.shape_cast %187 : vector<1x16x28xbf16> to vector<16x28xbf16>
    %189 = vector.extract_strided_slice %1 {offsets = [0, 0, 0, 0], sizes = [1, 1, 28, 384], strides = [1, 1, 1, 1]} : vector<5x2x28x384xbf16> to vector<1x1x28x384xbf16>
    %190 = vector.shape_cast %189 : vector<1x1x28x384xbf16> to vector<28x384xbf16>
    %cst_44 = arith.constant dense<0.000000e+00> : vector<16x384xf32>
    %191 = tpu.matmul %188, %190, %cst_44 {dimension_numbers = #tpu.dot_dimension_numbers<[1], [0], [0], [1], [0, 0, 1, 1], [], []>} : vector<16x28xbf16>, vector<28x384xbf16>, vector<16x384xf32> -> vector<16x384xf32>
    %192 = vector.extract_strided_slice %0 {offsets = [4, 0, 0], sizes = [1, 16, 28], strides = [1, 1, 1]} : vector<8x16x28xbf16> to vector<1x16x28xbf16>
    %193 = vector.shape_cast %192 : vector<1x16x28xbf16> to vector<16x28xbf16>
    %194 = vector.extract_strided_slice %1 {offsets = [1, 0, 0, 0], sizes = [1, 1, 28, 384], strides = [1, 1, 1, 1]} : vector<5x2x28x384xbf16> to vector<1x1x28x384xbf16>
    %195 = vector.shape_cast %194 : vector<1x1x28x384xbf16> to vector<28x384xbf16>
    %cst_45 = arith.constant dense<0.000000e+00> : vector<16x384xf32>
    %196 = tpu.matmul %193, %195, %cst_45 {dimension_numbers = #tpu.dot_dimension_numbers<[1], [0], [0], [1], [0, 0, 1, 1], [], []>} : vector<16x28xbf16>, vector<28x384xbf16>, vector<16x384xf32> -> vector<16x384xf32>
    %197 = arith.addf %191, %196 : vector<16x384xf32>
    %198 = vector.extract_strided_slice %0 {offsets = [5, 0, 0], sizes = [1, 16, 28], strides = [1, 1, 1]} : vector<8x16x28xbf16> to vector<1x16x28xbf16>
    %199 = vector.shape_cast %198 : vector<1x16x28xbf16> to vector<16x28xbf16>
    %200 = vector.extract_strided_slice %1 {offsets = [2, 0, 0, 0], sizes = [1, 1, 28, 384], strides = [1, 1, 1, 1]} : vector<5x2x28x384xbf16> to vector<1x1x28x384xbf16>
    %201 = vector.shape_cast %200 : vector<1x1x28x384xbf16> to vector<28x384xbf16>
    %cst_46 = arith.constant dense<0.000000e+00> : vector<16x384xf32>
    %202 = tpu.matmul %199, %201, %cst_46 {dimension_numbers = #tpu.dot_dimension_numbers<[1], [0], [0], [1], [0, 0, 1, 1], [], []>} : vector<16x28xbf16>, vector<28x384xbf16>, vector<16x384xf32> -> vector<16x384xf32>
    %203 = arith.addf %197, %202 : vector<16x384xf32>
    %204 = vector.extract_strided_slice %0 {offsets = [6, 0, 0], sizes = [1, 16, 28], strides = [1, 1, 1]} : vector<8x16x28xbf16> to vector<1x16x28xbf16>
    %205 = vector.shape_cast %204 : vector<1x16x28xbf16> to vector<16x28xbf16>
    %206 = vector.extract_strided_slice %1 {offsets = [3, 0, 0, 0], sizes = [1, 1, 28, 384], strides = [1, 1, 1, 1]} : vector<5x2x28x384xbf16> to vector<1x1x28x384xbf16>
    %207 = vector.shape_cast %206 : vector<1x1x28x384xbf16> to vector<28x384xbf16>
    %cst_47 = arith.constant dense<0.000000e+00> : vector<16x384xf32>
    %208 = tpu.matmul %205, %207, %cst_47 {dimension_numbers = #tpu.dot_dimension_numbers<[1], [0], [0], [1], [0, 0, 1, 1], [], []>} : vector<16x28xbf16>, vector<28x384xbf16>, vector<16x384xf32> -> vector<16x384xf32>
    %209 = arith.addf %203, %208 : vector<16x384xf32>
    %210 = vector.extract_strided_slice %0 {offsets = [7, 0, 0], sizes = [1, 16, 28], strides = [1, 1, 1]} : vector<8x16x28xbf16> to vector<1x16x28xbf16>
    %211 = vector.shape_cast %210 : vector<1x16x28xbf16> to vector<16x28xbf16>
    %212 = vector.extract_strided_slice %1 {offsets = [4, 0, 0, 0], sizes = [1, 1, 28, 384], strides = [1, 1, 1, 1]} : vector<5x2x28x384xbf16> to vector<1x1x28x384xbf16>
    %213 = vector.shape_cast %212 : vector<1x1x28x384xbf16> to vector<28x384xbf16>
    %cst_48 = arith.constant dense<0.000000e+00> : vector<16x384xf32>
    %214 = tpu.matmul %211, %213, %cst_48 {dimension_numbers = #tpu.dot_dimension_numbers<[1], [0], [0], [1], [0, 0, 1, 1], [], []>} : vector<16x28xbf16>, vector<28x384xbf16>, vector<16x384xf32> -> vector<16x384xf32>
    %215 = arith.addf %209, %214 : vector<16x384xf32>
    %216 = arith.maximumf %186, %215 : vector<16x384xf32>
    %217 = vector.extract_strided_slice %0 {offsets = [3, 0, 0], sizes = [1, 16, 28], strides = [1, 1, 1]} : vector<8x16x28xbf16> to vector<1x16x28xbf16>
    %218 = vector.shape_cast %217 : vector<1x16x28xbf16> to vector<16x28xbf16>
    %219 = vector.extract_strided_slice %1 {offsets = [0, 1, 0, 0], sizes = [1, 1, 28, 384], strides = [1, 1, 1, 1]} : vector<5x2x28x384xbf16> to vector<1x1x28x384xbf16>
    %220 = vector.shape_cast %219 : vector<1x1x28x384xbf16> to vector<28x384xbf16>
    %cst_49 = arith.constant dense<0.000000e+00> : vector<16x384xf32>
    %221 = tpu.matmul %218, %220, %cst_49 {dimension_numbers = #tpu.dot_dimension_numbers<[1], [0], [0], [1], [0, 0, 1, 1], [], []>} : vector<16x28xbf16>, vector<28x384xbf16>, vector<16x384xf32> -> vector<16x384xf32>
    %222 = vector.extract_strided_slice %0 {offsets = [4, 0, 0], sizes = [1, 16, 28], strides = [1, 1, 1]} : vector<8x16x28xbf16> to vector<1x16x28xbf16>
    %223 = vector.shape_cast %222 : vector<1x16x28xbf16> to vector<16x28xbf16>
    %224 = vector.extract_strided_slice %1 {offsets = [1, 1, 0, 0], sizes = [1, 1, 28, 384], strides = [1, 1, 1, 1]} : vector<5x2x28x384xbf16> to vector<1x1x28x384xbf16>
    %225 = vector.shape_cast %224 : vector<1x1x28x384xbf16> to vector<28x384xbf16>
    %cst_50 = arith.constant dense<0.000000e+00> : vector<16x384xf32>
    %226 = tpu.matmul %223, %225, %cst_50 {dimension_numbers = #tpu.dot_dimension_numbers<[1], [0], [0], [1], [0, 0, 1, 1], [], []>} : vector<16x28xbf16>, vector<28x384xbf16>, vector<16x384xf32> -> vector<16x384xf32>
    %227 = arith.addf %221, %226 : vector<16x384xf32>
    %228 = vector.extract_strided_slice %0 {offsets = [5, 0, 0], sizes = [1, 16, 28], strides = [1, 1, 1]} : vector<8x16x28xbf16> to vector<1x16x28xbf16>
    %229 = vector.shape_cast %228 : vector<1x16x28xbf16> to vector<16x28xbf16>
    %230 = vector.extract_strided_slice %1 {offsets = [2, 1, 0, 0], sizes = [1, 1, 28, 384], strides = [1, 1, 1, 1]} : vector<5x2x28x384xbf16> to vector<1x1x28x384xbf16>
    %231 = vector.shape_cast %230 : vector<1x1x28x384xbf16> to vector<28x384xbf16>
    %cst_51 = arith.constant dense<0.000000e+00> : vector<16x384xf32>
    %232 = tpu.matmul %229, %231, %cst_51 {dimension_numbers = #tpu.dot_dimension_numbers<[1], [0], [0], [1], [0, 0, 1, 1], [], []>} : vector<16x28xbf16>, vector<28x384xbf16>, vector<16x384xf32> -> vector<16x384xf32>
    %233 = arith.addf %227, %232 : vector<16x384xf32>
    %234 = vector.extract_strided_slice %0 {offsets = [6, 0, 0], sizes = [1, 16, 28], strides = [1, 1, 1]} : vector<8x16x28xbf16> to vector<1x16x28xbf16>
    %235 = vector.shape_cast %234 : vector<1x16x28xbf16> to vector<16x28xbf16>
    %236 = vector.extract_strided_slice %1 {offsets = [3, 1, 0, 0], sizes = [1, 1, 28, 384], strides = [1, 1, 1, 1]} : vector<5x2x28x384xbf16> to vector<1x1x28x384xbf16>
    %237 = vector.shape_cast %236 : vector<1x1x28x384xbf16> to vector<28x384xbf16>
    %cst_52 = arith.constant dense<0.000000e+00> : vector<16x384xf32>
    %238 = tpu.matmul %235, %237, %cst_52 {dimension_numbers = #tpu.dot_dimension_numbers<[1], [0], [0], [1], [0, 0, 1, 1], [], []>} : vector<16x28xbf16>, vector<28x384xbf16>, vector<16x384xf32> -> vector<16x384xf32>
    %239 = arith.addf %233, %238 : vector<16x384xf32>
    %240 = vector.extract_strided_slice %0 {offsets = [7, 0, 0], sizes = [1, 16, 28], strides = [1, 1, 1]} : vector<8x16x28xbf16> to vector<1x16x28xbf16>
    %241 = vector.shape_cast %240 : vector<1x16x28xbf16> to vector<16x28xbf16>
    %242 = vector.extract_strided_slice %1 {offsets = [4, 1, 0, 0], sizes = [1, 1, 28, 384], strides = [1, 1, 1, 1]} : vector<5x2x28x384xbf16> to vector<1x1x28x384xbf16>
    %243 = vector.shape_cast %242 : vector<1x1x28x384xbf16> to vector<28x384xbf16>
    %cst_53 = arith.constant dense<0.000000e+00> : vector<16x384xf32>
    %244 = tpu.matmul %241, %243, %cst_53 {dimension_numbers = #tpu.dot_dimension_numbers<[1], [0], [0], [1], [0, 0, 1, 1], [], []>} : vector<16x28xbf16>, vector<28x384xbf16>, vector<16x384xf32> -> vector<16x384xf32>
    %245 = arith.addf %239, %244 : vector<16x384xf32>
    %246 = arith.maximumf %216, %245 : vector<16x384xf32>
    %247 = vector.broadcast %3 : vector<1x384xf32> to vector<16x384xf32>
    %248 = arith.addf %246, %247 : vector<16x384xf32>
    %cst_54 = arith.constant 0.000000e+00 : f32
    %249 = vector.broadcast %cst_54 : f32 to vector<16x384xf32>
    %250 = arith.maximumf %248, %249 : vector<16x384xf32>
    %251 = arith.truncf %127 : vector<16x384xf32> to vector<16x384xbf16>
    %252 = arith.truncf %250 : vector<16x384xf32> to vector<16x384xbf16>
    %253 = vector.extract_strided_slice %127 {offsets = [1, 0], sizes = [15, 384], strides = [1, 1]} : vector<16x384xf32> to vector<15x384xf32>
    %254 = vector.extract_strided_slice %127 {offsets = [0, 0], sizes = [1, 384], strides = [1, 1]} : vector<16x384xf32> to vector<1x384xf32>
    %255 = tpu.concatenate %253, %254 in 0 : vector<15x384xf32>, vector<1x384xf32> -> vector<16x384xf32>
    %256 = arith.truncf %255 : vector<16x384xf32> to vector<16x384xbf16>
    %257 = vector.extract_strided_slice %250 {offsets = [1, 0], sizes = [15, 384], strides = [1, 1]} : vector<16x384xf32> to vector<15x384xf32>
    %258 = vector.extract_strided_slice %250 {offsets = [0, 0], sizes = [1, 384], strides = [1, 1]} : vector<16x384xf32> to vector<1x384xf32>
    %259 = tpu.concatenate %257, %258 in 0 : vector<15x384xf32>, vector<1x384xf32> -> vector<16x384xf32>
    %260 = arith.truncf %259 : vector<16x384xf32> to vector<16x384xbf16>
    %261 = vector.extract_strided_slice %127 {offsets = [2, 0], sizes = [14, 384], strides = [1, 1]} : vector<16x384xf32> to vector<14x384xf32>
    %262 = vector.extract_strided_slice %127 {offsets = [0, 0], sizes = [2, 384], strides = [1, 1]} : vector<16x384xf32> to vector<2x384xf32>
    %263 = tpu.concatenate %261, %262 in 0 : vector<14x384xf32>, vector<2x384xf32> -> vector<16x384xf32>
    %264 = arith.truncf %263 : vector<16x384xf32> to vector<16x384xbf16>
    %265 = vector.extract_strided_slice %250 {offsets = [2, 0], sizes = [14, 384], strides = [1, 1]} : vector<16x384xf32> to vector<14x384xf32>
    %266 = vector.extract_strided_slice %250 {offsets = [0, 0], sizes = [2, 384], strides = [1, 1]} : vector<16x384xf32> to vector<2x384xf32>
    %267 = tpu.concatenate %265, %266 in 0 : vector<14x384xf32>, vector<2x384xf32> -> vector<16x384xf32>
    %268 = arith.truncf %267 : vector<16x384xf32> to vector<16x384xbf16>
    %269 = vector.extract_strided_slice %2 {offsets = [0, 0, 0, 0], sizes = [1, 1, 384, 256], strides = [1, 1, 1, 1]} : vector<5x2x384x256xbf16> to vector<1x1x384x256xbf16>
    %270 = vector.shape_cast %269 : vector<1x1x384x256xbf16> to vector<384x256xbf16>
    %cst_55 = arith.constant dense<0.000000e+00> : vector<16x256xf32>
    %271 = tpu.matmul %251, %270, %cst_55 {dimension_numbers = #tpu.dot_dimension_numbers<[1], [0], [0], [1], [0, 0, 1, 1], [], []>} : vector<16x384xbf16>, vector<384x256xbf16>, vector<16x256xf32> -> vector<16x256xf32>
    %272 = vector.extract_strided_slice %2 {offsets = [1, 0, 0, 0], sizes = [1, 1, 384, 256], strides = [1, 1, 1, 1]} : vector<5x2x384x256xbf16> to vector<1x1x384x256xbf16>
    %273 = vector.shape_cast %272 : vector<1x1x384x256xbf16> to vector<384x256xbf16>
    %cst_56 = arith.constant dense<0.000000e+00> : vector<16x256xf32>
    %274 = tpu.matmul %252, %273, %cst_56 {dimension_numbers = #tpu.dot_dimension_numbers<[1], [0], [0], [1], [0, 0, 1, 1], [], []>} : vector<16x384xbf16>, vector<384x256xbf16>, vector<16x256xf32> -> vector<16x256xf32>
    %275 = arith.addf %271, %274 : vector<16x256xf32>
    %276 = vector.extract_strided_slice %2 {offsets = [2, 0, 0, 0], sizes = [1, 1, 384, 256], strides = [1, 1, 1, 1]} : vector<5x2x384x256xbf16> to vector<1x1x384x256xbf16>
    %277 = vector.shape_cast %276 : vector<1x1x384x256xbf16> to vector<384x256xbf16>
    %cst_57 = arith.constant dense<0.000000e+00> : vector<16x256xf32>
    %278 = tpu.matmul %256, %277, %cst_57 {dimension_numbers = #tpu.dot_dimension_numbers<[1], [0], [0], [1], [0, 0, 1, 1], [], []>} : vector<16x384xbf16>, vector<384x256xbf16>, vector<16x256xf32> -> vector<16x256xf32>
    %279 = arith.addf %275, %278 : vector<16x256xf32>
    %280 = vector.extract_strided_slice %2 {offsets = [3, 0, 0, 0], sizes = [1, 1, 384, 256], strides = [1, 1, 1, 1]} : vector<5x2x384x256xbf16> to vector<1x1x384x256xbf16>
    %281 = vector.shape_cast %280 : vector<1x1x384x256xbf16> to vector<384x256xbf16>
    %cst_58 = arith.constant dense<0.000000e+00> : vector<16x256xf32>
    %282 = tpu.matmul %260, %281, %cst_58 {dimension_numbers = #tpu.dot_dimension_numbers<[1], [0], [0], [1], [0, 0, 1, 1], [], []>} : vector<16x384xbf16>, vector<384x256xbf16>, vector<16x256xf32> -> vector<16x256xf32>
    %283 = arith.addf %279, %282 : vector<16x256xf32>
    %284 = vector.extract_strided_slice %2 {offsets = [4, 0, 0, 0], sizes = [1, 1, 384, 256], strides = [1, 1, 1, 1]} : vector<5x2x384x256xbf16> to vector<1x1x384x256xbf16>
    %285 = vector.shape_cast %284 : vector<1x1x384x256xbf16> to vector<384x256xbf16>
    %cst_59 = arith.constant dense<0.000000e+00> : vector<16x256xf32>
    %286 = tpu.matmul %264, %285, %cst_59 {dimension_numbers = #tpu.dot_dimension_numbers<[1], [0], [0], [1], [0, 0, 1, 1], [], []>} : vector<16x384xbf16>, vector<384x256xbf16>, vector<16x256xf32> -> vector<16x256xf32>
    %287 = arith.addf %283, %286 : vector<16x256xf32>
    %288 = vector.extract_strided_slice %2 {offsets = [0, 1, 0, 0], sizes = [1, 1, 384, 256], strides = [1, 1, 1, 1]} : vector<5x2x384x256xbf16> to vector<1x1x384x256xbf16>
    %289 = vector.shape_cast %288 : vector<1x1x384x256xbf16> to vector<384x256xbf16>
    %cst_60 = arith.constant dense<0.000000e+00> : vector<16x256xf32>
    %290 = tpu.matmul %251, %289, %cst_60 {dimension_numbers = #tpu.dot_dimension_numbers<[1], [0], [0], [1], [0, 0, 1, 1], [], []>} : vector<16x384xbf16>, vector<384x256xbf16>, vector<16x256xf32> -> vector<16x256xf32>
    %291 = vector.extract_strided_slice %2 {offsets = [1, 1, 0, 0], sizes = [1, 1, 384, 256], strides = [1, 1, 1, 1]} : vector<5x2x384x256xbf16> to vector<1x1x384x256xbf16>
    %292 = vector.shape_cast %291 : vector<1x1x384x256xbf16> to vector<384x256xbf16>
    %cst_61 = arith.constant dense<0.000000e+00> : vector<16x256xf32>
    %293 = tpu.matmul %252, %292, %cst_61 {dimension_numbers = #tpu.dot_dimension_numbers<[1], [0], [0], [1], [0, 0, 1, 1], [], []>} : vector<16x384xbf16>, vector<384x256xbf16>, vector<16x256xf32> -> vector<16x256xf32>
    %294 = arith.addf %290, %293 : vector<16x256xf32>
    %295 = vector.extract_strided_slice %2 {offsets = [2, 1, 0, 0], sizes = [1, 1, 384, 256], strides = [1, 1, 1, 1]} : vector<5x2x384x256xbf16> to vector<1x1x384x256xbf16>
    %296 = vector.shape_cast %295 : vector<1x1x384x256xbf16> to vector<384x256xbf16>
    %cst_62 = arith.constant dense<0.000000e+00> : vector<16x256xf32>
    %297 = tpu.matmul %256, %296, %cst_62 {dimension_numbers = #tpu.dot_dimension_numbers<[1], [0], [0], [1], [0, 0, 1, 1], [], []>} : vector<16x384xbf16>, vector<384x256xbf16>, vector<16x256xf32> -> vector<16x256xf32>
    %298 = arith.addf %294, %297 : vector<16x256xf32>
    %299 = vector.extract_strided_slice %2 {offsets = [3, 1, 0, 0], sizes = [1, 1, 384, 256], strides = [1, 1, 1, 1]} : vector<5x2x384x256xbf16> to vector<1x1x384x256xbf16>
    %300 = vector.shape_cast %299 : vector<1x1x384x256xbf16> to vector<384x256xbf16>
    %cst_63 = arith.constant dense<0.000000e+00> : vector<16x256xf32>
    %301 = tpu.matmul %260, %300, %cst_63 {dimension_numbers = #tpu.dot_dimension_numbers<[1], [0], [0], [1], [0, 0, 1, 1], [], []>} : vector<16x384xbf16>, vector<384x256xbf16>, vector<16x256xf32> -> vector<16x256xf32>
    %302 = arith.addf %298, %301 : vector<16x256xf32>
    %303 = vector.extract_strided_slice %2 {offsets = [4, 1, 0, 0], sizes = [1, 1, 384, 256], strides = [1, 1, 1, 1]} : vector<5x2x384x256xbf16> to vector<1x1x384x256xbf16>
    %304 = vector.shape_cast %303 : vector<1x1x384x256xbf16> to vector<384x256xbf16>
    %cst_64 = arith.constant dense<0.000000e+00> : vector<16x256xf32>
    %305 = tpu.matmul %264, %304, %cst_64 {dimension_numbers = #tpu.dot_dimension_numbers<[1], [0], [0], [1], [0, 0, 1, 1], [], []>} : vector<16x384xbf16>, vector<384x256xbf16>, vector<16x256xf32> -> vector<16x256xf32>
    %306 = arith.addf %302, %305 : vector<16x256xf32>
    %307 = arith.maximumf %287, %306 : vector<16x256xf32>
    %308 = vector.extract_strided_slice %2 {offsets = [0, 0, 0, 0], sizes = [1, 1, 384, 256], strides = [1, 1, 1, 1]} : vector<5x2x384x256xbf16> to vector<1x1x384x256xbf16>
    %309 = vector.shape_cast %308 : vector<1x1x384x256xbf16> to vector<384x256xbf16>
    %cst_65 = arith.constant dense<0.000000e+00> : vector<16x256xf32>
    %310 = tpu.matmul %252, %309, %cst_65 {dimension_numbers = #tpu.dot_dimension_numbers<[1], [0], [0], [1], [0, 0, 1, 1], [], []>} : vector<16x384xbf16>, vector<384x256xbf16>, vector<16x256xf32> -> vector<16x256xf32>
    %311 = vector.extract_strided_slice %2 {offsets = [1, 0, 0, 0], sizes = [1, 1, 384, 256], strides = [1, 1, 1, 1]} : vector<5x2x384x256xbf16> to vector<1x1x384x256xbf16>
    %312 = vector.shape_cast %311 : vector<1x1x384x256xbf16> to vector<384x256xbf16>
    %cst_66 = arith.constant dense<0.000000e+00> : vector<16x256xf32>
    %313 = tpu.matmul %256, %312, %cst_66 {dimension_numbers = #tpu.dot_dimension_numbers<[1], [0], [0], [1], [0, 0, 1, 1], [], []>} : vector<16x384xbf16>, vector<384x256xbf16>, vector<16x256xf32> -> vector<16x256xf32>
    %314 = arith.addf %310, %313 : vector<16x256xf32>
    %315 = vector.extract_strided_slice %2 {offsets = [2, 0, 0, 0], sizes = [1, 1, 384, 256], strides = [1, 1, 1, 1]} : vector<5x2x384x256xbf16> to vector<1x1x384x256xbf16>
    %316 = vector.shape_cast %315 : vector<1x1x384x256xbf16> to vector<384x256xbf16>
    %cst_67 = arith.constant dense<0.000000e+00> : vector<16x256xf32>
    %317 = tpu.matmul %260, %316, %cst_67 {dimension_numbers = #tpu.dot_dimension_numbers<[1], [0], [0], [1], [0, 0, 1, 1], [], []>} : vector<16x384xbf16>, vector<384x256xbf16>, vector<16x256xf32> -> vector<16x256xf32>
    %318 = arith.addf %314, %317 : vector<16x256xf32>
    %319 = vector.extract_strided_slice %2 {offsets = [3, 0, 0, 0], sizes = [1, 1, 384, 256], strides = [1, 1, 1, 1]} : vector<5x2x384x256xbf16> to vector<1x1x384x256xbf16>
    %320 = vector.shape_cast %319 : vector<1x1x384x256xbf16> to vector<384x256xbf16>
    %cst_68 = arith.constant dense<0.000000e+00> : vector<16x256xf32>
    %321 = tpu.matmul %264, %320, %cst_68 {dimension_numbers = #tpu.dot_dimension_numbers<[1], [0], [0], [1], [0, 0, 1, 1], [], []>} : vector<16x384xbf16>, vector<384x256xbf16>, vector<16x256xf32> -> vector<16x256xf32>
    %322 = arith.addf %318, %321 : vector<16x256xf32>
    %323 = vector.extract_strided_slice %2 {offsets = [4, 0, 0, 0], sizes = [1, 1, 384, 256], strides = [1, 1, 1, 1]} : vector<5x2x384x256xbf16> to vector<1x1x384x256xbf16>
    %324 = vector.shape_cast %323 : vector<1x1x384x256xbf16> to vector<384x256xbf16>
    %cst_69 = arith.constant dense<0.000000e+00> : vector<16x256xf32>
    %325 = tpu.matmul %268, %324, %cst_69 {dimension_numbers = #tpu.dot_dimension_numbers<[1], [0], [0], [1], [0, 0, 1, 1], [], []>} : vector<16x384xbf16>, vector<384x256xbf16>, vector<16x256xf32> -> vector<16x256xf32>
    %326 = arith.addf %322, %325 : vector<16x256xf32>
    %327 = arith.maximumf %307, %326 : vector<16x256xf32>
    %328 = vector.extract_strided_slice %2 {offsets = [0, 1, 0, 0], sizes = [1, 1, 384, 256], strides = [1, 1, 1, 1]} : vector<5x2x384x256xbf16> to vector<1x1x384x256xbf16>
    %329 = vector.shape_cast %328 : vector<1x1x384x256xbf16> to vector<384x256xbf16>
    %cst_70 = arith.constant dense<0.000000e+00> : vector<16x256xf32>
    %330 = tpu.matmul %252, %329, %cst_70 {dimension_numbers = #tpu.dot_dimension_numbers<[1], [0], [0], [1], [0, 0, 1, 1], [], []>} : vector<16x384xbf16>, vector<384x256xbf16>, vector<16x256xf32> -> vector<16x256xf32>
    %331 = vector.extract_strided_slice %2 {offsets = [1, 1, 0, 0], sizes = [1, 1, 384, 256], strides = [1, 1, 1, 1]} : vector<5x2x384x256xbf16> to vector<1x1x384x256xbf16>
    %332 = vector.shape_cast %331 : vector<1x1x384x256xbf16> to vector<384x256xbf16>
    %cst_71 = arith.constant dense<0.000000e+00> : vector<16x256xf32>
    %333 = tpu.matmul %256, %332, %cst_71 {dimension_numbers = #tpu.dot_dimension_numbers<[1], [0], [0], [1], [0, 0, 1, 1], [], []>} : vector<16x384xbf16>, vector<384x256xbf16>, vector<16x256xf32> -> vector<16x256xf32>
    %334 = arith.addf %330, %333 : vector<16x256xf32>
    %335 = vector.extract_strided_slice %2 {offsets = [2, 1, 0, 0], sizes = [1, 1, 384, 256], strides = [1, 1, 1, 1]} : vector<5x2x384x256xbf16> to vector<1x1x384x256xbf16>
    %336 = vector.shape_cast %335 : vector<1x1x384x256xbf16> to vector<384x256xbf16>
    %cst_72 = arith.constant dense<0.000000e+00> : vector<16x256xf32>
    %337 = tpu.matmul %260, %336, %cst_72 {dimension_numbers = #tpu.dot_dimension_numbers<[1], [0], [0], [1], [0, 0, 1, 1], [], []>} : vector<16x384xbf16>, vector<384x256xbf16>, vector<16x256xf32> -> vector<16x256xf32>
    %338 = arith.addf %334, %337 : vector<16x256xf32>
    %339 = vector.extract_strided_slice %2 {offsets = [3, 1, 0, 0], sizes = [1, 1, 384, 256], strides = [1, 1, 1, 1]} : vector<5x2x384x256xbf16> to vector<1x1x384x256xbf16>
    %340 = vector.shape_cast %339 : vector<1x1x384x256xbf16> to vector<384x256xbf16>
    %cst_73 = arith.constant dense<0.000000e+00> : vector<16x256xf32>
    %341 = tpu.matmul %264, %340, %cst_73 {dimension_numbers = #tpu.dot_dimension_numbers<[1], [0], [0], [1], [0, 0, 1, 1], [], []>} : vector<16x384xbf16>, vector<384x256xbf16>, vector<16x256xf32> -> vector<16x256xf32>
    %342 = arith.addf %338, %341 : vector<16x256xf32>
    %343 = vector.extract_strided_slice %2 {offsets = [4, 1, 0, 0], sizes = [1, 1, 384, 256], strides = [1, 1, 1, 1]} : vector<5x2x384x256xbf16> to vector<1x1x384x256xbf16>
    %344 = vector.shape_cast %343 : vector<1x1x384x256xbf16> to vector<384x256xbf16>
    %cst_74 = arith.constant dense<0.000000e+00> : vector<16x256xf32>
    %345 = tpu.matmul %268, %344, %cst_74 {dimension_numbers = #tpu.dot_dimension_numbers<[1], [0], [0], [1], [0, 0, 1, 1], [], []>} : vector<16x384xbf16>, vector<384x256xbf16>, vector<16x256xf32> -> vector<16x256xf32>
    %346 = arith.addf %342, %345 : vector<16x256xf32>
    %347 = arith.maximumf %327, %346 : vector<16x256xf32>
    %348 = vector.broadcast %4 : vector<1x256xf32> to vector<16x256xf32>
    %349 = arith.addf %347, %348 : vector<16x256xf32>
    %cst_75 = arith.constant 0.000000e+00 : f32
    %350 = vector.broadcast %cst_75 : f32 to vector<16x256xf32>
    %351 = arith.maximumf %349, %350 : vector<16x256xf32>
    %352 = arith.truncf %351 : vector<16x256xf32> to vector<16x256xbf16>
    %c0_76 = arith.constant 0 : index
    %c0_77 = arith.constant 0 : index
    %353 = vector.load %arg6[%c0_76, %c0_77] : memref<16x256xbf16, #tpu.memory_space<vmem>>, vector<16x256xbf16>
    tpu.vector_store %arg6[%c0_76, %c0_77], %352 {strides = array<i32>} : memref<16x256xbf16, #tpu.memory_space<vmem>>, vector<16x256xbf16>,
    return
  }
  func.func @transform_0(%arg0: i32) -> (i32, i32, i32) {
    %c0_i32 = arith.constant 0 : i32
    %c0_i32_0 = arith.constant 0 : i32
    %c0_i32_1 = arith.constant 0 : i32
    return %c0_i32, %arg0, %c0_i32_0 : i32, i32, i32
  }
  func.func @transform_1(%arg0: i32) -> (i32, i32, i32, i32) {
    %c0_i32 = arith.constant 0 : i32
    %c0_i32_0 = arith.constant 0 : i32
    %c0_i32_1 = arith.constant 0 : i32
    %c0_i32_2 = arith.constant 0 : i32
    %c0_i32_3 = arith.constant 0 : i32
    return %c0_i32, %c0_i32_0, %c0_i32_1, %c0_i32_2 : i32, i32, i32, i32
  }
  func.func @transform_2(%arg0: i32) -> (i32, i32) {
    %c0_i32 = arith.constant 0 : i32
    %c0_i32_0 = arith.constant 0 : i32
    %c0_i32_1 = arith.constant 0 : i32
    return %c0_i32, %c0_i32_0 : i32, i32
  }
  func.func @transform_3(%arg0: i32) -> (i32, i32, i32, i32) {
    %c0_i32 = arith.constant 0 : i32
    %c0_i32_0 = arith.constant 0 : i32
    %c0_i32_1 = arith.constant 0 : i32
    %c0_i32_2 = arith.constant 0 : i32
    %c0_i32_3 = arith.constant 0 : i32
    return %c0_i32, %c0_i32_0, %c0_i32_1, %c0_i32_2 : i32, i32, i32, i32
  }
  func.func @transform_4(%arg0: i32) -> (i32, i32) {
    %c0_i32 = arith.constant 0 : i32
    %c0_i32_0 = arith.constant 0 : i32
    %c0_i32_1 = arith.constant 0 : i32
    return %c0_i32, %c0_i32_0 : i32, i32
  }
  func.func @transform_5(%arg0: i32) -> (i32, i32) {
    %c0_i32 = arith.constant 0 : i32
    %c0_i32_0 = arith.constant 0 : i32
    return %arg0, %c0_i32 : i32, i32
  }
}

module attributes {stable_mosaic.version = 11 : i64} {
  func.func @_fc_fused_kernel(%arg0: i32, %arg1: memref<16x1024xbf16, #tpu.memory_space<vmem>>, %arg2: memref<1024x512xbf16, #tpu.memory_space<vmem>>, %arg3: memref<1x512xf32, #tpu.memory_space<vmem>>, %arg4: memref<512x128xbf16, #tpu.memory_space<vmem>>, %arg5: memref<1x128xf32, #tpu.memory_space<vmem>>, %arg6: memref<16x128xf32, #tpu.memory_space<vmem>>) attributes {dimension_semantics = [#tpu.dimension_semantics<parallel>], iteration_bounds = array<i64: 1>, scalar_prefetch = 0 : i64, scratch_operands = 0 : i64, tpu.core_type = #tpu.core_type<tc>, window_params = [{transform_indices = @transform_0, window_bounds = array<i64: 16, 1024>}, {pipeline_mode = #tpu.pipeline_mode<synchronous>, transform_indices = @transform_1, window_bounds = array<i64: 1024, 512>}, {pipeline_mode = #tpu.pipeline_mode<synchronous>, transform_indices = @transform_2, window_bounds = array<i64: 1, 512>}, {pipeline_mode = #tpu.pipeline_mode<synchronous>, transform_indices = @transform_3, window_bounds = array<i64: 512, 128>}, {pipeline_mode = #tpu.pipeline_mode<synchronous>, transform_indices = @transform_4, window_bounds = array<i64: 1, 128>}, {transform_indices = @transform_5, window_bounds = array<i64: 16, 128>}]} {
    %c0 = arith.constant 0 : index
    %c0_0 = arith.constant 0 : index
    %0 = vector.load %arg1[%c0, %c0_0] : memref<16x1024xbf16, #tpu.memory_space<vmem>>, vector<16x1024xbf16>
    %c0_1 = arith.constant 0 : index
    %c0_2 = arith.constant 0 : index
    %1 = vector.load %arg2[%c0_1, %c0_2] : memref<1024x512xbf16, #tpu.memory_space<vmem>>, vector<1024x512xbf16>
    %cst = arith.constant dense<0.000000e+00> : vector<16x512xf32>
    %2 = tpu.matmul %0, %1, %cst {dimension_numbers = #tpu.dot_dimension_numbers<[1], [0], [0], [1], [0, 0, 1, 1], [], []>} : vector<16x1024xbf16>, vector<1024x512xbf16>, vector<16x512xf32> -> vector<16x512xf32>
    %c0_3 = arith.constant 0 : index
    %c0_4 = arith.constant 0 : index
    %3 = vector.load %arg3[%c0_3, %c0_4] : memref<1x512xf32, #tpu.memory_space<vmem>>, vector<1x512xf32>
    %4 = vector.broadcast %3 : vector<1x512xf32> to vector<16x512xf32>
    %5 = arith.addf %2, %4 : vector<16x512xf32>
    %cst_5 = arith.constant 0.000000e+00 : f32
    %6 = vector.broadcast %cst_5 : f32 to vector<16x512xf32>
    %7 = arith.maximumf %5, %6 : vector<16x512xf32>
    %8 = arith.truncf %7 : vector<16x512xf32> to vector<16x512xbf16>
    %c0_6 = arith.constant 0 : index
    %c0_7 = arith.constant 0 : index
    %9 = vector.load %arg4[%c0_6, %c0_7] : memref<512x128xbf16, #tpu.memory_space<vmem>>, vector<512x128xbf16>
    %cst_8 = arith.constant dense<0.000000e+00> : vector<16x128xf32>
    %10 = tpu.matmul %8, %9, %cst_8 {dimension_numbers = #tpu.dot_dimension_numbers<[1], [0], [0], [1], [0, 0, 1, 1], [], []>} : vector<16x512xbf16>, vector<512x128xbf16>, vector<16x128xf32> -> vector<16x128xf32>
    %c0_9 = arith.constant 0 : index
    %c0_10 = arith.constant 0 : index
    %11 = vector.load %arg5[%c0_9, %c0_10] : memref<1x128xf32, #tpu.memory_space<vmem>>, vector<1x128xf32>
    %12 = vector.broadcast %11 : vector<1x128xf32> to vector<16x128xf32>
    %13 = arith.addf %10, %12 : vector<16x128xf32>
    %cst_11 = arith.constant dense<0xFF800000> : vector<16xf32>
    %14 = vector.multi_reduction <maximumf>, %13, %cst_11 [1] : vector<16x128xf32> to vector<16xf32>
    %15 = vector.shape_cast %14 : vector<16xf32> to vector<16x1xf32>
    %16 = vector.broadcast %15 : vector<16x1xf32> to vector<16x128xf32>
    %17 = arith.subf %13, %16 : vector<16x128xf32>
    %18 = math.exp %17 : vector<16x128xf32>
    %cst_12 = arith.constant dense<0.000000e+00> : vector<16xf32>
    %19 = vector.multi_reduction <add>, %18, %cst_12 [1] : vector<16x128xf32> to vector<16xf32>
    %20 = vector.shape_cast %19 : vector<16xf32> to vector<16x1xf32>
    %21 = math.log %20 : vector<16x1xf32>
    %22 = vector.broadcast %21 : vector<16x1xf32> to vector<16x128xf32>
    %23 = arith.subf %17, %22 : vector<16x128xf32>
    %c0_13 = arith.constant 0 : index
    %c0_14 = arith.constant 0 : index
    %24 = vector.load %arg6[%c0_13, %c0_14] : memref<16x128xf32, #tpu.memory_space<vmem>>, vector<16x128xf32>
    tpu.vector_store %arg6[%c0_13, %c0_14], %23 {strides = array<i32>} : memref<16x128xf32, #tpu.memory_space<vmem>>, vector<16x128xf32>,
    return
  }
  func.func @transform_0(%arg0: i32) -> (i32, i32) {
    %c0_i32 = arith.constant 0 : i32
    %c0_i32_0 = arith.constant 0 : i32
    return %arg0, %c0_i32 : i32, i32
  }
  func.func @transform_1(%arg0: i32) -> (i32, i32) {
    %c0_i32 = arith.constant 0 : i32
    %c0_i32_0 = arith.constant 0 : i32
    %c0_i32_1 = arith.constant 0 : i32
    return %c0_i32, %c0_i32_0 : i32, i32
  }
  func.func @transform_2(%arg0: i32) -> (i32, i32) {
    %c0_i32 = arith.constant 0 : i32
    %c0_i32_0 = arith.constant 0 : i32
    %c0_i32_1 = arith.constant 0 : i32
    return %c0_i32, %c0_i32_0 : i32, i32
  }
  func.func @transform_3(%arg0: i32) -> (i32, i32) {
    %c0_i32 = arith.constant 0 : i32
    %c0_i32_0 = arith.constant 0 : i32
    %c0_i32_1 = arith.constant 0 : i32
    return %c0_i32, %c0_i32_0 : i32, i32
  }
  func.func @transform_4(%arg0: i32) -> (i32, i32) {
    %c0_i32 = arith.constant 0 : i32
    %c0_i32_0 = arith.constant 0 : i32
    %c0_i32_1 = arith.constant 0 : i32
    return %c0_i32, %c0_i32_0 : i32, i32
  }
  func.func @transform_5(%arg0: i32) -> (i32, i32) {
    %c0_i32 = arith.constant 0 : i32
    %c0_i32_0 = arith.constant 0 : i32
    return %arg0, %c0_i32 : i32, i32
  }
}

</mosaic_0001>

<llo_original>
// kernel: _lambda_.3
$region0: #{_lambda_.3}
  #allocation0 [shape = 'u32[]', space=smem, size = 0x4, offset = 0x4, fixed_abs, tag = 'smem constant byte address 0x4 - core index']
  #allocation1 [shape = 'u32[72,128]{1,0:T(1,128)}', space=vmem, size = 0x9000, scoped, tag = 'internal scratch']
  %s0 = inlined_call_operand.vmem [shape: bf16[16,1024], index: 0, kind: input, shape index: {}]
  %s1 = inlined_call_operand.hbm [shape: bf16[1024,512], index: 1, kind: input, shape index: {}]
  %s2 = inlined_call_operand.hbm [shape: f32[1,512], index: 2, kind: input, shape index: {}]
  %s3 = inlined_call_operand.hbm [shape: bf16[512,128], index: 3, kind: input, shape index: {}]
  %s4 = inlined_call_operand.hbm [shape: f32[1,128], index: 4, kind: input, shape index: {}]
  %s5 = inlined_call_operand.vmem [shape: f32[16,128], index: 5, kind: output, shape index: {}]
  %s6 = sld [smem:[#allocation0]]
  $region46: #{_lambda_.3} parent=0
    _
  %s8 = ssub.s32 1, %s6
  %s9 = scalar_select 0, %s8, %s6
  $region1: #{_lambda_.3} parent=0
    #allocation2 [shape = 'u8[1048576]{0}', space=vmem, size = 0x100000, scoped, tag = 'input window, operand 1, single buffered']
    #allocation3 [shape = 's32[1]{0}', space=sflag, size = 0x4, scoped, tag = 'scoped memory for _lambda_.3']
    #allocation4 [shape = 'u8[2048]{0}', space=vmem, size = 0x800, scoped, tag = 'input window, operand 2, single buffered']
    #allocation5 [shape = 's32[1]{0}', space=sflag, size = 0x4, scoped, tag = 'scoped memory for _lambda_.3']
    #allocation6 [shape = 'u8[131072]{0}', space=vmem, size = 0x20000, scoped, tag = 'input window, operand 3, single buffered']
    #allocation7 [shape = 'u8[512]{0}', space=vmem, size = 0x400, scoped, tag = 'input window, operand 4, single buffered']
    #allocation8 [shape = 's32[1]{0}', space=sflag, size = 0x4, scoped, tag = 'scoped memory for _lambda_.3']
    %10 = vsyncpa [#allocation3], 0
    %11 = vsyncpa [#allocation5], 0
    %12 = vsyncpa [#allocation8], 0
    // Predicated region
    $region2: #{_lambda_.3} parent=1 // pred_check
      _
    $region3: #{_lambda_.3} parent=1 // pred_check_branch
      %14 = sbr.rel (0) target = $region5
    $region4: #{_lambda_.3} parent=1 // pred_region
      _
    $region5: #{_lambda_.3} parent=1 // pred_fallthru
      _
    // Predicated region
    $region6: #{_lambda_.3} parent=1 // pred_check
      _
    $region7: #{_lambda_.3} parent=1 // pred_check_branch
      %16 = sbr.rel (0) target = $region9
    $region8: #{_lambda_.3} parent=1 // pred_region
      %18 = vsyncadd [#allocation3], 0
      %s19 = sshll.u32 %s1, 4
      %s20 = int_to_ptr.hbm [resolvable:$true] %s19
      %s21 = sshll.u32 [#allocation2], 4
      %s22 = int_to_ptr.vmem [resolvable:$true] %s21
      %27 = dma.hbm_to_vmem [thread:$0]  %s20, 32768, %s22, [#allocation3], 256, 256, 16
    $region9: #{_lambda_.3} parent=1 // pred_fallthru
      _
    // Predicated region
    $region10: #{_lambda_.3} parent=1 // pred_check
      _
    $region11: #{_lambda_.3} parent=1 // pred_check_branch
      %29 = sbr.rel (0) target = $region13
    $region12: #{_lambda_.3} parent=1 // pred_region
      %31 = vsyncadd [#allocation5], 0
      %s33 = sshll.u32 %s2, 4
      %s34 = int_to_ptr.hbm [resolvable:$true] %s33
      %s35 = sshll.u32 [#allocation4], 4
      %s36 = int_to_ptr.vmem [resolvable:$true] %s35
      %38 = dma.hbm_to_vmem [thread:$0]  %s34, 64, %s36, [#allocation5]
    $region13: #{_lambda_.3} parent=1 // pred_fallthru
      _
    // Predicated region
    $region14: #{_lambda_.3} parent=1 // pred_check
      _
    $region15: #{_lambda_.3} parent=1 // pred_check_branch
      %40 = sbr.rel (0) target = $region17
    $region16: #{_lambda_.3} parent=1 // pred_region
      %42 = vsyncadd [#allocation5], 0
      %s43 = sshll.u32 %s3, 4
      %s44 = int_to_ptr.hbm [resolvable:$true] %s43
      %s45 = sshll.u32 [#allocation6], 4
      %s46 = int_to_ptr.vmem [resolvable:$true] %s45
      %51 = dma.hbm_to_vmem [thread:$0]  %s44, 4096, %s46, [#allocation5], 64, 64, 4
    $region17: #{_lambda_.3} parent=1 // pred_fallthru
      _
    // Predicated region
    $region18: #{_lambda_.3} parent=1 // pred_check
      _
    $region19: #{_lambda_.3} parent=1 // pred_check_branch
      %53 = sbr.rel (0) target = $region21
    $region20: #{_lambda_.3} parent=1 // pred_region
      %55 = vsyncadd [#allocation8], 0
      %s57 = sshll.u32 %s4, 4
      %s58 = int_to_ptr.hbm [resolvable:$true] %s57
      %s59 = sshll.u32 [#allocation7], 4
      %s60 = int_to_ptr.vmem [resolvable:$true] %s59
      %62 = dma.hbm_to_vmem [thread:$0]  %s58, 16, %s60, [#allocation8]
    $region21: #{_lambda_.3} parent=1 // pred_fallthru
      _
    // Predicated region
    $region22: #{_lambda_.3} parent=1 // pred_check
      _
    $region23: #{_lambda_.3} parent=1 // pred_check_branch
      %64 = sbr.rel (0) target = $region25
    $region24: #{_lambda_.3} parent=1 // pred_region
      %66 = dma.done [#allocation3], 32768
    $region25: #{_lambda_.3} parent=1 // pred_fallthru
      _
    // Predicated region
    $region26: #{_lambda_.3} parent=1 // pred_check
      _
    $region27: #{_lambda_.3} parent=1 // pred_check_branch
      %68 = sbr.rel (0) target = $region29
    $region28: #{_lambda_.3} parent=1 // pred_region
      %70 = dma.done [#allocation5], 64
    $region29: #{_lambda_.3} parent=1 // pred_fallthru
      _
    // Predicated region
    $region30: #{_lambda_.3} parent=1 // pred_check
      _
    $region31: #{_lambda_.3} parent=1 // pred_check_branch
      %72 = sbr.rel (0) target = $region33
    $region32: #{_lambda_.3} parent=1 // pred_region
      %74 = dma.done [#allocation5], 4096
    $region33: #{_lambda_.3} parent=1 // pred_fallthru
      _
    // Predicated region
    $region34: #{_lambda_.3} parent=1 // pred_check
      _
    $region35: #{_lambda_.3} parent=1 // pred_check_branch
      %76 = sbr.rel (0) target = $region37
    $region36: #{_lambda_.3} parent=1 // pred_region
      %78 = dma.done [#allocation8], 16
    $region37: #{_lambda_.3} parent=1 // pred_fallthru
      _
    %v79 = vld [vmem:[%s0] sm:$0xff]
    %v80 = vld [vmem:[%s0 + $0x8] sm:$0xff]
    %v81 = vld [vmem:[%s0 + $0x10] sm:$0xff]
    %v82 = vld [vmem:[%s0 + $0x18] sm:$0xff]
    %v83 = vld [vmem:[%s0 + $0x20] sm:$0xff]
    %v84 = vld [vmem:[%s0 + $0x28] sm:$0xff]
    %v85 = vld [vmem:[%s0 + $0x30] sm:$0xff]
    %v86 = vld [vmem:[%s0 + $0x38] sm:$0xff]
    %v87 = vld [vmem:[#allocation2] sm:$0xff]
    %v88 = vld [vmem:[#allocation2 + $0x8] sm:$0xff]
    %v89 = vld [vmem:[#allocation2 + $0x10] sm:$0xff]
    %v90 = vld [vmem:[#allocation2 + $0x18] sm:$0xff]
    %v91 = vld [vmem:[#allocation2 + $0x20] sm:$0xff]
    %v92 = vld [vmem:[#allocation2 + $0x28] sm:$0xff]
    %v93 = vld [vmem:[#allocation2 + $0x30] sm:$0xff]
    %v94 = vld [vmem:[#allocation2 + $0x38] sm:$0xff]
    %v95 = vld [vmem:[#allocation2 + $0x40] sm:$0xff]
    %v96 = vld [vmem:[#allocation2 + $0x48] sm:$0xff]
    %v97 = vld [vmem:[#allocation2 + $0x50] sm:$0xff]
    %v98 = vld [vmem:[#allocation2 + $0x58] sm:$0xff]
    %v99 = vld [vmem:[#allocation2 + $0x60] sm:$0xff]
    %v100 = vld [vmem:[#allocation2 + $0x68] sm:$0xff]
    %v101 = vld [vmem:[#allocation2 + $0x70] sm:$0xff]
    %v102 = vld [vmem:[#allocation2 + $0x78] sm:$0xff]
    %v103 = vld [vmem:[#allocation2 + $0x80] sm:$0xff]
    %v104 = vld [vmem:[#allocation2 + $0x88] sm:$0xff]
    %v105 = vld [vmem:[#allocation2 + $0x90] sm:$0xff]
    %v106 = vld [vmem:[#allocation2 + $0x98] sm:$0xff]
    %v107 = vld [vmem:[#allocation2 + $0xa0] sm:$0xff]
    %v108 = vld [vmem:[#allocation2 + $0xa8] sm:$0xff]
    %v109 = vld [vmem:[#allocation2 + $0xb0] sm:$0xff]
    %v110 = vld [vmem:[#allocation2 + $0xb8] sm:$0xff]
    %v111 = vld [vmem:[#allocation2 + $0xc0] sm:$0xff]
    %v112 = vld [vmem:[#allocation2 + $0xc8] sm:$0xff]
    %v113 = vld [vmem:[#allocation2 + $0xd0] sm:$0xff]
    %v114 = vld [vmem:[#allocation2 + $0xd8] sm:$0xff]
    %v115 = vld [vmem:[#allocation2 + $0xe0] sm:$0xff]
    %v116 = vld [vmem:[#allocation2 + $0xe8] sm:$0xff]
    %v117 = vld [vmem:[#allocation2 + $0xf0] sm:$0xff]
    %v118 = vld [vmem:[#allocation2 + $0xf8] sm:$0xff]
    %v119 = vld [vmem:[#allocation2 + $0x100] sm:$0xff]
    %v120 = vld [vmem:[#allocation2 + $0x108] sm:$0xff]
    %v121 = vld [vmem:[#allocation2 + $0x110] sm:$0xff]
    %v122 = vld [vmem:[#allocation2 + $0x118] sm:$0xff]
    %v123 = vld [vmem:[#allocation2 + $0x120] sm:$0xff]
    %v124 = vld [vmem:[#allocation2 + $0x128] sm:$0xff]
    %v125 = vld [vmem:[#allocation2 + $0x130] sm:$0xff]
    %v126 = vld [vmem:[#allocation2 + $0x138] sm:$0xff]
    %v127 = vld [vmem:[#allocation2 + $0x140] sm:$0xff]
    %v128 = vld [vmem:[#allocation2 + $0x148] sm:$0xff]
    %v129 = vld [vmem:[#allocation2 + $0x150] sm:$0xff]
    %v130 = vld [vmem:[#allocation2 + $0x158] sm:$0xff]
    %v131 = vld [vmem:[#allocation2 + $0x160] sm:$0xff]
    %v132 = vld [vmem:[#allocation2 + $0x168] sm:$0xff]
    %v133 = vld [vmem:[#allocation2 + $0x170] sm:$0xff]
    %v134 = vld [vmem:[#allocation2 + $0x178] sm:$0xff]
    %v135 = vld [vmem:[#allocation2 + $0x180] sm:$0xff]
    %v136 = vld [vmem:[#allocation2 + $0x188] sm:$0xff]
    %v137 = vld [vmem:[#allocation2 + $0x190] sm:$0xff]
    %v138 = vld [vmem:[#allocation2 + $0x198] sm:$0xff]
    %v139 = vld [vmem:[#allocation2 + $0x1a0] sm:$0xff]
    %v140 = vld [vmem:[#allocation2 + $0x1a8] sm:$0xff]
    %v141 = vld [vmem:[#allocation2 + $0x1b0] sm:$0xff]
    %v142 = vld [vmem:[#allocation2 + $0x1b8] sm:$0xff]
    %v143 = vld [vmem:[#allocation2 + $0x1c0] sm:$0xff]
    %v144 = vld [vmem:[#allocation2 + $0x1c8] sm:$0xff]
    %v145 = vld [vmem:[#allocation2 + $0x1d0] sm:$0xff]
    %v146 = vld [vmem:[#allocation2 + $0x1d8] sm:$0xff]
    %v147 = vld [vmem:[#allocation2 + $0x1e0] sm:$0xff]
    %v148 = vld [vmem:[#allocation2 + $0x1e8] sm:$0xff]
    %v149 = vld [vmem:[#allocation2 + $0x1f0] sm:$0xff]
    %v150 = vld [vmem:[#allocation2 + $0x1f8] sm:$0xff]
    %v151 = vld [vmem:[#allocation2 + $0x200] sm:$0xff]
    %v152 = vld [vmem:[#allocation2 + $0x208] sm:$0xff]
    %v153 = vld [vmem:[#allocation2 + $0x210] sm:$0xff]
    %v154 = vld [vmem:[#allocation2 + $0x218] sm:$0xff]
    %v155 = vld [vmem:[#allocation2 + $0x220] sm:$0xff]
    %v156 = vld [vmem:[#allocation2 + $0x228] sm:$0xff]
    %v157 = vld [vmem:[#allocation2 + $0x230] sm:$0xff]
    %v158 = vld [vmem:[#allocation2 + $0x238] sm:$0xff]
    %v159 = vld [vmem:[#allocation2 + $0x240] sm:$0xff]
    %v160 = vld [vmem:[#allocation2 + $0x248] sm:$0xff]
    %v161 = vld [vmem:[#allocation2 + $0x250] sm:$0xff]
    %v162 = vld [vmem:[#allocation2 + $0x258] sm:$0xff]
    %v163 = vld [vmem:[#allocation2 + $0x260] sm:$0xff]
    %v164 = vld [vmem:[#allocation2 + $0x268] sm:$0xff]
    %v165 = vld [vmem:[#allocation2 + $0x270] sm:$0xff]
    %v166 = vld [vmem:[#allocation2 + $0x278] sm:$0xff]
    %v167 = vld [vmem:[#allocation2 + $0x280] sm:$0xff]
    %v168 = vld [vmem:[#allocation2 + $0x288] sm:$0xff]
    %v169 = vld [vmem:[#allocation2 + $0x290] sm:$0xff]
    %v170 = vld [vmem:[#allocation2 + $0x298] sm:$0xff]
    %v171 = vld [vmem:[#allocation2 + $0x2a0] sm:$0xff]
    %v172 = vld [vmem:[#allocation2 + $0x2a8] sm:$0xff]
    %v173 = vld [vmem:[#allocation2 + $0x2b0] sm:$0xff]
    %v174 = vld [vmem:[#allocation2 + $0x2b8] sm:$0xff]
    %v175 = vld [vmem:[#allocation2 + $0x2c0] sm:$0xff]
    %v176 = vld [vmem:[#allocation2 + $0x2c8] sm:$0xff]
    %v177 = vld [vmem:[#allocation2 + $0x2d0] sm:$0xff]
    %v178 = vld [vmem:[#allocation2 + $0x2d8] sm:$0xff]
    %v179 = vld [vmem:[#allocation2 + $0x2e0] sm:$0xff]
    %v180 = vld [vmem:[#allocation2 + $0x2e8] sm:$0xff]
    %v181 = vld [vmem:[#allocation2 + $0x2f0] sm:$0xff]
    %v182 = vld [vmem:[#allocation2 + $0x2f8] sm:$0xff]
    %v183 = vld [vmem:[#allocation2 + $0x300] sm:$0xff]
    %v184 = vld [vmem:[#allocation2 + $0x308] sm:$0xff]
    %v185 = vld [vmem:[#allocation2 + $0x310] sm:$0xff]
    %v186 = vld [vmem:[#allocation2 + $0x318] sm:$0xff]
    %v187 = vld [vmem:[#allocation2 + $0x320] sm:$0xff]
    %v188 = vld [vmem:[#allocation2 + $0x328] sm:$0xff]
    %v189 = vld [vmem:[#allocation2 + $0x330] sm:$0xff]
    %v190 = vld [vmem:[#allocation2 + $0x338] sm:$0xff]
    %v191 = vld [vmem:[#allocation2 + $0x340] sm:$0xff]
    %v192 = vld [vmem:[#allocation2 + $0x348] sm:$0xff]
    %v193 = vld [vmem:[#allocation2 + $0x350] sm:$0xff]
    %v194 = vld [vmem:[#allocation2 + $0x358] sm:$0xff]
    %v195 = vld [vmem:[#allocation2 + $0x360] sm:$0xff]
    %v196 = vld [vmem:[#allocation2 + $0x368] sm:$0xff]
    %v197 = vld [vmem:[#allocation2 + $0x370] sm:$0xff]
    %v198 = vld [vmem:[#allocation2 + $0x378] sm:$0xff]
    %v199 = vld [vmem:[#allocation2 + $0x380] sm:$0xff]
    %v200 = vld [vmem:[#allocation2 + $0x388] sm:$0xff]
    %v201 = vld [vmem:[#allocation2 + $0x390] sm:$0xff]
    %v202 = vld [vmem:[#allocation2 + $0x398] sm:$0xff]
    %v203 = vld [vmem:[#allocation2 + $0x3a0] sm:$0xff]
    %v204 = vld [vmem:[#allocation2 + $0x3a8] sm:$0xff]
    %v205 = vld [vmem:[#allocation2 + $0x3b0] sm:$0xff]
    %v206 = vld [vmem:[#allocation2 + $0x3b8] sm:$0xff]
    %v207 = vld [vmem:[#allocation2 + $0x3c0] sm:$0xff]
    %v208 = vld [vmem:[#allocation2 + $0x3c8] sm:$0xff]
    %v209 = vld [vmem:[#allocation2 + $0x3d0] sm:$0xff]
    %v210 = vld [vmem:[#allocation2 + $0x3d8] sm:$0xff]
    %v211 = vld [vmem:[#allocation2 + $0x3e0] sm:$0xff]
    %v212 = vld [vmem:[#allocation2 + $0x3e8] sm:$0xff]
    %v213 = vld [vmem:[#allocation2 + $0x3f0] sm:$0xff]
    %v214 = vld [vmem:[#allocation2 + $0x3f8] sm:$0xff]
    %v215 = vld [vmem:[#allocation2 + $0x400] sm:$0xff]
    %v216 = vld [vmem:[#allocation2 + $0x408] sm:$0xff]
    %v217 = vld [vmem:[#allocation2 + $0x410] sm:$0xff]
    %v218 = vld [vmem:[#allocation2 + $0x418] sm:$0xff]
    %v219 = vld [vmem:[#allocation2 + $0x420] sm:$0xff]
    %v220 = vld [vmem:[#allocation2 + $0x428] sm:$0xff]
    %v221 = vld [vmem:[#allocation2 + $0x430] sm:$0xff]
    %v222 = vld [vmem:[#allocation2 + $0x438] sm:$0xff]
    %v223 = vld [vmem:[#allocation2 + $0x440] sm:$0xff]
    %v224 = vld [vmem:[#allocation2 + $0x448] sm:$0xff]
    %v225 = vld [vmem:[#allocation2 + $0x450] sm:$0xff]
    %v226 = vld [vmem:[#allocation2 + $0x458] sm:$0xff]
    %v227 = vld [vmem:[#allocation2 + $0x460] sm:$0xff]
    %v228 = vld [vmem:[#allocation2 + $0x468] sm:$0xff]
    %v229 = vld [vmem:[#allocation2 + $0x470] sm:$0xff]
    %v230 = vld [vmem:[#allocation2 + $0x478] sm:$0xff]
    %v231 = vld [vmem:[#allocation2 + $0x480] sm:$0xff]
    %v232 = vld [vmem:[#allocation2 + $0x488] sm:$0xff]
    %v233 = vld [vmem:[#allocation2 + $0x490] sm:$0xff]
    %v234 = vld [vmem:[#allocation2 + $0x498] sm:$0xff]
    %v235 = vld [vmem:[#allocation2 + $0x4a0] sm:$0xff]
    %v236 = vld [vmem:[#allocation2 + $0x4a8] sm:$0xff]
    %v237 = vld [vmem:[#allocation2 + $0x4b0] sm:$0xff]
    %v238 = vld [vmem:[#allocation2 + $0x4b8] sm:$0xff]
    %v239 = vld [vmem:[#allocation2 + $0x4c0] sm:$0xff]
    %v240 = vld [vmem:[#allocation2 + $0x4c8] sm:$0xff]
    %v241 = vld [vmem:[#allocation2 + $0x4d0] sm:$0xff]
    %v242 = vld [vmem:[#allocation2 + $0x4d8] sm:$0xff]
    %v243 = vld [vmem:[#allocation2 + $0x4e0] sm:$0xff]
    %v244 = vld [vmem:[#allocation2 + $0x4e8] sm:$0xff]
    %v245 = vld [vmem:[#allocation2 + $0x4f0] sm:$0xff]
    %v246 = vld [vmem:[#allocation2 + $0x4f8] sm:$0xff]
    %v247 = vld [vmem:[#allocation2 + $0x500] sm:$0xff]
    %v248 = vld [vmem:[#allocation2 + $0x508] sm:$0xff]
    %v249 = vld [vmem:[#allocation2 + $0x510] sm:$0xff]
    %v250 = vld [vmem:[#allocation2 + $0x518] sm:$0xff]
    %v251 = vld [vmem:[#allocation2 + $0x520] sm:$0xff]
    %v252 = vld [vmem:[#allocation2 + $0x528] sm:$0xff]
    %v253 = vld [vmem:[#allocation2 + $0x530] sm:$0xff]
    %v254 = vld [vmem:[#allocation2 + $0x538] sm:$0xff]
    %v255 = vld [vmem:[#allocation2 + $0x540] sm:$0xff]
    %v256 = vld [vmem:[#allocation2 + $0x548] sm:$0xff]
    %v257 = vld [vmem:[#allocation2 + $0x550] sm:$0xff]
    %v258 = vld [vmem:[#allocation2 + $0x558] sm:$0xff]
    %v259 = vld [vmem:[#allocation2 + $0x560] sm:$0xff]
    %v260 = vld [vmem:[#allocation2 + $0x568] sm:$0xff]
    %v261 = vld [vmem:[#allocation2 + $0x570] sm:$0xff]
    %v262 = vld [vmem:[#allocation2 + $0x578] sm:$0xff]
    %v263 = vld [vmem:[#allocation2 + $0x580] sm:$0xff]
    %v264 = vld [vmem:[#allocation2 + $0x588] sm:$0xff]
    %v265 = vld [vmem:[#allocation2 + $0x590] sm:$0xff]
    %v266 = vld [vmem:[#allocation2 + $0x598] sm:$0xff]
    %v267 = vld [vmem:[#allocation2 + $0x5a0] sm:$0xff]
    %v268 = vld [vmem:[#allocation2 + $0x5a8] sm:$0xff]
    %v269 = vld [vmem:[#allocation2 + $0x5b0] sm:$0xff]
    %v270 = vld [vmem:[#allocation2 + $0x5b8] sm:$0xff]
    %v271 = vld [vmem:[#allocation2 + $0x5c0] sm:$0xff]
    %v272 = vld [vmem:[#allocation2 + $0x5c8] sm:$0xff]
    %v273 = vld [vmem:[#allocation2 + $0x5d0] sm:$0xff]
    %v274 = vld [vmem:[#allocation2 + $0x5d8] sm:$0xff]
    %v275 = vld [vmem:[#allocation2 + $0x5e0] sm:$0xff]
    %v276 = vld [vmem:[#allocation2 + $0x5e8] sm:$0xff]
    %v277 = vld [vmem:[#allocation2 + $0x5f0] sm:$0xff]
    %v278 = vld [vmem:[#allocation2 + $0x5f8] sm:$0xff]
    %v279 = vld [vmem:[#allocation2 + $0x600] sm:$0xff]
    %v280 = vld [vmem:[#allocation2 + $0x608] sm:$0xff]
    %v281 = vld [vmem:[#allocation2 + $0x610] sm:$0xff]
    %v282 = vld [vmem:[#allocation2 + $0x618] sm:$0xff]
    %v283 = vld [vmem:[#allocation2 + $0x620] sm:$0xff]
    %v284 = vld [vmem:[#allocation2 + $0x628] sm:$0xff]
    %v285 = vld [vmem:[#allocation2 + $0x630] sm:$0xff]
    %v286 = vld [vmem:[#allocation2 + $0x638] sm:$0xff]
    %v287 = vld [vmem:[#allocation2 + $0x640] sm:$0xff]
    %v288 = vld [vmem:[#allocation2 + $0x648] sm:$0xff]
    %v289 = vld [vmem:[#allocation2 + $0x650] sm:$0xff]
    %v290 = vld [vmem:[#allocation2 + $0x658] sm:$0xff]
    %v291 = vld [vmem:[#allocation2 + $0x660] sm:$0xff]
    %v292 = vld [vmem:[#allocation2 + $0x668] sm:$0xff]
    %v293 = vld [vmem:[#allocation2 + $0x670] sm:$0xff]
    %v294 = vld [vmem:[#allocation2 + $0x678] sm:$0xff]
    %v295 = vld [vmem:[#allocation2 + $0x680] sm:$0xff]
    %v296 = vld [vmem:[#allocation2 + $0x688] sm:$0xff]
    %v297 = vld [vmem:[#allocation2 + $0x690] sm:$0xff]
    %v298 = vld [vmem:[#allocation2 + $0x698] sm:$0xff]
    %v299 = vld [vmem:[#allocation2 + $0x6a0] sm:$0xff]
    %v300 = vld [vmem:[#allocation2 + $0x6a8] sm:$0xff]
    %v301 = vld [vmem:[#allocation2 + $0x6b0] sm:$0xff]
    %v302 = vld [vmem:[#allocation2 + $0x6b8] sm:$0xff]
    %v303 = vld [vmem:[#allocation2 + $0x6c0] sm:$0xff]
    %v304 = vld [vmem:[#allocation2 + $0x6c8] sm:$0xff]
    %v305 = vld [vmem:[#allocation2 + $0x6d0] sm:$0xff]
    %v306 = vld [vmem:[#allocation2 + $0x6d8] sm:$0xff]
    %v307 = vld [vmem:[#allocation2 + $0x6e0] sm:$0xff]
    %v308 = vld [vmem:[#allocation2 + $0x6e8] sm:$0xff]
    %v309 = vld [vmem:[#allocation2 + $0x6f0] sm:$0xff]
    %v310 = vld [vmem:[#allocation2 + $0x6f8] sm:$0xff]
    %v311 = vld [vmem:[#allocation2 + $0x700] sm:$0xff]
    %v312 = vld [vmem:[#allocation2 + $0x708] sm:$0xff]
    %v313 = vld [vmem:[#allocation2 + $0x710] sm:$0xff]
    %v314 = vld [vmem:[#allocation2 + $0x718] sm:$0xff]
    %v315 = vld [vmem:[#allocation2 + $0x720] sm:$0xff]
    %v316 = vld [vmem:[#allocation2 + $0x728] sm:$0xff]
    %v317 = vld [vmem:[#allocation2 + $0x730] sm:$0xff]
    %v318 = vld [vmem:[#allocation2 + $0x738] sm:$0xff]
    %v319 = vld [vmem:[#allocation2 + $0x740] sm:$0xff]
    %v320 = vld [vmem:[#allocation2 + $0x748] sm:$0xff]
    %v321 = vld [vmem:[#allocation2 + $0x750] sm:$0xff]
    %v322 = vld [vmem:[#allocation2 + $0x758] sm:$0xff]
    %v323 = vld [vmem:[#allocation2 + $0x760] sm:$0xff]
    %v324 = vld [vmem:[#allocation2 + $0x768] sm:$0xff]
    %v325 = vld [vmem:[#allocation2 + $0x770] sm:$0xff]
    %v326 = vld [vmem:[#allocation2 + $0x778] sm:$0xff]
    %v327 = vld [vmem:[#allocation2 + $0x780] sm:$0xff]
    %v328 = vld [vmem:[#allocation2 + $0x788] sm:$0xff]
    %v329 = vld [vmem:[#allocation2 + $0x790] sm:$0xff]
    %v330 = vld [vmem:[#allocation2 + $0x798] sm:$0xff]
    %v331 = vld [vmem:[#allocation2 + $0x7a0] sm:$0xff]
    %v332 = vld [vmem:[#allocation2 + $0x7a8] sm:$0xff]
    %v333 = vld [vmem:[#allocation2 + $0x7b0] sm:$0xff]
    %v334 = vld [vmem:[#allocation2 + $0x7b8] sm:$0xff]
    %v335 = vld [vmem:[#allocation2 + $0x7c0] sm:$0xff]
    %v336 = vld [vmem:[#allocation2 + $0x7c8] sm:$0xff]
    %v337 = vld [vmem:[#allocation2 + $0x7d0] sm:$0xff]
    %v338 = vld [vmem:[#allocation2 + $0x7d8] sm:$0xff]
    %v339 = vld [vmem:[#allocation2 + $0x7e0] sm:$0xff]
    %v340 = vld [vmem:[#allocation2 + $0x7e8] sm:$0xff]
    %v341 = vld [vmem:[#allocation2 + $0x7f0] sm:$0xff]
    %v342 = vld [vmem:[#allocation2 + $0x7f8] sm:$0xff]
    %v343 = vld [vmem:[#allocation4] sm:$0xf]
    %v345 = vperm.slane %v343, 0
    %v346 = vperm.slane %v343, 1
    %v347 = vperm.slane %v343, 2
    %v348 = vperm.slane %v343, 3
    %v361 = vunpack.c.l.b16 %v79
    %v362 = vunpack.c.h.b16 %v79
    %v363 = vunpack.c.l.b16 %v80
    %v364 = vunpack.c.h.b16 %v80
    %v365 = vunpack.c.l.b16 %v81
    %v366 = vunpack.c.h.b16 %v81
    %v367 = vunpack.c.l.b16 %v82
    %v368 = vunpack.c.h.b16 %v82
    %v369 = vunpack.c.l.b16 %v83
    %v370 = vunpack.c.h.b16 %v83
    %v371 = vunpack.c.l.b16 %v84
    %v372 = vunpack.c.h.b16 %v84
    %v373 = vunpack.c.l.b16 %v85
    %v374 = vunpack.c.h.b16 %v85
    %v375 = vunpack.c.l.b16 %v86
    %v376 = vunpack.c.h.b16 %v86
    %v377 = vpack.c.b16 %v369, %v361
    %v378 = vpack.c.b16 %v370, %v362
    %v379 = vpack.c.b16 %v371, %v363
    %v380 = vpack.c.b16 %v372, %v364
    %v381 = vpack.c.b16 %v373, %v365
    %v382 = vpack.c.b16 %v374, %v366
    %v383 = vpack.c.b16 %v375, %v367
    %v384 = vpack.c.b16 %v376, %v368
    %v649 = vunpack.c.l.b16 %v87
    %v650 = vunpack.c.h.b16 %v87
    %v651 = vunpack.c.l.b16 %v88
    %v652 = vunpack.c.h.b16 %v88
    %v653 = vunpack.c.l.b16 %v89
    %v654 = vunpack.c.h.b16 %v89
    %v655 = vunpack.c.l.b16 %v90
    %v656 = vunpack.c.h.b16 %v90
    %v657 = vunpack.c.l.b16 %v91
    %v658 = vunpack.c.h.b16 %v91
    %v659 = vunpack.c.l.b16 %v92
    %v660 = vunpack.c.h.b16 %v92
    %v661 = vunpack.c.l.b16 %v93
    %v662 = vunpack.c.h.b16 %v93
    %v663 = vunpack.c.l.b16 %v94
    %v664 = vunpack.c.h.b16 %v94
    %v665 = vunpack.c.l.b16 %v95
    %v666 = vunpack.c.h.b16 %v95
    %v667 = vunpack.c.l.b16 %v96
    %v668 = vunpack.c.h.b16 %v96
    %v669 = vunpack.c.l.b16 %v97
    %v670 = vunpack.c.h.b16 %v97
    %v671 = vunpack.c.l.b16 %v98
    %v672 = vunpack.c.h.b16 %v98
    %v673 = vunpack.c.l.b16 %v99
    %v674 = vunpack.c.h.b16 %v99
    %v675 = vunpack.c.l.b16 %v100
    %v676 = vunpack.c.h.b16 %v100
    %v677 = vunpack.c.l.b16 %v101
    %v678 = vunpack.c.h.b16 %v101
    %v679 = vunpack.c.l.b16 %v102
    %v680 = vunpack.c.h.b16 %v102
    %v681 = vunpack.c.l.b16 %v103
    %v682 = vunpack.c.h.b16 %v103
    %v683 = vunpack.c.l.b16 %v104
    %v684 = vunpack.c.h.b16 %v104
    %v685 = vunpack.c.l.b16 %v105
    %v686 = vunpack.c.h.b16 %v105
    %v687 = vunpack.c.l.b16 %v106
    %v688 = vunpack.c.h.b16 %v106
    %v689 = vunpack.c.l.b16 %v107
    %v690 = vunpack.c.h.b16 %v107
    %v691 = vunpack.c.l.b16 %v108
    %v692 = vunpack.c.h.b16 %v108
    %v693 = vunpack.c.l.b16 %v109
    %v694 = vunpack.c.h.b16 %v109
    %v695 = vunpack.c.l.b16 %v110
    %v696 = vunpack.c.h.b16 %v110
    %v697 = vunpack.c.l.b16 %v111
    %v698 = vunpack.c.h.b16 %v111
    %v699 = vunpack.c.l.b16 %v112
    %v700 = vunpack.c.h.b16 %v112
    %v701 = vunpack.c.l.b16 %v113
    %v702 = vunpack.c.h.b16 %v113
    %v703 = vunpack.c.l.b16 %v114
    %v704 = vunpack.c.h.b16 %v114
    %v705 = vunpack.c.l.b16 %v115
    %v706 = vunpack.c.h.b16 %v115
    %v707 = vunpack.c.l.b16 %v116
    %v708 = vunpack.c.h.b16 %v116
    %v709 = vunpack.c.l.b16 %v117
    %v710 = vunpack.c.h.b16 %v117
    %v711 = vunpack.c.l.b16 %v118
    %v712 = vunpack.c.h.b16 %v118
    %v713 = vunpack.c.l.b16 %v119
    %v714 = vunpack.c.h.b16 %v119
    %v715 = vunpack.c.l.b16 %v120
    %v716 = vunpack.c.h.b16 %v120
    %v717 = vunpack.c.l.b16 %v121
    %v718 = vunpack.c.h.b16 %v121
    %v719 = vunpack.c.l.b16 %v122
    %v720 = vunpack.c.h.b16 %v122
    %v721 = vunpack.c.l.b16 %v123
    %v722 = vunpack.c.h.b16 %v123
    %v723 = vunpack.c.l.b16 %v124
    %v724 = vunpack.c.h.b16 %v124
    %v725 = vunpack.c.l.b16 %v125
    %v726 = vunpack.c.h.b16 %v125
    %v727 = vunpack.c.l.b16 %v126
    %v728 = vunpack.c.h.b16 %v126
    %v729 = vunpack.c.l.b16 %v127
    %v730 = vunpack.c.h.b16 %v127
    %v731 = vunpack.c.l.b16 %v128
    %v732 = vunpack.c.h.b16 %v128
    %v733 = vunpack.c.l.b16 %v129
    %v734 = vunpack.c.h.b16 %v129
    %v735 = vunpack.c.l.b16 %v130
    %v736 = vunpack.c.h.b16 %v130
    %v737 = vunpack.c.l.b16 %v131
    %v738 = vunpack.c.h.b16 %v131
    %v739 = vunpack.c.l.b16 %v132
    %v740 = vunpack.c.h.b16 %v132
    %v741 = vunpack.c.l.b16 %v133
    %v742 = vunpack.c.h.b16 %v133
    %v743 = vunpack.c.l.b16 %v134
    %v744 = vunpack.c.h.b16 %v134
    %v745 = vunpack.c.l.b16 %v135
    %v746 = vunpack.c.h.b16 %v135
    %v747 = vunpack.c.l.b16 %v136
    %v748 = vunpack.c.h.b16 %v136
    %v749 = vunpack.c.l.b16 %v137
    %v750 = vunpack.c.h.b16 %v137
    %v751 = vunpack.c.l.b16 %v138
    %v752 = vunpack.c.h.b16 %v138
    %v753 = vunpack.c.l.b16 %v139
    %v754 = vunpack.c.h.b16 %v139
    %v755 = vunpack.c.l.b16 %v140
    %v756 = vunpack.c.h.b16 %v140
    %v757 = vunpack.c.l.b16 %v141
    %v758 = vunpack.c.h.b16 %v141
    %v759 = vunpack.c.l.b16 %v142
    %v760 = vunpack.c.h.b16 %v142
    %v761 = vunpack.c.l.b16 %v143
    %v762 = vunpack.c.h.b16 %v143
    %v763 = vunpack.c.l.b16 %v144
    %v764 = vunpack.c.h.b16 %v144
    %v765 = vunpack.c.l.b16 %v145
    %v766 = vunpack.c.h.b16 %v145
    %v767 = vunpack.c.l.b16 %v146
    %v768 = vunpack.c.h.b16 %v146
    %v769 = vunpack.c.l.b16 %v147
    %v770 = vunpack.c.h.b16 %v147
    %v771 = vunpack.c.l.b16 %v148
    %v772 = vunpack.c.h.b16 %v148
    %v773 = vunpack.c.l.b16 %v149
    %v774 = vunpack.c.h.b16 %v149
    %v775 = vunpack.c.l.b16 %v150
    %v776 = vunpack.c.h.b16 %v150
    %v777 = vunpack.c.l.b16 %v151
    %v778 = vunpack.c.h.b16 %v151
    %v779 = vunpack.c.l.b16 %v152
    %v780 = vunpack.c.h.b16 %v152
    %v781 = vunpack.c.l.b16 %v153
    %v782 = vunpack.c.h.b16 %v153
    %v783 = vunpack.c.l.b16 %v154
    %v784 = vunpack.c.h.b16 %v154
    %v785 = vunpack.c.l.b16 %v155
    %v786 = vunpack.c.h.b16 %v155
    %v787 = vunpack.c.l.b16 %v156
    %v788 = vunpack.c.h.b16 %v156
    %v789 = vunpack.c.l.b16 %v157
    %v790 = vunpack.c.h.b16 %v157
    %v791 = vunpack.c.l.b16 %v158
    %v792 = vunpack.c.h.b16 %v158
    %v793 = vunpack.c.l.b16 %v159
    %v794 = vunpack.c.h.b16 %v159
    %v795 = vunpack.c.l.b16 %v160
    %v796 = vunpack.c.h.b16 %v160
    %v797 = vunpack.c.l.b16 %v161
    %v798 = vunpack.c.h.b16 %v161
    %v799 = vunpack.c.l.b16 %v162
    %v800 = vunpack.c.h.b16 %v162
    %v801 = vunpack.c.l.b16 %v163
    %v802 = vunpack.c.h.b16 %v163
    %v803 = vunpack.c.l.b16 %v164
    %v804 = vunpack.c.h.b16 %v164
    %v805 = vunpack.c.l.b16 %v165
    %v806 = vunpack.c.h.b16 %v165
    %v807 = vunpack.c.l.b16 %v166
    %v808 = vunpack.c.h.b16 %v166
    %v809 = vunpack.c.l.b16 %v167
    %v810 = vunpack.c.h.b16 %v167
    %v811 = vunpack.c.l.b16 %v168
    %v812 = vunpack.c.h.b16 %v168
    %v813 = vunpack.c.l.b16 %v169
    %v814 = vunpack.c.h.b16 %v169
    %v815 = vunpack.c.l.b16 %v170
    %v816 = vunpack.c.h.b16 %v170
    %v817 = vunpack.c.l.b16 %v171
    %v818 = vunpack.c.h.b16 %v171
    %v819 = vunpack.c.l.b16 %v172
    %v820 = vunpack.c.h.b16 %v172
    %v821 = vunpack.c.l.b16 %v173
    %v822 = vunpack.c.h.b16 %v173
    %v823 = vunpack.c.l.b16 %v174
    %v824 = vunpack.c.h.b16 %v174
    %v825 = vunpack.c.l.b16 %v175
    %v826 = vunpack.c.h.b16 %v175
    %v827 = vunpack.c.l.b16 %v176
    %v828 = vunpack.c.h.b16 %v176
    %v829 = vunpack.c.l.b16 %v177
    %v830 = vunpack.c.h.b16 %v177
    %v831 = vunpack.c.l.b16 %v178
    %v832 = vunpack.c.h.b16 %v178
    %v833 = vunpack.c.l.b16 %v179
    %v834 = vunpack.c.h.b16 %v179
    %v835 = vunpack.c.l.b16 %v180
    %v836 = vunpack.c.h.b16 %v180
    %v837 = vunpack.c.l.b16 %v181
    %v838 = vunpack.c.h.b16 %v181
    %v839 = vunpack.c.l.b16 %v182
    %v840 = vunpack.c.h.b16 %v182
    %v841 = vunpack.c.l.b16 %v183
    %v842 = vunpack.c.h.b16 %v183
    %v843 = vunpack.c.l.b16 %v184
    %v844 = vunpack.c.h.b16 %v184
    %v845 = vunpack.c.l.b16 %v185
    %v846 = vunpack.c.h.b16 %v185
    %v847 = vunpack.c.l.b16 %v186
    %v848 = vunpack.c.h.b16 %v186
    %v849 = vunpack.c.l.b16 %v187
    %v850 = vunpack.c.h.b16 %v187
    %v851 = vunpack.c.l.b16 %v188
    %v852 = vunpack.c.h.b16 %v188
    %v853 = vunpack.c.l.b16 %v189
    %v854 = vunpack.c.h.b16 %v189
    %v855 = vunpack.c.l.b16 %v190
    %v856 = vunpack.c.h.b16 %v190
    %v857 = vunpack.c.l.b16 %v191
    %v858 = vunpack.c.h.b16 %v191
    %v859 = vunpack.c.l.b16 %v192
    %v860 = vunpack.c.h.b16 %v192
    %v861 = vunpack.c.l.b16 %v193
    %v862 = vunpack.c.h.b16 %v193
    %v863 = vunpack.c.l.b16 %v194
    %v864 = vunpack.c.h.b16 %v194
    %v865 = vunpack.c.l.b16 %v195
    %v866 = vunpack.c.h.b16 %v195
    %v867 = vunpack.c.l.b16 %v196
    %v868 = vunpack.c.h.b16 %v196
    %v869 = vunpack.c.l.b16 %v197
    %v870 = vunpack.c.h.b16 %v197
    %v871 = vunpack.c.l.b16 %v198
    %v872 = vunpack.c.h.b16 %v198
    %v873 = vunpack.c.l.b16 %v199
    %v874 = vunpack.c.h.b16 %v199
    %v875 = vunpack.c.l.b16 %v200
    %v876 = vunpack.c.h.b16 %v200
    %v877 = vunpack.c.l.b16 %v201
    %v878 = vunpack.c.h.b16 %v201
    %v879 = vunpack.c.l.b16 %v202
    %v880 = vunpack.c.h.b16 %v202
    %v881 = vunpack.c.l.b16 %v203
    %v882 = vunpack.c.h.b16 %v203
    %v883 = vunpack.c.l.b16 %v204
    %v884 = vunpack.c.h.b16 %v204
    %v885 = vunpack.c.l.b16 %v205
    %v886 = vunpack.c.h.b16 %v205
    %v887 = vunpack.c.l.b16 %v206
    %v888 = vunpack.c.h.b16 %v206
    %v889 = vunpack.c.l.b16 %v207
    %v890 = vunpack.c.h.b16 %v207
    %v891 = vunpack.c.l.b16 %v208
    %v892 = vunpack.c.h.b16 %v208
    %v893 = vunpack.c.l.b16 %v209
    %v894 = vunpack.c.h.b16 %v209
    %v895 = vunpack.c.l.b16 %v210
    %v896 = vunpack.c.h.b16 %v210
    %v897 = vunpack.c.l.b16 %v211
    %v898 = vunpack.c.h.b16 %v211
    %v899 = vunpack.c.l.b16 %v212
    %v900 = vunpack.c.h.b16 %v212
    %v901 = vunpack.c.l.b16 %v213
    %v902 = vunpack.c.h.b16 %v213
    %v903 = vunpack.c.l.b16 %v214
    %v904 = vunpack.c.h.b16 %v214
    %v905 = vunpack.c.l.b16 %v215
    %v906 = vunpack.c.h.b16 %v215
    %v907 = vunpack.c.l.b16 %v216
    %v908 = vunpack.c.h.b16 %v216
    %v909 = vunpack.c.l.b16 %v217
    %v910 = vunpack.c.h.b16 %v217
    %v911 = vunpack.c.l.b16 %v218
    %v912 = vunpack.c.h.b16 %v218
    %v913 = vunpack.c.l.b16 %v219
    %v914 = vunpack.c.h.b16 %v219
    %v915 = vunpack.c.l.b16 %v220
    %v916 = vunpack.c.h.b16 %v220
    %v917 = vunpack.c.l.b16 %v221
    %v918 = vunpack.c.h.b16 %v221
    %v919 = vunpack.c.l.b16 %v222
    %v920 = vunpack.c.h.b16 %v222
    %v921 = vunpack.c.l.b16 %v223
    %v922 = vunpack.c.h.b16 %v223
    %v923 = vunpack.c.l.b16 %v224
    %v924 = vunpack.c.h.b16 %v224
    %v925 = vunpack.c.l.b16 %v225
    %v926 = vunpack.c.h.b16 %v225
    %v927 = vunpack.c.l.b16 %v226
    %v928 = vunpack.c.h.b16 %v226
    %v929 = vunpack.c.l.b16 %v227
    %v930 = vunpack.c.h.b16 %v227
    %v931 = vunpack.c.l.b16 %v228
    %v932 = vunpack.c.h.b16 %v228
    %v933 = vunpack.c.l.b16 %v229
    %v934 = vunpack.c.h.b16 %v229
    %v935 = vunpack.c.l.b16 %v230
    %v936 = vunpack.c.h.b16 %v230
    %v937 = vunpack.c.l.b16 %v231
    %v938 = vunpack.c.h.b16 %v231
    %v939 = vunpack.c.l.b16 %v232
    %v940 = vunpack.c.h.b16 %v232
    %v941 = vunpack.c.l.b16 %v233
    %v942 = vunpack.c.h.b16 %v233
    %v943 = vunpack.c.l.b16 %v234
    %v944 = vunpack.c.h.b16 %v234
    %v945 = vunpack.c.l.b16 %v235
    %v946 = vunpack.c.h.b16 %v235
    %v947 = vunpack.c.l.b16 %v236
    %v948 = vunpack.c.h.b16 %v236
    %v949 = vunpack.c.l.b16 %v237
    %v950 = vunpack.c.h.b16 %v237
    %v951 = vunpack.c.l.b16 %v238
    %v952 = vunpack.c.h.b16 %v238
    %v953 = vunpack.c.l.b16 %v239
    %v954 = vunpack.c.h.b16 %v239
    %v955 = vunpack.c.l.b16 %v240
    %v956 = vunpack.c.h.b16 %v240
    %v957 = vunpack.c.l.b16 %v241
    %v958 = vunpack.c.h.b16 %v241
    %v959 = vunpack.c.l.b16 %v242
    %v960 = vunpack.c.h.b16 %v242
    %v961 = vunpack.c.l.b16 %v243
    %v962 = vunpack.c.h.b16 %v243
    %v963 = vunpack.c.l.b16 %v244
    %v964 = vunpack.c.h.b16 %v244
    %v965 = vunpack.c.l.b16 %v245
    %v966 = vunpack.c.h.b16 %v245
    %v967 = vunpack.c.l.b16 %v246
    %v968 = vunpack.c.h.b16 %v246
    %v969 = vunpack.c.l.b16 %v247
    %v970 = vunpack.c.h.b16 %v247
    %v971 = vunpack.c.l.b16 %v248
    %v972 = vunpack.c.h.b16 %v248
    %v973 = vunpack.c.l.b16 %v249
    %v974 = vunpack.c.h.b16 %v249
    %v975 = vunpack.c.l.b16 %v250
    %v976 = vunpack.c.h.b16 %v250
    %v977 = vunpack.c.l.b16 %v251
    %v978 = vunpack.c.h.b16 %v251
    %v979 = vunpack.c.l.b16 %v252
    %v980 = vunpack.c.h.b16 %v252
    %v981 = vunpack.c.l.b16 %v253
    %v982 = vunpack.c.h.b16 %v253
    %v983 = vunpack.c.l.b16 %v254
    %v984 = vunpack.c.h.b16 %v254
    %v985 = vunpack.c.l.b16 %v255
    %v986 = vunpack.c.h.b16 %v255
    %v987 = vunpack.c.l.b16 %v256
    %v988 = vunpack.c.h.b16 %v256
    %v989 = vunpack.c.l.b16 %v257
    %v990 = vunpack.c.h.b16 %v257
    %v991 = vunpack.c.l.b16 %v258
    %v992 = vunpack.c.h.b16 %v258
    %v993 = vunpack.c.l.b16 %v259
    %v994 = vunpack.c.h.b16 %v259
    %v995 = vunpack.c.l.b16 %v260
    %v996 = vunpack.c.h.b16 %v260
    %v997 = vunpack.c.l.b16 %v261
    %v998 = vunpack.c.h.b16 %v261
    %v999 = vunpack.c.l.b16 %v262
    %v1000 = vunpack.c.h.b16 %v262
    %v1001 = vunpack.c.l.b16 %v263
    %v1002 = vunpack.c.h.b16 %v263
    %v1003 = vunpack.c.l.b16 %v264
    %v1004 = vunpack.c.h.b16 %v264
    %v1005 = vunpack.c.l.b16 %v265
    %v1006 = vunpack.c.h.b16 %v265
    %v1007 = vunpack.c.l.b16 %v266
    %v1008 = vunpack.c.h.b16 %v266
    %v1009 = vunpack.c.l.b16 %v267
    %v1010 = vunpack.c.h.b16 %v267
    %v1011 = vunpack.c.l.b16 %v268
    %v1012 = vunpack.c.h.b16 %v268
    %v1013 = vunpack.c.l.b16 %v269
    %v1014 = vunpack.c.h.b16 %v269
    %v1015 = vunpack.c.l.b16 %v270
    %v1016 = vunpack.c.h.b16 %v270
    %v1017 = vunpack.c.l.b16 %v271
    %v1018 = vunpack.c.h.b16 %v271
    %v1019 = vunpack.c.l.b16 %v272
    %v1020 = vunpack.c.h.b16 %v272
    %v1021 = vunpack.c.l.b16 %v273
    %v1022 = vunpack.c.h.b16 %v273
    %v1023 = vunpack.c.l.b16 %v274
    %v1024 = vunpack.c.h.b16 %v274
    %v1025 = vunpack.c.l.b16 %v275
    %v1026 = vunpack.c.h.b16 %v275
    %v1027 = vunpack.c.l.b16 %v276
    %v1028 = vunpack.c.h.b16 %v276
    %v1029 = vunpack.c.l.b16 %v277
    %v1030 = vunpack.c.h.b16 %v277
    %v1031 = vunpack.c.l.b16 %v278
    %v1032 = vunpack.c.h.b16 %v278
    %v1033 = vunpack.c.l.b16 %v279
    %v1034 = vunpack.c.h.b16 %v279
    %v1035 = vunpack.c.l.b16 %v280
    %v1036 = vunpack.c.h.b16 %v280
    %v1037 = vunpack.c.l.b16 %v281
    %v1038 = vunpack.c.h.b16 %v281
    %v1039 = vunpack.c.l.b16 %v282
    %v1040 = vunpack.c.h.b16 %v282
    %v1041 = vunpack.c.l.b16 %v283
    %v1042 = vunpack.c.h.b16 %v283
    %v1043 = vunpack.c.l.b16 %v284
    %v1044 = vunpack.c.h.b16 %v284
    %v1045 = vunpack.c.l.b16 %v285
    %v1046 = vunpack.c.h.b16 %v285
    %v1047 = vunpack.c.l.b16 %v286
    %v1048 = vunpack.c.h.b16 %v286
    %v1049 = vunpack.c.l.b16 %v287
    %v1050 = vunpack.c.h.b16 %v287
    %v1051 = vunpack.c.l.b16 %v288
    %v1052 = vunpack.c.h.b16 %v288
    %v1053 = vunpack.c.l.b16 %v289
    %v1054 = vunpack.c.h.b16 %v289
    %v1055 = vunpack.c.l.b16 %v290
    %v1056 = vunpack.c.h.b16 %v290
    %v1057 = vunpack.c.l.b16 %v291
    %v1058 = vunpack.c.h.b16 %v291
    %v1059 = vunpack.c.l.b16 %v292
    %v1060 = vunpack.c.h.b16 %v292
    %v1061 = vunpack.c.l.b16 %v293
    %v1062 = vunpack.c.h.b16 %v293
    %v1063 = vunpack.c.l.b16 %v294
    %v1064 = vunpack.c.h.b16 %v294
    %v1065 = vunpack.c.l.b16 %v295
    %v1066 = vunpack.c.h.b16 %v295
    %v1067 = vunpack.c.l.b16 %v296
    %v1068 = vunpack.c.h.b16 %v296
    %v1069 = vunpack.c.l.b16 %v297
    %v1070 = vunpack.c.h.b16 %v297
    %v1071 = vunpack.c.l.b16 %v298
    %v1072 = vunpack.c.h.b16 %v298
    %v1073 = vunpack.c.l.b16 %v299
    %v1074 = vunpack.c.h.b16 %v299
    %v1075 = vunpack.c.l.b16 %v300
    %v1076 = vunpack.c.h.b16 %v300
    %v1077 = vunpack.c.l.b16 %v301
    %v1078 = vunpack.c.h.b16 %v301
    %v1079 = vunpack.c.l.b16 %v302
    %v1080 = vunpack.c.h.b16 %v302
    %v1081 = vunpack.c.l.b16 %v303
    %v1082 = vunpack.c.h.b16 %v303
    %v1083 = vunpack.c.l.b16 %v304
    %v1084 = vunpack.c.h.b16 %v304
    %v1085 = vunpack.c.l.b16 %v305
    %v1086 = vunpack.c.h.b16 %v305
    %v1087 = vunpack.c.l.b16 %v306
    %v1088 = vunpack.c.h.b16 %v306
    %v1089 = vunpack.c.l.b16 %v307
    %v1090 = vunpack.c.h.b16 %v307
    %v1091 = vunpack.c.l.b16 %v308
    %v1092 = vunpack.c.h.b16 %v308
    %v1093 = vunpack.c.l.b16 %v309
    %v1094 = vunpack.c.h.b16 %v309
    %v1095 = vunpack.c.l.b16 %v310
    %v1096 = vunpack.c.h.b16 %v310
    %v1097 = vunpack.c.l.b16 %v311
    %v1098 = vunpack.c.h.b16 %v311
    %v1099 = vunpack.c.l.b16 %v312
    %v1100 = vunpack.c.h.b16 %v312
    %v1101 = vunpack.c.l.b16 %v313
    %v1102 = vunpack.c.h.b16 %v313
    %v1103 = vunpack.c.l.b16 %v314
    %v1104 = vunpack.c.h.b16 %v314
    %v1105 = vunpack.c.l.b16 %v315
    %v1106 = vunpack.c.h.b16 %v315
    %v1107 = vunpack.c.l.b16 %v316
    %v1108 = vunpack.c.h.b16 %v316
    %v1109 = vunpack.c.l.b16 %v317
    %v1110 = vunpack.c.h.b16 %v317
    %v1111 = vunpack.c.l.b16 %v318
    %v1112 = vunpack.c.h.b16 %v318
    %v1113 = vunpack.c.l.b16 %v319
    %v1114 = vunpack.c.h.b16 %v319
    %v1115 = vunpack.c.l.b16 %v320
    %v1116 = vunpack.c.h.b16 %v320
    %v1117 = vunpack.c.l.b16 %v321
    %v1118 = vunpack.c.h.b16 %v321
    %v1119 = vunpack.c.l.b16 %v322
    %v1120 = vunpack.c.h.b16 %v322
    %v1121 = vunpack.c.l.b16 %v323
    %v1122 = vunpack.c.h.b16 %v323
    %v1123 = vunpack.c.l.b16 %v324
    %v1124 = vunpack.c.h.b16 %v324
    %v1125 = vunpack.c.l.b16 %v325
    %v1126 = vunpack.c.h.b16 %v325
    %v1127 = vunpack.c.l.b16 %v326
    %v1128 = vunpack.c.h.b16 %v326
    %v1129 = vunpack.c.l.b16 %v327
    %v1130 = vunpack.c.h.b16 %v327
    %v1131 = vunpack.c.l.b16 %v328
    %v1132 = vunpack.c.h.b16 %v328
    %v1133 = vunpack.c.l.b16 %v329
    %v1134 = vunpack.c.h.b16 %v329
    %v1135 = vunpack.c.l.b16 %v330
    %v1136 = vunpack.c.h.b16 %v330
    %v1137 = vunpack.c.l.b16 %v331
    %v1138 = vunpack.c.h.b16 %v331
    %v1139 = vunpack.c.l.b16 %v332
    %v1140 = vunpack.c.h.b16 %v332
    %v1141 = vunpack.c.l.b16 %v333
    %v1142 = vunpack.c.h.b16 %v333
    %v1143 = vunpack.c.l.b16 %v334
    %v1144 = vunpack.c.h.b16 %v334
    %v1145 = vunpack.c.l.b16 %v335
    %v1146 = vunpack.c.h.b16 %v335
    %v1147 = vunpack.c.l.b16 %v336
    %v1148 = vunpack.c.h.b16 %v336
    %v1149 = vunpack.c.l.b16 %v337
    %v1150 = vunpack.c.h.b16 %v337
    %v1151 = vunpack.c.l.b16 %v338
    %v1152 = vunpack.c.h.b16 %v338
    %v1153 = vunpack.c.l.b16 %v339
    %v1154 = vunpack.c.h.b16 %v339
    %v1155 = vunpack.c.l.b16 %v340
    %v1156 = vunpack.c.h.b16 %v340
    %v1157 = vunpack.c.l.b16 %v341
    %v1158 = vunpack.c.h.b16 %v341
    %v1159 = vunpack.c.l.b16 %v342
    %v1160 = vunpack.c.h.b16 %v342
    %v1161 = vpack.c.b16 %v653, %v649
    %v1162 = vpack.c.b16 %v654, %v650
    %v1163 = vpack.c.b16 %v655, %v651
    %v1164 = vpack.c.b16 %v656, %v652
    %v1165 = vpack.c.b16 %v661, %v657
    %v1166 = vpack.c.b16 %v662, %v658
    %v1167 = vpack.c.b16 %v663, %v659
    %v1168 = vpack.c.b16 %v664, %v660
    %v1169 = vpack.c.b16 %v669, %v665
    %v1170 = vpack.c.b16 %v670, %v666
    %v1171 = vpack.c.b16 %v671, %v667
    %v1172 = vpack.c.b16 %v672, %v668
    %v1173 = vpack.c.b16 %v677, %v673
    %v1174 = vpack.c.b16 %v678, %v674
    %v1175 = vpack.c.b16 %v679, %v675
    %v1176 = vpack.c.b16 %v680, %v676
    %v1177 = vpack.c.b16 %v685, %v681
    %v1178 = vpack.c.b16 %v686, %v682
    %v1179 = vpack.c.b16 %v687, %v683
    %v1180 = vpack.c.b16 %v688, %v684
    %v1181 = vpack.c.b16 %v693, %v689
    %v1182 = vpack.c.b16 %v694, %v690
    %v1183 = vpack.c.b16 %v695, %v691
    %v1184 = vpack.c.b16 %v696, %v692
    %v1185 = vpack.c.b16 %v701, %v697
    %v1186 = vpack.c.b16 %v702, %v698
    %v1187 = vpack.c.b16 %v703, %v699
    %v1188 = vpack.c.b16 %v704, %v700
    %v1189 = vpack.c.b16 %v709, %v705
    %v1190 = vpack.c.b16 %v710, %v706
    %v1191 = vpack.c.b16 %v711, %v707
    %v1192 = vpack.c.b16 %v712, %v708
    %v1193 = vpack.c.b16 %v717, %v713
    %v1194 = vpack.c.b16 %v718, %v714
    %v1195 = vpack.c.b16 %v719, %v715
    %v1196 = vpack.c.b16 %v720, %v716
    %v1197 = vpack.c.b16 %v725, %v721
    %v1198 = vpack.c.b16 %v726, %v722
    %v1199 = vpack.c.b16 %v727, %v723
    %v1200 = vpack.c.b16 %v728, %v724
    %v1201 = vpack.c.b16 %v733, %v729
    %v1202 = vpack.c.b16 %v734, %v730
    %v1203 = vpack.c.b16 %v735, %v731
    %v1204 = vpack.c.b16 %v736, %v732
    %v1205 = vpack.c.b16 %v741, %v737
    %v1206 = vpack.c.b16 %v742, %v738
    %v1207 = vpack.c.b16 %v743, %v739
    %v1208 = vpack.c.b16 %v744, %v740
    %v1209 = vpack.c.b16 %v749, %v745
    %v1210 = vpack.c.b16 %v750, %v746
    %v1211 = vpack.c.b16 %v751, %v747
    %v1212 = vpack.c.b16 %v752, %v748
    %v1213 = vpack.c.b16 %v757, %v753
    %v1214 = vpack.c.b16 %v758, %v754
    %v1215 = vpack.c.b16 %v759, %v755
    %v1216 = vpack.c.b16 %v760, %v756
    %v1217 = vpack.c.b16 %v765, %v761
    %v1218 = vpack.c.b16 %v766, %v762
    %v1219 = vpack.c.b16 %v767, %v763
    %v1220 = vpack.c.b16 %v768, %v764
    %v1221 = vpack.c.b16 %v773, %v769
    %v1222 = vpack.c.b16 %v774, %v770
    %v1223 = vpack.c.b16 %v775, %v771
    %v1224 = vpack.c.b16 %v776, %v772
    %v1225 = vpack.c.b16 %v781, %v777
    %v1226 = vpack.c.b16 %v782, %v778
    %v1227 = vpack.c.b16 %v783, %v779
    %v1228 = vpack.c.b16 %v784, %v780
    %v1229 = vpack.c.b16 %v789, %v785
    %v1230 = vpack.c.b16 %v790, %v786
    %v1231 = vpack.c.b16 %v791, %v787
    %v1232 = vpack.c.b16 %v792, %v788
    %v1233 = vpack.c.b16 %v797, %v793
    %v1234 = vpack.c.b16 %v798, %v794
    %v1235 = vpack.c.b16 %v799, %v795
    %v1236 = vpack.c.b16 %v800, %v796
    %v1237 = vpack.c.b16 %v805, %v801
    %v1238 = vpack.c.b16 %v806, %v802
    %v1239 = vpack.c.b16 %v807, %v803
    %v1240 = vpack.c.b16 %v808, %v804
    %v1241 = vpack.c.b16 %v813, %v809
    %v1242 = vpack.c.b16 %v814, %v810
    %v1243 = vpack.c.b16 %v815, %v811
    %v1244 = vpack.c.b16 %v816, %v812
    %v1245 = vpack.c.b16 %v821, %v817
    %v1246 = vpack.c.b16 %v822, %v818
    %v1247 = vpack.c.b16 %v823, %v819
    %v1248 = vpack.c.b16 %v824, %v820
    %v1249 = vpack.c.b16 %v829, %v825
    %v1250 = vpack.c.b16 %v830, %v826
    %v1251 = vpack.c.b16 %v831, %v827
    %v1252 = vpack.c.b16 %v832, %v828
    %v1253 = vpack.c.b16 %v837, %v833
    %v1254 = vpack.c.b16 %v838, %v834
    %v1255 = vpack.c.b16 %v839, %v835
    %v1256 = vpack.c.b16 %v840, %v836
    %v1257 = vpack.c.b16 %v845, %v841
    %v1258 = vpack.c.b16 %v846, %v842
    %v1259 = vpack.c.b16 %v847, %v843
    %v1260 = vpack.c.b16 %v848, %v844
    %v1261 = vpack.c.b16 %v853, %v849
    %v1262 = vpack.c.b16 %v854, %v850
    %v1263 = vpack.c.b16 %v855, %v851
    %v1264 = vpack.c.b16 %v856, %v852
    %v1265 = vpack.c.b16 %v861, %v857
    %v1266 = vpack.c.b16 %v862, %v858
    %v1267 = vpack.c.b16 %v863, %v859
    %v1268 = vpack.c.b16 %v864, %v860
    %v1269 = vpack.c.b16 %v869, %v865
    %v1270 = vpack.c.b16 %v870, %v866
    %v1271 = vpack.c.b16 %v871, %v867
    %v1272 = vpack.c.b16 %v872, %v868
    %v1273 = vpack.c.b16 %v877, %v873
    %v1274 = vpack.c.b16 %v878, %v874
    %v1275 = vpack.c.b16 %v879, %v875
    %v1276 = vpack.c.b16 %v880, %v876
    %v1277 = vpack.c.b16 %v885, %v881
    %v1278 = vpack.c.b16 %v886, %v882
    %v1279 = vpack.c.b16 %v887, %v883
    %v1280 = vpack.c.b16 %v888, %v884
    %v1281 = vpack.c.b16 %v893, %v889
    %v1282 = vpack.c.b16 %v894, %v890
    %v1283 = vpack.c.b16 %v895, %v891
    %v1284 = vpack.c.b16 %v896, %v892
    %v1285 = vpack.c.b16 %v901, %v897
    %v1286 = vpack.c.b16 %v902, %v898
    %v1287 = vpack.c.b16 %v903, %v899
    %v1288 = vpack.c.b16 %v904, %v900
    %v1289 = vpack.c.b16 %v909, %v905
    %v1290 = vpack.c.b16 %v910, %v906
    %v1291 = vpack.c.b16 %v911, %v907
    %v1292 = vpack.c.b16 %v912, %v908
    %v1293 = vpack.c.b16 %v917, %v913
    %v1294 = vpack.c.b16 %v918, %v914
    %v1295 = vpack.c.b16 %v919, %v915
    %v1296 = vpack.c.b16 %v920, %v916
    %v1297 = vpack.c.b16 %v925, %v921
    %v1298 = vpack.c.b16 %v926, %v922
    %v1299 = vpack.c.b16 %v927, %v923
    %v1300 = vpack.c.b16 %v928, %v924
    %v1301 = vpack.c.b16 %v933, %v929
    %v1302 = vpack.c.b16 %v934, %v930
    %v1303 = vpack.c.b16 %v935, %v931
    %v1304 = vpack.c.b16 %v936, %v932
    %v1305 = vpack.c.b16 %v941, %v937
    %v1306 = vpack.c.b16 %v942, %v938
    %v1307 = vpack.c.b16 %v943, %v939
    %v1308 = vpack.c.b16 %v944, %v940
    %v1309 = vpack.c.b16 %v949, %v945
    %v1310 = vpack.c.b16 %v950, %v946
    %v1311 = vpack.c.b16 %v951, %v947
    %v1312 = vpack.c.b16 %v952, %v948
    %v1313 = vpack.c.b16 %v957, %v953
    %v1314 = vpack.c.b16 %v958, %v954
    %v1315 = vpack.c.b16 %v959, %v955
    %v1316 = vpack.c.b16 %v960, %v956
    %v1317 = vpack.c.b16 %v965, %v961
    %v1318 = vpack.c.b16 %v966, %v962
    %v1319 = vpack.c.b16 %v967, %v963
    %v1320 = vpack.c.b16 %v968, %v964
    %v1321 = vpack.c.b16 %v973, %v969
    %v1322 = vpack.c.b16 %v974, %v970
    %v1323 = vpack.c.b16 %v975, %v971
    %v1324 = vpack.c.b16 %v976, %v972
    %v1325 = vpack.c.b16 %v981, %v977
    %v1326 = vpack.c.b16 %v982, %v978
    %v1327 = vpack.c.b16 %v983, %v979
    %v1328 = vpack.c.b16 %v984, %v980
    %v1329 = vpack.c.b16 %v989, %v985
    %v1330 = vpack.c.b16 %v990, %v986
    %v1331 = vpack.c.b16 %v991, %v987
    %v1332 = vpack.c.b16 %v992, %v988
    %v1333 = vpack.c.b16 %v997, %v993
    %v1334 = vpack.c.b16 %v998, %v994
    %v1335 = vpack.c.b16 %v999, %v995
    %v1336 = vpack.c.b16 %v1000, %v996
    %v1337 = vpack.c.b16 %v1005, %v1001
    %v1338 = vpack.c.b16 %v1006, %v1002
    %v1339 = vpack.c.b16 %v1007, %v1003
    %v1340 = vpack.c.b16 %v1008, %v1004
    %v1341 = vpack.c.b16 %v1013, %v1009
    %v1342 = vpack.c.b16 %v1014, %v1010
    %v1343 = vpack.c.b16 %v1015, %v1011
    %v1344 = vpack.c.b16 %v1016, %v1012
    %v1345 = vpack.c.b16 %v1021, %v1017
    %v1346 = vpack.c.b16 %v1022, %v1018
    %v1347 = vpack.c.b16 %v1023, %v1019
    %v1348 = vpack.c.b16 %v1024, %v1020
    %v1349 = vpack.c.b16 %v1029, %v1025
    %v1350 = vpack.c.b16 %v1030, %v1026
    %v1351 = vpack.c.b16 %v1031, %v1027
    %v1352 = vpack.c.b16 %v1032, %v1028
    %v1353 = vpack.c.b16 %v1037, %v1033
    %v1354 = vpack.c.b16 %v1038, %v1034
    %v1355 = vpack.c.b16 %v1039, %v1035
    %v1356 = vpack.c.b16 %v1040, %v1036
    %v1357 = vpack.c.b16 %v1045, %v1041
    %v1358 = vpack.c.b16 %v1046, %v1042
    %v1359 = vpack.c.b16 %v1047, %v1043
    %v1360 = vpack.c.b16 %v1048, %v1044
    %v1361 = vpack.c.b16 %v1053, %v1049
    %v1362 = vpack.c.b16 %v1054, %v1050
    %v1363 = vpack.c.b16 %v1055, %v1051
    %v1364 = vpack.c.b16 %v1056, %v1052
    %v1365 = vpack.c.b16 %v1061, %v1057
    %v1366 = vpack.c.b16 %v1062, %v1058
    %v1367 = vpack.c.b16 %v1063, %v1059
    %v1368 = vpack.c.b16 %v1064, %v1060
    %v1369 = vpack.c.b16 %v1069, %v1065
    %v1370 = vpack.c.b16 %v1070, %v1066
    %v1371 = vpack.c.b16 %v1071, %v1067
    %v1372 = vpack.c.b16 %v1072, %v1068
    %v1373 = vpack.c.b16 %v1077, %v1073
    %v1374 = vpack.c.b16 %v1078, %v1074
    %v1375 = vpack.c.b16 %v1079, %v1075
    %v1376 = vpack.c.b16 %v1080, %v1076
    %v1377 = vpack.c.b16 %v1085, %v1081
    %v1378 = vpack.c.b16 %v1086, %v1082
    %v1379 = vpack.c.b16 %v1087, %v1083
    %v1380 = vpack.c.b16 %v1088, %v1084
    %v1381 = vpack.c.b16 %v1093, %v1089
    %v1382 = vpack.c.b16 %v1094, %v1090
    %v1383 = vpack.c.b16 %v1095, %v1091
    %v1384 = vpack.c.b16 %v1096, %v1092
    %v1385 = vpack.c.b16 %v1101, %v1097
    %v1386 = vpack.c.b16 %v1102, %v1098
    %v1387 = vpack.c.b16 %v1103, %v1099
    %v1388 = vpack.c.b16 %v1104, %v1100
    %v1389 = vpack.c.b16 %v1109, %v1105
    %v1390 = vpack.c.b16 %v1110, %v1106
    %v1391 = vpack.c.b16 %v1111, %v1107
    %v1392 = vpack.c.b16 %v1112, %v1108
    %v1393 = vpack.c.b16 %v1117, %v1113
    %v1394 = vpack.c.b16 %v1118, %v1114
    %v1395 = vpack.c.b16 %v1119, %v1115
    %v1396 = vpack.c.b16 %v1120, %v1116
    %v1397 = vpack.c.b16 %v1125, %v1121
    %v1398 = vpack.c.b16 %v1126, %v1122
    %v1399 = vpack.c.b16 %v1127, %v1123
    %v1400 = vpack.c.b16 %v1128, %v1124
    %v1401 = vpack.c.b16 %v1133, %v1129
    %v1402 = vpack.c.b16 %v1134, %v1130
    %v1403 = vpack.c.b16 %v1135, %v1131
    %v1404 = vpack.c.b16 %v1136, %v1132
    %v1405 = vpack.c.b16 %v1141, %v1137
    %v1406 = vpack.c.b16 %v1142, %v1138
    %v1407 = vpack.c.b16 %v1143, %v1139
    %v1408 = vpack.c.b16 %v1144, %v1140
    %v1409 = vpack.c.b16 %v1149, %v1145
    %v1410 = vpack.c.b16 %v1150, %v1146
    %v1411 = vpack.c.b16 %v1151, %v1147
    %v1412 = vpack.c.b16 %v1152, %v1148
    %v1413 = vpack.c.b16 %v1157, %v1153
    %v1414 = vpack.c.b16 %v1158, %v1154
    %v1415 = vpack.c.b16 %v1159, %v1155
    %v1416 = vpack.c.b16 %v1160, %v1156
    %1673 = vmatpush.bf16.msra.mxu0 %v1189
    %1674 = vmatpush.bf16.msra.mxu0 %v1185
    %1675 = vmatpush.bf16.msra.mxu0 %v1181
    %1676 = vmatpush.bf16.msra.mxu0 %v1177
    %1677 = vmatpush.bf16.msra.mxu0 %v1173
    %1678 = vmatpush.bf16.msra.mxu0 %v1169
    %1679 = vmatpush.bf16.msra.mxu0 %v1165
    %1680 = vmatpush.bf16.msra.mxu0 %v1161
    %1681 = vmatmul.bf16.gmra.mxu0 %v377
    %v1682 = vpop.f32.mrf.mxu0
    %v1683 = vadd.f32 %v345, %v1682
    %v1684 = vpop.f32.mrf.mxu0
    %v1685 = vadd.f32 %v345, %v1684
    %1686 = vdwg.mxu0
    %1687 = vmatpush.bf16.msra.mxu0 %v1221
    %1688 = vmatpush.bf16.msra.mxu0 %v1217
    %1689 = vmatpush.bf16.msra.mxu0 %v1213
    %1690 = vmatpush.bf16.msra.mxu0 %v1209
    %1691 = vmatpush.bf16.msra.mxu0 %v1205
    %1692 = vmatpush.bf16.msra.mxu0 %v1201
    %1693 = vmatpush.bf16.msra.mxu0 %v1197
    %1694 = vmatpush.bf16.msra.mxu0 %v1193
    %1695 = vmatmul.bf16.gmra.mxu0 %v378
    %v1696 = vpop.f32.mrf.mxu0
    %v1697 = vadd.f32 %v1683, %v1696
    %v1698 = vpop.f32.mrf.mxu0
    %v1699 = vadd.f32 %v1685, %v1698
    %1700 = vdwg.mxu0
    %1701 = vmatpush.bf16.msra.mxu0 %v1253
    %1702 = vmatpush.bf16.msra.mxu0 %v1249
    %1703 = vmatpush.bf16.msra.mxu0 %v1245
    %1704 = vmatpush.bf16.msra.mxu0 %v1241
    %1705 = vmatpush.bf16.msra.mxu0 %v1237
    %1706 = vmatpush.bf16.msra.mxu0 %v1233
    %1707 = vmatpush.bf16.msra.mxu0 %v1229
    %1708 = vmatpush.bf16.msra.mxu0 %v1225
    %1709 = vmatmul.bf16.gmra.mxu0 %v379
    %v1710 = vpop.f32.mrf.mxu0
    %v1711 = vadd.f32 %v1697, %v1710
    %v1712 = vpop.f32.mrf.mxu0
    %v1713 = vadd.f32 %v1699, %v1712
    %1714 = vdwg.mxu0
    %1715 = vmatpush.bf16.msra.mxu0 %v1285
    %1716 = vmatpush.bf16.msra.mxu0 %v1281
    %1717 = vmatpush.bf16.msra.mxu0 %v1277
    %1718 = vmatpush.bf16.msra.mxu0 %v1273
    %1719 = vmatpush.bf16.msra.mxu0 %v1269
    %1720 = vmatpush.bf16.msra.mxu0 %v1265
    %1721 = vmatpush.bf16.msra.mxu0 %v1261
    %1722 = vmatpush.bf16.msra.mxu0 %v1257
    %1723 = vmatmul.bf16.gmra.mxu0 %v380
    %v1724 = vpop.f32.mrf.mxu0
    %v1725 = vadd.f32 %v1711, %v1724
    %v1726 = vpop.f32.mrf.mxu0
    %v1727 = vadd.f32 %v1713, %v1726
    %1728 = vdwg.mxu0
    %1729 = vmatpush.bf16.msra.mxu0 %v1317
    %1730 = vmatpush.bf16.msra.mxu0 %v1313
    %1731 = vmatpush.bf16.msra.mxu0 %v1309
    %1732 = vmatpush.bf16.msra.mxu0 %v1305
    %1733 = vmatpush.bf16.msra.mxu0 %v1301
    %1734 = vmatpush.bf16.msra.mxu0 %v1297
    %1735 = vmatpush.bf16.msra.mxu0 %v1293
    %1736 = vmatpush.bf16.msra.mxu0 %v1289
    %1737 = vmatmul.bf16.gmra.mxu0 %v381
    %v1738 = vpop.f32.mrf.mxu0
    %v1739 = vadd.f32 %v1725, %v1738
    %v1740 = vpop.f32.mrf.mxu0
    %v1741 = vadd.f32 %v1727, %v1740
    %1742 = vdwg.mxu0
    %1743 = vmatpush.bf16.msra.mxu0 %v1349
    %1744 = vmatpush.bf16.msra.mxu0 %v1345
    %1745 = vmatpush.bf16.msra.mxu0 %v1341
    %1746 = vmatpush.bf16.msra.mxu0 %v1337
    %1747 = vmatpush.bf16.msra.mxu0 %v1333
    %1748 = vmatpush.bf16.msra.mxu0 %v1329
    %1749 = vmatpush.bf16.msra.mxu0 %v1325
    %1750 = vmatpush.bf16.msra.mxu0 %v1321
    %1751 = vmatmul.bf16.gmra.mxu0 %v382
    %v1752 = vpop.f32.mrf.mxu0
    %v1753 = vadd.f32 %v1739, %v1752
    %v1754 = vpop.f32.mrf.mxu0
    %v1755 = vadd.f32 %v1741, %v1754
    %1756 = vdwg.mxu0
    %1757 = vmatpush.bf16.msra.mxu0 %v1381
    %1758 = vmatpush.bf16.msra.mxu0 %v1377
    %1759 = vmatpush.bf16.msra.mxu0 %v1373
    %1760 = vmatpush.bf16.msra.mxu0 %v1369
    %1761 = vmatpush.bf16.msra.mxu0 %v1365
    %1762 = vmatpush.bf16.msra.mxu0 %v1361
    %1763 = vmatpush.bf16.msra.mxu0 %v1357
    %1764 = vmatpush.bf16.msra.mxu0 %v1353
    %1765 = vmatmul.bf16.gmra.mxu0 %v383
    %v1766 = vpop.f32.mrf.mxu0
    %v1767 = vadd.f32 %v1753, %v1766
    %v1768 = vpop.f32.mrf.mxu0
    %v1769 = vadd.f32 %v1755, %v1768
    %1770 = vdwg.mxu0
    %1771 = vmatpush.bf16.msra.mxu0 %v1413
    %1772 = vmatpush.bf16.msra.mxu0 %v1409
    %1773 = vmatpush.bf16.msra.mxu0 %v1405
    %1774 = vmatpush.bf16.msra.mxu0 %v1401
    %1775 = vmatpush.bf16.msra.mxu0 %v1397
    %1776 = vmatpush.bf16.msra.mxu0 %v1393
    %1777 = vmatpush.bf16.msra.mxu0 %v1389
    %1778 = vmatpush.bf16.msra.mxu0 %v1385
    %1779 = vmatmul.bf16.gmra.mxu0 %v384
    %v1780 = vpop.f32.mrf.mxu0
    %v1781 = vadd.f32 %v1767, %v1780
    %v1782 = vpop.f32.mrf.mxu0
    %v1783 = vadd.f32 %v1769, %v1782
    %1784 = vdwg.mxu0
    %1785 = vmatpush.bf16.msra.mxu0 %v1190
    %1786 = vmatpush.bf16.msra.mxu0 %v1186
    %1787 = vmatpush.bf16.msra.mxu0 %v1182
    %1788 = vmatpush.bf16.msra.mxu0 %v1178
    %1789 = vmatpush.bf16.msra.mxu0 %v1174
    %1790 = vmatpush.bf16.msra.mxu0 %v1170
    %1791 = vmatpush.bf16.msra.mxu0 %v1166
    %1792 = vmatpush.bf16.msra.mxu0 %v1162
    %1793 = vmatmul.bf16.gmra.mxu0 %v377
    %v1794 = vpop.f32.mrf.mxu0
    %v1795 = vadd.f32 %v346, %v1794
    %v1796 = vpop.f32.mrf.mxu0
    %v1797 = vadd.f32 %v346, %v1796
    %1798 = vdwg.mxu0
    %1799 = vmatpush.bf16.msra.mxu0 %v1222
    %1800 = vmatpush.bf16.msra.mxu0 %v1218
    %1801 = vmatpush.bf16.msra.mxu0 %v1214
    %1802 = vmatpush.bf16.msra.mxu0 %v1210
    %1803 = vmatpush.bf16.msra.mxu0 %v1206
    %1804 = vmatpush.bf16.msra.mxu0 %v1202
    %1805 = vmatpush.bf16.msra.mxu0 %v1198
    %1806 = vmatpush.bf16.msra.mxu0 %v1194
    %1807 = vmatmul.bf16.gmra.mxu0 %v378
    %v1808 = vpop.f32.mrf.mxu0
    %v1809 = vadd.f32 %v1795, %v1808
    %v1810 = vpop.f32.mrf.mxu0
    %v1811 = vadd.f32 %v1797, %v1810
    %1812 = vdwg.mxu0
    %1813 = vmatpush.bf16.msra.mxu0 %v1254
    %1814 = vmatpush.bf16.msra.mxu0 %v1250
    %1815 = vmatpush.bf16.msra.mxu0 %v1246
    %1816 = vmatpush.bf16.msra.mxu0 %v1242
    %1817 = vmatpush.bf16.msra.mxu0 %v1238
    %1818 = vmatpush.bf16.msra.mxu0 %v1234
    %1819 = vmatpush.bf16.msra.mxu0 %v1230
    %1820 = vmatpush.bf16.msra.mxu0 %v1226
    %1821 = vmatmul.bf16.gmra.mxu0 %v379
    %v1822 = vpop.f32.mrf.mxu0
    %v1823 = vadd.f32 %v1809, %v1822
    %v1824 = vpop.f32.mrf.mxu0
    %v1825 = vadd.f32 %v1811, %v1824
    %1826 = vdwg.mxu0
    %1827 = vmatpush.bf16.msra.mxu0 %v1286
    %1828 = vmatpush.bf16.msra.mxu0 %v1282
    %1829 = vmatpush.bf16.msra.mxu0 %v1278
    %1830 = vmatpush.bf16.msra.mxu0 %v1274
    %1831 = vmatpush.bf16.msra.mxu0 %v1270
    %1832 = vmatpush.bf16.msra.mxu0 %v1266
    %1833 = vmatpush.bf16.msra.mxu0 %v1262
    %1834 = vmatpush.bf16.msra.mxu0 %v1258
    %1835 = vmatmul.bf16.gmra.mxu0 %v380
    %v1836 = vpop.f32.mrf.mxu0
    %v1837 = vadd.f32 %v1823, %v1836
    %v1838 = vpop.f32.mrf.mxu0
    %v1839 = vadd.f32 %v1825, %v1838
    %1840 = vdwg.mxu0
    %1841 = vmatpush.bf16.msra.mxu0 %v1318
    %1842 = vmatpush.bf16.msra.mxu0 %v1314
    %1843 = vmatpush.bf16.msra.mxu0 %v1310
    %1844 = vmatpush.bf16.msra.mxu0 %v1306
    %1845 = vmatpush.bf16.msra.mxu0 %v1302
    %1846 = vmatpush.bf16.msra.mxu0 %v1298
    %1847 = vmatpush.bf16.msra.mxu0 %v1294
    %1848 = vmatpush.bf16.msra.mxu0 %v1290
    %1849 = vmatmul.bf16.gmra.mxu0 %v381
    %v1850 = vpop.f32.mrf.mxu0
    %v1851 = vadd.f32 %v1837, %v1850
    %v1852 = vpop.f32.mrf.mxu0
    %v1853 = vadd.f32 %v1839, %v1852
    %1854 = vdwg.mxu0
    %1855 = vmatpush.bf16.msra.mxu0 %v1350
    %1856 = vmatpush.bf16.msra.mxu0 %v1346
    %1857 = vmatpush.bf16.msra.mxu0 %v1342
    %1858 = vmatpush.bf16.msra.mxu0 %v1338
    %1859 = vmatpush.bf16.msra.mxu0 %v1334
    %1860 = vmatpush.bf16.msra.mxu0 %v1330
    %1861 = vmatpush.bf16.msra.mxu0 %v1326
    %1862 = vmatpush.bf16.msra.mxu0 %v1322
    %1863 = vmatmul.bf16.gmra.mxu0 %v382
    %v1864 = vpop.f32.mrf.mxu0
    %v1865 = vadd.f32 %v1851, %v1864
    %v1866 = vpop.f32.mrf.mxu0
    %v1867 = vadd.f32 %v1853, %v1866
    %1868 = vdwg.mxu0
    %1869 = vmatpush.bf16.msra.mxu0 %v1382
    %1870 = vmatpush.bf16.msra.mxu0 %v1378
    %1871 = vmatpush.bf16.msra.mxu0 %v1374
    %1872 = vmatpush.bf16.msra.mxu0 %v1370
    %1873 = vmatpush.bf16.msra.mxu0 %v1366
    %1874 = vmatpush.bf16.msra.mxu0 %v1362
    %1875 = vmatpush.bf16.msra.mxu0 %v1358
    %1876 = vmatpush.bf16.msra.mxu0 %v1354
    %1877 = vmatmul.bf16.gmra.mxu0 %v383
    %v1878 = vpop.f32.mrf.mxu0
    %v1879 = vadd.f32 %v1865, %v1878
    %v1880 = vpop.f32.mrf.mxu0
    %v1881 = vadd.f32 %v1867, %v1880
    %1882 = vdwg.mxu0
    %1883 = vmatpush.bf16.msra.mxu0 %v1414
    %1884 = vmatpush.bf16.msra.mxu0 %v1410
    %1885 = vmatpush.bf16.msra.mxu0 %v1406
    %1886 = vmatpush.bf16.msra.mxu0 %v1402
    %1887 = vmatpush.bf16.msra.mxu0 %v1398
    %1888 = vmatpush.bf16.msra.mxu0 %v1394
    %1889 = vmatpush.bf16.msra.mxu0 %v1390
    %1890 = vmatpush.bf16.msra.mxu0 %v1386
    %1891 = vmatmul.bf16.gmra.mxu0 %v384
    %v1892 = vpop.f32.mrf.mxu0
    %v1893 = vadd.f32 %v1879, %v1892
    %v1894 = vpop.f32.mrf.mxu0
    %v1895 = vadd.f32 %v1881, %v1894
    %1896 = vdwg.mxu0
    %1897 = vmatpush.bf16.msra.mxu0 %v1191
    %1898 = vmatpush.bf16.msra.mxu0 %v1187
    %1899 = vmatpush.bf16.msra.mxu0 %v1183
    %1900 = vmatpush.bf16.msra.mxu0 %v1179
    %1901 = vmatpush.bf16.msra.mxu0 %v1175
    %1902 = vmatpush.bf16.msra.mxu0 %v1171
    %1903 = vmatpush.bf16.msra.mxu0 %v1167
    %1904 = vmatpush.bf16.msra.mxu0 %v1163
    %1905 = vmatmul.bf16.gmra.mxu0 %v377
    %v1906 = vpop.f32.mrf.mxu0
    %v1907 = vadd.f32 %v347, %v1906
    %v1908 = vpop.f32.mrf.mxu0
    %v1909 = vadd.f32 %v347, %v1908
    %1910 = vdwg.mxu0
    %1911 = vmatpush.bf16.msra.mxu0 %v1223
    %1912 = vmatpush.bf16.msra.mxu0 %v1219
    %1913 = vmatpush.bf16.msra.mxu0 %v1215
    %1914 = vmatpush.bf16.msra.mxu0 %v1211
    %1915 = vmatpush.bf16.msra.mxu0 %v1207
    %1916 = vmatpush.bf16.msra.mxu0 %v1203
    %1917 = vmatpush.bf16.msra.mxu0 %v1199
    %1918 = vmatpush.bf16.msra.mxu0 %v1195
    %1919 = vmatmul.bf16.gmra.mxu0 %v378
    %v1920 = vpop.f32.mrf.mxu0
    %v1921 = vadd.f32 %v1907, %v1920
    %v1922 = vpop.f32.mrf.mxu0
    %v1923 = vadd.f32 %v1909, %v1922
    %1924 = vdwg.mxu0
    %1925 = vmatpush.bf16.msra.mxu0 %v1255
    %1926 = vmatpush.bf16.msra.mxu0 %v1251
    %1927 = vmatpush.bf16.msra.mxu0 %v1247
    %1928 = vmatpush.bf16.msra.mxu0 %v1243
    %1929 = vmatpush.bf16.msra.mxu0 %v1239
    %1930 = vmatpush.bf16.msra.mxu0 %v1235
    %1931 = vmatpush.bf16.msra.mxu0 %v1231
    %1932 = vmatpush.bf16.msra.mxu0 %v1227
    %1933 = vmatmul.bf16.gmra.mxu0 %v379
    %v1934 = vpop.f32.mrf.mxu0
    %v1935 = vadd.f32 %v1921, %v1934
    %v1936 = vpop.f32.mrf.mxu0
    %v1937 = vadd.f32 %v1923, %v1936
    %1938 = vdwg.mxu0
    %1939 = vmatpush.bf16.msra.mxu0 %v1287
    %1940 = vmatpush.bf16.msra.mxu0 %v1283
    %1941 = vmatpush.bf16.msra.mxu0 %v1279
    %1942 = vmatpush.bf16.msra.mxu0 %v1275
    %1943 = vmatpush.bf16.msra.mxu0 %v1271
    %1944 = vmatpush.bf16.msra.mxu0 %v1267
    %1945 = vmatpush.bf16.msra.mxu0 %v1263
    %1946 = vmatpush.bf16.msra.mxu0 %v1259
    %1947 = vmatmul.bf16.gmra.mxu0 %v380
    %v1948 = vpop.f32.mrf.mxu0
    %v1949 = vadd.f32 %v1935, %v1948
    %v1950 = vpop.f32.mrf.mxu0
    %v1951 = vadd.f32 %v1937, %v1950
    %1952 = vdwg.mxu0
    %1953 = vmatpush.bf16.msra.mxu0 %v1319
    %1954 = vmatpush.bf16.msra.mxu0 %v1315
    %1955 = vmatpush.bf16.msra.mxu0 %v1311
    %1956 = vmatpush.bf16.msra.mxu0 %v1307
    %1957 = vmatpush.bf16.msra.mxu0 %v1303
    %1958 = vmatpush.bf16.msra.mxu0 %v1299
    %1959 = vmatpush.bf16.msra.mxu0 %v1295
    %1960 = vmatpush.bf16.msra.mxu0 %v1291
    %1961 = vmatmul.bf16.gmra.mxu0 %v381
    %v1962 = vpop.f32.mrf.mxu0
    %v1963 = vadd.f32 %v1949, %v1962
    %v1964 = vpop.f32.mrf.mxu0
    %v1965 = vadd.f32 %v1951, %v1964
    %1966 = vdwg.mxu0
    %1967 = vmatpush.bf16.msra.mxu0 %v1351
    %1968 = vmatpush.bf16.msra.mxu0 %v1347
    %1969 = vmatpush.bf16.msra.mxu0 %v1343
    %1970 = vmatpush.bf16.msra.mxu0 %v1339
    %1971 = vmatpush.bf16.msra.mxu0 %v1335
    %1972 = vmatpush.bf16.msra.mxu0 %v1331
    %1973 = vmatpush.bf16.msra.mxu0 %v1327
    %1974 = vmatpush.bf16.msra.mxu0 %v1323
    %1975 = vmatmul.bf16.gmra.mxu0 %v382
    %v1976 = vpop.f32.mrf.mxu0
    %v1977 = vadd.f32 %v1963, %v1976
    %v1978 = vpop.f32.mrf.mxu0
    %v1979 = vadd.f32 %v1965, %v1978
    %1980 = vdwg.mxu0
    %1981 = vmatpush.bf16.msra.mxu0 %v1383
    %1982 = vmatpush.bf16.msra.mxu0 %v1379
    %1983 = vmatpush.bf16.msra.mxu0 %v1375
    %1984 = vmatpush.bf16.msra.mxu0 %v1371
    %1985 = vmatpush.bf16.msra.mxu0 %v1367
    %1986 = vmatpush.bf16.msra.mxu0 %v1363
    %1987 = vmatpush.bf16.msra.mxu0 %v1359
    %1988 = vmatpush.bf16.msra.mxu0 %v1355
    %1989 = vmatmul.bf16.gmra.mxu0 %v383
    %v1990 = vpop.f32.mrf.mxu0
    %v1991 = vadd.f32 %v1977, %v1990
    %v1992 = vpop.f32.mrf.mxu0
    %v1993 = vadd.f32 %v1979, %v1992
    %1994 = vdwg.mxu0
    %1995 = vmatpush.bf16.msra.mxu0 %v1415
    %1996 = vmatpush.bf16.msra.mxu0 %v1411
    %1997 = vmatpush.bf16.msra.mxu0 %v1407
    %1998 = vmatpush.bf16.msra.mxu0 %v1403
    %1999 = vmatpush.bf16.msra.mxu0 %v1399
    %2000 = vmatpush.bf16.msra.mxu0 %v1395
    %2001 = vmatpush.bf16.msra.mxu0 %v1391
    %2002 = vmatpush.bf16.msra.mxu0 %v1387
    %2003 = vmatmul.bf16.gmra.mxu0 %v384
    %v2004 = vpop.f32.mrf.mxu0
    %v2005 = vadd.f32 %v1991, %v2004
    %v2006 = vpop.f32.mrf.mxu0
    %v2007 = vadd.f32 %v1993, %v2006
    %2008 = vdwg.mxu0
    %2009 = vmatpush.bf16.msra.mxu0 %v1192
    %2010 = vmatpush.bf16.msra.mxu0 %v1188
    %2011 = vmatpush.bf16.msra.mxu0 %v1184
    %2012 = vmatpush.bf16.msra.mxu0 %v1180
    %2013 = vmatpush.bf16.msra.mxu0 %v1176
    %2014 = vmatpush.bf16.msra.mxu0 %v1172
    %2015 = vmatpush.bf16.msra.mxu0 %v1168
    %2016 = vmatpush.bf16.msra.mxu0 %v1164
    %2017 = vmatmul.bf16.gmra.mxu0 %v377
    %v2018 = vpop.f32.mrf.mxu0
    %v2019 = vadd.f32 %v348, %v2018
    %v2020 = vpop.f32.mrf.mxu0
    %v2021 = vadd.f32 %v348, %v2020
    %2022 = vdwg.mxu0
    %2023 = vmatpush.bf16.msra.mxu0 %v1224
    %2024 = vmatpush.bf16.msra.mxu0 %v1220
    %2025 = vmatpush.bf16.msra.mxu0 %v1216
    %2026 = vmatpush.bf16.msra.mxu0 %v1212
    %2027 = vmatpush.bf16.msra.mxu0 %v1208
    %2028 = vmatpush.bf16.msra.mxu0 %v1204
    %2029 = vmatpush.bf16.msra.mxu0 %v1200
    %2030 = vmatpush.bf16.msra.mxu0 %v1196
    %2031 = vmatmul.bf16.gmra.mxu0 %v378
    %v2032 = vpop.f32.mrf.mxu0
    %v2033 = vadd.f32 %v2019, %v2032
    %v2034 = vpop.f32.mrf.mxu0
    %v2035 = vadd.f32 %v2021, %v2034
    %2036 = vdwg.mxu0
    %2037 = vmatpush.bf16.msra.mxu0 %v1256
    %2038 = vmatpush.bf16.msra.mxu0 %v1252
    %2039 = vmatpush.bf16.msra.mxu0 %v1248
    %2040 = vmatpush.bf16.msra.mxu0 %v1244
    %2041 = vmatpush.bf16.msra.mxu0 %v1240
    %2042 = vmatpush.bf16.msra.mxu0 %v1236
    %2043 = vmatpush.bf16.msra.mxu0 %v1232
    %2044 = vmatpush.bf16.msra.mxu0 %v1228
    %2045 = vmatmul.bf16.gmra.mxu0 %v379
    %v2046 = vpop.f32.mrf.mxu0
    %v2047 = vadd.f32 %v2033, %v2046
    %v2048 = vpop.f32.mrf.mxu0
    %v2049 = vadd.f32 %v2035, %v2048
    %2050 = vdwg.mxu0
    %2051 = vmatpush.bf16.msra.mxu0 %v1288
    %2052 = vmatpush.bf16.msra.mxu0 %v1284
    %2053 = vmatpush.bf16.msra.mxu0 %v1280
    %2054 = vmatpush.bf16.msra.mxu0 %v1276
    %2055 = vmatpush.bf16.msra.mxu0 %v1272
    %2056 = vmatpush.bf16.msra.mxu0 %v1268
    %2057 = vmatpush.bf16.msra.mxu0 %v1264
    %2058 = vmatpush.bf16.msra.mxu0 %v1260
    %2059 = vmatmul.bf16.gmra.mxu0 %v380
    %v2060 = vpop.f32.mrf.mxu0
    %v2061 = vadd.f32 %v2047, %v2060
    %v2062 = vpop.f32.mrf.mxu0
    %v2063 = vadd.f32 %v2049, %v2062
    %2064 = vdwg.mxu0
    %2065 = vmatpush.bf16.msra.mxu0 %v1320
    %2066 = vmatpush.bf16.msra.mxu0 %v1316
    %2067 = vmatpush.bf16.msra.mxu0 %v1312
    %2068 = vmatpush.bf16.msra.mxu0 %v1308
    %2069 = vmatpush.bf16.msra.mxu0 %v1304
    %2070 = vmatpush.bf16.msra.mxu0 %v1300
    %2071 = vmatpush.bf16.msra.mxu0 %v1296
    %2072 = vmatpush.bf16.msra.mxu0 %v1292
    %2073 = vmatmul.bf16.gmra.mxu0 %v381
    %v2074 = vpop.f32.mrf.mxu0
    %v2075 = vadd.f32 %v2061, %v2074
    %v2076 = vpop.f32.mrf.mxu0
    %v2077 = vadd.f32 %v2063, %v2076
    %2078 = vdwg.mxu0
    %2079 = vmatpush.bf16.msra.mxu0 %v1352
    %2080 = vmatpush.bf16.msra.mxu0 %v1348
    %2081 = vmatpush.bf16.msra.mxu0 %v1344
    %2082 = vmatpush.bf16.msra.mxu0 %v1340
    %2083 = vmatpush.bf16.msra.mxu0 %v1336
    %2084 = vmatpush.bf16.msra.mxu0 %v1332
    %2085 = vmatpush.bf16.msra.mxu0 %v1328
    %2086 = vmatpush.bf16.msra.mxu0 %v1324
    %2087 = vmatmul.bf16.gmra.mxu0 %v382
    %v2088 = vpop.f32.mrf.mxu0
    %v2089 = vadd.f32 %v2075, %v2088
    %v2090 = vpop.f32.mrf.mxu0
    %v2091 = vadd.f32 %v2077, %v2090
    %2092 = vdwg.mxu0
    %2093 = vmatpush.bf16.msra.mxu0 %v1384
    %2094 = vmatpush.bf16.msra.mxu0 %v1380
    %2095 = vmatpush.bf16.msra.mxu0 %v1376
    %2096 = vmatpush.bf16.msra.mxu0 %v1372
    %2097 = vmatpush.bf16.msra.mxu0 %v1368
    %2098 = vmatpush.bf16.msra.mxu0 %v1364
    %2099 = vmatpush.bf16.msra.mxu0 %v1360
    %2100 = vmatpush.bf16.msra.mxu0 %v1356
    %2101 = vmatmul.bf16.gmra.mxu0 %v383
    %v2102 = vpop.f32.mrf.mxu0
    %v2103 = vadd.f32 %v2089, %v2102
    %v2104 = vpop.f32.mrf.mxu0
    %v2105 = vadd.f32 %v2091, %v2104
    %2106 = vdwg.mxu0
    %2107 = vmatpush.bf16.msra.mxu0 %v1416
    %2108 = vmatpush.bf16.msra.mxu0 %v1412
    %2109 = vmatpush.bf16.msra.mxu0 %v1408
    %2110 = vmatpush.bf16.msra.mxu0 %v1404
    %2111 = vmatpush.bf16.msra.mxu0 %v1400
    %2112 = vmatpush.bf16.msra.mxu0 %v1396
    %2113 = vmatpush.bf16.msra.mxu0 %v1392
    %2114 = vmatpush.bf16.msra.mxu0 %v1388
    %2115 = vmatmul.bf16.gmra.mxu0 %v384
    %v2116 = vpop.f32.mrf.mxu0
    %v2117 = vadd.f32 %v2103, %v2116
    %v2118 = vpop.f32.mrf.mxu0
    %v2119 = vadd.f32 %v2105, %v2118
    %2120 = vdwg.mxu0
    %v2121 = vmax.f32 %v1781, 0.0
    %v2122 = vmax.f32 %v1893, 0.0
    %v2123 = vmax.f32 %v2005, 0.0
    %v2124 = vmax.f32 %v2117, 0.0
    %v2125 = vmax.f32 %v1783, 0.0
    %v2126 = vmax.f32 %v1895, 0.0
    %v2127 = vmax.f32 %v2007, 0.0
    %v2128 = vmax.f32 %v2119, 0.0
    %v2129 = vpack.c.bf16 %v2125, %v2121
    %v2130 = vpack.c.bf16 %v2126, %v2122
    %v2131 = vpack.c.bf16 %v2127, %v2123
    %v2132 = vpack.c.bf16 %v2128, %v2124
    %v2133 = vld [vmem:[#allocation6] sm:$0xf]
    %v2134 = vld [vmem:[#allocation6 + $0x4] sm:$0xf]
    %v2135 = vld [vmem:[#allocation6 + $0x8] sm:$0xf]
    %v2136 = vld [vmem:[#allocation6 + $0xc] sm:$0xf]
    %v2137 = vld [vmem:[#allocation6 + $0x10] sm:$0xf]
    %v2138 = vld [vmem:[#allocation6 + $0x14] sm:$0xf]
    %v2139 = vld [vmem:[#allocation6 + $0x18] sm:$0xf]
    %v2140 = vld [vmem:[#allocation6 + $0x1c] sm:$0xf]
    %v2141 = vld [vmem:[#allocation6 + $0x20] sm:$0xf]
    %v2142 = vld [vmem:[#allocation6 + $0x24] sm:$0xf]
    %v2143 = vld [vmem:[#allocation6 + $0x28] sm:$0xf]
    %v2144 = vld [vmem:[#allocation6 + $0x2c] sm:$0xf]
    %v2145 = vld [vmem:[#allocation6 + $0x30] sm:$0xf]
    %v2146 = vld [vmem:[#allocation6 + $0x34] sm:$0xf]
    %v2147 = vld [vmem:[#allocation6 + $0x38] sm:$0xf]
    %v2148 = vld [vmem:[#allocation6 + $0x3c] sm:$0xf]
    %v2149 = vld [vmem:[#allocation6 + $0x40] sm:$0xf]
    %v2150 = vld [vmem:[#allocation6 + $0x44] sm:$0xf]
    %v2151 = vld [vmem:[#allocation6 + $0x48] sm:$0xf]
    %v2152 = vld [vmem:[#allocation6 + $0x4c] sm:$0xf]
    %v2153 = vld [vmem:[#allocation6 + $0x50] sm:$0xf]
    %v2154 = vld [vmem:[#allocation6 + $0x54] sm:$0xf]
    %v2155 = vld [vmem:[#allocation6 + $0x58] sm:$0xf]
    %v2156 = vld [vmem:[#allocation6 + $0x5c] sm:$0xf]
    %v2157 = vld [vmem:[#allocation6 + $0x60] sm:$0xf]
    %v2158 = vld [vmem:[#allocation6 + $0x64] sm:$0xf]
    %v2159 = vld [vmem:[#allocation6 + $0x68] sm:$0xf]
    %v2160 = vld [vmem:[#allocation6 + $0x6c] sm:$0xf]
    %v2161 = vld [vmem:[#allocation6 + $0x70] sm:$0xf]
    %v2162 = vld [vmem:[#allocation6 + $0x74] sm:$0xf]
    %v2163 = vld [vmem:[#allocation6 + $0x78] sm:$0xf]
    %v2164 = vld [vmem:[#allocation6 + $0x7c] sm:$0xf]
    %v2165 = vld [vmem:[#allocation6 + $0x80] sm:$0xf]
    %v2166 = vld [vmem:[#allocation6 + $0x84] sm:$0xf]
    %v2167 = vld [vmem:[#allocation6 + $0x88] sm:$0xf]
    %v2168 = vld [vmem:[#allocation6 + $0x8c] sm:$0xf]
    %v2169 = vld [vmem:[#allocation6 + $0x90] sm:$0xf]
    %v2170 = vld [vmem:[#allocation6 + $0x94] sm:$0xf]
    %v2171 = vld [vmem:[#allocation6 + $0x98] sm:$0xf]
    %v2172 = vld [vmem:[#allocation6 + $0x9c] sm:$0xf]
    %v2173 = vld [vmem:[#allocation6 + $0xa0] sm:$0xf]
    %v2174 = vld [vmem:[#allocation6 + $0xa4] sm:$0xf]
    %v2175 = vld [vmem:[#allocation6 + $0xa8] sm:$0xf]
    %v2176 = vld [vmem:[#allocation6 + $0xac] sm:$0xf]
    %v2177 = vld [vmem:[#allocation6 + $0xb0] sm:$0xf]
    %v2178 = vld [vmem:[#allocation6 + $0xb4] sm:$0xf]
    %v2179 = vld [vmem:[#allocation6 + $0xb8] sm:$0xf]
    %v2180 = vld [vmem:[#allocation6 + $0xbc] sm:$0xf]
    %v2181 = vld [vmem:[#allocation6 + $0xc0] sm:$0xf]
    %v2182 = vld [vmem:[#allocation6 + $0xc4] sm:$0xf]
    %v2183 = vld [vmem:[#allocation6 + $0xc8] sm:$0xf]
    %v2184 = vld [vmem:[#allocation6 + $0xcc] sm:$0xf]
    %v2185 = vld [vmem:[#allocation6 + $0xd0] sm:$0xf]
    %v2186 = vld [vmem:[#allocation6 + $0xd4] sm:$0xf]
    %v2187 = vld [vmem:[#allocation6 + $0xd8] sm:$0xf]
    %v2188 = vld [vmem:[#allocation6 + $0xdc] sm:$0xf]
    %v2189 = vld [vmem:[#allocation6 + $0xe0] sm:$0xf]
    %v2190 = vld [vmem:[#allocation6 + $0xe4] sm:$0xf]
    %v2191 = vld [vmem:[#allocation6 + $0xe8] sm:$0xf]
    %v2192 = vld [vmem:[#allocation6 + $0xec] sm:$0xf]
    %v2193 = vld [vmem:[#allocation6 + $0xf0] sm:$0xf]
    %v2194 = vld [vmem:[#allocation6 + $0xf4] sm:$0xf]
    %v2195 = vld [vmem:[#allocation6 + $0xf8] sm:$0xf]
    %v2196 = vld [vmem:[#allocation6 + $0xfc] sm:$0xf]
    %v2197 = vld [vmem:[#allocation7] sm:$0x1]
    %v2199 = vperm.slane %v2197, 0
    %v2265 = vunpack.c.l.b16 %v2133
    %v2266 = vunpack.c.l.b16 %v2134
    %v2267 = vunpack.c.l.b16 %v2135
    %v2268 = vunpack.c.l.b16 %v2136
    %v2269 = vunpack.c.l.b16 %v2137
    %v2270 = vunpack.c.l.b16 %v2138
    %v2271 = vunpack.c.l.b16 %v2139
    %v2272 = vunpack.c.l.b16 %v2140
    %v2273 = vunpack.c.l.b16 %v2141
    %v2274 = vunpack.c.l.b16 %v2142
    %v2275 = vunpack.c.l.b16 %v2143
    %v2276 = vunpack.c.l.b16 %v2144
    %v2277 = vunpack.c.l.b16 %v2145
    %v2278 = vunpack.c.l.b16 %v2146
    %v2279 = vunpack.c.l.b16 %v2147
    %v2280 = vunpack.c.l.b16 %v2148
    %v2281 = vunpack.c.l.b16 %v2149
    %v2282 = vunpack.c.l.b16 %v2150
    %v2283 = vunpack.c.l.b16 %v2151
    %v2284 = vunpack.c.l.b16 %v2152
    %v2285 = vunpack.c.l.b16 %v2153
    %v2286 = vunpack.c.l.b16 %v2154
    %v2287 = vunpack.c.l.b16 %v2155
    %v2288 = vunpack.c.l.b16 %v2156
    %v2289 = vunpack.c.l.b16 %v2157
    %v2290 = vunpack.c.l.b16 %v2158
    %v2291 = vunpack.c.l.b16 %v2159
    %v2292 = vunpack.c.l.b16 %v2160
    %v2293 = vunpack.c.l.b16 %v2161
    %v2294 = vunpack.c.l.b16 %v2162
    %v2295 = vunpack.c.l.b16 %v2163
    %v2296 = vunpack.c.l.b16 %v2164
    %v2297 = vunpack.c.l.b16 %v2165
    %v2298 = vunpack.c.l.b16 %v2166
    %v2299 = vunpack.c.l.b16 %v2167
    %v2300 = vunpack.c.l.b16 %v2168
    %v2301 = vunpack.c.l.b16 %v2169
    %v2302 = vunpack.c.l.b16 %v2170
    %v2303 = vunpack.c.l.b16 %v2171
    %v2304 = vunpack.c.l.b16 %v2172
    %v2305 = vunpack.c.l.b16 %v2173
    %v2306 = vunpack.c.l.b16 %v2174
    %v2307 = vunpack.c.l.b16 %v2175
    %v2308 = vunpack.c.l.b16 %v2176
    %v2309 = vunpack.c.l.b16 %v2177
    %v2310 = vunpack.c.l.b16 %v2178
    %v2311 = vunpack.c.l.b16 %v2179
    %v2312 = vunpack.c.l.b16 %v2180
    %v2313 = vunpack.c.l.b16 %v2181
    %v2314 = vunpack.c.l.b16 %v2182
    %v2315 = vunpack.c.l.b16 %v2183
    %v2316 = vunpack.c.l.b16 %v2184
    %v2317 = vunpack.c.l.b16 %v2185
    %v2318 = vunpack.c.l.b16 %v2186
    %v2319 = vunpack.c.l.b16 %v2187
    %v2320 = vunpack.c.l.b16 %v2188
    %v2321 = vunpack.c.l.b16 %v2189
    %v2322 = vunpack.c.l.b16 %v2190
    %v2323 = vunpack.c.l.b16 %v2191
    %v2324 = vunpack.c.l.b16 %v2192
    %v2325 = vunpack.c.l.b16 %v2193
    %v2326 = vunpack.c.l.b16 %v2194
    %v2327 = vunpack.c.l.b16 %v2195
    %v2328 = vunpack.c.l.b16 %v2196
    %v2329 = vpack.c.b16 %v2266, %v2265
    %v2330 = vpack.c.b16 %v2268, %v2267
    %v2331 = vpack.c.b16 %v2270, %v2269
    %v2332 = vpack.c.b16 %v2272, %v2271
    %v2333 = vpack.c.b16 %v2274, %v2273
    %v2334 = vpack.c.b16 %v2276, %v2275
    %v2335 = vpack.c.b16 %v2278, %v2277
    %v2336 = vpack.c.b16 %v2280, %v2279
    %v2337 = vpack.c.b16 %v2282, %v2281
    %v2338 = vpack.c.b16 %v2284, %v2283
    %v2339 = vpack.c.b16 %v2286, %v2285
    %v2340 = vpack.c.b16 %v2288, %v2287
    %v2341 = vpack.c.b16 %v2290, %v2289
    %v2342 = vpack.c.b16 %v2292, %v2291
    %v2343 = vpack.c.b16 %v2294, %v2293
    %v2344 = vpack.c.b16 %v2296, %v2295
    %v2345 = vpack.c.b16 %v2298, %v2297
    %v2346 = vpack.c.b16 %v2300, %v2299
    %v2347 = vpack.c.b16 %v2302, %v2301
    %v2348 = vpack.c.b16 %v2304, %v2303
    %v2349 = vpack.c.b16 %v2306, %v2305
    %v2350 = vpack.c.b16 %v2308, %v2307
    %v2351 = vpack.c.b16 %v2310, %v2309
    %v2352 = vpack.c.b16 %v2312, %v2311
    %v2353 = vpack.c.b16 %v2314, %v2313
    %v2354 = vpack.c.b16 %v2316, %v2315
    %v2355 = vpack.c.b16 %v2318, %v2317
    %v2356 = vpack.c.b16 %v2320, %v2319
    %v2357 = vpack.c.b16 %v2322, %v2321
    %v2358 = vpack.c.b16 %v2324, %v2323
    %v2359 = vpack.c.b16 %v2326, %v2325
    %v2360 = vpack.c.b16 %v2328, %v2327
    %2393 = vmatpush.bf16.msra.mxu0 %v2336
    %2394 = vmatpush.bf16.msra.mxu0 %v2335
    %2395 = vmatpush.bf16.msra.mxu0 %v2334
    %2396 = vmatpush.bf16.msra.mxu0 %v2333
    %2397 = vmatpush.bf16.msra.mxu0 %v2332
    %2398 = vmatpush.bf16.msra.mxu0 %v2331
    %2399 = vmatpush.bf16.msra.mxu0 %v2330
    %2400 = vmatpush.bf16.msra.mxu0 %v2329
    %2401 = vmatmul.bf16.gmra.mxu0 %v2129
    %v2402 = vpop.f32.mrf.mxu0
    %v2403 = vadd.f32 %v2199, %v2402
    %v2404 = vpop.f32.mrf.mxu0
    %v2405 = vadd.f32 %v2199, %v2404
    %2406 = vdwg.mxu0
    %2407 = vmatpush.bf16.msra.mxu0 %v2344
    %2408 = vmatpush.bf16.msra.mxu0 %v2343
    %2409 = vmatpush.bf16.msra.mxu0 %v2342
    %2410 = vmatpush.bf16.msra.mxu0 %v2341
    %2411 = vmatpush.bf16.msra.mxu0 %v2340
    %2412 = vmatpush.bf16.msra.mxu0 %v2339
    %2413 = vmatpush.bf16.msra.mxu0 %v2338
    %2414 = vmatpush.bf16.msra.mxu0 %v2337
    %2415 = vmatmul.bf16.gmra.mxu0 %v2130
    %v2416 = vpop.f32.mrf.mxu0
    %v2417 = vadd.f32 %v2403, %v2416
    %v2418 = vpop.f32.mrf.mxu0
    %v2419 = vadd.f32 %v2405, %v2418
    %2420 = vdwg.mxu0
    %2421 = vmatpush.bf16.msra.mxu0 %v2352
    %2422 = vmatpush.bf16.msra.mxu0 %v2351
    %2423 = vmatpush.bf16.msra.mxu0 %v2350
    %2424 = vmatpush.bf16.msra.mxu0 %v2349
    %2425 = vmatpush.bf16.msra.mxu0 %v2348
    %2426 = vmatpush.bf16.msra.mxu0 %v2347
    %2427 = vmatpush.bf16.msra.mxu0 %v2346
    %2428 = vmatpush.bf16.msra.mxu0 %v2345
    %2429 = vmatmul.bf16.gmra.mxu0 %v2131
    %v2430 = vpop.f32.mrf.mxu0
    %v2431 = vadd.f32 %v2417, %v2430
    %v2432 = vpop.f32.mrf.mxu0
    %v2433 = vadd.f32 %v2419, %v2432
    %2434 = vdwg.mxu0
    %2435 = vmatpush.bf16.msra.mxu0 %v2360
    %2436 = vmatpush.bf16.msra.mxu0 %v2359
    %2437 = vmatpush.bf16.msra.mxu0 %v2358
    %2438 = vmatpush.bf16.msra.mxu0 %v2357
    %2439 = vmatpush.bf16.msra.mxu0 %v2356
    %2440 = vmatpush.bf16.msra.mxu0 %v2355
    %2441 = vmatpush.bf16.msra.mxu0 %v2354
    %2442 = vmatpush.bf16.msra.mxu0 %v2353
    %2443 = vmatmul.bf16.gmra.mxu0 %v2132
    %v2444 = vpop.f32.mrf.mxu0
    %v2445 = vadd.f32 %v2431, %v2444
    %v2446 = vpop.f32.mrf.mxu0
    %v2447 = vadd.f32 %v2433, %v2446
    %2448 = vdwg.mxu0
    %2449 = vmax.xlane.f32.xlu0 %v2445
    %v2450 = vpop.xlane.xlu0 %2449
    %2451 = vmax.xlane.f32.xlu0 %v2447
    %v2452 = vpop.xlane.xlu0 %2451
    %v2453 = vsub.f32 %v2445, %v2450
    %v2454 = vsub.f32 %v2447, %v2452
    %v2455 = vmul.f32 %v2453, 1.442695
    %v2456 = vpow.pop %v2455
    %v2457 = vmul.f32 %v2454, 1.442695
    %v2458 = vpow.pop %v2457
    %2459 = vadd.xlane.f32.xlu0 %v2456
    %v2460 = vpop.xlane.xlu0 %2459
    %2461 = vadd.xlane.f32.xlu0 %v2458
    %v2462 = vpop.xlane.xlu0 %2461
    %v2463 = vlog2.pop %v2460
    %v2464 = vmul.f32 %v2463, 0.6931472
    %v2465 = vlog2.pop %v2462
    %v2466 = vmul.f32 %v2465, 0.6931472
    %v2467 = vsub.f32 %v2453, %v2464
    %v2468 = vsub.f32 %v2454, %v2466
    %2469 = vst [vmem:[%s5] sm:$0xff] %v2467
    %2470 = vst [vmem:[%s5 + $0x8] sm:$0xff] %v2468
    // Predicated region
    $region38: #{_lambda_.3} parent=1 // pred_check
      _
    $region39: #{_lambda_.3} parent=1 // pred_check_branch
      %2472 = sbr.rel (0) target = $region41
    $region40: #{_lambda_.3} parent=1 // pred_region
      _
    $region41: #{_lambda_.3} parent=1 // pred_fallthru
      _
    // Predicated region
    $region42: #{_lambda_.3} parent=1 // pred_check
      _
    $region43: #{_lambda_.3} parent=1 // pred_check_branch
      %2474 = sbr.rel (0) target = $region45
    $region44: #{_lambda_.3} parent=1 // pred_region
      _
    $region45: #{_lambda_.3} parent=1 // pred_fallthru
      _
    %2475 = vsyncpa [#allocation3], 1
    %2476 = vsyncpa [#allocation5], 1
    %2477 = vsyncpa [#allocation8], 1

// kernel: _lambda_.2
$region0: #{_lambda_.2}
  #allocation0 [shape = 'u32[]', space=smem, size = 0x4, offset = 0x4, fixed_abs, tag = 'smem constant byte address 0x4 - core index']
  #allocation1 [shape = 'u32[72,128]{1,0:T(1,128)}', space=vmem, size = 0x9000, scoped, tag = 'internal scratch']
  %s0 = inlined_call_operand.vmem [shape: bf16[8,16,28], index: 0, kind: input, shape index: {}]
  %s1 = inlined_call_operand.vmem [shape: bf16[5,2,28,384], index: 1, kind: input, shape index: {}]
  %s2 = inlined_call_operand.hbm [shape: f32[1,384], index: 2, kind: input, shape index: {}]
  %s3 = inlined_call_operand.hbm [shape: bf16[5,2,384,256], index: 3, kind: input, shape index: {}]
  %s4 = inlined_call_operand.hbm [shape: f32[1,256], index: 4, kind: input, shape index: {}]
  %s5 = inlined_call_operand.vmem [shape: bf16[16,256], index: 5, kind: output, shape index: {}]
  %s6 = sld [smem:[#allocation0]]
  $region42: #{_lambda_.2} parent=0
    _
  %s8 = ssub.s32 1, %s6
  %s9 = scalar_select 0, %s8, %s6
  $region1: #{_lambda_.2} parent=0
    #allocation2 [shape = 'u8[1536]{0}', space=vmem, size = 0x800, scoped, tag = 'input window, operand 2, single buffered']
    #allocation3 [shape = 's32[1]{0}', space=sflag, size = 0x4, scoped, tag = 'scoped memory for _lambda_.2']
    #allocation4 [shape = 'u8[1966080]{0}', space=vmem, size = 0x1e0000, scoped, tag = 'input window, operand 3, single buffered']
    #allocation5 [shape = 's32[1]{0}', space=sflag, size = 0x4, scoped, tag = 'scoped memory for _lambda_.2']
    #allocation6 [shape = 'u8[1024]{0}', space=vmem, size = 0x400, scoped, tag = 'input window, operand 4, single buffered']
    %10 = vsyncpa [#allocation3], 0
    %11 = vsyncpa [#allocation5], 0
    // Predicated region
    $region2: #{_lambda_.2} parent=1 // pred_check
      _
    $region3: #{_lambda_.2} parent=1 // pred_check_branch
      %13 = sbr.rel (0) target = $region5
    $region4: #{_lambda_.2} parent=1 // pred_region
      _
    $region5: #{_lambda_.2} parent=1 // pred_fallthru
      _
    // Predicated region
    $region6: #{_lambda_.2} parent=1 // pred_check
      _
    $region7: #{_lambda_.2} parent=1 // pred_check_branch
      %15 = sbr.rel (0) target = $region9
    $region8: #{_lambda_.2} parent=1 // pred_region
      _
    $region9: #{_lambda_.2} parent=1 // pred_fallthru
      _
    // Predicated region
    $region10: #{_lambda_.2} parent=1 // pred_check
      _
    $region11: #{_lambda_.2} parent=1 // pred_check_branch
      %17 = sbr.rel (0) target = $region13
    $region12: #{_lambda_.2} parent=1 // pred_region
      %19 = vsyncadd [#allocation3], 0
      %s21 = sshll.u32 %s2, 4
      %s22 = int_to_ptr.hbm [resolvable:$true] %s21
      %s23 = sshll.u32 [#allocation2], 4
      %s24 = int_to_ptr.vmem [resolvable:$true] %s23
      %26 = dma.hbm_to_vmem [thread:$0]  %s22, 48, %s24, [#allocation3]
    $region13: #{_lambda_.2} parent=1 // pred_fallthru
      _
    // Predicated region
    $region14: #{_lambda_.2} parent=1 // pred_check
      _
    $region15: #{_lambda_.2} parent=1 // pred_check_branch
      %28 = sbr.rel (0) target = $region17
    $region16: #{_lambda_.2} parent=1 // pred_region
      %30 = vsyncadd [#allocation5], 0
      %s31 = sshll.u32 %s3, 4
      %s32 = int_to_ptr.hbm [resolvable:$true] %s31
      %s33 = sshll.u32 [#allocation4], 4
      %s34 = int_to_ptr.vmem [resolvable:$true] %s33
      %39 = dma.hbm_to_vmem [thread:$0]  %s32, 61440, %s34, [#allocation5], 128, 128, 8
    $region17: #{_lambda_.2} parent=1 // pred_fallthru
      _
    // Predicated region
    $region18: #{_lambda_.2} parent=1 // pred_check
      _
    $region19: #{_lambda_.2} parent=1 // pred_check_branch
      %41 = sbr.rel (0) target = $region21
    $region20: #{_lambda_.2} parent=1 // pred_region
      %43 = vsyncadd [#allocation5], 0
      %s45 = sshll.u32 %s4, 4
      %s46 = int_to_ptr.hbm [resolvable:$true] %s45
      %s47 = sshll.u32 [#allocation6], 4
      %s48 = int_to_ptr.vmem [resolvable:$true] %s47
      %50 = dma.hbm_to_vmem [thread:$0]  %s46, 32, %s48, [#allocation5]
    $region21: #{_lambda_.2} parent=1 // pred_fallthru
      _
    // Predicated region
    $region22: #{_lambda_.2} parent=1 // pred_check
      _
    $region23: #{_lambda_.2} parent=1 // pred_check_branch
      %52 = sbr.rel (0) target = $region25
    $region24: #{_lambda_.2} parent=1 // pred_region
      %54 = dma.done [#allocation3], 48
    $region25: #{_lambda_.2} parent=1 // pred_fallthru
      _
    // Predicated region
    $region26: #{_lambda_.2} parent=1 // pred_check
      _
    $region27: #{_lambda_.2} parent=1 // pred_check_branch
      %56 = sbr.rel (0) target = $region29
    $region28: #{_lambda_.2} parent=1 // pred_region
      %58 = dma.done [#allocation5], 61440
    $region29: #{_lambda_.2} parent=1 // pred_fallthru
      _
    // Predicated region
    $region30: #{_lambda_.2} parent=1 // pred_check
      _
    $region31: #{_lambda_.2} parent=1 // pred_check_branch
      %60 = sbr.rel (0) target = $region33
    $region32: #{_lambda_.2} parent=1 // pred_region
      %62 = dma.done [#allocation5], 32
    $region33: #{_lambda_.2} parent=1 // pred_fallthru
      _
    %v64 = vld [vmem:[%s0] sm:$0xf]
    %v65 = vld [vmem:[%s0 + $0x4] sm:$0xf]
    %v66 = vld [vmem:[%s0 + $0x8] sm:$0xf]
    %v67 = vld [vmem:[%s0 + $0xc] sm:$0xf]
    %v68 = vld [vmem:[%s0 + $0x10] sm:$0xf]
    %v69 = vld [vmem:[%s0 + $0x14] sm:$0xf]
    %v70 = vld [vmem:[%s0 + $0x18] sm:$0xf]
    %v71 = vld [vmem:[%s0 + $0x1c] sm:$0xf]
    %v72 = vld [vmem:[%s0 + $0x20] sm:$0xf]
    %v73 = vld [vmem:[%s0 + $0x24] sm:$0xf]
    %v74 = vld [vmem:[%s0 + $0x28] sm:$0xf]
    %v75 = vld [vmem:[%s0 + $0x2c] sm:$0xf]
    %v76 = vld [vmem:[%s0 + $0x30] sm:$0xf]
    %v77 = vld [vmem:[%s0 + $0x34] sm:$0xf]
    %v78 = vld [vmem:[%s0 + $0x38] sm:$0xf]
    %v79 = vld [vmem:[%s0 + $0x3c] sm:$0xf]
    %v80 = vld [vmem:[%s1] sm:$0xff]
    %v81 = vld [vmem:[%s1 + $0x8] sm:$0xf]
    %v82 = vld [vmem:[%s1 + $0xc] sm:$0xff]
    %v83 = vld [vmem:[%s1 + $0x14] sm:$0xf]
    %v84 = vld [vmem:[%s1 + $0x18] sm:$0xff]
    %v85 = vld [vmem:[%s1 + $0x20] sm:$0xf]
    %v86 = vld [vmem:[%s1 + $0x24] sm:$0x33]
    %v87 = vld [vmem:[%s1 + $0x2c] sm:$0x3]
    %v88 = vld [vmem:[%s1 + $0x30] sm:$0xff]
    %v89 = vld [vmem:[%s1 + $0x38] sm:$0xf]
    %v90 = vld [vmem:[%s1 + $0x3c] sm:$0xff]
    %v91 = vld [vmem:[%s1 + $0x44] sm:$0xf]
    %v92 = vld [vmem:[%s1 + $0x48] sm:$0xff]
    %v93 = vld [vmem:[%s1 + $0x50] sm:$0xf]
    %v94 = vld [vmem:[%s1 + $0x54] sm:$0x33]
    %v95 = vld [vmem:[%s1 + $0x5c] sm:$0x3]
    %v96 = vld [vmem:[%s1 + $0x60] sm:$0xff]
    %v97 = vld [vmem:[%s1 + $0x68] sm:$0xf]
    %v98 = vld [vmem:[%s1 + $0x6c] sm:$0xff]
    %v99 = vld [vmem:[%s1 + $0x74] sm:$0xf]
    %v100 = vld [vmem:[%s1 + $0x78] sm:$0xff]
    %v101 = vld [vmem:[%s1 + $0x80] sm:$0xf]
    %v102 = vld [vmem:[%s1 + $0x84] sm:$0x33]
    %v103 = vld [vmem:[%s1 + $0x8c] sm:$0x3]
    %v104 = vld [vmem:[%s1 + $0x90] sm:$0xff]
    %v105 = vld [vmem:[%s1 + $0x98] sm:$0xf]
    %v106 = vld [vmem:[%s1 + $0x9c] sm:$0xff]
    %v107 = vld [vmem:[%s1 + $0xa4] sm:$0xf]
    %v108 = vld [vmem:[%s1 + $0xa8] sm:$0xff]
    %v109 = vld [vmem:[%s1 + $0xb0] sm:$0xf]
    %v110 = vld [vmem:[%s1 + $0xb4] sm:$0x33]
    %v111 = vld [vmem:[%s1 + $0xbc] sm:$0x3]
    %v112 = vld [vmem:[%s1 + $0xc0] sm:$0xff]
    %v113 = vld [vmem:[%s1 + $0xc8] sm:$0xf]
    %v114 = vld [vmem:[%s1 + $0xcc] sm:$0xff]
    %v115 = vld [vmem:[%s1 + $0xd4] sm:$0xf]
    %v116 = vld [vmem:[%s1 + $0xd8] sm:$0xff]
    %v117 = vld [vmem:[%s1 + $0xe0] sm:$0xf]
    %v118 = vld [vmem:[%s1 + $0xe4] sm:$0x33]
    %v119 = vld [vmem:[%s1 + $0xec] sm:$0x3]
    %v120 = vld [vmem:[%s1 + $0xf0] sm:$0xff]
    %v121 = vld [vmem:[%s1 + $0xf8] sm:$0xf]
    %v122 = vld [vmem:[%s1 + $0xfc] sm:$0xff]
    %v123 = vld [vmem:[%s1 + $0x104] sm:$0xf]
    %v124 = vld [vmem:[%s1 + $0x108] sm:$0xff]
    %v125 = vld [vmem:[%s1 + $0x110] sm:$0xf]
    %v126 = vld [vmem:[%s1 + $0x114] sm:$0x33]
    %v127 = vld [vmem:[%s1 + $0x11c] sm:$0x3]
    %v128 = vld [vmem:[%s1 + $0x120] sm:$0xff]
    %v129 = vld [vmem:[%s1 + $0x128] sm:$0xf]
    %v130 = vld [vmem:[%s1 + $0x12c] sm:$0xff]
    %v131 = vld [vmem:[%s1 + $0x134] sm:$0xf]
    %v132 = vld [vmem:[%s1 + $0x138] sm:$0xff]
    %v133 = vld [vmem:[%s1 + $0x140] sm:$0xf]
    %v134 = vld [vmem:[%s1 + $0x144] sm:$0x33]
    %v135 = vld [vmem:[%s1 + $0x14c] sm:$0x3]
    %v136 = vld [vmem:[%s1 + $0x150] sm:$0xff]
    %v137 = vld [vmem:[%s1 + $0x158] sm:$0xf]
    %v138 = vld [vmem:[%s1 + $0x15c] sm:$0xff]
    %v139 = vld [vmem:[%s1 + $0x164] sm:$0xf]
    %v140 = vld [vmem:[%s1 + $0x168] sm:$0xff]
    %v141 = vld [vmem:[%s1 + $0x170] sm:$0xf]
    %v142 = vld [vmem:[%s1 + $0x174] sm:$0x33]
    %v143 = vld [vmem:[%s1 + $0x17c] sm:$0x3]
    %v144 = vld [vmem:[%s1 + $0x180] sm:$0xff]
    %v145 = vld [vmem:[%s1 + $0x188] sm:$0xf]
    %v146 = vld [vmem:[%s1 + $0x18c] sm:$0xff]
    %v147 = vld [vmem:[%s1 + $0x194] sm:$0xf]
    %v148 = vld [vmem:[%s1 + $0x198] sm:$0xff]
    %v149 = vld [vmem:[%s1 + $0x1a0] sm:$0xf]
    %v150 = vld [vmem:[%s1 + $0x1a4] sm:$0x33]
    %v151 = vld [vmem:[%s1 + $0x1ac] sm:$0x3]
    %v152 = vld [vmem:[%s1 + $0x1b0] sm:$0xff]
    %v153 = vld [vmem:[%s1 + $0x1b8] sm:$0xf]
    %v154 = vld [vmem:[%s1 + $0x1bc] sm:$0xff]
    %v155 = vld [vmem:[%s1 + $0x1c4] sm:$0xf]
    %v156 = vld [vmem:[%s1 + $0x1c8] sm:$0xff]
    %v157 = vld [vmem:[%s1 + $0x1d0] sm:$0xf]
    %v158 = vld [vmem:[%s1 + $0x1d4] sm:$0x33]
    %v159 = vld [vmem:[%s1 + $0x1dc] sm:$0x3]
    %v160 = vld [vmem:[#allocation4] sm:$0xff]
    %v161 = vld [vmem:[#allocation4 + $0x8] sm:$0xff]
    %v162 = vld [vmem:[#allocation4 + $0x10] sm:$0xff]
    %v163 = vld [vmem:[#allocation4 + $0x18] sm:$0xff]
    %v164 = vld [vmem:[#allocation4 + $0x20] sm:$0xff]
    %v165 = vld [vmem:[#allocation4 + $0x28] sm:$0xff]
    %v166 = vld [vmem:[#allocation4 + $0x30] sm:$0xff]
    %v167 = vld [vmem:[#allocation4 + $0x38] sm:$0xff]
    %v168 = vld [vmem:[#allocation4 + $0x40] sm:$0xff]
    %v169 = vld [vmem:[#allocation4 + $0x48] sm:$0xff]
    %v170 = vld [vmem:[#allocation4 + $0x50] sm:$0xff]
    %v171 = vld [vmem:[#allocation4 + $0x58] sm:$0xff]
    %v172 = vld [vmem:[#allocation4 + $0x60] sm:$0xff]
    %v173 = vld [vmem:[#allocation4 + $0x68] sm:$0xff]
    %v174 = vld [vmem:[#allocation4 + $0x70] sm:$0xff]
    %v175 = vld [vmem:[#allocation4 + $0x78] sm:$0xff]
    %v176 = vld [vmem:[#allocation4 + $0x80] sm:$0xff]
    %v177 = vld [vmem:[#allocation4 + $0x88] sm:$0xff]
    %v178 = vld [vmem:[#allocation4 + $0x90] sm:$0xff]
    %v179 = vld [vmem:[#allocation4 + $0x98] sm:$0xff]
    %v180 = vld [vmem:[#allocation4 + $0xa0] sm:$0xff]
    %v181 = vld [vmem:[#allocation4 + $0xa8] sm:$0xff]
    %v182 = vld [vmem:[#allocation4 + $0xb0] sm:$0xff]
    %v183 = vld [vmem:[#allocation4 + $0xb8] sm:$0xff]
    %v184 = vld [vmem:[#allocation4 + $0xc0] sm:$0xff]
    %v185 = vld [vmem:[#allocation4 + $0xc8] sm:$0xff]
    %v186 = vld [vmem:[#allocation4 + $0xd0] sm:$0xff]
    %v187 = vld [vmem:[#allocation4 + $0xd8] sm:$0xff]
    %v188 = vld [vmem:[#allocation4 + $0xe0] sm:$0xff]
    %v189 = vld [vmem:[#allocation4 + $0xe8] sm:$0xff]
    %v190 = vld [vmem:[#allocation4 + $0xf0] sm:$0xff]
    %v191 = vld [vmem:[#allocation4 + $0xf8] sm:$0xff]
    %v192 = vld [vmem:[#allocation4 + $0x100] sm:$0xff]
    %v193 = vld [vmem:[#allocation4 + $0x108] sm:$0xff]
    %v194 = vld [vmem:[#allocation4 + $0x110] sm:$0xff]
    %v195 = vld [vmem:[#allocation4 + $0x118] sm:$0xff]
    %v196 = vld [vmem:[#allocation4 + $0x120] sm:$0xff]
    %v197 = vld [vmem:[#allocation4 + $0x128] sm:$0xff]
    %v198 = vld [vmem:[#allocation4 + $0x130] sm:$0xff]
    %v199 = vld [vmem:[#allocation4 + $0x138] sm:$0xff]
    %v200 = vld [vmem:[#allocation4 + $0x140] sm:$0xff]
    %v201 = vld [vmem:[#allocation4 + $0x148] sm:$0xff]
    %v202 = vld [vmem:[#allocation4 + $0x150] sm:$0xff]
    %v203 = vld [vmem:[#allocation4 + $0x158] sm:$0xff]
    %v204 = vld [vmem:[#allocation4 + $0x160] sm:$0xff]
    %v205 = vld [vmem:[#allocation4 + $0x168] sm:$0xff]
    %v206 = vld [vmem:[#allocation4 + $0x170] sm:$0xff]
    %v207 = vld [vmem:[#allocation4 + $0x178] sm:$0xff]
    %v208 = vld [vmem:[#allocation4 + $0x180] sm:$0xff]
    %v209 = vld [vmem:[#allocation4 + $0x188] sm:$0xff]
    %v210 = vld [vmem:[#allocation4 + $0x190] sm:$0xff]
    %v211 = vld [vmem:[#allocation4 + $0x198] sm:$0xff]
    %v212 = vld [vmem:[#allocation4 + $0x1a0] sm:$0xff]
    %v213 = vld [vmem:[#allocation4 + $0x1a8] sm:$0xff]
    %v214 = vld [vmem:[#allocation4 + $0x1b0] sm:$0xff]
    %v215 = vld [vmem:[#allocation4 + $0x1b8] sm:$0xff]
    %v216 = vld [vmem:[#allocation4 + $0x1c0] sm:$0xff]
    %v217 = vld [vmem:[#allocation4 + $0x1c8] sm:$0xff]
    %v218 = vld [vmem:[#allocation4 + $0x1d0] sm:$0xff]
    %v219 = vld [vmem:[#allocation4 + $0x1d8] sm:$0xff]
    %v220 = vld [vmem:[#allocation4 + $0x1e0] sm:$0xff]
    %v221 = vld [vmem:[#allocation4 + $0x1e8] sm:$0xff]
    %v222 = vld [vmem:[#allocation4 + $0x1f0] sm:$0xff]
    %v223 = vld [vmem:[#allocation4 + $0x1f8] sm:$0xff]
    %v224 = vld [vmem:[#allocation4 + $0x200] sm:$0xff]
    %v225 = vld [vmem:[#allocation4 + $0x208] sm:$0xff]
    %v226 = vld [vmem:[#allocation4 + $0x210] sm:$0xff]
    %v227 = vld [vmem:[#allocation4 + $0x218] sm:$0xff]
    %v228 = vld [vmem:[#allocation4 + $0x220] sm:$0xff]
    %v229 = vld [vmem:[#allocation4 + $0x228] sm:$0xff]
    %v230 = vld [vmem:[#allocation4 + $0x230] sm:$0xff]
    %v231 = vld [vmem:[#allocation4 + $0x238] sm:$0xff]
    %v232 = vld [vmem:[#allocation4 + $0x240] sm:$0xff]
    %v233 = vld [vmem:[#allocation4 + $0x248] sm:$0xff]
    %v234 = vld [vmem:[#allocation4 + $0x250] sm:$0xff]
    %v235 = vld [vmem:[#allocation4 + $0x258] sm:$0xff]
    %v236 = vld [vmem:[#allocation4 + $0x260] sm:$0xff]
    %v237 = vld [vmem:[#allocation4 + $0x268] sm:$0xff]
    %v238 = vld [vmem:[#allocation4 + $0x270] sm:$0xff]
    %v239 = vld [vmem:[#allocation4 + $0x278] sm:$0xff]
    %v240 = vld [vmem:[#allocation4 + $0x280] sm:$0xff]
    %v241 = vld [vmem:[#allocation4 + $0x288] sm:$0xff]
    %v242 = vld [vmem:[#allocation4 + $0x290] sm:$0xff]
    %v243 = vld [vmem:[#allocation4 + $0x298] sm:$0xff]
    %v244 = vld [vmem:[#allocation4 + $0x2a0] sm:$0xff]
    %v245 = vld [vmem:[#allocation4 + $0x2a8] sm:$0xff]
    %v246 = vld [vmem:[#allocation4 + $0x2b0] sm:$0xff]
    %v247 = vld [vmem:[#allocation4 + $0x2b8] sm:$0xff]
    %v248 = vld [vmem:[#allocation4 + $0x2c0] sm:$0xff]
    %v249 = vld [vmem:[#allocation4 + $0x2c8] sm:$0xff]
    %v250 = vld [vmem:[#allocation4 + $0x2d0] sm:$0xff]
    %v251 = vld [vmem:[#allocation4 + $0x2d8] sm:$0xff]
    %v252 = vld [vmem:[#allocation4 + $0x2e0] sm:$0xff]
    %v253 = vld [vmem:[#allocation4 + $0x2e8] sm:$0xff]
    %v254 = vld [vmem:[#allocation4 + $0x2f0] sm:$0xff]
    %v255 = vld [vmem:[#allocation4 + $0x2f8] sm:$0xff]
    %v256 = vld [vmem:[#allocation4 + $0x300] sm:$0xff]
    %v257 = vld [vmem:[#allocation4 + $0x308] sm:$0xff]
    %v258 = vld [vmem:[#allocation4 + $0x310] sm:$0xff]
    %v259 = vld [vmem:[#allocation4 + $0x318] sm:$0xff]
    %v260 = vld [vmem:[#allocation4 + $0x320] sm:$0xff]
    %v261 = vld [vmem:[#allocation4 + $0x328] sm:$0xff]
    %v262 = vld [vmem:[#allocation4 + $0x330] sm:$0xff]
    %v263 = vld [vmem:[#allocation4 + $0x338] sm:$0xff]
    %v264 = vld [vmem:[#allocation4 + $0x340] sm:$0xff]
    %v265 = vld [vmem:[#allocation4 + $0x348] sm:$0xff]
    %v266 = vld [vmem:[#allocation4 + $0x350] sm:$0xff]
    %v267 = vld [vmem:[#allocation4 + $0x358] sm:$0xff]
    %v268 = vld [vmem:[#allocation4 + $0x360] sm:$0xff]
    %v269 = vld [vmem:[#allocation4 + $0x368] sm:$0xff]
    %v270 = vld [vmem:[#allocation4 + $0x370] sm:$0xff]
    %v271 = vld [vmem:[#allocation4 + $0x378] sm:$0xff]
    %v272 = vld [vmem:[#allocation4 + $0x380] sm:$0xff]
    %v273 = vld [vmem:[#allocation4 + $0x388] sm:$0xff]
    %v274 = vld [vmem:[#allocation4 + $0x390] sm:$0xff]
    %v275 = vld [vmem:[#allocation4 + $0x398] sm:$0xff]
    %v276 = vld [vmem:[#allocation4 + $0x3a0] sm:$0xff]
    %v277 = vld [vmem:[#allocation4 + $0x3a8] sm:$0xff]
    %v278 = vld [vmem:[#allocation4 + $0x3b0] sm:$0xff]
    %v279 = vld [vmem:[#allocation4 + $0x3b8] sm:$0xff]
    %v280 = vld [vmem:[#allocation4 + $0x3c0] sm:$0xff]
    %v281 = vld [vmem:[#allocation4 + $0x3c8] sm:$0xff]
    %v282 = vld [vmem:[#allocation4 + $0x3d0] sm:$0xff]
    %v283 = vld [vmem:[#allocation4 + $0x3d8] sm:$0xff]
    %v284 = vld [vmem:[#allocation4 + $0x3e0] sm:$0xff]
    %v285 = vld [vmem:[#allocation4 + $0x3e8] sm:$0xff]
    %v286 = vld [vmem:[#allocation4 + $0x3f0] sm:$0xff]
    %v287 = vld [vmem:[#allocation4 + $0x3f8] sm:$0xff]
    %v288 = vld [vmem:[#allocation4 + $0x400] sm:$0xff]
    %v289 = vld [vmem:[#allocation4 + $0x408] sm:$0xff]
    %v290 = vld [vmem:[#allocation4 + $0x410] sm:$0xff]
    %v291 = vld [vmem:[#allocation4 + $0x418] sm:$0xff]
    %v292 = vld [vmem:[#allocation4 + $0x420] sm:$0xff]
    %v293 = vld [vmem:[#allocation4 + $0x428] sm:$0xff]
    %v294 = vld [vmem:[#allocation4 + $0x430] sm:$0xff]
    %v295 = vld [vmem:[#allocation4 + $0x438] sm:$0xff]
    %v296 = vld [vmem:[#allocation4 + $0x440] sm:$0xff]
    %v297 = vld [vmem:[#allocation4 + $0x448] sm:$0xff]
    %v298 = vld [vmem:[#allocation4 + $0x450] sm:$0xff]
    %v299 = vld [vmem:[#allocation4 + $0x458] sm:$0xff]
    %v300 = vld [vmem:[#allocation4 + $0x460] sm:$0xff]
    %v301 = vld [vmem:[#allocation4 + $0x468] sm:$0xff]
    %v302 = vld [vmem:[#allocation4 + $0x470] sm:$0xff]
    %v303 = vld [vmem:[#allocation4 + $0x478] sm:$0xff]
    %v304 = vld [vmem:[#allocation4 + $0x480] sm:$0xff]
    %v305 = vld [vmem:[#allocation4 + $0x488] sm:$0xff]
    %v306 = vld [vmem:[#allocation4 + $0x490] sm:$0xff]
    %v307 = vld [vmem:[#allocation4 + $0x498] sm:$0xff]
    %v308 = vld [vmem:[#allocation4 + $0x4a0] sm:$0xff]
    %v309 = vld [vmem:[#allocation4 + $0x4a8] sm:$0xff]
    %v310 = vld [vmem:[#allocation4 + $0x4b0] sm:$0xff]
    %v311 = vld [vmem:[#allocation4 + $0x4b8] sm:$0xff]
    %v312 = vld [vmem:[#allocation4 + $0x4c0] sm:$0xff]
    %v313 = vld [vmem:[#allocation4 + $0x4c8] sm:$0xff]
    %v314 = vld [vmem:[#allocation4 + $0x4d0] sm:$0xff]
    %v315 = vld [vmem:[#allocation4 + $0x4d8] sm:$0xff]
    %v316 = vld [vmem:[#allocation4 + $0x4e0] sm:$0xff]
    %v317 = vld [vmem:[#allocation4 + $0x4e8] sm:$0xff]
    %v318 = vld [vmem:[#allocation4 + $0x4f0] sm:$0xff]
    %v319 = vld [vmem:[#allocation4 + $0x4f8] sm:$0xff]
    %v320 = vld [vmem:[#allocation4 + $0x500] sm:$0xff]
    %v321 = vld [vmem:[#allocation4 + $0x508] sm:$0xff]
    %v322 = vld [vmem:[#allocation4 + $0x510] sm:$0xff]
    %v323 = vld [vmem:[#allocation4 + $0x518] sm:$0xff]
    %v324 = vld [vmem:[#allocation4 + $0x520] sm:$0xff]
    %v325 = vld [vmem:[#allocation4 + $0x528] sm:$0xff]
    %v326 = vld [vmem:[#allocation4 + $0x530] sm:$0xff]
    %v327 = vld [vmem:[#allocation4 + $0x538] sm:$0xff]
    %v328 = vld [vmem:[#allocation4 + $0x540] sm:$0xff]
    %v329 = vld [vmem:[#allocation4 + $0x548] sm:$0xff]
    %v330 = vld [vmem:[#allocation4 + $0x550] sm:$0xff]
    %v331 = vld [vmem:[#allocation4 + $0x558] sm:$0xff]
    %v332 = vld [vmem:[#allocation4 + $0x560] sm:$0xff]
    %v333 = vld [vmem:[#allocation4 + $0x568] sm:$0xff]
    %v334 = vld [vmem:[#allocation4 + $0x570] sm:$0xff]
    %v335 = vld [vmem:[#allocation4 + $0x578] sm:$0xff]
    %v336 = vld [vmem:[#allocation4 + $0x580] sm:$0xff]
    %v337 = vld [vmem:[#allocation4 + $0x588] sm:$0xff]
    %v338 = vld [vmem:[#allocation4 + $0x590] sm:$0xff]
    %v339 = vld [vmem:[#allocation4 + $0x598] sm:$0xff]
    %v340 = vld [vmem:[#allocation4 + $0x5a0] sm:$0xff]
    %v341 = vld [vmem:[#allocation4 + $0x5a8] sm:$0xff]
    %v342 = vld [vmem:[#allocation4 + $0x5b0] sm:$0xff]
    %v343 = vld [vmem:[#allocation4 + $0x5b8] sm:$0xff]
    %v344 = vld [vmem:[#allocation4 + $0x5c0] sm:$0xff]
    %v345 = vld [vmem:[#allocation4 + $0x5c8] sm:$0xff]
    %v346 = vld [vmem:[#allocation4 + $0x5d0] sm:$0xff]
    %v347 = vld [vmem:[#allocation4 + $0x5d8] sm:$0xff]
    %v348 = vld [vmem:[#allocation4 + $0x5e0] sm:$0xff]
    %v349 = vld [vmem:[#allocation4 + $0x5e8] sm:$0xff]
    %v350 = vld [vmem:[#allocation4 + $0x5f0] sm:$0xff]
    %v351 = vld [vmem:[#allocation4 + $0x5f8] sm:$0xff]
    %v352 = vld [vmem:[#allocation4 + $0x600] sm:$0xff]
    %v353 = vld [vmem:[#allocation4 + $0x608] sm:$0xff]
    %v354 = vld [vmem:[#allocation4 + $0x610] sm:$0xff]
    %v355 = vld [vmem:[#allocation4 + $0x618] sm:$0xff]
    %v356 = vld [vmem:[#allocation4 + $0x620] sm:$0xff]
    %v357 = vld [vmem:[#allocation4 + $0x628] sm:$0xff]
    %v358 = vld [vmem:[#allocation4 + $0x630] sm:$0xff]
    %v359 = vld [vmem:[#allocation4 + $0x638] sm:$0xff]
    %v360 = vld [vmem:[#allocation4 + $0x640] sm:$0xff]
    %v361 = vld [vmem:[#allocation4 + $0x648] sm:$0xff]
    %v362 = vld [vmem:[#allocation4 + $0x650] sm:$0xff]
    %v363 = vld [vmem:[#allocation4 + $0x658] sm:$0xff]
    %v364 = vld [vmem:[#allocation4 + $0x660] sm:$0xff]
    %v365 = vld [vmem:[#allocation4 + $0x668] sm:$0xff]
    %v366 = vld [vmem:[#allocation4 + $0x670] sm:$0xff]
    %v367 = vld [vmem:[#allocation4 + $0x678] sm:$0xff]
    %v368 = vld [vmem:[#allocation4 + $0x680] sm:$0xff]
    %v369 = vld [vmem:[#allocation4 + $0x688] sm:$0xff]
    %v370 = vld [vmem:[#allocation4 + $0x690] sm:$0xff]
    %v371 = vld [vmem:[#allocation4 + $0x698] sm:$0xff]
    %v372 = vld [vmem:[#allocation4 + $0x6a0] sm:$0xff]
    %v373 = vld [vmem:[#allocation4 + $0x6a8] sm:$0xff]
    %v374 = vld [vmem:[#allocation4 + $0x6b0] sm:$0xff]
    %v375 = vld [vmem:[#allocation4 + $0x6b8] sm:$0xff]
    %v376 = vld [vmem:[#allocation4 + $0x6c0] sm:$0xff]
    %v377 = vld [vmem:[#allocation4 + $0x6c8] sm:$0xff]
    %v378 = vld [vmem:[#allocation4 + $0x6d0] sm:$0xff]
    %v379 = vld [vmem:[#allocation4 + $0x6d8] sm:$0xff]
    %v380 = vld [vmem:[#allocation4 + $0x6e0] sm:$0xff]
    %v381 = vld [vmem:[#allocation4 + $0x6e8] sm:$0xff]
    %v382 = vld [vmem:[#allocation4 + $0x6f0] sm:$0xff]
    %v383 = vld [vmem:[#allocation4 + $0x6f8] sm:$0xff]
    %v384 = vld [vmem:[#allocation4 + $0x700] sm:$0xff]
    %v385 = vld [vmem:[#allocation4 + $0x708] sm:$0xff]
    %v386 = vld [vmem:[#allocation4 + $0x710] sm:$0xff]
    %v387 = vld [vmem:[#allocation4 + $0x718] sm:$0xff]
    %v388 = vld [vmem:[#allocation4 + $0x720] sm:$0xff]
    %v389 = vld [vmem:[#allocation4 + $0x728] sm:$0xff]
    %v390 = vld [vmem:[#allocation4 + $0x730] sm:$0xff]
    %v391 = vld [vmem:[#allocation4 + $0x738] sm:$0xff]
    %v392 = vld [vmem:[#allocation4 + $0x740] sm:$0xff]
    %v393 = vld [vmem:[#allocation4 + $0x748] sm:$0xff]
    %v394 = vld [vmem:[#allocation4 + $0x750] sm:$0xff]
    %v395 = vld [vmem:[#allocation4 + $0x758] sm:$0xff]
    %v396 = vld [vmem:[#allocation4 + $0x760] sm:$0xff]
    %v397 = vld [vmem:[#allocation4 + $0x768] sm:$0xff]
    %v398 = vld [vmem:[#allocation4 + $0x770] sm:$0xff]
    %v399 = vld [vmem:[#allocation4 + $0x778] sm:$0xff]
    %v400 = vld [vmem:[#allocation4 + $0x780] sm:$0xff]
    %v401 = vld [vmem:[#allocation4 + $0x788] sm:$0xff]
    %v402 = vld [vmem:[#allocation4 + $0x790] sm:$0xff]
    %v403 = vld [vmem:[#allocation4 + $0x798] sm:$0xff]
    %v404 = vld [vmem:[#allocation4 + $0x7a0] sm:$0xff]
    %v405 = vld [vmem:[#allocation4 + $0x7a8] sm:$0xff]
    %v406 = vld [vmem:[#allocation4 + $0x7b0] sm:$0xff]
    %v407 = vld [vmem:[#allocation4 + $0x7b8] sm:$0xff]
    %v408 = vld [vmem:[#allocation4 + $0x7c0] sm:$0xff]
    %v409 = vld [vmem:[#allocation4 + $0x7c8] sm:$0xff]
    %v410 = vld [vmem:[#allocation4 + $0x7d0] sm:$0xff]
    %v411 = vld [vmem:[#allocation4 + $0x7d8] sm:$0xff]
    %v412 = vld [vmem:[#allocation4 + $0x7e0] sm:$0xff]
    %v413 = vld [vmem:[#allocation4 + $0x7e8] sm:$0xff]
    %v414 = vld [vmem:[#allocation4 + $0x7f0] sm:$0xff]
    %v415 = vld [vmem:[#allocation4 + $0x7f8] sm:$0xff]
    %v416 = vld [vmem:[#allocation4 + $0x800] sm:$0xff]
    %v417 = vld [vmem:[#allocation4 + $0x808] sm:$0xff]
    %v418 = vld [vmem:[#allocation4 + $0x810] sm:$0xff]
    %v419 = vld [vmem:[#allocation4 + $0x818] sm:$0xff]
    %v420 = vld [vmem:[#allocation4 + $0x820] sm:$0xff]
    %v421 = vld [vmem:[#allocation4 + $0x828] sm:$0xff]
    %v422 = vld [vmem:[#allocation4 + $0x830] sm:$0xff]
    %v423 = vld [vmem:[#allocation4 + $0x838] sm:$0xff]
    %v424 = vld [vmem:[#allocation4 + $0x840] sm:$0xff]
    %v425 = vld [vmem:[#allocation4 + $0x848] sm:$0xff]
    %v426 = vld [vmem:[#allocation4 + $0x850] sm:$0xff]
    %v427 = vld [vmem:[#allocation4 + $0x858] sm:$0xff]
    %v428 = vld [vmem:[#allocation4 + $0x860] sm:$0xff]
    %v429 = vld [vmem:[#allocation4 + $0x868] sm:$0xff]
    %v430 = vld [vmem:[#allocation4 + $0x870] sm:$0xff]
    %v431 = vld [vmem:[#allocation4 + $0x878] sm:$0xff]
    %v432 = vld [vmem:[#allocation4 + $0x880] sm:$0xff]
    %v433 = vld [vmem:[#allocation4 + $0x888] sm:$0xff]
    %v434 = vld [vmem:[#allocation4 + $0x890] sm:$0xff]
    %v435 = vld [vmem:[#allocation4 + $0x898] sm:$0xff]
    %v436 = vld [vmem:[#allocation4 + $0x8a0] sm:$0xff]
    %v437 = vld [vmem:[#allocation4 + $0x8a8] sm:$0xff]
    %v438 = vld [vmem:[#allocation4 + $0x8b0] sm:$0xff]
    %v439 = vld [vmem:[#allocation4 + $0x8b8] sm:$0xff]
    %v440 = vld [vmem:[#allocation4 + $0x8c0] sm:$0xff]
    %v441 = vld [vmem:[#allocation4 + $0x8c8] sm:$0xff]
    %v442 = vld [vmem:[#allocation4 + $0x8d0] sm:$0xff]
    %v443 = vld [vmem:[#allocation4 + $0x8d8] sm:$0xff]
    %v444 = vld [vmem:[#allocation4 + $0x8e0] sm:$0xff]
    %v445 = vld [vmem:[#allocation4 + $0x8e8] sm:$0xff]
    %v446 = vld [vmem:[#allocation4 + $0x8f0] sm:$0xff]
    %v447 = vld [vmem:[#allocation4 + $0x8f8] sm:$0xff]
    %v448 = vld [vmem:[#allocation4 + $0x900] sm:$0xff]
    %v449 = vld [vmem:[#allocation4 + $0x908] sm:$0xff]
    %v450 = vld [vmem:[#allocation4 + $0x910] sm:$0xff]
    %v451 = vld [vmem:[#allocation4 + $0x918] sm:$0xff]
    %v452 = vld [vmem:[#allocation4 + $0x920] sm:$0xff]
    %v453 = vld [vmem:[#allocation4 + $0x928] sm:$0xff]
    %v454 = vld [vmem:[#allocation4 + $0x930] sm:$0xff]
    %v455 = vld [vmem:[#allocation4 + $0x938] sm:$0xff]
    %v456 = vld [vmem:[#allocation4 + $0x940] sm:$0xff]
    %v457 = vld [vmem:[#allocation4 + $0x948] sm:$0xff]
    %v458 = vld [vmem:[#allocation4 + $0x950] sm:$0xff]
    %v459 = vld [vmem:[#allocation4 + $0x958] sm:$0xff]
    %v460 = vld [vmem:[#allocation4 + $0x960] sm:$0xff]
    %v461 = vld [vmem:[#allocation4 + $0x968] sm:$0xff]
    %v462 = vld [vmem:[#allocation4 + $0x970] sm:$0xff]
    %v463 = vld [vmem:[#allocation4 + $0x978] sm:$0xff]
    %v464 = vld [vmem:[#allocation4 + $0x980] sm:$0xff]
    %v465 = vld [vmem:[#allocation4 + $0x988] sm:$0xff]
    %v466 = vld [vmem:[#allocation4 + $0x990] sm:$0xff]
    %v467 = vld [vmem:[#allocation4 + $0x998] sm:$0xff]
    %v468 = vld [vmem:[#allocation4 + $0x9a0] sm:$0xff]
    %v469 = vld [vmem:[#allocation4 + $0x9a8] sm:$0xff]
    %v470 = vld [vmem:[#allocation4 + $0x9b0] sm:$0xff]
    %v471 = vld [vmem:[#allocation4 + $0x9b8] sm:$0xff]
    %v472 = vld [vmem:[#allocation4 + $0x9c0] sm:$0xff]
    %v473 = vld [vmem:[#allocation4 + $0x9c8] sm:$0xff]
    %v474 = vld [vmem:[#allocation4 + $0x9d0] sm:$0xff]
    %v475 = vld [vmem:[#allocation4 + $0x9d8] sm:$0xff]
    %v476 = vld [vmem:[#allocation4 + $0x9e0] sm:$0xff]
    %v477 = vld [vmem:[#allocation4 + $0x9e8] sm:$0xff]
    %v478 = vld [vmem:[#allocation4 + $0x9f0] sm:$0xff]
    %v479 = vld [vmem:[#allocation4 + $0x9f8] sm:$0xff]
    %v480 = vld [vmem:[#allocation4 + $0xa00] sm:$0xff]
    %v481 = vld [vmem:[#allocation4 + $0xa08] sm:$0xff]
    %v482 = vld [vmem:[#allocation4 + $0xa10] sm:$0xff]
    %v483 = vld [vmem:[#allocation4 + $0xa18] sm:$0xff]
    %v484 = vld [vmem:[#allocation4 + $0xa20] sm:$0xff]
    %v485 = vld [vmem:[#allocation4 + $0xa28] sm:$0xff]
    %v486 = vld [vmem:[#allocation4 + $0xa30] sm:$0xff]
    %v487 = vld [vmem:[#allocation4 + $0xa38] sm:$0xff]
    %v488 = vld [vmem:[#allocation4 + $0xa40] sm:$0xff]
    %v489 = vld [vmem:[#allocation4 + $0xa48] sm:$0xff]
    %v490 = vld [vmem:[#allocation4 + $0xa50] sm:$0xff]
    %v491 = vld [vmem:[#allocation4 + $0xa58] sm:$0xff]
    %v492 = vld [vmem:[#allocation4 + $0xa60] sm:$0xff]
    %v493 = vld [vmem:[#allocation4 + $0xa68] sm:$0xff]
    %v494 = vld [vmem:[#allocation4 + $0xa70] sm:$0xff]
    %v495 = vld [vmem:[#allocation4 + $0xa78] sm:$0xff]
    %v496 = vld [vmem:[#allocation4 + $0xa80] sm:$0xff]
    %v497 = vld [vmem:[#allocation4 + $0xa88] sm:$0xff]
    %v498 = vld [vmem:[#allocation4 + $0xa90] sm:$0xff]
    %v499 = vld [vmem:[#allocation4 + $0xa98] sm:$0xff]
    %v500 = vld [vmem:[#allocation4 + $0xaa0] sm:$0xff]
    %v501 = vld [vmem:[#allocation4 + $0xaa8] sm:$0xff]
    %v502 = vld [vmem:[#allocation4 + $0xab0] sm:$0xff]
    %v503 = vld [vmem:[#allocation4 + $0xab8] sm:$0xff]
    %v504 = vld [vmem:[#allocation4 + $0xac0] sm:$0xff]
    %v505 = vld [vmem:[#allocation4 + $0xac8] sm:$0xff]
    %v506 = vld [vmem:[#allocation4 + $0xad0] sm:$0xff]
    %v507 = vld [vmem:[#allocation4 + $0xad8] sm:$0xff]
    %v508 = vld [vmem:[#allocation4 + $0xae0] sm:$0xff]
    %v509 = vld [vmem:[#allocation4 + $0xae8] sm:$0xff]
    %v510 = vld [vmem:[#allocation4 + $0xaf0] sm:$0xff]
    %v511 = vld [vmem:[#allocation4 + $0xaf8] sm:$0xff]
    %v512 = vld [vmem:[#allocation4 + $0xb00] sm:$0xff]
    %v513 = vld [vmem:[#allocation4 + $0xb08] sm:$0xff]
    %v514 = vld [vmem:[#allocation4 + $0xb10] sm:$0xff]
    %v515 = vld [vmem:[#allocation4 + $0xb18] sm:$0xff]
    %v516 = vld [vmem:[#allocation4 + $0xb20] sm:$0xff]
    %v517 = vld [vmem:[#allocation4 + $0xb28] sm:$0xff]
    %v518 = vld [vmem:[#allocation4 + $0xb30] sm:$0xff]
    %v519 = vld [vmem:[#allocation4 + $0xb38] sm:$0xff]
    %v520 = vld [vmem:[#allocation4 + $0xb40] sm:$0xff]
    %v521 = vld [vmem:[#allocation4 + $0xb48] sm:$0xff]
    %v522 = vld [vmem:[#allocation4 + $0xb50] sm:$0xff]
    %v523 = vld [vmem:[#allocation4 + $0xb58] sm:$0xff]
    %v524 = vld [vmem:[#allocation4 + $0xb60] sm:$0xff]
    %v525 = vld [vmem:[#allocation4 + $0xb68] sm:$0xff]
    %v526 = vld [vmem:[#allocation4 + $0xb70] sm:$0xff]
    %v527 = vld [vmem:[#allocation4 + $0xb78] sm:$0xff]
    %v528 = vld [vmem:[#allocation4 + $0xb80] sm:$0xff]
    %v529 = vld [vmem:[#allocation4 + $0xb88] sm:$0xff]
    %v530 = vld [vmem:[#allocation4 + $0xb90] sm:$0xff]
    %v531 = vld [vmem:[#allocation4 + $0xb98] sm:$0xff]
    %v532 = vld [vmem:[#allocation4 + $0xba0] sm:$0xff]
    %v533 = vld [vmem:[#allocation4 + $0xba8] sm:$0xff]
    %v534 = vld [vmem:[#allocation4 + $0xbb0] sm:$0xff]
    %v535 = vld [vmem:[#allocation4 + $0xbb8] sm:$0xff]
    %v536 = vld [vmem:[#allocation4 + $0xbc0] sm:$0xff]
    %v537 = vld [vmem:[#allocation4 + $0xbc8] sm:$0xff]
    %v538 = vld [vmem:[#allocation4 + $0xbd0] sm:$0xff]
    %v539 = vld [vmem:[#allocation4 + $0xbd8] sm:$0xff]
    %v540 = vld [vmem:[#allocation4 + $0xbe0] sm:$0xff]
    %v541 = vld [vmem:[#allocation4 + $0xbe8] sm:$0xff]
    %v542 = vld [vmem:[#allocation4 + $0xbf0] sm:$0xff]
    %v543 = vld [vmem:[#allocation4 + $0xbf8] sm:$0xff]
    %v544 = vld [vmem:[#allocation4 + $0xc00] sm:$0xff]
    %v545 = vld [vmem:[#allocation4 + $0xc08] sm:$0xff]
    %v546 = vld [vmem:[#allocation4 + $0xc10] sm:$0xff]
    %v547 = vld [vmem:[#allocation4 + $0xc18] sm:$0xff]
    %v548 = vld [vmem:[#allocation4 + $0xc20] sm:$0xff]
    %v549 = vld [vmem:[#allocation4 + $0xc28] sm:$0xff]
    %v550 = vld [vmem:[#allocation4 + $0xc30] sm:$0xff]
    %v551 = vld [vmem:[#allocation4 + $0xc38] sm:$0xff]
    %v552 = vld [vmem:[#allocation4 + $0xc40] sm:$0xff]
    %v553 = vld [vmem:[#allocation4 + $0xc48] sm:$0xff]
    %v554 = vld [vmem:[#allocation4 + $0xc50] sm:$0xff]
    %v555 = vld [vmem:[#allocation4 + $0xc58] sm:$0xff]
    %v556 = vld [vmem:[#allocation4 + $0xc60] sm:$0xff]
    %v557 = vld [vmem:[#allocation4 + $0xc68] sm:$0xff]
    %v558 = vld [vmem:[#allocation4 + $0xc70] sm:$0xff]
    %v559 = vld [vmem:[#allocation4 + $0xc78] sm:$0xff]
    %v560 = vld [vmem:[#allocation4 + $0xc80] sm:$0xff]
    %v561 = vld [vmem:[#allocation4 + $0xc88] sm:$0xff]
    %v562 = vld [vmem:[#allocation4 + $0xc90] sm:$0xff]
    %v563 = vld [vmem:[#allocation4 + $0xc98] sm:$0xff]
    %v564 = vld [vmem:[#allocation4 + $0xca0] sm:$0xff]
    %v565 = vld [vmem:[#allocation4 + $0xca8] sm:$0xff]
    %v566 = vld [vmem:[#allocation4 + $0xcb0] sm:$0xff]
    %v567 = vld [vmem:[#allocation4 + $0xcb8] sm:$0xff]
    %v568 = vld [vmem:[#allocation4 + $0xcc0] sm:$0xff]
    %v569 = vld [vmem:[#allocation4 + $0xcc8] sm:$0xff]
    %v570 = vld [vmem:[#allocation4 + $0xcd0] sm:$0xff]
    %v571 = vld [vmem:[#allocation4 + $0xcd8] sm:$0xff]
    %v572 = vld [vmem:[#allocation4 + $0xce0] sm:$0xff]
    %v573 = vld [vmem:[#allocation4 + $0xce8] sm:$0xff]
    %v574 = vld [vmem:[#allocation4 + $0xcf0] sm:$0xff]
    %v575 = vld [vmem:[#allocation4 + $0xcf8] sm:$0xff]
    %v576 = vld [vmem:[#allocation4 + $0xd00] sm:$0xff]
    %v577 = vld [vmem:[#allocation4 + $0xd08] sm:$0xff]
    %v578 = vld [vmem:[#allocation4 + $0xd10] sm:$0xff]
    %v579 = vld [vmem:[#allocation4 + $0xd18] sm:$0xff]
    %v580 = vld [vmem:[#allocation4 + $0xd20] sm:$0xff]
    %v581 = vld [vmem:[#allocation4 + $0xd28] sm:$0xff]
    %v582 = vld [vmem:[#allocation4 + $0xd30] sm:$0xff]
    %v583 = vld [vmem:[#allocation4 + $0xd38] sm:$0xff]
    %v584 = vld [vmem:[#allocation4 + $0xd40] sm:$0xff]
    %v585 = vld [vmem:[#allocation4 + $0xd48] sm:$0xff]
    %v586 = vld [vmem:[#allocation4 + $0xd50] sm:$0xff]
    %v587 = vld [vmem:[#allocation4 + $0xd58] sm:$0xff]
    %v588 = vld [vmem:[#allocation4 + $0xd60] sm:$0xff]
    %v589 = vld [vmem:[#allocation4 + $0xd68] sm:$0xff]
    %v590 = vld [vmem:[#allocation4 + $0xd70] sm:$0xff]
    %v591 = vld [vmem:[#allocation4 + $0xd78] sm:$0xff]
    %v592 = vld [vmem:[#allocation4 + $0xd80] sm:$0xff]
    %v593 = vld [vmem:[#allocation4 + $0xd88] sm:$0xff]
    %v594 = vld [vmem:[#allocation4 + $0xd90] sm:$0xff]
    %v595 = vld [vmem:[#allocation4 + $0xd98] sm:$0xff]
    %v596 = vld [vmem:[#allocation4 + $0xda0] sm:$0xff]
    %v597 = vld [vmem:[#allocation4 + $0xda8] sm:$0xff]
    %v598 = vld [vmem:[#allocation4 + $0xdb0] sm:$0xff]
    %v599 = vld [vmem:[#allocation4 + $0xdb8] sm:$0xff]
    %v600 = vld [vmem:[#allocation4 + $0xdc0] sm:$0xff]
    %v601 = vld [vmem:[#allocation4 + $0xdc8] sm:$0xff]
    %v602 = vld [vmem:[#allocation4 + $0xdd0] sm:$0xff]
    %v603 = vld [vmem:[#allocation4 + $0xdd8] sm:$0xff]
    %v604 = vld [vmem:[#allocation4 + $0xde0] sm:$0xff]
    %v605 = vld [vmem:[#allocation4 + $0xde8] sm:$0xff]
    %v606 = vld [vmem:[#allocation4 + $0xdf0] sm:$0xff]
    %v607 = vld [vmem:[#allocation4 + $0xdf8] sm:$0xff]
    %v608 = vld [vmem:[#allocation4 + $0xe00] sm:$0xff]
    %v609 = vld [vmem:[#allocation4 + $0xe08] sm:$0xff]
    %v610 = vld [vmem:[#allocation4 + $0xe10] sm:$0xff]
    %v611 = vld [vmem:[#allocation4 + $0xe18] sm:$0xff]
    %v612 = vld [vmem:[#allocation4 + $0xe20] sm:$0xff]
    %v613 = vld [vmem:[#allocation4 + $0xe28] sm:$0xff]
    %v614 = vld [vmem:[#allocation4 + $0xe30] sm:$0xff]
    %v615 = vld [vmem:[#allocation4 + $0xe38] sm:$0xff]
    %v616 = vld [vmem:[#allocation4 + $0xe40] sm:$0xff]
    %v617 = vld [vmem:[#allocation4 + $0xe48] sm:$0xff]
    %v618 = vld [vmem:[#allocation4 + $0xe50] sm:$0xff]
    %v619 = vld [vmem:[#allocation4 + $0xe58] sm:$0xff]
    %v620 = vld [vmem:[#allocation4 + $0xe60] sm:$0xff]
    %v621 = vld [vmem:[#allocation4 + $0xe68] sm:$0xff]
    %v622 = vld [vmem:[#allocation4 + $0xe70] sm:$0xff]
    %v623 = vld [vmem:[#allocation4 + $0xe78] sm:$0xff]
    %v624 = vld [vmem:[#allocation4 + $0xe80] sm:$0xff]
    %v625 = vld [vmem:[#allocation4 + $0xe88] sm:$0xff]
    %v626 = vld [vmem:[#allocation4 + $0xe90] sm:$0xff]
    %v627 = vld [vmem:[#allocation4 + $0xe98] sm:$0xff]
    %v628 = vld [vmem:[#allocation4 + $0xea0] sm:$0xff]
    %v629 = vld [vmem:[#allocation4 + $0xea8] sm:$0xff]
    %v630 = vld [vmem:[#allocation4 + $0xeb0] sm:$0xff]
    %v631 = vld [vmem:[#allocation4 + $0xeb8] sm:$0xff]
    %v632 = vld [vmem:[#allocation4 + $0xec0] sm:$0xff]
    %v633 = vld [vmem:[#allocation4 + $0xec8] sm:$0xff]
    %v634 = vld [vmem:[#allocation4 + $0xed0] sm:$0xff]
    %v635 = vld [vmem:[#allocation4 + $0xed8] sm:$0xff]
    %v636 = vld [vmem:[#allocation4 + $0xee0] sm:$0xff]
    %v637 = vld [vmem:[#allocation4 + $0xee8] sm:$0xff]
    %v638 = vld [vmem:[#allocation4 + $0xef0] sm:$0xff]
    %v639 = vld [vmem:[#allocation4 + $0xef8] sm:$0xff]
    %v640 = vld [vmem:[#allocation2] sm:$0x7]
    %v641 = vld [vmem:[#allocation6] sm:$0x3]
    %v644 = vunpack.c.l.b16 %v66
    %v645 = vunpack.c.l.b16 %v67
    %v646 = vpack.c.b16 %v645, %v644
    %v655 = vunpack.c.l.b16 %v96
    %v656 = vunpack.c.h.b16 %v96
    %v657 = vunpack.c.l.b16 %v97
    %v658 = vunpack.c.l.b16 %v98
    %v659 = vunpack.c.h.b16 %v98
    %v660 = vunpack.c.l.b16 %v99
    %v661 = vunpack.c.l.b16 %v100
    %v662 = vunpack.c.h.b16 %v100
    %v663 = vunpack.c.l.b16 %v101
    %v664 = vunpack.c.l.b16 %v102
    %v665 = vunpack.c.h.b16 %v102
    %v666 = vunpack.c.l.b16 %v103
    %v667 = vpack.c.b16 %v658, %v655
    %v668 = vpack.c.b16 %v659, %v656
    %v669 = vpack.c.b16 %v660, %v657
    %v670 = vpack.c.b16 %v664, %v661
    %v671 = vpack.c.b16 %v665, %v662
    %v672 = vpack.c.b16 %v666, %v663
    %vm676 = vcmask 228352
    %v678 = vsel %vm676, %v646, 0
    %vm680 = vcmask 1045504
    %v682 = vsel %vm680, %v670, 0
    %v685 = vsel %vm680, %v671, 0
    %v688 = vsel %vm680, %v672, 0
    %690 = vmatpush.bf16.msra.mxu0 0
    %691 = vmatpush.bf16.msra.mxu0 0
    %692 = vmatpush.bf16.msra.mxu0 0
    %693 = vmatpush.bf16.msra.mxu0 0
    %694 = vmatpush.bf16.msra.mxu0 0
    %695 = vmatpush.bf16.msra.mxu0 0
    %696 = vmatpush.bf16.msra.mxu0 %v682
    %697 = vmatpush.bf16.msra.mxu0 %v667
    %698 = vmatmul.bf16.gmra.mxu0 %v678
    %v699 = vpop.f32.mrf.mxu0
    %v700 = vadd.f32 0.0, %v699
    %v701 = vpop.f32.mrf.mxu0
    %v702 = vadd.f32 0.0, %v701
    %703 = vdwg.mxu0
    %704 = vmatpush.bf16.msra.mxu0 0
    %705 = vmatpush.bf16.msra.mxu0 0
    %706 = vmatpush.bf16.msra.mxu0 0
    %707 = vmatpush.bf16.msra.mxu0 0
    %708 = vmatpush.bf16.msra.mxu0 0
    %709 = vmatpush.bf16.msra.mxu0 0
    %710 = vmatpush.bf16.msra.mxu0 %v685
    %711 = vmatpush.bf16.msra.mxu0 %v668
    %712 = vmatmul.bf16.gmra.mxu0 %v678
    %v713 = vpop.f32.mrf.mxu0
    %v714 = vadd.f32 0.0, %v713
    %v715 = vpop.f32.mrf.mxu0
    %v716 = vadd.f32 0.0, %v715
    %717 = vdwg.mxu0
    %718 = vmatpush.bf16.msra.mxu0 0
    %719 = vmatpush.bf16.msra.mxu0 0
    %720 = vmatpush.bf16.msra.mxu0 0
    %721 = vmatpush.bf16.msra.mxu0 0
    %722 = vmatpush.bf16.msra.mxu0 0
    %723 = vmatpush.bf16.msra.mxu0 0
    %724 = vmatpush.bf16.msra.mxu0 %v688
    %725 = vmatpush.bf16.msra.mxu0 %v669
    %726 = vmatmul.bf16.gmra.mxu0 %v678
    %v727 = vpop.f32.mrf.mxu0
    %v728 = vadd.f32 0.0, %v727
    %v729 = vpop.f32.mrf.mxu0
    %v730 = vadd.f32 0.0, %v729
    %731 = vdwg.mxu0
    %v734 = vunpack.c.l.b16 %v64
    %v735 = vunpack.c.l.b16 %v65
    %v736 = vpack.c.b16 %v735, %v734
    %v745 = vunpack.c.l.b16 %v80
    %v746 = vunpack.c.h.b16 %v80
    %v747 = vunpack.c.l.b16 %v81
    %v748 = vunpack.c.l.b16 %v82
    %v749 = vunpack.c.h.b16 %v82
    %v750 = vunpack.c.l.b16 %v83
    %v751 = vunpack.c.l.b16 %v84
    %v752 = vunpack.c.h.b16 %v84
    %v753 = vunpack.c.l.b16 %v85
    %v754 = vunpack.c.l.b16 %v86
    %v755 = vunpack.c.h.b16 %v86
    %v756 = vunpack.c.l.b16 %v87
    %v757 = vpack.c.b16 %v748, %v745
    %v758 = vpack.c.b16 %v749, %v746
    %v759 = vpack.c.b16 %v750, %v747
    %v760 = vpack.c.b16 %v754, %v751
    %v761 = vpack.c.b16 %v755, %v752
    %v762 = vpack.c.b16 %v756, %v753
    %v767 = vsel %vm676, %v736, 0
    %v770 = vsel %vm680, %v760, 0
    %v773 = vsel %vm680, %v761, 0
    %v776 = vsel %vm680, %v762, 0
    %778 = vmatpush.bf16.msra.mxu0 0
    %779 = vmatpush.bf16.msra.mxu0 0
    %780 = vmatpush.bf16.msra.mxu0 0
    %781 = vmatpush.bf16.msra.mxu0 0
    %782 = vmatpush.bf16.msra.mxu0 0
    %783 = vmatpush.bf16.msra.mxu0 0
    %784 = vmatpush.bf16.msra.mxu0 %v770
    %785 = vmatpush.bf16.msra.mxu0 %v757
    %786 = vmatmul.bf16.gmra.mxu0 %v767
    %v787 = vpop.f32.mrf.mxu0
    %v788 = vadd.f32 %v700, %v787
    %v789 = vpop.f32.mrf.mxu0
    %v790 = vadd.f32 %v702, %v789
    %791 = vdwg.mxu0
    %792 = vmatpush.bf16.msra.mxu0 0
    %793 = vmatpush.bf16.msra.mxu0 0
    %794 = vmatpush.bf16.msra.mxu0 0
    %795 = vmatpush.bf16.msra.mxu0 0
    %796 = vmatpush.bf16.msra.mxu0 0
    %797 = vmatpush.bf16.msra.mxu0 0
    %798 = vmatpush.bf16.msra.mxu0 %v773
    %799 = vmatpush.bf16.msra.mxu0 %v758
    %800 = vmatmul.bf16.gmra.mxu0 %v767
    %v801 = vpop.f32.mrf.mxu0
    %v802 = vadd.f32 %v714, %v801
    %v803 = vpop.f32.mrf.mxu0
    %v804 = vadd.f32 %v716, %v803
    %805 = vdwg.mxu0
    %806 = vmatpush.bf16.msra.mxu0 0
    %807 = vmatpush.bf16.msra.mxu0 0
    %808 = vmatpush.bf16.msra.mxu0 0
    %809 = vmatpush.bf16.msra.mxu0 0
    %810 = vmatpush.bf16.msra.mxu0 0
    %811 = vmatpush.bf16.msra.mxu0 0
    %812 = vmatpush.bf16.msra.mxu0 %v776
    %813 = vmatpush.bf16.msra.mxu0 %v759
    %814 = vmatmul.bf16.gmra.mxu0 %v767
    %v815 = vpop.f32.mrf.mxu0
    %v816 = vadd.f32 %v728, %v815
    %v817 = vpop.f32.mrf.mxu0
    %v818 = vadd.f32 %v730, %v817
    %819 = vdwg.mxu0
    %v822 = vunpack.c.l.b16 %v68
    %v823 = vunpack.c.l.b16 %v69
    %v824 = vpack.c.b16 %v823, %v822
    %v833 = vunpack.c.l.b16 %v112
    %v834 = vunpack.c.h.b16 %v112
    %v835 = vunpack.c.l.b16 %v113
    %v836 = vunpack.c.l.b16 %v114
    %v837 = vunpack.c.h.b16 %v114
    %v838 = vunpack.c.l.b16 %v115
    %v839 = vunpack.c.l.b16 %v116
    %v840 = vunpack.c.h.b16 %v116
    %v841 = vunpack.c.l.b16 %v117
    %v842 = vunpack.c.l.b16 %v118
    %v843 = vunpack.c.h.b16 %v118
    %v844 = vunpack.c.l.b16 %v119
    %v845 = vpack.c.b16 %v836, %v833
    %v846 = vpack.c.b16 %v837, %v834
    %v847 = vpack.c.b16 %v838, %v835
    %v848 = vpack.c.b16 %v842, %v839
    %v849 = vpack.c.b16 %v843, %v840
    %v850 = vpack.c.b16 %v844, %v841
    %v855 = vsel %vm676, %v824, 0
    %v858 = vsel %vm680, %v848, 0
    %v861 = vsel %vm680, %v849, 0
    %v864 = vsel %vm680, %v850, 0
    %866 = vmatpush.bf16.msra.mxu0 0
    %867 = vmatpush.bf16.msra.mxu0 0
    %868 = vmatpush.bf16.msra.mxu0 0
    %869 = vmatpush.bf16.msra.mxu0 0
    %870 = vmatpush.bf16.msra.mxu0 0
    %871 = vmatpush.bf16.msra.mxu0 0
    %872 = vmatpush.bf16.msra.mxu0 %v858
    %873 = vmatpush.bf16.msra.mxu0 %v845
    %874 = vmatmul.bf16.gmra.mxu0 %v855
    %v875 = vpop.f32.mrf.mxu0
    %v876 = vadd.f32 0.0, %v875
    %v877 = vpop.f32.mrf.mxu0
    %v878 = vadd.f32 0.0, %v877
    %879 = vdwg.mxu0
    %880 = vmatpush.bf16.msra.mxu0 0
    %881 = vmatpush.bf16.msra.mxu0 0
    %882 = vmatpush.bf16.msra.mxu0 0
    %883 = vmatpush.bf16.msra.mxu0 0
    %884 = vmatpush.bf16.msra.mxu0 0
    %885 = vmatpush.bf16.msra.mxu0 0
    %886 = vmatpush.bf16.msra.mxu0 %v861
    %887 = vmatpush.bf16.msra.mxu0 %v846
    %888 = vmatmul.bf16.gmra.mxu0 %v855
    %v889 = vpop.f32.mrf.mxu0
    %v890 = vadd.f32 0.0, %v889
    %v891 = vpop.f32.mrf.mxu0
    %v892 = vadd.f32 0.0, %v891
    %893 = vdwg.mxu0
    %894 = vmatpush.bf16.msra.mxu0 0
    %895 = vmatpush.bf16.msra.mxu0 0
    %896 = vmatpush.bf16.msra.mxu0 0
    %897 = vmatpush.bf16.msra.mxu0 0
    %898 = vmatpush.bf16.msra.mxu0 0
    %899 = vmatpush.bf16.msra.mxu0 0
    %900 = vmatpush.bf16.msra.mxu0 %v864
    %901 = vmatpush.bf16.msra.mxu0 %v847
    %902 = vmatmul.bf16.gmra.mxu0 %v855
    %v903 = vpop.f32.mrf.mxu0
    %v904 = vadd.f32 0.0, %v903
    %v905 = vpop.f32.mrf.mxu0
    %v906 = vadd.f32 0.0, %v905
    %907 = vdwg.mxu0
    %v908 = vadd.f32 %v788, %v876
    %v909 = vadd.f32 %v802, %v890
    %v910 = vadd.f32 %v816, %v904
    %v911 = vadd.f32 %v790, %v878
    %v912 = vadd.f32 %v804, %v892
    %v913 = vadd.f32 %v818, %v906
    %v916 = vunpack.c.l.b16 %v70
    %v917 = vunpack.c.l.b16 %v71
    %v918 = vpack.c.b16 %v917, %v916
    %v927 = vunpack.c.l.b16 %v128
    %v928 = vunpack.c.h.b16 %v128
    %v929 = vunpack.c.l.b16 %v129
    %v930 = vunpack.c.l.b16 %v130
    %v931 = vunpack.c.h.b16 %v130
    %v932 = vunpack.c.l.b16 %v131
    %v933 = vunpack.c.l.b16 %v132
    %v934 = vunpack.c.h.b16 %v132
    %v935 = vunpack.c.l.b16 %v133
    %v936 = vunpack.c.l.b16 %v134
    %v937 = vunpack.c.h.b16 %v134
    %v938 = vunpack.c.l.b16 %v135
    %v939 = vpack.c.b16 %v930, %v927
    %v940 = vpack.c.b16 %v931, %v928
    %v941 = vpack.c.b16 %v932, %v929
    %v942 = vpack.c.b16 %v936, %v933
    %v943 = vpack.c.b16 %v937, %v934
    %v944 = vpack.c.b16 %v938, %v935
    %v949 = vsel %vm676, %v918, 0
    %v952 = vsel %vm680, %v942, 0
    %v955 = vsel %vm680, %v943, 0
    %v958 = vsel %vm680, %v944, 0
    %960 = vmatpush.bf16.msra.mxu0 0
    %961 = vmatpush.bf16.msra.mxu0 0
    %962 = vmatpush.bf16.msra.mxu0 0
    %963 = vmatpush.bf16.msra.mxu0 0
    %964 = vmatpush.bf16.msra.mxu0 0
    %965 = vmatpush.bf16.msra.mxu0 0
    %966 = vmatpush.bf16.msra.mxu0 %v952
    %967 = vmatpush.bf16.msra.mxu0 %v939
    %968 = vmatmul.bf16.gmra.mxu0 %v949
    %v969 = vpop.f32.mrf.mxu0
    %v970 = vadd.f32 0.0, %v969
    %v971 = vpop.f32.mrf.mxu0
    %v972 = vadd.f32 0.0, %v971
    %973 = vdwg.mxu0
    %974 = vmatpush.bf16.msra.mxu0 0
    %975 = vmatpush.bf16.msra.mxu0 0
    %976 = vmatpush.bf16.msra.mxu0 0
    %977 = vmatpush.bf16.msra.mxu0 0
    %978 = vmatpush.bf16.msra.mxu0 0
    %979 = vmatpush.bf16.msra.mxu0 0
    %980 = vmatpush.bf16.msra.mxu0 %v955
    %981 = vmatpush.bf16.msra.mxu0 %v940
    %982 = vmatmul.bf16.gmra.mxu0 %v949
    %v983 = vpop.f32.mrf.mxu0
    %v984 = vadd.f32 0.0, %v983
    %v985 = vpop.f32.mrf.mxu0
    %v986 = vadd.f32 0.0, %v985
    %987 = vdwg.mxu0
    %988 = vmatpush.bf16.msra.mxu0 0
    %989 = vmatpush.bf16.msra.mxu0 0
    %990 = vmatpush.bf16.msra.mxu0 0
    %991 = vmatpush.bf16.msra.mxu0 0
    %992 = vmatpush.bf16.msra.mxu0 0
    %993 = vmatpush.bf16.msra.mxu0 0
    %994 = vmatpush.bf16.msra.mxu0 %v958
    %995 = vmatpush.bf16.msra.mxu0 %v941
    %996 = vmatmul.bf16.gmra.mxu0 %v949
    %v997 = vpop.f32.mrf.mxu0
    %v998 = vadd.f32 0.0, %v997
    %v999 = vpop.f32.mrf.mxu0
    %v1000 = vadd.f32 0.0, %v999
    %1001 = vdwg.mxu0
    %v1002 = vadd.f32 %v908, %v970
    %v1003 = vadd.f32 %v909, %v984
    %v1004 = vadd.f32 %v910, %v998
    %v1005 = vadd.f32 %v911, %v972
    %v1006 = vadd.f32 %v912, %v986
    %v1007 = vadd.f32 %v913, %v1000
    %v1010 = vunpack.c.l.b16 %v72
    %v1011 = vunpack.c.l.b16 %v73
    %v1012 = vpack.c.b16 %v1011, %v1010
    %v1021 = vunpack.c.l.b16 %v144
    %v1022 = vunpack.c.h.b16 %v144
    %v1023 = vunpack.c.l.b16 %v145
    %v1024 = vunpack.c.l.b16 %v146
    %v1025 = vunpack.c.h.b16 %v146
    %v1026 = vunpack.c.l.b16 %v147
    %v1027 = vunpack.c.l.b16 %v148
    %v1028 = vunpack.c.h.b16 %v148
    %v1029 = vunpack.c.l.b16 %v149
    %v1030 = vunpack.c.l.b16 %v150
    %v1031 = vunpack.c.h.b16 %v150
    %v1032 = vunpack.c.l.b16 %v151
    %v1033 = vpack.c.b16 %v1024, %v1021
    %v1034 = vpack.c.b16 %v1025, %v1022
    %v1035 = vpack.c.b16 %v1026, %v1023
    %v1036 = vpack.c.b16 %v1030, %v1027
    %v1037 = vpack.c.b16 %v1031, %v1028
    %v1038 = vpack.c.b16 %v1032, %v1029
    %v1043 = vsel %vm676, %v1012, 0
    %v1046 = vsel %vm680, %v1036, 0
    %v1049 = vsel %vm680, %v1037, 0
    %v1052 = vsel %vm680, %v1038, 0
    %1054 = vmatpush.bf16.msra.mxu0 0
    %1055 = vmatpush.bf16.msra.mxu0 0
    %1056 = vmatpush.bf16.msra.mxu0 0
    %1057 = vmatpush.bf16.msra.mxu0 0
    %1058 = vmatpush.bf16.msra.mxu0 0
    %1059 = vmatpush.bf16.msra.mxu0 0
    %1060 = vmatpush.bf16.msra.mxu0 %v1046
    %1061 = vmatpush.bf16.msra.mxu0 %v1033
    %1062 = vmatmul.bf16.gmra.mxu0 %v1043
    %v1063 = vpop.f32.mrf.mxu0
    %v1064 = vadd.f32 0.0, %v1063
    %v1065 = vpop.f32.mrf.mxu0
    %v1066 = vadd.f32 0.0, %v1065
    %1067 = vdwg.mxu0
    %1068 = vmatpush.bf16.msra.mxu0 0
    %1069 = vmatpush.bf16.msra.mxu0 0
    %1070 = vmatpush.bf16.msra.mxu0 0
    %1071 = vmatpush.bf16.msra.mxu0 0
    %1072 = vmatpush.bf16.msra.mxu0 0
    %1073 = vmatpush.bf16.msra.mxu0 0
    %1074 = vmatpush.bf16.msra.mxu0 %v1049
    %1075 = vmatpush.bf16.msra.mxu0 %v1034
    %1076 = vmatmul.bf16.gmra.mxu0 %v1043
    %v1077 = vpop.f32.mrf.mxu0
    %v1078 = vadd.f32 0.0, %v1077
    %v1079 = vpop.f32.mrf.mxu0
    %v1080 = vadd.f32 0.0, %v1079
    %1081 = vdwg.mxu0
    %1082 = vmatpush.bf16.msra.mxu0 0
    %1083 = vmatpush.bf16.msra.mxu0 0
    %1084 = vmatpush.bf16.msra.mxu0 0
    %1085 = vmatpush.bf16.msra.mxu0 0
    %1086 = vmatpush.bf16.msra.mxu0 0
    %1087 = vmatpush.bf16.msra.mxu0 0
    %1088 = vmatpush.bf16.msra.mxu0 %v1052
    %1089 = vmatpush.bf16.msra.mxu0 %v1035
    %1090 = vmatmul.bf16.gmra.mxu0 %v1043
    %v1091 = vpop.f32.mrf.mxu0
    %v1092 = vadd.f32 0.0, %v1091
    %v1093 = vpop.f32.mrf.mxu0
    %v1094 = vadd.f32 0.0, %v1093
    %1095 = vdwg.mxu0
    %v1096 = vadd.f32 %v1002, %v1064
    %v1097 = vadd.f32 %v1003, %v1078
    %v1098 = vadd.f32 %v1004, %v1092
    %v1099 = vadd.f32 %v1005, %v1066
    %v1100 = vadd.f32 %v1006, %v1080
    %v1101 = vadd.f32 %v1007, %v1094
    %v1110 = vunpack.c.l.b16 %v104
    %v1111 = vunpack.c.h.b16 %v104
    %v1112 = vunpack.c.l.b16 %v105
    %v1113 = vunpack.c.l.b16 %v106
    %v1114 = vunpack.c.h.b16 %v106
    %v1115 = vunpack.c.l.b16 %v107
    %v1116 = vunpack.c.l.b16 %v108
    %v1117 = vunpack.c.h.b16 %v108
    %v1118 = vunpack.c.l.b16 %v109
    %v1119 = vunpack.c.l.b16 %v110
    %v1120 = vunpack.c.h.b16 %v110
    %v1121 = vunpack.c.l.b16 %v111
    %v1122 = vpack.c.b16 %v1113, %v1110
    %v1123 = vpack.c.b16 %v1114, %v1111
    %v1124 = vpack.c.b16 %v1115, %v1112
    %v1125 = vpack.c.b16 %v1119, %v1116
    %v1126 = vpack.c.b16 %v1120, %v1117
    %v1127 = vpack.c.b16 %v1121, %v1118
    %v1132 = vsel %vm680, %v1125, 0
    %v1135 = vsel %vm680, %v1126, 0
    %v1138 = vsel %vm680, %v1127, 0
    %1140 = vmatpush.bf16.msra.mxu0 0
    %1141 = vmatpush.bf16.msra.mxu0 0
    %1142 = vmatpush.bf16.msra.mxu0 0
    %1143 = vmatpush.bf16.msra.mxu0 0
    %1144 = vmatpush.bf16.msra.mxu0 0
    %1145 = vmatpush.bf16.msra.mxu0 0
    %1146 = vmatpush.bf16.msra.mxu0 %v1132
    %1147 = vmatpush.bf16.msra.mxu0 %v1122
    %1148 = vmatmul.bf16.gmra.mxu0 %v678
    %v1149 = vpop.f32.mrf.mxu0
    %v1150 = vadd.f32 0.0, %v1149
    %v1151 = vpop.f32.mrf.mxu0
    %v1152 = vadd.f32 0.0, %v1151
    %1153 = vdwg.mxu0
    %1154 = vmatpush.bf16.msra.mxu0 0
    %1155 = vmatpush.bf16.msra.mxu0 0
    %1156 = vmatpush.bf16.msra.mxu0 0
    %1157 = vmatpush.bf16.msra.mxu0 0
    %1158 = vmatpush.bf16.msra.mxu0 0
    %1159 = vmatpush.bf16.msra.mxu0 0
    %1160 = vmatpush.bf16.msra.mxu0 %v1135
    %1161 = vmatpush.bf16.msra.mxu0 %v1123
    %1162 = vmatmul.bf16.gmra.mxu0 %v678
    %v1163 = vpop.f32.mrf.mxu0
    %v1164 = vadd.f32 0.0, %v1163
    %v1165 = vpop.f32.mrf.mxu0
    %v1166 = vadd.f32 0.0, %v1165
    %1167 = vdwg.mxu0
    %1168 = vmatpush.bf16.msra.mxu0 0
    %1169 = vmatpush.bf16.msra.mxu0 0
    %1170 = vmatpush.bf16.msra.mxu0 0
    %1171 = vmatpush.bf16.msra.mxu0 0
    %1172 = vmatpush.bf16.msra.mxu0 0
    %1173 = vmatpush.bf16.msra.mxu0 0
    %1174 = vmatpush.bf16.msra.mxu0 %v1138
    %1175 = vmatpush.bf16.msra.mxu0 %v1124
    %1176 = vmatmul.bf16.gmra.mxu0 %v678
    %v1177 = vpop.f32.mrf.mxu0
    %v1178 = vadd.f32 0.0, %v1177
    %v1179 = vpop.f32.mrf.mxu0
    %v1180 = vadd.f32 0.0, %v1179
    %1181 = vdwg.mxu0
    %v1190 = vunpack.c.l.b16 %v88
    %v1191 = vunpack.c.h.b16 %v88
    %v1192 = vunpack.c.l.b16 %v89
    %v1193 = vunpack.c.l.b16 %v90
    %v1194 = vunpack.c.h.b16 %v90
    %v1195 = vunpack.c.l.b16 %v91
    %v1196 = vunpack.c.l.b16 %v92
    %v1197 = vunpack.c.h.b16 %v92
    %v1198 = vunpack.c.l.b16 %v93
    %v1199 = vunpack.c.l.b16 %v94
    %v1200 = vunpack.c.h.b16 %v94
    %v1201 = vunpack.c.l.b16 %v95
    %v1202 = vpack.c.b16 %v1193, %v1190
    %v1203 = vpack.c.b16 %v1194, %v1191
    %v1204 = vpack.c.b16 %v1195, %v1192
    %v1205 = vpack.c.b16 %v1199, %v1196
    %v1206 = vpack.c.b16 %v1200, %v1197
    %v1207 = vpack.c.b16 %v1201, %v1198
    %v1212 = vsel %vm680, %v1205, 0
    %v1215 = vsel %vm680, %v1206, 0
    %v1218 = vsel %vm680, %v1207, 0
    %1220 = vmatpush.bf16.msra.mxu0 0
    %1221 = vmatpush.bf16.msra.mxu0 0
    %1222 = vmatpush.bf16.msra.mxu0 0
    %1223 = vmatpush.bf16.msra.mxu0 0
    %1224 = vmatpush.bf16.msra.mxu0 0
    %1225 = vmatpush.bf16.msra.mxu0 0
    %1226 = vmatpush.bf16.msra.mxu0 %v1212
    %1227 = vmatpush.bf16.msra.mxu0 %v1202
    %1228 = vmatmul.bf16.gmra.mxu0 %v767
    %v1229 = vpop.f32.mrf.mxu0
    %v1230 = vadd.f32 %v1150, %v1229
    %v1231 = vpop.f32.mrf.mxu0
    %v1232 = vadd.f32 %v1152, %v1231
    %1233 = vdwg.mxu0
    %1234 = vmatpush.bf16.msra.mxu0 0
    %1235 = vmatpush.bf16.msra.mxu0 0
    %1236 = vmatpush.bf16.msra.mxu0 0
    %1237 = vmatpush.bf16.msra.mxu0 0
    %1238 = vmatpush.bf16.msra.mxu0 0
    %1239 = vmatpush.bf16.msra.mxu0 0
    %1240 = vmatpush.bf16.msra.mxu0 %v1215
    %1241 = vmatpush.bf16.msra.mxu0 %v1203
    %1242 = vmatmul.bf16.gmra.mxu0 %v767
    %v1243 = vpop.f32.mrf.mxu0
    %v1244 = vadd.f32 %v1164, %v1243
    %v1245 = vpop.f32.mrf.mxu0
    %v1246 = vadd.f32 %v1166, %v1245
    %1247 = vdwg.mxu0
    %1248 = vmatpush.bf16.msra.mxu0 0
    %1249 = vmatpush.bf16.msra.mxu0 0
    %1250 = vmatpush.bf16.msra.mxu0 0
    %1251 = vmatpush.bf16.msra.mxu0 0
    %1252 = vmatpush.bf16.msra.mxu0 0
    %1253 = vmatpush.bf16.msra.mxu0 0
    %1254 = vmatpush.bf16.msra.mxu0 %v1218
    %1255 = vmatpush.bf16.msra.mxu0 %v1204
    %1256 = vmatmul.bf16.gmra.mxu0 %v767
    %v1257 = vpop.f32.mrf.mxu0
    %v1258 = vadd.f32 %v1178, %v1257
    %v1259 = vpop.f32.mrf.mxu0
    %v1260 = vadd.f32 %v1180, %v1259
    %1261 = vdwg.mxu0
    %v1270 = vunpack.c.l.b16 %v120
    %v1271 = vunpack.c.h.b16 %v120
    %v1272 = vunpack.c.l.b16 %v121
    %v1273 = vunpack.c.l.b16 %v122
    %v1274 = vunpack.c.h.b16 %v122
    %v1275 = vunpack.c.l.b16 %v123
    %v1276 = vunpack.c.l.b16 %v124
    %v1277 = vunpack.c.h.b16 %v124
    %v1278 = vunpack.c.l.b16 %v125
    %v1279 = vunpack.c.l.b16 %v126
    %v1280 = vunpack.c.h.b16 %v126
    %v1281 = vunpack.c.l.b16 %v127
    %v1282 = vpack.c.b16 %v1273, %v1270
    %v1283 = vpack.c.b16 %v1274, %v1271
    %v1284 = vpack.c.b16 %v1275, %v1272
    %v1285 = vpack.c.b16 %v1279, %v1276
    %v1286 = vpack.c.b16 %v1280, %v1277
    %v1287 = vpack.c.b16 %v1281, %v1278
    %v1292 = vsel %vm680, %v1285, 0
    %v1295 = vsel %vm680, %v1286, 0
    %v1298 = vsel %vm680, %v1287, 0
    %1300 = vmatpush.bf16.msra.mxu0 0
    %1301 = vmatpush.bf16.msra.mxu0 0
    %1302 = vmatpush.bf16.msra.mxu0 0
    %1303 = vmatpush.bf16.msra.mxu0 0
    %1304 = vmatpush.bf16.msra.mxu0 0
    %1305 = vmatpush.bf16.msra.mxu0 0
    %1306 = vmatpush.bf16.msra.mxu0 %v1292
    %1307 = vmatpush.bf16.msra.mxu0 %v1282
    %1308 = vmatmul.bf16.gmra.mxu0 %v855
    %v1309 = vpop.f32.mrf.mxu0
    %v1310 = vadd.f32 0.0, %v1309
    %v1311 = vpop.f32.mrf.mxu0
    %v1312 = vadd.f32 0.0, %v1311
    %1313 = vdwg.mxu0
    %1314 = vmatpush.bf16.msra.mxu0 0
    %1315 = vmatpush.bf16.msra.mxu0 0
    %1316 = vmatpush.bf16.msra.mxu0 0
    %1317 = vmatpush.bf16.msra.mxu0 0
    %1318 = vmatpush.bf16.msra.mxu0 0
    %1319 = vmatpush.bf16.msra.mxu0 0
    %1320 = vmatpush.bf16.msra.mxu0 %v1295
    %1321 = vmatpush.bf16.msra.mxu0 %v1283
    %1322 = vmatmul.bf16.gmra.mxu0 %v855
    %v1323 = vpop.f32.mrf.mxu0
    %v1324 = vadd.f32 0.0, %v1323
    %v1325 = vpop.f32.mrf.mxu0
    %v1326 = vadd.f32 0.0, %v1325
    %1327 = vdwg.mxu0
    %1328 = vmatpush.bf16.msra.mxu0 0
    %1329 = vmatpush.bf16.msra.mxu0 0
    %1330 = vmatpush.bf16.msra.mxu0 0
    %1331 = vmatpush.bf16.msra.mxu0 0
    %1332 = vmatpush.bf16.msra.mxu0 0
    %1333 = vmatpush.bf16.msra.mxu0 0
    %1334 = vmatpush.bf16.msra.mxu0 %v1298
    %1335 = vmatpush.bf16.msra.mxu0 %v1284
    %1336 = vmatmul.bf16.gmra.mxu0 %v855
    %v1337 = vpop.f32.mrf.mxu0
    %v1338 = vadd.f32 0.0, %v1337
    %v1339 = vpop.f32.mrf.mxu0
    %v1340 = vadd.f32 0.0, %v1339
    %1341 = vdwg.mxu0
    %v1342 = vadd.f32 %v1230, %v1310
    %v1343 = vadd.f32 %v1244, %v1324
    %v1344 = vadd.f32 %v1258, %v1338
    %v1345 = vadd.f32 %v1232, %v1312
    %v1346 = vadd.f32 %v1246, %v1326
    %v1347 = vadd.f32 %v1260, %v1340
    %v1356 = vunpack.c.l.b16 %v136
    %v1357 = vunpack.c.h.b16 %v136
    %v1358 = vunpack.c.l.b16 %v137
    %v1359 = vunpack.c.l.b16 %v138
    %v1360 = vunpack.c.h.b16 %v138
    %v1361 = vunpack.c.l.b16 %v139
    %v1362 = vunpack.c.l.b16 %v140
    %v1363 = vunpack.c.h.b16 %v140
    %v1364 = vunpack.c.l.b16 %v141
    %v1365 = vunpack.c.l.b16 %v142
    %v1366 = vunpack.c.h.b16 %v142
    %v1367 = vunpack.c.l.b16 %v143
    %v1368 = vpack.c.b16 %v1359, %v1356
    %v1369 = vpack.c.b16 %v1360, %v1357
    %v1370 = vpack.c.b16 %v1361, %v1358
    %v1371 = vpack.c.b16 %v1365, %v1362
    %v1372 = vpack.c.b16 %v1366, %v1363
    %v1373 = vpack.c.b16 %v1367, %v1364
    %v1378 = vsel %vm680, %v1371, 0
    %v1381 = vsel %vm680, %v1372, 0
    %v1384 = vsel %vm680, %v1373, 0
    %1386 = vmatpush.bf16.msra.mxu0 0
    %1387 = vmatpush.bf16.msra.mxu0 0
    %1388 = vmatpush.bf16.msra.mxu0 0
    %1389 = vmatpush.bf16.msra.mxu0 0
    %1390 = vmatpush.bf16.msra.mxu0 0
    %1391 = vmatpush.bf16.msra.mxu0 0
    %1392 = vmatpush.bf16.msra.mxu0 %v1378
    %1393 = vmatpush.bf16.msra.mxu0 %v1368
    %1394 = vmatmul.bf16.gmra.mxu0 %v949
    %v1395 = vpop.f32.mrf.mxu0
    %v1396 = vadd.f32 0.0, %v1395
    %v1397 = vpop.f32.mrf.mxu0
    %v1398 = vadd.f32 0.0, %v1397
    %1399 = vdwg.mxu0
    %1400 = vmatpush.bf16.msra.mxu0 0
    %1401 = vmatpush.bf16.msra.mxu0 0
    %1402 = vmatpush.bf16.msra.mxu0 0
    %1403 = vmatpush.bf16.msra.mxu0 0
    %1404 = vmatpush.bf16.msra.mxu0 0
    %1405 = vmatpush.bf16.msra.mxu0 0
    %1406 = vmatpush.bf16.msra.mxu0 %v1381
    %1407 = vmatpush.bf16.msra.mxu0 %v1369
    %1408 = vmatmul.bf16.gmra.mxu0 %v949
    %v1409 = vpop.f32.mrf.mxu0
    %v1410 = vadd.f32 0.0, %v1409
    %v1411 = vpop.f32.mrf.mxu0
    %v1412 = vadd.f32 0.0, %v1411
    %1413 = vdwg.mxu0
    %1414 = vmatpush.bf16.msra.mxu0 0
    %1415 = vmatpush.bf16.msra.mxu0 0
    %1416 = vmatpush.bf16.msra.mxu0 0
    %1417 = vmatpush.bf16.msra.mxu0 0
    %1418 = vmatpush.bf16.msra.mxu0 0
    %1419 = vmatpush.bf16.msra.mxu0 0
    %1420 = vmatpush.bf16.msra.mxu0 %v1384
    %1421 = vmatpush.bf16.msra.mxu0 %v1370
    %1422 = vmatmul.bf16.gmra.mxu0 %v949
    %v1423 = vpop.f32.mrf.mxu0
    %v1424 = vadd.f32 0.0, %v1423
    %v1425 = vpop.f32.mrf.mxu0
    %v1426 = vadd.f32 0.0, %v1425
    %1427 = vdwg.mxu0
    %v1428 = vadd.f32 %v1342, %v1396
    %v1429 = vadd.f32 %v1343, %v1410
    %v1430 = vadd.f32 %v1344, %v1424
    %v1431 = vadd.f32 %v1345, %v1398
    %v1432 = vadd.f32 %v1346, %v1412
    %v1433 = vadd.f32 %v1347, %v1426
    %v1442 = vunpack.c.l.b16 %v152
    %v1443 = vunpack.c.h.b16 %v152
    %v1444 = vunpack.c.l.b16 %v153
    %v1445 = vunpack.c.l.b16 %v154
    %v1446 = vunpack.c.h.b16 %v154
    %v1447 = vunpack.c.l.b16 %v155
    %v1448 = vunpack.c.l.b16 %v156
    %v1449 = vunpack.c.h.b16 %v156
    %v1450 = vunpack.c.l.b16 %v157
    %v1451 = vunpack.c.l.b16 %v158
    %v1452 = vunpack.c.h.b16 %v158
    %v1453 = vunpack.c.l.b16 %v159
    %v1454 = vpack.c.b16 %v1445, %v1442
    %v1455 = vpack.c.b16 %v1446, %v1443
    %v1456 = vpack.c.b16 %v1447, %v1444
    %v1457 = vpack.c.b16 %v1451, %v1448
    %v1458 = vpack.c.b16 %v1452, %v1449
    %v1459 = vpack.c.b16 %v1453, %v1450
    %v1464 = vsel %vm680, %v1457, 0
    %v1467 = vsel %vm680, %v1458, 0
    %v1470 = vsel %vm680, %v1459, 0
    %1472 = vmatpush.bf16.msra.mxu0 0
    %1473 = vmatpush.bf16.msra.mxu0 0
    %1474 = vmatpush.bf16.msra.mxu0 0
    %1475 = vmatpush.bf16.msra.mxu0 0
    %1476 = vmatpush.bf16.msra.mxu0 0
    %1477 = vmatpush.bf16.msra.mxu0 0
    %1478 = vmatpush.bf16.msra.mxu0 %v1464
    %1479 = vmatpush.bf16.msra.mxu0 %v1454
    %1480 = vmatmul.bf16.gmra.mxu0 %v1043
    %v1481 = vpop.f32.mrf.mxu0
    %v1482 = vadd.f32 0.0, %v1481
    %v1483 = vpop.f32.mrf.mxu0
    %v1484 = vadd.f32 0.0, %v1483
    %1485 = vdwg.mxu0
    %1486 = vmatpush.bf16.msra.mxu0 0
    %1487 = vmatpush.bf16.msra.mxu0 0
    %1488 = vmatpush.bf16.msra.mxu0 0
    %1489 = vmatpush.bf16.msra.mxu0 0
    %1490 = vmatpush.bf16.msra.mxu0 0
    %1491 = vmatpush.bf16.msra.mxu0 0
    %1492 = vmatpush.bf16.msra.mxu0 %v1467
    %1493 = vmatpush.bf16.msra.mxu0 %v1455
    %1494 = vmatmul.bf16.gmra.mxu0 %v1043
    %v1495 = vpop.f32.mrf.mxu0
    %v1496 = vadd.f32 0.0, %v1495
    %v1497 = vpop.f32.mrf.mxu0
    %v1498 = vadd.f32 0.0, %v1497
    %1499 = vdwg.mxu0
    %1500 = vmatpush.bf16.msra.mxu0 0
    %1501 = vmatpush.bf16.msra.mxu0 0
    %1502 = vmatpush.bf16.msra.mxu0 0
    %1503 = vmatpush.bf16.msra.mxu0 0
    %1504 = vmatpush.bf16.msra.mxu0 0
    %1505 = vmatpush.bf16.msra.mxu0 0
    %1506 = vmatpush.bf16.msra.mxu0 %v1470
    %1507 = vmatpush.bf16.msra.mxu0 %v1456
    %1508 = vmatmul.bf16.gmra.mxu0 %v1043
    %v1509 = vpop.f32.mrf.mxu0
    %v1510 = vadd.f32 0.0, %v1509
    %v1511 = vpop.f32.mrf.mxu0
    %v1512 = vadd.f32 0.0, %v1511
    %1513 = vdwg.mxu0
    %v1514 = vadd.f32 %v1428, %v1482
    %v1515 = vadd.f32 %v1429, %v1496
    %v1516 = vadd.f32 %v1430, %v1510
    %v1517 = vadd.f32 %v1431, %v1484
    %v1518 = vadd.f32 %v1432, %v1498
    %v1519 = vadd.f32 %v1433, %v1512
    %v1520 = vmax.f32 %v1096, %v1514
    %v1521 = vmax.f32 %v1097, %v1515
    %v1522 = vmax.f32 %v1098, %v1516
    %v1523 = vmax.f32 %v1099, %v1517
    %v1524 = vmax.f32 %v1100, %v1518
    %v1525 = vmax.f32 %v1101, %v1519
    %1526 = vmatpush.bf16.msra.mxu0 0
    %1527 = vmatpush.bf16.msra.mxu0 0
    %1528 = vmatpush.bf16.msra.mxu0 0
    %1529 = vmatpush.bf16.msra.mxu0 0
    %1530 = vmatpush.bf16.msra.mxu0 0
    %1531 = vmatpush.bf16.msra.mxu0 0
    %1532 = vmatpush.bf16.msra.mxu0 %v682
    %1533 = vmatpush.bf16.msra.mxu0 %v667
    %1534 = vmatmul.bf16.gmra.mxu0 %v855
    %v1535 = vpop.f32.mrf.mxu0
    %v1536 = vadd.f32 0.0, %v1535
    %v1537 = vpop.f32.mrf.mxu0
    %v1538 = vadd.f32 0.0, %v1537
    %1539 = vdwg.mxu0
    %1540 = vmatpush.bf16.msra.mxu0 0
    %1541 = vmatpush.bf16.msra.mxu0 0
    %1542 = vmatpush.bf16.msra.mxu0 0
    %1543 = vmatpush.bf16.msra.mxu0 0
    %1544 = vmatpush.bf16.msra.mxu0 0
    %1545 = vmatpush.bf16.msra.mxu0 0
    %1546 = vmatpush.bf16.msra.mxu0 %v685
    %1547 = vmatpush.bf16.msra.mxu0 %v668
    %1548 = vmatmul.bf16.gmra.mxu0 %v855
    %v1549 = vpop.f32.mrf.mxu0
    %v1550 = vadd.f32 0.0, %v1549
    %v1551 = vpop.f32.mrf.mxu0
    %v1552 = vadd.f32 0.0, %v1551
    %1553 = vdwg.mxu0
    %1554 = vmatpush.bf16.msra.mxu0 0
    %1555 = vmatpush.bf16.msra.mxu0 0
    %1556 = vmatpush.bf16.msra.mxu0 0
    %1557 = vmatpush.bf16.msra.mxu0 0
    %1558 = vmatpush.bf16.msra.mxu0 0
    %1559 = vmatpush.bf16.msra.mxu0 0
    %1560 = vmatpush.bf16.msra.mxu0 %v688
    %1561 = vmatpush.bf16.msra.mxu0 %v669
    %1562 = vmatmul.bf16.gmra.mxu0 %v855
    %v1563 = vpop.f32.mrf.mxu0
    %v1564 = vadd.f32 0.0, %v1563
    %v1565 = vpop.f32.mrf.mxu0
    %v1566 = vadd.f32 0.0, %v1565
    %1567 = vdwg.mxu0
    %1568 = vmatpush.bf16.msra.mxu0 0
    %1569 = vmatpush.bf16.msra.mxu0 0
    %1570 = vmatpush.bf16.msra.mxu0 0
    %1571 = vmatpush.bf16.msra.mxu0 0
    %1572 = vmatpush.bf16.msra.mxu0 0
    %1573 = vmatpush.bf16.msra.mxu0 0
    %1574 = vmatpush.bf16.msra.mxu0 %v770
    %1575 = vmatpush.bf16.msra.mxu0 %v757
    %1576 = vmatmul.bf16.gmra.mxu0 %v678
    %v1577 = vpop.f32.mrf.mxu0
    %v1578 = vadd.f32 %v1536, %v1577
    %v1579 = vpop.f32.mrf.mxu0
    %v1580 = vadd.f32 %v1538, %v1579
    %1581 = vdwg.mxu0
    %1582 = vmatpush.bf16.msra.mxu0 0
    %1583 = vmatpush.bf16.msra.mxu0 0
    %1584 = vmatpush.bf16.msra.mxu0 0
    %1585 = vmatpush.bf16.msra.mxu0 0
    %1586 = vmatpush.bf16.msra.mxu0 0
    %1587 = vmatpush.bf16.msra.mxu0 0
    %1588 = vmatpush.bf16.msra.mxu0 %v773
    %1589 = vmatpush.bf16.msra.mxu0 %v758
    %1590 = vmatmul.bf16.gmra.mxu0 %v678
    %v1591 = vpop.f32.mrf.mxu0
    %v1592 = vadd.f32 %v1550, %v1591
    %v1593 = vpop.f32.mrf.mxu0
    %v1594 = vadd.f32 %v1552, %v1593
    %1595 = vdwg.mxu0
    %1596 = vmatpush.bf16.msra.mxu0 0
    %1597 = vmatpush.bf16.msra.mxu0 0
    %1598 = vmatpush.bf16.msra.mxu0 0
    %1599 = vmatpush.bf16.msra.mxu0 0
    %1600 = vmatpush.bf16.msra.mxu0 0
    %1601 = vmatpush.bf16.msra.mxu0 0
    %1602 = vmatpush.bf16.msra.mxu0 %v776
    %1603 = vmatpush.bf16.msra.mxu0 %v759
    %1604 = vmatmul.bf16.gmra.mxu0 %v678
    %v1605 = vpop.f32.mrf.mxu0
    %v1606 = vadd.f32 %v1564, %v1605
    %v1607 = vpop.f32.mrf.mxu0
    %v1608 = vadd.f32 %v1566, %v1607
    %1609 = vdwg.mxu0
    %1610 = vmatpush.bf16.msra.mxu0 0
    %1611 = vmatpush.bf16.msra.mxu0 0
    %1612 = vmatpush.bf16.msra.mxu0 0
    %1613 = vmatpush.bf16.msra.mxu0 0
    %1614 = vmatpush.bf16.msra.mxu0 0
    %1615 = vmatpush.bf16.msra.mxu0 0
    %1616 = vmatpush.bf16.msra.mxu0 %v858
    %1617 = vmatpush.bf16.msra.mxu0 %v845
    %1618 = vmatmul.bf16.gmra.mxu0 %v949
    %v1619 = vpop.f32.mrf.mxu0
    %v1620 = vadd.f32 0.0, %v1619
    %v1621 = vpop.f32.mrf.mxu0
    %v1622 = vadd.f32 0.0, %v1621
    %1623 = vdwg.mxu0
    %1624 = vmatpush.bf16.msra.mxu0 0
    %1625 = vmatpush.bf16.msra.mxu0 0
    %1626 = vmatpush.bf16.msra.mxu0 0
    %1627 = vmatpush.bf16.msra.mxu0 0
    %1628 = vmatpush.bf16.msra.mxu0 0
    %1629 = vmatpush.bf16.msra.mxu0 0
    %1630 = vmatpush.bf16.msra.mxu0 %v861
    %1631 = vmatpush.bf16.msra.mxu0 %v846
    %1632 = vmatmul.bf16.gmra.mxu0 %v949
    %v1633 = vpop.f32.mrf.mxu0
    %v1634 = vadd.f32 0.0, %v1633
    %v1635 = vpop.f32.mrf.mxu0
    %v1636 = vadd.f32 0.0, %v1635
    %1637 = vdwg.mxu0
    %1638 = vmatpush.bf16.msra.mxu0 0
    %1639 = vmatpush.bf16.msra.mxu0 0
    %1640 = vmatpush.bf16.msra.mxu0 0
    %1641 = vmatpush.bf16.msra.mxu0 0
    %1642 = vmatpush.bf16.msra.mxu0 0
    %1643 = vmatpush.bf16.msra.mxu0 0
    %1644 = vmatpush.bf16.msra.mxu0 %v864
    %1645 = vmatpush.bf16.msra.mxu0 %v847
    %1646 = vmatmul.bf16.gmra.mxu0 %v949
    %v1647 = vpop.f32.mrf.mxu0
    %v1648 = vadd.f32 0.0, %v1647
    %v1649 = vpop.f32.mrf.mxu0
    %v1650 = vadd.f32 0.0, %v1649
    %1651 = vdwg.mxu0
    %v1652 = vadd.f32 %v1578, %v1620
    %v1653 = vadd.f32 %v1592, %v1634
    %v1654 = vadd.f32 %v1606, %v1648
    %v1655 = vadd.f32 %v1580, %v1622
    %v1656 = vadd.f32 %v1594, %v1636
    %v1657 = vadd.f32 %v1608, %v1650
    %1658 = vmatpush.bf16.msra.mxu0 0
    %1659 = vmatpush.bf16.msra.mxu0 0
    %1660 = vmatpush.bf16.msra.mxu0 0
    %1661 = vmatpush.bf16.msra.mxu0 0
    %1662 = vmatpush.bf16.msra.mxu0 0
    %1663 = vmatpush.bf16.msra.mxu0 0
    %1664 = vmatpush.bf16.msra.mxu0 %v952
    %1665 = vmatpush.bf16.msra.mxu0 %v939
    %1666 = vmatmul.bf16.gmra.mxu0 %v1043
    %v1667 = vpop.f32.mrf.mxu0
    %v1668 = vadd.f32 0.0, %v1667
    %v1669 = vpop.f32.mrf.mxu0
    %v1670 = vadd.f32 0.0, %v1669
    %1671 = vdwg.mxu0
    %1672 = vmatpush.bf16.msra.mxu0 0
    %1673 = vmatpush.bf16.msra.mxu0 0
    %1674 = vmatpush.bf16.msra.mxu0 0
    %1675 = vmatpush.bf16.msra.mxu0 0
    %1676 = vmatpush.bf16.msra.mxu0 0
    %1677 = vmatpush.bf16.msra.mxu0 0
    %1678 = vmatpush.bf16.msra.mxu0 %v955
    %1679 = vmatpush.bf16.msra.mxu0 %v940
    %1680 = vmatmul.bf16.gmra.mxu0 %v1043
    %v1681 = vpop.f32.mrf.mxu0
    %v1682 = vadd.f32 0.0, %v1681
    %v1683 = vpop.f32.mrf.mxu0
    %v1684 = vadd.f32 0.0, %v1683
    %1685 = vdwg.mxu0
    %1686 = vmatpush.bf16.msra.mxu0 0
    %1687 = vmatpush.bf16.msra.mxu0 0
    %1688 = vmatpush.bf16.msra.mxu0 0
    %1689 = vmatpush.bf16.msra.mxu0 0
    %1690 = vmatpush.bf16.msra.mxu0 0
    %1691 = vmatpush.bf16.msra.mxu0 0
    %1692 = vmatpush.bf16.msra.mxu0 %v958
    %1693 = vmatpush.bf16.msra.mxu0 %v941
    %1694 = vmatmul.bf16.gmra.mxu0 %v1043
    %v1695 = vpop.f32.mrf.mxu0
    %v1696 = vadd.f32 0.0, %v1695
    %v1697 = vpop.f32.mrf.mxu0
    %v1698 = vadd.f32 0.0, %v1697
    %1699 = vdwg.mxu0
    %v1700 = vadd.f32 %v1652, %v1668
    %v1701 = vadd.f32 %v1653, %v1682
    %v1702 = vadd.f32 %v1654, %v1696
    %v1703 = vadd.f32 %v1655, %v1670
    %v1704 = vadd.f32 %v1656, %v1684
    %v1705 = vadd.f32 %v1657, %v1698
    %v1708 = vunpack.c.l.b16 %v74
    %v1709 = vunpack.c.l.b16 %v75
    %v1710 = vpack.c.b16 %v1709, %v1708
    %v1712 = vsel %vm676, %v1710, 0
    %1714 = vmatpush.bf16.msra.mxu0 0
    %1715 = vmatpush.bf16.msra.mxu0 0
    %1716 = vmatpush.bf16.msra.mxu0 0
    %1717 = vmatpush.bf16.msra.mxu0 0
    %1718 = vmatpush.bf16.msra.mxu0 0
    %1719 = vmatpush.bf16.msra.mxu0 0
    %1720 = vmatpush.bf16.msra.mxu0 %v1046
    %1721 = vmatpush.bf16.msra.mxu0 %v1033
    %1722 = vmatmul.bf16.gmra.mxu0 %v1712
    %v1723 = vpop.f32.mrf.mxu0
    %v1724 = vadd.f32 0.0, %v1723
    %v1725 = vpop.f32.mrf.mxu0
    %v1726 = vadd.f32 0.0, %v1725
    %1727 = vdwg.mxu0
    %1728 = vmatpush.bf16.msra.mxu0 0
    %1729 = vmatpush.bf16.msra.mxu0 0
    %1730 = vmatpush.bf16.msra.mxu0 0
    %1731 = vmatpush.bf16.msra.mxu0 0
    %1732 = vmatpush.bf16.msra.mxu0 0
    %1733 = vmatpush.bf16.msra.mxu0 0
    %1734 = vmatpush.bf16.msra.mxu0 %v1049
    %1735 = vmatpush.bf16.msra.mxu0 %v1034
    %1736 = vmatmul.bf16.gmra.mxu0 %v1712
    %v1737 = vpop.f32.mrf.mxu0
    %v1738 = vadd.f32 0.0, %v1737
    %v1739 = vpop.f32.mrf.mxu0
    %v1740 = vadd.f32 0.0, %v1739
    %1741 = vdwg.mxu0
    %1742 = vmatpush.bf16.msra.mxu0 0
    %1743 = vmatpush.bf16.msra.mxu0 0
    %1744 = vmatpush.bf16.msra.mxu0 0
    %1745 = vmatpush.bf16.msra.mxu0 0
    %1746 = vmatpush.bf16.msra.mxu0 0
    %1747 = vmatpush.bf16.msra.mxu0 0
    %1748 = vmatpush.bf16.msra.mxu0 %v1052
    %1749 = vmatpush.bf16.msra.mxu0 %v1035
    %1750 = vmatmul.bf16.gmra.mxu0 %v1712
    %v1751 = vpop.f32.mrf.mxu0
    %v1752 = vadd.f32 0.0, %v1751
    %v1753 = vpop.f32.mrf.mxu0
    %v1754 = vadd.f32 0.0, %v1753
    %1755 = vdwg.mxu0
    %v1756 = vadd.f32 %v1700, %v1724
    %v1757 = vadd.f32 %v1701, %v1738
    %v1758 = vadd.f32 %v1702, %v1752
    %v1759 = vadd.f32 %v1703, %v1726
    %v1760 = vadd.f32 %v1704, %v1740
    %v1761 = vadd.f32 %v1705, %v1754
    %v1762 = vmax.f32 %v1520, %v1756
    %v1763 = vmax.f32 %v1521, %v1757
    %v1764 = vmax.f32 %v1522, %v1758
    %v1765 = vmax.f32 %v1523, %v1759
    %v1766 = vmax.f32 %v1524, %v1760
    %v1767 = vmax.f32 %v1525, %v1761
    %1768 = vmatpush.bf16.msra.mxu0 0
    %1769 = vmatpush.bf16.msra.mxu0 0
    %1770 = vmatpush.bf16.msra.mxu0 0
    %1771 = vmatpush.bf16.msra.mxu0 0
    %1772 = vmatpush.bf16.msra.mxu0 0
    %1773 = vmatpush.bf16.msra.mxu0 0
    %1774 = vmatpush.bf16.msra.mxu0 %v1132
    %1775 = vmatpush.bf16.msra.mxu0 %v1122
    %1776 = vmatmul.bf16.gmra.mxu0 %v855
    %v1777 = vpop.f32.mrf.mxu0
    %v1778 = vadd.f32 0.0, %v1777
    %v1779 = vpop.f32.mrf.mxu0
    %v1780 = vadd.f32 0.0, %v1779
    %1781 = vdwg.mxu0
    %1782 = vmatpush.bf16.msra.mxu0 0
    %1783 = vmatpush.bf16.msra.mxu0 0
    %1784 = vmatpush.bf16.msra.mxu0 0
    %1785 = vmatpush.bf16.msra.mxu0 0
    %1786 = vmatpush.bf16.msra.mxu0 0
    %1787 = vmatpush.bf16.msra.mxu0 0
    %1788 = vmatpush.bf16.msra.mxu0 %v1135
    %1789 = vmatpush.bf16.msra.mxu0 %v1123
    %1790 = vmatmul.bf16.gmra.mxu0 %v855
    %v1791 = vpop.f32.mrf.mxu0
    %v1792 = vadd.f32 0.0, %v1791
    %v1793 = vpop.f32.mrf.mxu0
    %v1794 = vadd.f32 0.0, %v1793
    %1795 = vdwg.mxu0
    %1796 = vmatpush.bf16.msra.mxu0 0
    %1797 = vmatpush.bf16.msra.mxu0 0
    %1798 = vmatpush.bf16.msra.mxu0 0
    %1799 = vmatpush.bf16.msra.mxu0 0
    %1800 = vmatpush.bf16.msra.mxu0 0
    %1801 = vmatpush.bf16.msra.mxu0 0
    %1802 = vmatpush.bf16.msra.mxu0 %v1138
    %1803 = vmatpush.bf16.msra.mxu0 %v1124
    %1804 = vmatmul.bf16.gmra.mxu0 %v855
    %v1805 = vpop.f32.mrf.mxu0
    %v1806 = vadd.f32 0.0, %v1805
    %v1807 = vpop.f32.mrf.mxu0
    %v1808 = vadd.f32 0.0, %v1807
    %1809 = vdwg.mxu0
    %1810 = vmatpush.bf16.msra.mxu0 0
    %1811 = vmatpush.bf16.msra.mxu0 0
    %1812 = vmatpush.bf16.msra.mxu0 0
    %1813 = vmatpush.bf16.msra.mxu0 0
    %1814 = vmatpush.bf16.msra.mxu0 0
    %1815 = vmatpush.bf16.msra.mxu0 0
    %1816 = vmatpush.bf16.msra.mxu0 %v1212
    %1817 = vmatpush.bf16.msra.mxu0 %v1202
    %1818 = vmatmul.bf16.gmra.mxu0 %v678
    %v1819 = vpop.f32.mrf.mxu0
    %v1820 = vadd.f32 %v1778, %v1819
    %v1821 = vpop.f32.mrf.mxu0
    %v1822 = vadd.f32 %v1780, %v1821
    %1823 = vdwg.mxu0
    %1824 = vmatpush.bf16.msra.mxu0 0
    %1825 = vmatpush.bf16.msra.mxu0 0
    %1826 = vmatpush.bf16.msra.mxu0 0
    %1827 = vmatpush.bf16.msra.mxu0 0
    %1828 = vmatpush.bf16.msra.mxu0 0
    %1829 = vmatpush.bf16.msra.mxu0 0
    %1830 = vmatpush.bf16.msra.mxu0 %v1215
    %1831 = vmatpush.bf16.msra.mxu0 %v1203
    %1832 = vmatmul.bf16.gmra.mxu0 %v678
    %v1833 = vpop.f32.mrf.mxu0
    %v1834 = vadd.f32 %v1792, %v1833
    %v1835 = vpop.f32.mrf.mxu0
    %v1836 = vadd.f32 %v1794, %v1835
    %1837 = vdwg.mxu0
    %1838 = vmatpush.bf16.msra.mxu0 0
    %1839 = vmatpush.bf16.msra.mxu0 0
    %1840 = vmatpush.bf16.msra.mxu0 0
    %1841 = vmatpush.bf16.msra.mxu0 0
    %1842 = vmatpush.bf16.msra.mxu0 0
    %1843 = vmatpush.bf16.msra.mxu0 0
    %1844 = vmatpush.bf16.msra.mxu0 %v1218
    %1845 = vmatpush.bf16.msra.mxu0 %v1204
    %1846 = vmatmul.bf16.gmra.mxu0 %v678
    %v1847 = vpop.f32.mrf.mxu0
    %v1848 = vadd.f32 %v1806, %v1847
    %v1849 = vpop.f32.mrf.mxu0
    %v1850 = vadd.f32 %v1808, %v1849
    %1851 = vdwg.mxu0
    %1852 = vmatpush.bf16.msra.mxu0 0
    %1853 = vmatpush.bf16.msra.mxu0 0
    %1854 = vmatpush.bf16.msra.mxu0 0
    %1855 = vmatpush.bf16.msra.mxu0 0
    %1856 = vmatpush.bf16.msra.mxu0 0
    %1857 = vmatpush.bf16.msra.mxu0 0
    %1858 = vmatpush.bf16.msra.mxu0 %v1292
    %1859 = vmatpush.bf16.msra.mxu0 %v1282
    %1860 = vmatmul.bf16.gmra.mxu0 %v949
    %v1861 = vpop.f32.mrf.mxu0
    %v1862 = vadd.f32 0.0, %v1861
    %v1863 = vpop.f32.mrf.mxu0
    %v1864 = vadd.f32 0.0, %v1863
    %1865 = vdwg.mxu0
    %1866 = vmatpush.bf16.msra.mxu0 0
    %1867 = vmatpush.bf16.msra.mxu0 0
    %1868 = vmatpush.bf16.msra.mxu0 0
    %1869 = vmatpush.bf16.msra.mxu0 0
    %1870 = vmatpush.bf16.msra.mxu0 0
    %1871 = vmatpush.bf16.msra.mxu0 0
    %1872 = vmatpush.bf16.msra.mxu0 %v1295
    %1873 = vmatpush.bf16.msra.mxu0 %v1283
    %1874 = vmatmul.bf16.gmra.mxu0 %v949
    %v1875 = vpop.f32.mrf.mxu0
    %v1876 = vadd.f32 0.0, %v1875
    %v1877 = vpop.f32.mrf.mxu0
    %v1878 = vadd.f32 0.0, %v1877
    %1879 = vdwg.mxu0
    %1880 = vmatpush.bf16.msra.mxu0 0
    %1881 = vmatpush.bf16.msra.mxu0 0
    %1882 = vmatpush.bf16.msra.mxu0 0
    %1883 = vmatpush.bf16.msra.mxu0 0
    %1884 = vmatpush.bf16.msra.mxu0 0
    %1885 = vmatpush.bf16.msra.mxu0 0
    %1886 = vmatpush.bf16.msra.mxu0 %v1298
    %1887 = vmatpush.bf16.msra.mxu0 %v1284
    %1888 = vmatmul.bf16.gmra.mxu0 %v949
    %v1889 = vpop.f32.mrf.mxu0
    %v1890 = vadd.f32 0.0, %v1889
    %v1891 = vpop.f32.mrf.mxu0
    %v1892 = vadd.f32 0.0, %v1891
    %1893 = vdwg.mxu0
    %v1894 = vadd.f32 %v1820, %v1862
    %v1895 = vadd.f32 %v1834, %v1876
    %v1896 = vadd.f32 %v1848, %v1890
    %v1897 = vadd.f32 %v1822, %v1864
    %v1898 = vadd.f32 %v1836, %v1878
    %v1899 = vadd.f32 %v1850, %v1892
    %1900 = vmatpush.bf16.msra.mxu0 0
    %1901 = vmatpush.bf16.msra.mxu0 0
    %1902 = vmatpush.bf16.msra.mxu0 0
    %1903 = vmatpush.bf16.msra.mxu0 0
    %1904 = vmatpush.bf16.msra.mxu0 0
    %1905 = vmatpush.bf16.msra.mxu0 0
    %1906 = vmatpush.bf16.msra.mxu0 %v1378
    %1907 = vmatpush.bf16.msra.mxu0 %v1368
    %1908 = vmatmul.bf16.gmra.mxu0 %v1043
    %v1909 = vpop.f32.mrf.mxu0
    %v1910 = vadd.f32 0.0, %v1909
    %v1911 = vpop.f32.mrf.mxu0
    %v1912 = vadd.f32 0.0, %v1911
    %1913 = vdwg.mxu0
    %1914 = vmatpush.bf16.msra.mxu0 0
    %1915 = vmatpush.bf16.msra.mxu0 0
    %1916 = vmatpush.bf16.msra.mxu0 0
    %1917 = vmatpush.bf16.msra.mxu0 0
    %1918 = vmatpush.bf16.msra.mxu0 0
    %1919 = vmatpush.bf16.msra.mxu0 0
    %1920 = vmatpush.bf16.msra.mxu0 %v1381
    %1921 = vmatpush.bf16.msra.mxu0 %v1369
    %1922 = vmatmul.bf16.gmra.mxu0 %v1043
    %v1923 = vpop.f32.mrf.mxu0
    %v1924 = vadd.f32 0.0, %v1923
    %v1925 = vpop.f32.mrf.mxu0
    %v1926 = vadd.f32 0.0, %v1925
    %1927 = vdwg.mxu0
    %1928 = vmatpush.bf16.msra.mxu0 0
    %1929 = vmatpush.bf16.msra.mxu0 0
    %1930 = vmatpush.bf16.msra.mxu0 0
    %1931 = vmatpush.bf16.msra.mxu0 0
    %1932 = vmatpush.bf16.msra.mxu0 0
    %1933 = vmatpush.bf16.msra.mxu0 0
    %1934 = vmatpush.bf16.msra.mxu0 %v1384
    %1935 = vmatpush.bf16.msra.mxu0 %v1370
    %1936 = vmatmul.bf16.gmra.mxu0 %v1043
    %v1937 = vpop.f32.mrf.mxu0
    %v1938 = vadd.f32 0.0, %v1937
    %v1939 = vpop.f32.mrf.mxu0
    %v1940 = vadd.f32 0.0, %v1939
    %1941 = vdwg.mxu0
    %v1942 = vadd.f32 %v1894, %v1910
    %v1943 = vadd.f32 %v1895, %v1924
    %v1944 = vadd.f32 %v1896, %v1938
    %v1945 = vadd.f32 %v1897, %v1912
    %v1946 = vadd.f32 %v1898, %v1926
    %v1947 = vadd.f32 %v1899, %v1940
    %1948 = vmatpush.bf16.msra.mxu0 0
    %1949 = vmatpush.bf16.msra.mxu0 0
    %1950 = vmatpush.bf16.msra.mxu0 0
    %1951 = vmatpush.bf16.msra.mxu0 0
    %1952 = vmatpush.bf16.msra.mxu0 0
    %1953 = vmatpush.bf16.msra.mxu0 0
    %1954 = vmatpush.bf16.msra.mxu0 %v1464
    %1955 = vmatpush.bf16.msra.mxu0 %v1454
    %1956 = vmatmul.bf16.gmra.mxu0 %v1712
    %v1957 = vpop.f32.mrf.mxu0
    %v1958 = vadd.f32 0.0, %v1957
    %v1959 = vpop.f32.mrf.mxu0
    %v1960 = vadd.f32 0.0, %v1959
    %1961 = vdwg.mxu0
    %1962 = vmatpush.bf16.msra.mxu0 0
    %1963 = vmatpush.bf16.msra.mxu0 0
    %1964 = vmatpush.bf16.msra.mxu0 0
    %1965 = vmatpush.bf16.msra.mxu0 0
    %1966 = vmatpush.bf16.msra.mxu0 0
    %1967 = vmatpush.bf16.msra.mxu0 0
    %1968 = vmatpush.bf16.msra.mxu0 %v1467
    %1969 = vmatpush.bf16.msra.mxu0 %v1455
    %1970 = vmatmul.bf16.gmra.mxu0 %v1712
    %v1971 = vpop.f32.mrf.mxu0
    %v1972 = vadd.f32 0.0, %v1971
    %v1973 = vpop.f32.mrf.mxu0
    %v1974 = vadd.f32 0.0, %v1973
    %1975 = vdwg.mxu0
    %1976 = vmatpush.bf16.msra.mxu0 0
    %1977 = vmatpush.bf16.msra.mxu0 0
    %1978 = vmatpush.bf16.msra.mxu0 0
    %1979 = vmatpush.bf16.msra.mxu0 0
    %1980 = vmatpush.bf16.msra.mxu0 0
    %1981 = vmatpush.bf16.msra.mxu0 0
    %1982 = vmatpush.bf16.msra.mxu0 %v1470
    %1983 = vmatpush.bf16.msra.mxu0 %v1456
    %1984 = vmatmul.bf16.gmra.mxu0 %v1712
    %v1985 = vpop.f32.mrf.mxu0
    %v1986 = vadd.f32 0.0, %v1985
    %v1987 = vpop.f32.mrf.mxu0
    %v1988 = vadd.f32 0.0, %v1987
    %1989 = vdwg.mxu0
    %v1990 = vadd.f32 %v1942, %v1958
    %v1991 = vadd.f32 %v1943, %v1972
    %v1992 = vadd.f32 %v1944, %v1986
    %v1993 = vadd.f32 %v1945, %v1960
    %v1994 = vadd.f32 %v1946, %v1974
    %v1995 = vadd.f32 %v1947, %v1988
    %v1996 = vmax.f32 %v1762, %v1990
    %v1997 = vmax.f32 %v1763, %v1991
    %v1998 = vmax.f32 %v1764, %v1992
    %v1999 = vmax.f32 %v1765, %v1993
    %v2000 = vmax.f32 %v1766, %v1994
    %v2001 = vmax.f32 %v1767, %v1995
    %v2003 = vperm.slane %v640, 0
    %v2004 = vperm.slane %v640, 1
    %v2005 = vperm.slane %v640, 2
    %v2009 = vadd.f32 %v1996, %v2003
    %v2010 = vadd.f32 %v1997, %v2004
    %v2011 = vadd.f32 %v1998, %v2005
    %v2012 = vadd.f32 %v1999, %v2003
    %v2013 = vadd.f32 %v2000, %v2004
    %v2014 = vadd.f32 %v2001, %v2005
    %v2015 = vmax.f32 %v2009, 0.0
    %v2016 = vmax.f32 %v2010, 0.0
    %v2017 = vmax.f32 %v2011, 0.0
    %v2018 = vmax.f32 %v2012, 0.0
    %v2019 = vmax.f32 %v2013, 0.0
    %v2020 = vmax.f32 %v2014, 0.0
    %2021 = vmatpush.bf16.msra.mxu0 0
    %2022 = vmatpush.bf16.msra.mxu0 0
    %2023 = vmatpush.bf16.msra.mxu0 0
    %2024 = vmatpush.bf16.msra.mxu0 0
    %2025 = vmatpush.bf16.msra.mxu0 0
    %2026 = vmatpush.bf16.msra.mxu0 0
    %2027 = vmatpush.bf16.msra.mxu0 %v682
    %2028 = vmatpush.bf16.msra.mxu0 %v667
    %2029 = vmatmul.bf16.gmra.mxu0 %v949
    %v2030 = vpop.f32.mrf.mxu0
    %v2031 = vadd.f32 0.0, %v2030
    %v2032 = vpop.f32.mrf.mxu0
    %v2033 = vadd.f32 0.0, %v2032
    %2034 = vdwg.mxu0
    %2035 = vmatpush.bf16.msra.mxu0 0
    %2036 = vmatpush.bf16.msra.mxu0 0
    %2037 = vmatpush.bf16.msra.mxu0 0
    %2038 = vmatpush.bf16.msra.mxu0 0
    %2039 = vmatpush.bf16.msra.mxu0 0
    %2040 = vmatpush.bf16.msra.mxu0 0
    %2041 = vmatpush.bf16.msra.mxu0 %v685
    %2042 = vmatpush.bf16.msra.mxu0 %v668
    %2043 = vmatmul.bf16.gmra.mxu0 %v949
    %v2044 = vpop.f32.mrf.mxu0
    %v2045 = vadd.f32 0.0, %v2044
    %v2046 = vpop.f32.mrf.mxu0
    %v2047 = vadd.f32 0.0, %v2046
    %2048 = vdwg.mxu0
    %2049 = vmatpush.bf16.msra.mxu0 0
    %2050 = vmatpush.bf16.msra.mxu0 0
    %2051 = vmatpush.bf16.msra.mxu0 0
    %2052 = vmatpush.bf16.msra.mxu0 0
    %2053 = vmatpush.bf16.msra.mxu0 0
    %2054 = vmatpush.bf16.msra.mxu0 0
    %2055 = vmatpush.bf16.msra.mxu0 %v688
    %2056 = vmatpush.bf16.msra.mxu0 %v669
    %2057 = vmatmul.bf16.gmra.mxu0 %v949
    %v2058 = vpop.f32.mrf.mxu0
    %v2059 = vadd.f32 0.0, %v2058
    %v2060 = vpop.f32.mrf.mxu0
    %v2061 = vadd.f32 0.0, %v2060
    %2062 = vdwg.mxu0
    %2063 = vmatpush.bf16.msra.mxu0 0
    %2064 = vmatpush.bf16.msra.mxu0 0
    %2065 = vmatpush.bf16.msra.mxu0 0
    %2066 = vmatpush.bf16.msra.mxu0 0
    %2067 = vmatpush.bf16.msra.mxu0 0
    %2068 = vmatpush.bf16.msra.mxu0 0
    %2069 = vmatpush.bf16.msra.mxu0 %v770
    %2070 = vmatpush.bf16.msra.mxu0 %v757
    %2071 = vmatmul.bf16.gmra.mxu0 %v855
    %v2072 = vpop.f32.mrf.mxu0
    %v2073 = vadd.f32 %v2031, %v2072
    %v2074 = vpop.f32.mrf.mxu0
    %v2075 = vadd.f32 %v2033, %v2074
    %2076 = vdwg.mxu0
    %2077 = vmatpush.bf16.msra.mxu0 0
    %2078 = vmatpush.bf16.msra.mxu0 0
    %2079 = vmatpush.bf16.msra.mxu0 0
    %2080 = vmatpush.bf16.msra.mxu0 0
    %2081 = vmatpush.bf16.msra.mxu0 0
    %2082 = vmatpush.bf16.msra.mxu0 0
    %2083 = vmatpush.bf16.msra.mxu0 %v773
    %2084 = vmatpush.bf16.msra.mxu0 %v758
    %2085 = vmatmul.bf16.gmra.mxu0 %v855
    %v2086 = vpop.f32.mrf.mxu0
    %v2087 = vadd.f32 %v2045, %v2086
    %v2088 = vpop.f32.mrf.mxu0
    %v2089 = vadd.f32 %v2047, %v2088
    %2090 = vdwg.mxu0
    %2091 = vmatpush.bf16.msra.mxu0 0
    %2092 = vmatpush.bf16.msra.mxu0 0
    %2093 = vmatpush.bf16.msra.mxu0 0
    %2094 = vmatpush.bf16.msra.mxu0 0
    %2095 = vmatpush.bf16.msra.mxu0 0
    %2096 = vmatpush.bf16.msra.mxu0 0
    %2097 = vmatpush.bf16.msra.mxu0 %v776
    %2098 = vmatpush.bf16.msra.mxu0 %v759
    %2099 = vmatmul.bf16.gmra.mxu0 %v855
    %v2100 = vpop.f32.mrf.mxu0
    %v2101 = vadd.f32 %v2059, %v2100
    %v2102 = vpop.f32.mrf.mxu0
    %v2103 = vadd.f32 %v2061, %v2102
    %2104 = vdwg.mxu0
    %2105 = vmatpush.bf16.msra.mxu0 0
    %2106 = vmatpush.bf16.msra.mxu0 0
    %2107 = vmatpush.bf16.msra.mxu0 0
    %2108 = vmatpush.bf16.msra.mxu0 0
    %2109 = vmatpush.bf16.msra.mxu0 0
    %2110 = vmatpush.bf16.msra.mxu0 0
    %2111 = vmatpush.bf16.msra.mxu0 %v858
    %2112 = vmatpush.bf16.msra.mxu0 %v845
    %2113 = vmatmul.bf16.gmra.mxu0 %v1043
    %v2114 = vpop.f32.mrf.mxu0
    %v2115 = vadd.f32 0.0, %v2114
    %v2116 = vpop.f32.mrf.mxu0
    %v2117 = vadd.f32 0.0, %v2116
    %2118 = vdwg.mxu0
    %2119 = vmatpush.bf16.msra.mxu0 0
    %2120 = vmatpush.bf16.msra.mxu0 0
    %2121 = vmatpush.bf16.msra.mxu0 0
    %2122 = vmatpush.bf16.msra.mxu0 0
    %2123 = vmatpush.bf16.msra.mxu0 0
    %2124 = vmatpush.bf16.msra.mxu0 0
    %2125 = vmatpush.bf16.msra.mxu0 %v861
    %2126 = vmatpush.bf16.msra.mxu0 %v846
    %2127 = vmatmul.bf16.gmra.mxu0 %v1043
    %v2128 = vpop.f32.mrf.mxu0
    %v2129 = vadd.f32 0.0, %v2128
    %v2130 = vpop.f32.mrf.mxu0
    %v2131 = vadd.f32 0.0, %v2130
    %2132 = vdwg.mxu0
    %2133 = vmatpush.bf16.msra.mxu0 0
    %2134 = vmatpush.bf16.msra.mxu0 0
    %2135 = vmatpush.bf16.msra.mxu0 0
    %2136 = vmatpush.bf16.msra.mxu0 0
    %2137 = vmatpush.bf16.msra.mxu0 0
    %2138 = vmatpush.bf16.msra.mxu0 0
    %2139 = vmatpush.bf16.msra.mxu0 %v864
    %2140 = vmatpush.bf16.msra.mxu0 %v847
    %2141 = vmatmul.bf16.gmra.mxu0 %v1043
    %v2142 = vpop.f32.mrf.mxu0
    %v2143 = vadd.f32 0.0, %v2142
    %v2144 = vpop.f32.mrf.mxu0
    %v2145 = vadd.f32 0.0, %v2144
    %2146 = vdwg.mxu0
    %v2147 = vadd.f32 %v2073, %v2115
    %v2148 = vadd.f32 %v2087, %v2129
    %v2149 = vadd.f32 %v2101, %v2143
    %v2150 = vadd.f32 %v2075, %v2117
    %v2151 = vadd.f32 %v2089, %v2131
    %v2152 = vadd.f32 %v2103, %v2145
    %2153 = vmatpush.bf16.msra.mxu0 0
    %2154 = vmatpush.bf16.msra.mxu0 0
    %2155 = vmatpush.bf16.msra.mxu0 0
    %2156 = vmatpush.bf16.msra.mxu0 0
    %2157 = vmatpush.bf16.msra.mxu0 0
    %2158 = vmatpush.bf16.msra.mxu0 0
    %2159 = vmatpush.bf16.msra.mxu0 %v952
    %2160 = vmatpush.bf16.msra.mxu0 %v939
    %2161 = vmatmul.bf16.gmra.mxu0 %v1712
    %v2162 = vpop.f32.mrf.mxu0
    %v2163 = vadd.f32 0.0, %v2162
    %v2164 = vpop.f32.mrf.mxu0
    %v2165 = vadd.f32 0.0, %v2164
    %2166 = vdwg.mxu0
    %2167 = vmatpush.bf16.msra.mxu0 0
    %2168 = vmatpush.bf16.msra.mxu0 0
    %2169 = vmatpush.bf16.msra.mxu0 0
    %2170 = vmatpush.bf16.msra.mxu0 0
    %2171 = vmatpush.bf16.msra.mxu0 0
    %2172 = vmatpush.bf16.msra.mxu0 0
    %2173 = vmatpush.bf16.msra.mxu0 %v955
    %2174 = vmatpush.bf16.msra.mxu0 %v940
    %2175 = vmatmul.bf16.gmra.mxu0 %v1712
    %v2176 = vpop.f32.mrf.mxu0
    %v2177 = vadd.f32 0.0, %v2176
    %v2178 = vpop.f32.mrf.mxu0
    %v2179 = vadd.f32 0.0, %v2178
    %2180 = vdwg.mxu0
    %2181 = vmatpush.bf16.msra.mxu0 0
    %2182 = vmatpush.bf16.msra.mxu0 0
    %2183 = vmatpush.bf16.msra.mxu0 0
    %2184 = vmatpush.bf16.msra.mxu0 0
    %2185 = vmatpush.bf16.msra.mxu0 0
    %2186 = vmatpush.bf16.msra.mxu0 0
    %2187 = vmatpush.bf16.msra.mxu0 %v958
    %2188 = vmatpush.bf16.msra.mxu0 %v941
    %2189 = vmatmul.bf16.gmra.mxu0 %v1712
    %v2190 = vpop.f32.mrf.mxu0
    %v2191 = vadd.f32 0.0, %v2190
    %v2192 = vpop.f32.mrf.mxu0
    %v2193 = vadd.f32 0.0, %v2192
    %2194 = vdwg.mxu0
    %v2195 = vadd.f32 %v2147, %v2163
    %v2196 = vadd.f32 %v2148, %v2177
    %v2197 = vadd.f32 %v2149, %v2191
    %v2198 = vadd.f32 %v2150, %v2165
    %v2199 = vadd.f32 %v2151, %v2179
    %v2200 = vadd.f32 %v2152, %v2193
    %v2203 = vunpack.c.l.b16 %v76
    %v2204 = vunpack.c.l.b16 %v77
    %v2205 = vpack.c.b16 %v2204, %v2203
    %v2207 = vsel %vm676, %v2205, 0
    %2209 = vmatpush.bf16.msra.mxu0 0
    %2210 = vmatpush.bf16.msra.mxu0 0
    %2211 = vmatpush.bf16.msra.mxu0 0
    %2212 = vmatpush.bf16.msra.mxu0 0
    %2213 = vmatpush.bf16.msra.mxu0 0
    %2214 = vmatpush.bf16.msra.mxu0 0
    %2215 = vmatpush.bf16.msra.mxu0 %v1046
    %2216 = vmatpush.bf16.msra.mxu0 %v1033
    %2217 = vmatmul.bf16.gmra.mxu0 %v2207
    %v2218 = vpop.f32.mrf.mxu0
    %v2219 = vadd.f32 0.0, %v2218
    %v2220 = vpop.f32.mrf.mxu0
    %v2221 = vadd.f32 0.0, %v2220
    %2222 = vdwg.mxu0
    %2223 = vmatpush.bf16.msra.mxu0 0
    %2224 = vmatpush.bf16.msra.mxu0 0
    %2225 = vmatpush.bf16.msra.mxu0 0
    %2226 = vmatpush.bf16.msra.mxu0 0
    %2227 = vmatpush.bf16.msra.mxu0 0
    %2228 = vmatpush.bf16.msra.mxu0 0
    %2229 = vmatpush.bf16.msra.mxu0 %v1049
    %2230 = vmatpush.bf16.msra.mxu0 %v1034
    %2231 = vmatmul.bf16.gmra.mxu0 %v2207
    %v2232 = vpop.f32.mrf.mxu0
    %v2233 = vadd.f32 0.0, %v2232
    %v2234 = vpop.f32.mrf.mxu0
    %v2235 = vadd.f32 0.0, %v2234
    %2236 = vdwg.mxu0
    %2237 = vmatpush.bf16.msra.mxu0 0
    %2238 = vmatpush.bf16.msra.mxu0 0
    %2239 = vmatpush.bf16.msra.mxu0 0
    %2240 = vmatpush.bf16.msra.mxu0 0
    %2241 = vmatpush.bf16.msra.mxu0 0
    %2242 = vmatpush.bf16.msra.mxu0 0
    %2243 = vmatpush.bf16.msra.mxu0 %v1052
    %2244 = vmatpush.bf16.msra.mxu0 %v1035
    %2245 = vmatmul.bf16.gmra.mxu0 %v2207
    %v2246 = vpop.f32.mrf.mxu0
    %v2247 = vadd.f32 0.0, %v2246
    %v2248 = vpop.f32.mrf.mxu0
    %v2249 = vadd.f32 0.0, %v2248
    %2250 = vdwg.mxu0
    %v2251 = vadd.f32 %v2195, %v2219
    %v2252 = vadd.f32 %v2196, %v2233
    %v2253 = vadd.f32 %v2197, %v2247
    %v2254 = vadd.f32 %v2198, %v2221
    %v2255 = vadd.f32 %v2199, %v2235
    %v2256 = vadd.f32 %v2200, %v2249
    %2257 = vmatpush.bf16.msra.mxu0 0
    %2258 = vmatpush.bf16.msra.mxu0 0
    %2259 = vmatpush.bf16.msra.mxu0 0
    %2260 = vmatpush.bf16.msra.mxu0 0
    %2261 = vmatpush.bf16.msra.mxu0 0
    %2262 = vmatpush.bf16.msra.mxu0 0
    %2263 = vmatpush.bf16.msra.mxu0 %v1132
    %2264 = vmatpush.bf16.msra.mxu0 %v1122
    %2265 = vmatmul.bf16.gmra.mxu0 %v949
    %v2266 = vpop.f32.mrf.mxu0
    %v2267 = vadd.f32 0.0, %v2266
    %v2268 = vpop.f32.mrf.mxu0
    %v2269 = vadd.f32 0.0, %v2268
    %2270 = vdwg.mxu0
    %2271 = vmatpush.bf16.msra.mxu0 0
    %2272 = vmatpush.bf16.msra.mxu0 0
    %2273 = vmatpush.bf16.msra.mxu0 0
    %2274 = vmatpush.bf16.msra.mxu0 0
    %2275 = vmatpush.bf16.msra.mxu0 0
    %2276 = vmatpush.bf16.msra.mxu0 0
    %2277 = vmatpush.bf16.msra.mxu0 %v1135
    %2278 = vmatpush.bf16.msra.mxu0 %v1123
    %2279 = vmatmul.bf16.gmra.mxu0 %v949
    %v2280 = vpop.f32.mrf.mxu0
    %v2281 = vadd.f32 0.0, %v2280
    %v2282 = vpop.f32.mrf.mxu0
    %v2283 = vadd.f32 0.0, %v2282
    %2284 = vdwg.mxu0
    %2285 = vmatpush.bf16.msra.mxu0 0
    %2286 = vmatpush.bf16.msra.mxu0 0
    %2287 = vmatpush.bf16.msra.mxu0 0
    %2288 = vmatpush.bf16.msra.mxu0 0
    %2289 = vmatpush.bf16.msra.mxu0 0
    %2290 = vmatpush.bf16.msra.mxu0 0
    %2291 = vmatpush.bf16.msra.mxu0 %v1138
    %2292 = vmatpush.bf16.msra.mxu0 %v1124
    %2293 = vmatmul.bf16.gmra.mxu0 %v949
    %v2294 = vpop.f32.mrf.mxu0
    %v2295 = vadd.f32 0.0, %v2294
    %v2296 = vpop.f32.mrf.mxu0
    %v2297 = vadd.f32 0.0, %v2296
    %2298 = vdwg.mxu0
    %2299 = vmatpush.bf16.msra.mxu0 0
    %2300 = vmatpush.bf16.msra.mxu0 0
    %2301 = vmatpush.bf16.msra.mxu0 0
    %2302 = vmatpush.bf16.msra.mxu0 0
    %2303 = vmatpush.bf16.msra.mxu0 0
    %2304 = vmatpush.bf16.msra.mxu0 0
    %2305 = vmatpush.bf16.msra.mxu0 %v1212
    %2306 = vmatpush.bf16.msra.mxu0 %v1202
    %2307 = vmatmul.bf16.gmra.mxu0 %v855
    %v2308 = vpop.f32.mrf.mxu0
    %v2309 = vadd.f32 %v2267, %v2308
    %v2310 = vpop.f32.mrf.mxu0
    %v2311 = vadd.f32 %v2269, %v2310
    %2312 = vdwg.mxu0
    %2313 = vmatpush.bf16.msra.mxu0 0
    %2314 = vmatpush.bf16.msra.mxu0 0
    %2315 = vmatpush.bf16.msra.mxu0 0
    %2316 = vmatpush.bf16.msra.mxu0 0
    %2317 = vmatpush.bf16.msra.mxu0 0
    %2318 = vmatpush.bf16.msra.mxu0 0
    %2319 = vmatpush.bf16.msra.mxu0 %v1215
    %2320 = vmatpush.bf16.msra.mxu0 %v1203
    %2321 = vmatmul.bf16.gmra.mxu0 %v855
    %v2322 = vpop.f32.mrf.mxu0
    %v2323 = vadd.f32 %v2281, %v2322
    %v2324 = vpop.f32.mrf.mxu0
    %v2325 = vadd.f32 %v2283, %v2324
    %2326 = vdwg.mxu0
    %2327 = vmatpush.bf16.msra.mxu0 0
    %2328 = vmatpush.bf16.msra.mxu0 0
    %2329 = vmatpush.bf16.msra.mxu0 0
    %2330 = vmatpush.bf16.msra.mxu0 0
    %2331 = vmatpush.bf16.msra.mxu0 0
    %2332 = vmatpush.bf16.msra.mxu0 0
    %2333 = vmatpush.bf16.msra.mxu0 %v1218
    %2334 = vmatpush.bf16.msra.mxu0 %v1204
    %2335 = vmatmul.bf16.gmra.mxu0 %v855
    %v2336 = vpop.f32.mrf.mxu0
    %v2337 = vadd.f32 %v2295, %v2336
    %v2338 = vpop.f32.mrf.mxu0
    %v2339 = vadd.f32 %v2297, %v2338
    %2340 = vdwg.mxu0
    %2341 = vmatpush.bf16.msra.mxu0 0
    %2342 = vmatpush.bf16.msra.mxu0 0
    %2343 = vmatpush.bf16.msra.mxu0 0
    %2344 = vmatpush.bf16.msra.mxu0 0
    %2345 = vmatpush.bf16.msra.mxu0 0
    %2346 = vmatpush.bf16.msra.mxu0 0
    %2347 = vmatpush.bf16.msra.mxu0 %v1292
    %2348 = vmatpush.bf16.msra.mxu0 %v1282
    %2349 = vmatmul.bf16.gmra.mxu0 %v1043
    %v2350 = vpop.f32.mrf.mxu0
    %v2351 = vadd.f32 0.0, %v2350
    %v2352 = vpop.f32.mrf.mxu0
    %v2353 = vadd.f32 0.0, %v2352
    %2354 = vdwg.mxu0
    %2355 = vmatpush.bf16.msra.mxu0 0
    %2356 = vmatpush.bf16.msra.mxu0 0
    %2357 = vmatpush.bf16.msra.mxu0 0
    %2358 = vmatpush.bf16.msra.mxu0 0
    %2359 = vmatpush.bf16.msra.mxu0 0
    %2360 = vmatpush.bf16.msra.mxu0 0
    %2361 = vmatpush.bf16.msra.mxu0 %v1295
    %2362 = vmatpush.bf16.msra.mxu0 %v1283
    %2363 = vmatmul.bf16.gmra.mxu0 %v1043
    %v2364 = vpop.f32.mrf.mxu0
    %v2365 = vadd.f32 0.0, %v2364
    %v2366 = vpop.f32.mrf.mxu0
    %v2367 = vadd.f32 0.0, %v2366
    %2368 = vdwg.mxu0
    %2369 = vmatpush.bf16.msra.mxu0 0
    %2370 = vmatpush.bf16.msra.mxu0 0
    %2371 = vmatpush.bf16.msra.mxu0 0
    %2372 = vmatpush.bf16.msra.mxu0 0
    %2373 = vmatpush.bf16.msra.mxu0 0
    %2374 = vmatpush.bf16.msra.mxu0 0
    %2375 = vmatpush.bf16.msra.mxu0 %v1298
    %2376 = vmatpush.bf16.msra.mxu0 %v1284
    %2377 = vmatmul.bf16.gmra.mxu0 %v1043
    %v2378 = vpop.f32.mrf.mxu0
    %v2379 = vadd.f32 0.0, %v2378
    %v2380 = vpop.f32.mrf.mxu0
    %v2381 = vadd.f32 0.0, %v2380
    %2382 = vdwg.mxu0
    %v2383 = vadd.f32 %v2309, %v2351
    %v2384 = vadd.f32 %v2323, %v2365
    %v2385 = vadd.f32 %v2337, %v2379
    %v2386 = vadd.f32 %v2311, %v2353
    %v2387 = vadd.f32 %v2325, %v2367
    %v2388 = vadd.f32 %v2339, %v2381
    %2389 = vmatpush.bf16.msra.mxu0 0
    %2390 = vmatpush.bf16.msra.mxu0 0
    %2391 = vmatpush.bf16.msra.mxu0 0
    %2392 = vmatpush.bf16.msra.mxu0 0
    %2393 = vmatpush.bf16.msra.mxu0 0
    %2394 = vmatpush.bf16.msra.mxu0 0
    %2395 = vmatpush.bf16.msra.mxu0 %v1378
    %2396 = vmatpush.bf16.msra.mxu0 %v1368
    %2397 = vmatmul.bf16.gmra.mxu0 %v1712
    %v2398 = vpop.f32.mrf.mxu0
    %v2399 = vadd.f32 0.0, %v2398
    %v2400 = vpop.f32.mrf.mxu0
    %v2401 = vadd.f32 0.0, %v2400
    %2402 = vdwg.mxu0
    %2403 = vmatpush.bf16.msra.mxu0 0
    %2404 = vmatpush.bf16.msra.mxu0 0
    %2405 = vmatpush.bf16.msra.mxu0 0
    %2406 = vmatpush.bf16.msra.mxu0 0
    %2407 = vmatpush.bf16.msra.mxu0 0
    %2408 = vmatpush.bf16.msra.mxu0 0
    %2409 = vmatpush.bf16.msra.mxu0 %v1381
    %2410 = vmatpush.bf16.msra.mxu0 %v1369
    %2411 = vmatmul.bf16.gmra.mxu0 %v1712
    %v2412 = vpop.f32.mrf.mxu0
    %v2413 = vadd.f32 0.0, %v2412
    %v2414 = vpop.f32.mrf.mxu0
    %v2415 = vadd.f32 0.0, %v2414
    %2416 = vdwg.mxu0
    %2417 = vmatpush.bf16.msra.mxu0 0
    %2418 = vmatpush.bf16.msra.mxu0 0
    %2419 = vmatpush.bf16.msra.mxu0 0
    %2420 = vmatpush.bf16.msra.mxu0 0
    %2421 = vmatpush.bf16.msra.mxu0 0
    %2422 = vmatpush.bf16.msra.mxu0 0
    %2423 = vmatpush.bf16.msra.mxu0 %v1384
    %2424 = vmatpush.bf16.msra.mxu0 %v1370
    %2425 = vmatmul.bf16.gmra.mxu0 %v1712
    %v2426 = vpop.f32.mrf.mxu0
    %v2427 = vadd.f32 0.0, %v2426
    %v2428 = vpop.f32.mrf.mxu0
    %v2429 = vadd.f32 0.0, %v2428
    %2430 = vdwg.mxu0
    %v2431 = vadd.f32 %v2383, %v2399
    %v2432 = vadd.f32 %v2384, %v2413
    %v2433 = vadd.f32 %v2385, %v2427
    %v2434 = vadd.f32 %v2386, %v2401
    %v2435 = vadd.f32 %v2387, %v2415
    %v2436 = vadd.f32 %v2388, %v2429
    %2437 = vmatpush.bf16.msra.mxu0 0
    %2438 = vmatpush.bf16.msra.mxu0 0
    %2439 = vmatpush.bf16.msra.mxu0 0
    %2440 = vmatpush.bf16.msra.mxu0 0
    %2441 = vmatpush.bf16.msra.mxu0 0
    %2442 = vmatpush.bf16.msra.mxu0 0
    %2443 = vmatpush.bf16.msra.mxu0 %v1464
    %2444 = vmatpush.bf16.msra.mxu0 %v1454
    %2445 = vmatmul.bf16.gmra.mxu0 %v2207
    %v2446 = vpop.f32.mrf.mxu0
    %v2447 = vadd.f32 0.0, %v2446
    %v2448 = vpop.f32.mrf.mxu0
    %v2449 = vadd.f32 0.0, %v2448
    %2450 = vdwg.mxu0
    %2451 = vmatpush.bf16.msra.mxu0 0
    %2452 = vmatpush.bf16.msra.mxu0 0
    %2453 = vmatpush.bf16.msra.mxu0 0
    %2454 = vmatpush.bf16.msra.mxu0 0
    %2455 = vmatpush.bf16.msra.mxu0 0
    %2456 = vmatpush.bf16.msra.mxu0 0
    %2457 = vmatpush.bf16.msra.mxu0 %v1467
    %2458 = vmatpush.bf16.msra.mxu0 %v1455
    %2459 = vmatmul.bf16.gmra.mxu0 %v2207
    %v2460 = vpop.f32.mrf.mxu0
    %v2461 = vadd.f32 0.0, %v2460
    %v2462 = vpop.f32.mrf.mxu0
    %v2463 = vadd.f32 0.0, %v2462
    %2464 = vdwg.mxu0
    %2465 = vmatpush.bf16.msra.mxu0 0
    %2466 = vmatpush.bf16.msra.mxu0 0
    %2467 = vmatpush.bf16.msra.mxu0 0
    %2468 = vmatpush.bf16.msra.mxu0 0
    %2469 = vmatpush.bf16.msra.mxu0 0
    %2470 = vmatpush.bf16.msra.mxu0 0
    %2471 = vmatpush.bf16.msra.mxu0 %v1470
    %2472 = vmatpush.bf16.msra.mxu0 %v1456
    %2473 = vmatmul.bf16.gmra.mxu0 %v2207
    %v2474 = vpop.f32.mrf.mxu0
    %v2475 = vadd.f32 0.0, %v2474
    %v2476 = vpop.f32.mrf.mxu0
    %v2477 = vadd.f32 0.0, %v2476
    %2478 = vdwg.mxu0
    %v2479 = vadd.f32 %v2431, %v2447
    %v2480 = vadd.f32 %v2432, %v2461
    %v2481 = vadd.f32 %v2433, %v2475
    %v2482 = vadd.f32 %v2434, %v2449
    %v2483 = vadd.f32 %v2435, %v2463
    %v2484 = vadd.f32 %v2436, %v2477
    %v2485 = vmax.f32 %v2251, %v2479
    %v2486 = vmax.f32 %v2252, %v2480
    %v2487 = vmax.f32 %v2253, %v2481
    %v2488 = vmax.f32 %v2254, %v2482
    %v2489 = vmax.f32 %v2255, %v2483
    %v2490 = vmax.f32 %v2256, %v2484
    %2491 = vmatpush.bf16.msra.mxu0 0
    %2492 = vmatpush.bf16.msra.mxu0 0
    %2493 = vmatpush.bf16.msra.mxu0 0
    %2494 = vmatpush.bf16.msra.mxu0 0
    %2495 = vmatpush.bf16.msra.mxu0 0
    %2496 = vmatpush.bf16.msra.mxu0 0
    %2497 = vmatpush.bf16.msra.mxu0 %v682
    %2498 = vmatpush.bf16.msra.mxu0 %v667
    %2499 = vmatmul.bf16.gmra.mxu0 %v1043
    %v2500 = vpop.f32.mrf.mxu0
    %v2501 = vadd.f32 0.0, %v2500
    %v2502 = vpop.f32.mrf.mxu0
    %v2503 = vadd.f32 0.0, %v2502
    %2504 = vdwg.mxu0
    %2505 = vmatpush.bf16.msra.mxu0 0
    %2506 = vmatpush.bf16.msra.mxu0 0
    %2507 = vmatpush.bf16.msra.mxu0 0
    %2508 = vmatpush.bf16.msra.mxu0 0
    %2509 = vmatpush.bf16.msra.mxu0 0
    %2510 = vmatpush.bf16.msra.mxu0 0
    %2511 = vmatpush.bf16.msra.mxu0 %v685
    %2512 = vmatpush.bf16.msra.mxu0 %v668
    %2513 = vmatmul.bf16.gmra.mxu0 %v1043
    %v2514 = vpop.f32.mrf.mxu0
    %v2515 = vadd.f32 0.0, %v2514
    %v2516 = vpop.f32.mrf.mxu0
    %v2517 = vadd.f32 0.0, %v2516
    %2518 = vdwg.mxu0
    %2519 = vmatpush.bf16.msra.mxu0 0
    %2520 = vmatpush.bf16.msra.mxu0 0
    %2521 = vmatpush.bf16.msra.mxu0 0
    %2522 = vmatpush.bf16.msra.mxu0 0
    %2523 = vmatpush.bf16.msra.mxu0 0
    %2524 = vmatpush.bf16.msra.mxu0 0
    %2525 = vmatpush.bf16.msra.mxu0 %v688
    %2526 = vmatpush.bf16.msra.mxu0 %v669
    %2527 = vmatmul.bf16.gmra.mxu0 %v1043
    %v2528 = vpop.f32.mrf.mxu0
    %v2529 = vadd.f32 0.0, %v2528
    %v2530 = vpop.f32.mrf.mxu0
    %v2531 = vadd.f32 0.0, %v2530
    %2532 = vdwg.mxu0
    %2533 = vmatpush.bf16.msra.mxu0 0
    %2534 = vmatpush.bf16.msra.mxu0 0
    %2535 = vmatpush.bf16.msra.mxu0 0
    %2536 = vmatpush.bf16.msra.mxu0 0
    %2537 = vmatpush.bf16.msra.mxu0 0
    %2538 = vmatpush.bf16.msra.mxu0 0
    %2539 = vmatpush.bf16.msra.mxu0 %v770
    %2540 = vmatpush.bf16.msra.mxu0 %v757
    %2541 = vmatmul.bf16.gmra.mxu0 %v949
    %v2542 = vpop.f32.mrf.mxu0
    %v2543 = vadd.f32 %v2501, %v2542
    %v2544 = vpop.f32.mrf.mxu0
    %v2545 = vadd.f32 %v2503, %v2544
    %2546 = vdwg.mxu0
    %2547 = vmatpush.bf16.msra.mxu0 0
    %2548 = vmatpush.bf16.msra.mxu0 0
    %2549 = vmatpush.bf16.msra.mxu0 0
    %2550 = vmatpush.bf16.msra.mxu0 0
    %2551 = vmatpush.bf16.msra.mxu0 0
    %2552 = vmatpush.bf16.msra.mxu0 0
    %2553 = vmatpush.bf16.msra.mxu0 %v773
    %2554 = vmatpush.bf16.msra.mxu0 %v758
    %2555 = vmatmul.bf16.gmra.mxu0 %v949
    %v2556 = vpop.f32.mrf.mxu0
    %v2557 = vadd.f32 %v2515, %v2556
    %v2558 = vpop.f32.mrf.mxu0
    %v2559 = vadd.f32 %v2517, %v2558
    %2560 = vdwg.mxu0
    %2561 = vmatpush.bf16.msra.mxu0 0
    %2562 = vmatpush.bf16.msra.mxu0 0
    %2563 = vmatpush.bf16.msra.mxu0 0
    %2564 = vmatpush.bf16.msra.mxu0 0
    %2565 = vmatpush.bf16.msra.mxu0 0
    %2566 = vmatpush.bf16.msra.mxu0 0
    %2567 = vmatpush.bf16.msra.mxu0 %v776
    %2568 = vmatpush.bf16.msra.mxu0 %v759
    %2569 = vmatmul.bf16.gmra.mxu0 %v949
    %v2570 = vpop.f32.mrf.mxu0
    %v2571 = vadd.f32 %v2529, %v2570
    %v2572 = vpop.f32.mrf.mxu0
    %v2573 = vadd.f32 %v2531, %v2572
    %2574 = vdwg.mxu0
    %2575 = vmatpush.bf16.msra.mxu0 0
    %2576 = vmatpush.bf16.msra.mxu0 0
    %2577 = vmatpush.bf16.msra.mxu0 0
    %2578 = vmatpush.bf16.msra.mxu0 0
    %2579 = vmatpush.bf16.msra.mxu0 0
    %2580 = vmatpush.bf16.msra.mxu0 0
    %2581 = vmatpush.bf16.msra.mxu0 %v858
    %2582 = vmatpush.bf16.msra.mxu0 %v845
    %2583 = vmatmul.bf16.gmra.mxu0 %v1712
    %v2584 = vpop.f32.mrf.mxu0
    %v2585 = vadd.f32 0.0, %v2584
    %v2586 = vpop.f32.mrf.mxu0
    %v2587 = vadd.f32 0.0, %v2586
    %2588 = vdwg.mxu0
    %2589 = vmatpush.bf16.msra.mxu0 0
    %2590 = vmatpush.bf16.msra.mxu0 0
    %2591 = vmatpush.bf16.msra.mxu0 0
    %2592 = vmatpush.bf16.msra.mxu0 0
    %2593 = vmatpush.bf16.msra.mxu0 0
    %2594 = vmatpush.bf16.msra.mxu0 0
    %2595 = vmatpush.bf16.msra.mxu0 %v861
    %2596 = vmatpush.bf16.msra.mxu0 %v846
    %2597 = vmatmul.bf16.gmra.mxu0 %v1712
    %v2598 = vpop.f32.mrf.mxu0
    %v2599 = vadd.f32 0.0, %v2598
    %v2600 = vpop.f32.mrf.mxu0
    %v2601 = vadd.f32 0.0, %v2600
    %2602 = vdwg.mxu0
    %2603 = vmatpush.bf16.msra.mxu0 0
    %2604 = vmatpush.bf16.msra.mxu0 0
    %2605 = vmatpush.bf16.msra.mxu0 0
    %2606 = vmatpush.bf16.msra.mxu0 0
    %2607 = vmatpush.bf16.msra.mxu0 0
    %2608 = vmatpush.bf16.msra.mxu0 0
    %2609 = vmatpush.bf16.msra.mxu0 %v864
    %2610 = vmatpush.bf16.msra.mxu0 %v847
    %2611 = vmatmul.bf16.gmra.mxu0 %v1712
    %v2612 = vpop.f32.mrf.mxu0
    %v2613 = vadd.f32 0.0, %v2612
    %v2614 = vpop.f32.mrf.mxu0
    %v2615 = vadd.f32 0.0, %v2614
    %2616 = vdwg.mxu0
    %v2617 = vadd.f32 %v2543, %v2585
    %v2618 = vadd.f32 %v2557, %v2599
    %v2619 = vadd.f32 %v2571, %v2613
    %v2620 = vadd.f32 %v2545, %v2587
    %v2621 = vadd.f32 %v2559, %v2601
    %v2622 = vadd.f32 %v2573, %v2615
    %2623 = vmatpush.bf16.msra.mxu0 0
    %2624 = vmatpush.bf16.msra.mxu0 0
    %2625 = vmatpush.bf16.msra.mxu0 0
    %2626 = vmatpush.bf16.msra.mxu0 0
    %2627 = vmatpush.bf16.msra.mxu0 0
    %2628 = vmatpush.bf16.msra.mxu0 0
    %2629 = vmatpush.bf16.msra.mxu0 %v952
    %2630 = vmatpush.bf16.msra.mxu0 %v939
    %2631 = vmatmul.bf16.gmra.mxu0 %v2207
    %v2632 = vpop.f32.mrf.mxu0
    %v2633 = vadd.f32 0.0, %v2632
    %v2634 = vpop.f32.mrf.mxu0
    %v2635 = vadd.f32 0.0, %v2634
    %2636 = vdwg.mxu0
    %2637 = vmatpush.bf16.msra.mxu0 0
    %2638 = vmatpush.bf16.msra.mxu0 0
    %2639 = vmatpush.bf16.msra.mxu0 0
    %2640 = vmatpush.bf16.msra.mxu0 0
    %2641 = vmatpush.bf16.msra.mxu0 0
    %2642 = vmatpush.bf16.msra.mxu0 0
    %2643 = vmatpush.bf16.msra.mxu0 %v955
    %2644 = vmatpush.bf16.msra.mxu0 %v940
    %2645 = vmatmul.bf16.gmra.mxu0 %v2207
    %v2646 = vpop.f32.mrf.mxu0
    %v2647 = vadd.f32 0.0, %v2646
    %v2648 = vpop.f32.mrf.mxu0
    %v2649 = vadd.f32 0.0, %v2648
    %2650 = vdwg.mxu0
    %2651 = vmatpush.bf16.msra.mxu0 0
    %2652 = vmatpush.bf16.msra.mxu0 0
    %2653 = vmatpush.bf16.msra.mxu0 0
    %2654 = vmatpush.bf16.msra.mxu0 0
    %2655 = vmatpush.bf16.msra.mxu0 0
    %2656 = vmatpush.bf16.msra.mxu0 0
    %2657 = vmatpush.bf16.msra.mxu0 %v958
    %2658 = vmatpush.bf16.msra.mxu0 %v941
    %2659 = vmatmul.bf16.gmra.mxu0 %v2207
    %v2660 = vpop.f32.mrf.mxu0
    %v2661 = vadd.f32 0.0, %v2660
    %v2662 = vpop.f32.mrf.mxu0
    %v2663 = vadd.f32 0.0, %v2662
    %2664 = vdwg.mxu0
    %v2665 = vadd.f32 %v2617, %v2633
    %v2666 = vadd.f32 %v2618, %v2647
    %v2667 = vadd.f32 %v2619, %v2661
    %v2668 = vadd.f32 %v2620, %v2635
    %v2669 = vadd.f32 %v2621, %v2649
    %v2670 = vadd.f32 %v2622, %v2663
    %v2673 = vunpack.c.l.b16 %v78
    %v2674 = vunpack.c.l.b16 %v79
    %v2675 = vpack.c.b16 %v2674, %v2673
    %v2677 = vsel %vm676, %v2675, 0
    %2679 = vmatpush.bf16.msra.mxu0 0
    %2680 = vmatpush.bf16.msra.mxu0 0
    %2681 = vmatpush.bf16.msra.mxu0 0
    %2682 = vmatpush.bf16.msra.mxu0 0
    %2683 = vmatpush.bf16.msra.mxu0 0
    %2684 = vmatpush.bf16.msra.mxu0 0
    %2685 = vmatpush.bf16.msra.mxu0 %v1046
    %2686 = vmatpush.bf16.msra.mxu0 %v1033
    %2687 = vmatmul.bf16.gmra.mxu0 %v2677
    %v2688 = vpop.f32.mrf.mxu0
    %v2689 = vadd.f32 0.0, %v2688
    %v2690 = vpop.f32.mrf.mxu0
    %v2691 = vadd.f32 0.0, %v2690
    %2692 = vdwg.mxu0
    %2693 = vmatpush.bf16.msra.mxu0 0
    %2694 = vmatpush.bf16.msra.mxu0 0
    %2695 = vmatpush.bf16.msra.mxu0 0
    %2696 = vmatpush.bf16.msra.mxu0 0
    %2697 = vmatpush.bf16.msra.mxu0 0
    %2698 = vmatpush.bf16.msra.mxu0 0
    %2699 = vmatpush.bf16.msra.mxu0 %v1049
    %2700 = vmatpush.bf16.msra.mxu0 %v1034
    %2701 = vmatmul.bf16.gmra.mxu0 %v2677
    %v2702 = vpop.f32.mrf.mxu0
    %v2703 = vadd.f32 0.0, %v2702
    %v2704 = vpop.f32.mrf.mxu0
    %v2705 = vadd.f32 0.0, %v2704
    %2706 = vdwg.mxu0
    %2707 = vmatpush.bf16.msra.mxu0 0
    %2708 = vmatpush.bf16.msra.mxu0 0
    %2709 = vmatpush.bf16.msra.mxu0 0
    %2710 = vmatpush.bf16.msra.mxu0 0
    %2711 = vmatpush.bf16.msra.mxu0 0
    %2712 = vmatpush.bf16.msra.mxu0 0
    %2713 = vmatpush.bf16.msra.mxu0 %v1052
    %2714 = vmatpush.bf16.msra.mxu0 %v1035
    %2715 = vmatmul.bf16.gmra.mxu0 %v2677
    %v2716 = vpop.f32.mrf.mxu0
    %v2717 = vadd.f32 0.0, %v2716
    %v2718 = vpop.f32.mrf.mxu0
    %v2719 = vadd.f32 0.0, %v2718
    %2720 = vdwg.mxu0
    %v2721 = vadd.f32 %v2665, %v2689
    %v2722 = vadd.f32 %v2666, %v2703
    %v2723 = vadd.f32 %v2667, %v2717
    %v2724 = vadd.f32 %v2668, %v2691
    %v2725 = vadd.f32 %v2669, %v2705
    %v2726 = vadd.f32 %v2670, %v2719
    %v2727 = vmax.f32 %v2485, %v2721
    %v2728 = vmax.f32 %v2486, %v2722
    %v2729 = vmax.f32 %v2487, %v2723
    %v2730 = vmax.f32 %v2488, %v2724
    %v2731 = vmax.f32 %v2489, %v2725
    %v2732 = vmax.f32 %v2490, %v2726
    %2733 = vmatpush.bf16.msra.mxu0 0
    %2734 = vmatpush.bf16.msra.mxu0 0
    %2735 = vmatpush.bf16.msra.mxu0 0
    %2736 = vmatpush.bf16.msra.mxu0 0
    %2737 = vmatpush.bf16.msra.mxu0 0
    %2738 = vmatpush.bf16.msra.mxu0 0
    %2739 = vmatpush.bf16.msra.mxu0 %v1132
    %2740 = vmatpush.bf16.msra.mxu0 %v1122
    %2741 = vmatmul.bf16.gmra.mxu0 %v1043
    %v2742 = vpop.f32.mrf.mxu0
    %v2743 = vadd.f32 0.0, %v2742
    %v2744 = vpop.f32.mrf.mxu0
    %v2745 = vadd.f32 0.0, %v2744
    %2746 = vdwg.mxu0
    %2747 = vmatpush.bf16.msra.mxu0 0
    %2748 = vmatpush.bf16.msra.mxu0 0
    %2749 = vmatpush.bf16.msra.mxu0 0
    %2750 = vmatpush.bf16.msra.mxu0 0
    %2751 = vmatpush.bf16.msra.mxu0 0
    %2752 = vmatpush.bf16.msra.mxu0 0
    %2753 = vmatpush.bf16.msra.mxu0 %v1135
    %2754 = vmatpush.bf16.msra.mxu0 %v1123
    %2755 = vmatmul.bf16.gmra.mxu0 %v1043
    %v2756 = vpop.f32.mrf.mxu0
    %v2757 = vadd.f32 0.0, %v2756
    %v2758 = vpop.f32.mrf.mxu0
    %v2759 = vadd.f32 0.0, %v2758
    %2760 = vdwg.mxu0
    %2761 = vmatpush.bf16.msra.mxu0 0
    %2762 = vmatpush.bf16.msra.mxu0 0
    %2763 = vmatpush.bf16.msra.mxu0 0
    %2764 = vmatpush.bf16.msra.mxu0 0
    %2765 = vmatpush.bf16.msra.mxu0 0
    %2766 = vmatpush.bf16.msra.mxu0 0
    %2767 = vmatpush.bf16.msra.mxu0 %v1138
    %2768 = vmatpush.bf16.msra.mxu0 %v1124
    %2769 = vmatmul.bf16.gmra.mxu0 %v1043
    %v2770 = vpop.f32.mrf.mxu0
    %v2771 = vadd.f32 0.0, %v2770
    %v2772 = vpop.f32.mrf.mxu0
    %v2773 = vadd.f32 0.0, %v2772
    %2774 = vdwg.mxu0
    %2775 = vmatpush.bf16.msra.mxu0 0
    %2776 = vmatpush.bf16.msra.mxu0 0
    %2777 = vmatpush.bf16.msra.mxu0 0
    %2778 = vmatpush.bf16.msra.mxu0 0
    %2779 = vmatpush.bf16.msra.mxu0 0
    %2780 = vmatpush.bf16.msra.mxu0 0
    %2781 = vmatpush.bf16.msra.mxu0 %v1212
    %2782 = vmatpush.bf16.msra.mxu0 %v1202
    %2783 = vmatmul.bf16.gmra.mxu0 %v949
    %v2784 = vpop.f32.mrf.mxu0
    %v2785 = vadd.f32 %v2743, %v2784
    %v2786 = vpop.f32.mrf.mxu0
    %v2787 = vadd.f32 %v2745, %v2786
    %2788 = vdwg.mxu0
    %2789 = vmatpush.bf16.msra.mxu0 0
    %2790 = vmatpush.bf16.msra.mxu0 0
    %2791 = vmatpush.bf16.msra.mxu0 0
    %2792 = vmatpush.bf16.msra.mxu0 0
    %2793 = vmatpush.bf16.msra.mxu0 0
    %2794 = vmatpush.bf16.msra.mxu0 0
    %2795 = vmatpush.bf16.msra.mxu0 %v1215
    %2796 = vmatpush.bf16.msra.mxu0 %v1203
    %2797 = vmatmul.bf16.gmra.mxu0 %v949
    %v2798 = vpop.f32.mrf.mxu0
    %v2799 = vadd.f32 %v2757, %v2798
    %v2800 = vpop.f32.mrf.mxu0
    %v2801 = vadd.f32 %v2759, %v2800
    %2802 = vdwg.mxu0
    %2803 = vmatpush.bf16.msra.mxu0 0
    %2804 = vmatpush.bf16.msra.mxu0 0
    %2805 = vmatpush.bf16.msra.mxu0 0
    %2806 = vmatpush.bf16.msra.mxu0 0
    %2807 = vmatpush.bf16.msra.mxu0 0
    %2808 = vmatpush.bf16.msra.mxu0 0
    %2809 = vmatpush.bf16.msra.mxu0 %v1218
    %2810 = vmatpush.bf16.msra.mxu0 %v1204
    %2811 = vmatmul.bf16.gmra.mxu0 %v949
    %v2812 = vpop.f32.mrf.mxu0
    %v2813 = vadd.f32 %v2771, %v2812
    %v2814 = vpop.f32.mrf.mxu0
    %v2815 = vadd.f32 %v2773, %v2814
    %2816 = vdwg.mxu0
    %2817 = vmatpush.bf16.msra.mxu0 0
    %2818 = vmatpush.bf16.msra.mxu0 0
    %2819 = vmatpush.bf16.msra.mxu0 0
    %2820 = vmatpush.bf16.msra.mxu0 0
    %2821 = vmatpush.bf16.msra.mxu0 0
    %2822 = vmatpush.bf16.msra.mxu0 0
    %2823 = vmatpush.bf16.msra.mxu0 %v1292
    %2824 = vmatpush.bf16.msra.mxu0 %v1282
    %2825 = vmatmul.bf16.gmra.mxu0 %v1712
    %v2826 = vpop.f32.mrf.mxu0
    %v2827 = vadd.f32 0.0, %v2826
    %v2828 = vpop.f32.mrf.mxu0
    %v2829 = vadd.f32 0.0, %v2828
    %2830 = vdwg.mxu0
    %2831 = vmatpush.bf16.msra.mxu0 0
    %2832 = vmatpush.bf16.msra.mxu0 0
    %2833 = vmatpush.bf16.msra.mxu0 0
    %2834 = vmatpush.bf16.msra.mxu0 0
    %2835 = vmatpush.bf16.msra.mxu0 0
    %2836 = vmatpush.bf16.msra.mxu0 0
    %2837 = vmatpush.bf16.msra.mxu0 %v1295
    %2838 = vmatpush.bf16.msra.mxu0 %v1283
    %2839 = vmatmul.bf16.gmra.mxu0 %v1712
    %v2840 = vpop.f32.mrf.mxu0
    %v2841 = vadd.f32 0.0, %v2840
    %v2842 = vpop.f32.mrf.mxu0
    %v2843 = vadd.f32 0.0, %v2842
    %2844 = vdwg.mxu0
    %2845 = vmatpush.bf16.msra.mxu0 0
    %2846 = vmatpush.bf16.msra.mxu0 0
    %2847 = vmatpush.bf16.msra.mxu0 0
    %2848 = vmatpush.bf16.msra.mxu0 0
    %2849 = vmatpush.bf16.msra.mxu0 0
    %2850 = vmatpush.bf16.msra.mxu0 0
    %2851 = vmatpush.bf16.msra.mxu0 %v1298
    %2852 = vmatpush.bf16.msra.mxu0 %v1284
    %2853 = vmatmul.bf16.gmra.mxu0 %v1712
    %v2854 = vpop.f32.mrf.mxu0
    %v2855 = vadd.f32 0.0, %v2854
    %v2856 = vpop.f32.mrf.mxu0
    %v2857 = vadd.f32 0.0, %v2856
    %2858 = vdwg.mxu0
    %v2859 = vadd.f32 %v2785, %v2827
    %v2860 = vadd.f32 %v2799, %v2841
    %v2861 = vadd.f32 %v2813, %v2855
    %v2862 = vadd.f32 %v2787, %v2829
    %v2863 = vadd.f32 %v2801, %v2843
    %v2864 = vadd.f32 %v2815, %v2857
    %2865 = vmatpush.bf16.msra.mxu0 0
    %2866 = vmatpush.bf16.msra.mxu0 0
    %2867 = vmatpush.bf16.msra.mxu0 0
    %2868 = vmatpush.bf16.msra.mxu0 0
    %2869 = vmatpush.bf16.msra.mxu0 0
    %2870 = vmatpush.bf16.msra.mxu0 0
    %2871 = vmatpush.bf16.msra.mxu0 %v1378
    %2872 = vmatpush.bf16.msra.mxu0 %v1368
    %2873 = vmatmul.bf16.gmra.mxu0 %v2207
    %v2874 = vpop.f32.mrf.mxu0
    %v2875 = vadd.f32 0.0, %v2874
    %v2876 = vpop.f32.mrf.mxu0
    %v2877 = vadd.f32 0.0, %v2876
    %2878 = vdwg.mxu0
    %2879 = vmatpush.bf16.msra.mxu0 0
    %2880 = vmatpush.bf16.msra.mxu0 0
    %2881 = vmatpush.bf16.msra.mxu0 0
    %2882 = vmatpush.bf16.msra.mxu0 0
    %2883 = vmatpush.bf16.msra.mxu0 0
    %2884 = vmatpush.bf16.msra.mxu0 0
    %2885 = vmatpush.bf16.msra.mxu0 %v1381
    %2886 = vmatpush.bf16.msra.mxu0 %v1369
    %2887 = vmatmul.bf16.gmra.mxu0 %v2207
    %v2888 = vpop.f32.mrf.mxu0
    %v2889 = vadd.f32 0.0, %v2888
    %v2890 = vpop.f32.mrf.mxu0
    %v2891 = vadd.f32 0.0, %v2890
    %2892 = vdwg.mxu0
    %2893 = vmatpush.bf16.msra.mxu0 0
    %2894 = vmatpush.bf16.msra.mxu0 0
    %2895 = vmatpush.bf16.msra.mxu0 0
    %2896 = vmatpush.bf16.msra.mxu0 0
    %2897 = vmatpush.bf16.msra.mxu0 0
    %2898 = vmatpush.bf16.msra.mxu0 0
    %2899 = vmatpush.bf16.msra.mxu0 %v1384
    %2900 = vmatpush.bf16.msra.mxu0 %v1370
    %2901 = vmatmul.bf16.gmra.mxu0 %v2207
    %v2902 = vpop.f32.mrf.mxu0
    %v2903 = vadd.f32 0.0, %v2902
    %v2904 = vpop.f32.mrf.mxu0
    %v2905 = vadd.f32 0.0, %v2904
    %2906 = vdwg.mxu0
    %v2907 = vadd.f32 %v2859, %v2875
    %v2908 = vadd.f32 %v2860, %v2889
    %v2909 = vadd.f32 %v2861, %v2903
    %v2910 = vadd.f32 %v2862, %v2877
    %v2911 = vadd.f32 %v2863, %v2891
    %v2912 = vadd.f32 %v2864, %v2905
    %2913 = vmatpush.bf16.msra.mxu0 0
    %2914 = vmatpush.bf16.msra.mxu0 0
    %2915 = vmatpush.bf16.msra.mxu0 0
    %2916 = vmatpush.bf16.msra.mxu0 0
    %2917 = vmatpush.bf16.msra.mxu0 0
    %2918 = vmatpush.bf16.msra.mxu0 0
    %2919 = vmatpush.bf16.msra.mxu0 %v1464
    %2920 = vmatpush.bf16.msra.mxu0 %v1454
    %2921 = vmatmul.bf16.gmra.mxu0 %v2677
    %v2922 = vpop.f32.mrf.mxu0
    %v2923 = vadd.f32 0.0, %v2922
    %v2924 = vpop.f32.mrf.mxu0
    %v2925 = vadd.f32 0.0, %v2924
    %2926 = vdwg.mxu0
    %2927 = vmatpush.bf16.msra.mxu0 0
    %2928 = vmatpush.bf16.msra.mxu0 0
    %2929 = vmatpush.bf16.msra.mxu0 0
    %2930 = vmatpush.bf16.msra.mxu0 0
    %2931 = vmatpush.bf16.msra.mxu0 0
    %2932 = vmatpush.bf16.msra.mxu0 0
    %2933 = vmatpush.bf16.msra.mxu0 %v1467
    %2934 = vmatpush.bf16.msra.mxu0 %v1455
    %2935 = vmatmul.bf16.gmra.mxu0 %v2677
    %v2936 = vpop.f32.mrf.mxu0
    %v2937 = vadd.f32 0.0, %v2936
    %v2938 = vpop.f32.mrf.mxu0
    %v2939 = vadd.f32 0.0, %v2938
    %2940 = vdwg.mxu0
    %2941 = vmatpush.bf16.msra.mxu0 0
    %2942 = vmatpush.bf16.msra.mxu0 0
    %2943 = vmatpush.bf16.msra.mxu0 0
    %2944 = vmatpush.bf16.msra.mxu0 0
    %2945 = vmatpush.bf16.msra.mxu0 0
    %2946 = vmatpush.bf16.msra.mxu0 0
    %2947 = vmatpush.bf16.msra.mxu0 %v1470
    %2948 = vmatpush.bf16.msra.mxu0 %v1456
    %2949 = vmatmul.bf16.gmra.mxu0 %v2677
    %v2950 = vpop.f32.mrf.mxu0
    %v2951 = vadd.f32 0.0, %v2950
    %v2952 = vpop.f32.mrf.mxu0
    %v2953 = vadd.f32 0.0, %v2952
    %2954 = vdwg.mxu0
    %v2955 = vadd.f32 %v2907, %v2923
    %v2956 = vadd.f32 %v2908, %v2937
    %v2957 = vadd.f32 %v2909, %v2951
    %v2958 = vadd.f32 %v2910, %v2925
    %v2959 = vadd.f32 %v2911, %v2939
    %v2960 = vadd.f32 %v2912, %v2953
    %v2961 = vmax.f32 %v2727, %v2955
    %v2962 = vmax.f32 %v2728, %v2956
    %v2963 = vmax.f32 %v2729, %v2957
    %v2964 = vmax.f32 %v2730, %v2958
    %v2965 = vmax.f32 %v2731, %v2959
    %v2966 = vmax.f32 %v2732, %v2960
    %v2967 = vadd.f32 %v2961, %v2003
    %v2968 = vadd.f32 %v2962, %v2004
    %v2969 = vadd.f32 %v2963, %v2005
    %v2970 = vadd.f32 %v2964, %v2003
    %v2971 = vadd.f32 %v2965, %v2004
    %v2972 = vadd.f32 %v2966, %v2005
    %v2973 = vmax.f32 %v2967, 0.0
    %v2974 = vmax.f32 %v2968, 0.0
    %v2975 = vmax.f32 %v2969, 0.0
    %v2976 = vmax.f32 %v2970, 0.0
    %v2977 = vmax.f32 %v2971, 0.0
    %v2978 = vmax.f32 %v2972, 0.0
    %v2979 = vpack.c.bf16 %v2018, %v2015
    %v2980 = vpack.c.bf16 %v2019, %v2016
    %v2981 = vpack.c.bf16 %v2020, %v2017
    %v2982 = vpack.c.bf16 %v2976, %v2973
    %v2983 = vpack.c.bf16 %v2977, %v2974
    %v2984 = vpack.c.bf16 %v2978, %v2975
    %vm2991 = vcmask 1046528
    %v2992 = vrot.slane %v2015, 1
    %v2993 = vrot.slane %v2018, 1
    %v2994 = vsel %vm2991, %v2992, %v2993
    %v2995 = vrot.slane %v2016, 1
    %v2996 = vrot.slane %v2019, 1
    %v2997 = vsel %vm2991, %v2995, %v2996
    %v2998 = vrot.slane %v2017, 1
    %v2999 = vrot.slane %v2020, 1
    %v3000 = vsel %vm2991, %v2998, %v2999
    %v3010 = vsel %vm2991, %v2993, %v2992
    %v3011 = vsel %vm2991, %v2996, %v2995
    %v3012 = vsel %vm2991, %v2999, %v2998
    %v3013 = vpack.c.bf16 %v3010, %v2994
    %v3014 = vpack.c.bf16 %v3011, %v2997
    %v3015 = vpack.c.bf16 %v3012, %v3000
    %v3022 = vrot.slane %v2973, 1
    %v3023 = vrot.slane %v2976, 1
    %v3024 = vsel %vm2991, %v3022, %v3023
    %v3025 = vrot.slane %v2974, 1
    %v3026 = vrot.slane %v2977, 1
    %v3027 = vsel %vm2991, %v3025, %v3026
    %v3028 = vrot.slane %v2975, 1
    %v3029 = vrot.slane %v2978, 1
    %v3030 = vsel %vm2991, %v3028, %v3029
    %v3040 = vsel %vm2991, %v3023, %v3022
    %v3041 = vsel %vm2991, %v3026, %v3025
    %v3042 = vsel %vm2991, %v3029, %v3028
    %v3043 = vpack.c.bf16 %v3040, %v3024
    %v3044 = vpack.c.bf16 %v3041, %v3027
    %v3045 = vpack.c.bf16 %v3042, %v3030
    %v3046 = vrot.slane %v2015, 2
    %v3047 = vrot.slane %v2018, 2
    %v3048 = vsel %vm680, %v3046, %v3047
    %v3049 = vrot.slane %v2016, 2
    %v3050 = vrot.slane %v2019, 2
    %v3051 = vsel %vm680, %v3049, %v3050
    %v3052 = vrot.slane %v2017, 2
    %v3053 = vrot.slane %v2020, 2
    %v3054 = vsel %vm680, %v3052, %v3053
    %v3064 = vsel %vm680, %v3047, %v3046
    %v3065 = vsel %vm680, %v3050, %v3049
    %v3066 = vsel %vm680, %v3053, %v3052
    %v3067 = vpack.c.bf16 %v3064, %v3048
    %v3068 = vpack.c.bf16 %v3065, %v3051
    %v3069 = vpack.c.bf16 %v3066, %v3054
    %v3070 = vrot.slane %v2973, 2
    %v3071 = vrot.slane %v2976, 2
    %v3072 = vsel %vm680, %v3070, %v3071
    %v3073 = vrot.slane %v2974, 2
    %v3074 = vrot.slane %v2977, 2
    %v3075 = vsel %vm680, %v3073, %v3074
    %v3076 = vrot.slane %v2975, 2
    %v3077 = vrot.slane %v2978, 2
    %v3078 = vsel %vm680, %v3076, %v3077
    %v3088 = vsel %vm680, %v3071, %v3070
    %v3089 = vsel %vm680, %v3074, %v3073
    %v3090 = vsel %vm680, %v3077, %v3076
    %v3091 = vpack.c.bf16 %v3088, %v3072
    %v3092 = vpack.c.bf16 %v3089, %v3075
    %v3093 = vpack.c.bf16 %v3090, %v3078
    %v3142 = vunpack.c.l.b16 %v256
    %v3143 = vunpack.c.h.b16 %v256
    %v3144 = vunpack.c.l.b16 %v257
    %v3145 = vunpack.c.h.b16 %v257
    %v3146 = vunpack.c.l.b16 %v258
    %v3147 = vunpack.c.h.b16 %v258
    %v3148 = vunpack.c.l.b16 %v259
    %v3149 = vunpack.c.h.b16 %v259
    %v3150 = vunpack.c.l.b16 %v260
    %v3151 = vunpack.c.h.b16 %v260
    %v3152 = vunpack.c.l.b16 %v261
    %v3153 = vunpack.c.h.b16 %v261
    %v3154 = vunpack.c.l.b16 %v262
    %v3155 = vunpack.c.h.b16 %v262
    %v3156 = vunpack.c.l.b16 %v263
    %v3157 = vunpack.c.h.b16 %v263
    %v3158 = vunpack.c.l.b16 %v264
    %v3159 = vunpack.c.h.b16 %v264
    %v3160 = vunpack.c.l.b16 %v265
    %v3161 = vunpack.c.h.b16 %v265
    %v3162 = vunpack.c.l.b16 %v266
    %v3163 = vunpack.c.h.b16 %v266
    %v3164 = vunpack.c.l.b16 %v267
    %v3165 = vunpack.c.h.b16 %v267
    %v3166 = vunpack.c.l.b16 %v268
    %v3167 = vunpack.c.h.b16 %v268
    %v3168 = vunpack.c.l.b16 %v269
    %v3169 = vunpack.c.h.b16 %v269
    %v3170 = vunpack.c.l.b16 %v270
    %v3171 = vunpack.c.h.b16 %v270
    %v3172 = vunpack.c.l.b16 %v271
    %v3173 = vunpack.c.h.b16 %v271
    %v3174 = vunpack.c.l.b16 %v272
    %v3175 = vunpack.c.h.b16 %v272
    %v3176 = vunpack.c.l.b16 %v273
    %v3177 = vunpack.c.h.b16 %v273
    %v3178 = vunpack.c.l.b16 %v274
    %v3179 = vunpack.c.h.b16 %v274
    %v3180 = vunpack.c.l.b16 %v275
    %v3181 = vunpack.c.h.b16 %v275
    %v3182 = vunpack.c.l.b16 %v276
    %v3183 = vunpack.c.h.b16 %v276
    %v3184 = vunpack.c.l.b16 %v277
    %v3185 = vunpack.c.h.b16 %v277
    %v3186 = vunpack.c.l.b16 %v278
    %v3187 = vunpack.c.h.b16 %v278
    %v3188 = vunpack.c.l.b16 %v279
    %v3189 = vunpack.c.h.b16 %v279
    %v3190 = vunpack.c.l.b16 %v280
    %v3191 = vunpack.c.h.b16 %v280
    %v3192 = vunpack.c.l.b16 %v281
    %v3193 = vunpack.c.h.b16 %v281
    %v3194 = vunpack.c.l.b16 %v282
    %v3195 = vunpack.c.h.b16 %v282
    %v3196 = vunpack.c.l.b16 %v283
    %v3197 = vunpack.c.h.b16 %v283
    %v3198 = vunpack.c.l.b16 %v284
    %v3199 = vunpack.c.h.b16 %v284
    %v3200 = vunpack.c.l.b16 %v285
    %v3201 = vunpack.c.h.b16 %v285
    %v3202 = vunpack.c.l.b16 %v286
    %v3203 = vunpack.c.h.b16 %v286
    %v3204 = vunpack.c.l.b16 %v287
    %v3205 = vunpack.c.h.b16 %v287
    %v3206 = vunpack.c.l.b16 %v288
    %v3207 = vunpack.c.h.b16 %v288
    %v3208 = vunpack.c.l.b16 %v289
    %v3209 = vunpack.c.h.b16 %v289
    %v3210 = vunpack.c.l.b16 %v290
    %v3211 = vunpack.c.h.b16 %v290
    %v3212 = vunpack.c.l.b16 %v291
    %v3213 = vunpack.c.h.b16 %v291
    %v3214 = vunpack.c.l.b16 %v292
    %v3215 = vunpack.c.h.b16 %v292
    %v3216 = vunpack.c.l.b16 %v293
    %v3217 = vunpack.c.h.b16 %v293
    %v3218 = vunpack.c.l.b16 %v294
    %v3219 = vunpack.c.h.b16 %v294
    %v3220 = vunpack.c.l.b16 %v295
    %v3221 = vunpack.c.h.b16 %v295
    %v3222 = vunpack.c.l.b16 %v296
    %v3223 = vunpack.c.h.b16 %v296
    %v3224 = vunpack.c.l.b16 %v297
    %v3225 = vunpack.c.h.b16 %v297
    %v3226 = vunpack.c.l.b16 %v298
    %v3227 = vunpack.c.h.b16 %v298
    %v3228 = vunpack.c.l.b16 %v299
    %v3229 = vunpack.c.h.b16 %v299
    %v3230 = vunpack.c.l.b16 %v300
    %v3231 = vunpack.c.h.b16 %v300
    %v3232 = vunpack.c.l.b16 %v301
    %v3233 = vunpack.c.h.b16 %v301
    %v3234 = vunpack.c.l.b16 %v302
    %v3235 = vunpack.c.h.b16 %v302
    %v3236 = vunpack.c.l.b16 %v303
    %v3237 = vunpack.c.h.b16 %v303
    %v3238 = vpack.c.b16 %v3144, %v3142
    %v3239 = vpack.c.b16 %v3145, %v3143
    %v3240 = vpack.c.b16 %v3148, %v3146
    %v3241 = vpack.c.b16 %v3149, %v3147
    %v3242 = vpack.c.b16 %v3152, %v3150
    %v3243 = vpack.c.b16 %v3153, %v3151
    %v3244 = vpack.c.b16 %v3156, %v3154
    %v3245 = vpack.c.b16 %v3157, %v3155
    %v3246 = vpack.c.b16 %v3160, %v3158
    %v3247 = vpack.c.b16 %v3161, %v3159
    %v3248 = vpack.c.b16 %v3164, %v3162
    %v3249 = vpack.c.b16 %v3165, %v3163
    %v3250 = vpack.c.b16 %v3168, %v3166
    %v3251 = vpack.c.b16 %v3169, %v3167
    %v3252 = vpack.c.b16 %v3172, %v3170
    %v3253 = vpack.c.b16 %v3173, %v3171
    %v3254 = vpack.c.b16 %v3176, %v3174
    %v3255 = vpack.c.b16 %v3177, %v3175
    %v3256 = vpack.c.b16 %v3180, %v3178
    %v3257 = vpack.c.b16 %v3181, %v3179
    %v3258 = vpack.c.b16 %v3184, %v3182
    %v3259 = vpack.c.b16 %v3185, %v3183
    %v3260 = vpack.c.b16 %v3188, %v3186
    %v3261 = vpack.c.b16 %v3189, %v3187
    %v3262 = vpack.c.b16 %v3192, %v3190
    %v3263 = vpack.c.b16 %v3193, %v3191
    %v3264 = vpack.c.b16 %v3196, %v3194
    %v3265 = vpack.c.b16 %v3197, %v3195
    %v3266 = vpack.c.b16 %v3200, %v3198
    %v3267 = vpack.c.b16 %v3201, %v3199
    %v3268 = vpack.c.b16 %v3204, %v3202
    %v3269 = vpack.c.b16 %v3205, %v3203
    %v3270 = vpack.c.b16 %v3208, %v3206
    %v3271 = vpack.c.b16 %v3209, %v3207
    %v3272 = vpack.c.b16 %v3212, %v3210
    %v3273 = vpack.c.b16 %v3213, %v3211
    %v3274 = vpack.c.b16 %v3216, %v3214
    %v3275 = vpack.c.b16 %v3217, %v3215
    %v3276 = vpack.c.b16 %v3220, %v3218
    %v3277 = vpack.c.b16 %v3221, %v3219
    %v3278 = vpack.c.b16 %v3224, %v3222
    %v3279 = vpack.c.b16 %v3225, %v3223
    %v3280 = vpack.c.b16 %v3228, %v3226
    %v3281 = vpack.c.b16 %v3229, %v3227
    %v3282 = vpack.c.b16 %v3232, %v3230
    %v3283 = vpack.c.b16 %v3233, %v3231
    %v3284 = vpack.c.b16 %v3236, %v3234
    %v3285 = vpack.c.b16 %v3237, %v3235
    %3334 = vmatpush.bf16.msra.mxu0 %v3252
    %3335 = vmatpush.bf16.msra.mxu0 %v3250
    %3336 = vmatpush.bf16.msra.mxu0 %v3248
    %3337 = vmatpush.bf16.msra.mxu0 %v3246
    %3338 = vmatpush.bf16.msra.mxu0 %v3244
    %3339 = vmatpush.bf16.msra.mxu0 %v3242
    %3340 = vmatpush.bf16.msra.mxu0 %v3240
    %3341 = vmatpush.bf16.msra.mxu0 %v3238
    %3342 = vmatmul.bf16.gmra.mxu0 %v2982
    %v3343 = vpop.f32.mrf.mxu0
    %v3344 = vadd.f32 0.0, %v3343
    %v3345 = vpop.f32.mrf.mxu0
    %v3346 = vadd.f32 0.0, %v3345
    %3347 = vdwg.mxu0
    %3348 = vmatpush.bf16.msra.mxu0 %v3268
    %3349 = vmatpush.bf16.msra.mxu0 %v3266
    %3350 = vmatpush.bf16.msra.mxu0 %v3264
    %3351 = vmatpush.bf16.msra.mxu0 %v3262
    %3352 = vmatpush.bf16.msra.mxu0 %v3260
    %3353 = vmatpush.bf16.msra.mxu0 %v3258
    %3354 = vmatpush.bf16.msra.mxu0 %v3256
    %3355 = vmatpush.bf16.msra.mxu0 %v3254
    %3356 = vmatmul.bf16.gmra.mxu0 %v2983
    %v3357 = vpop.f32.mrf.mxu0
    %v3358 = vadd.f32 %v3344, %v3357
    %v3359 = vpop.f32.mrf.mxu0
    %v3360 = vadd.f32 %v3346, %v3359
    %3361 = vdwg.mxu0
    %3362 = vmatpush.bf16.msra.mxu0 %v3284
    %3363 = vmatpush.bf16.msra.mxu0 %v3282
    %3364 = vmatpush.bf16.msra.mxu0 %v3280
    %3365 = vmatpush.bf16.msra.mxu0 %v3278
    %3366 = vmatpush.bf16.msra.mxu0 %v3276
    %3367 = vmatpush.bf16.msra.mxu0 %v3274
    %3368 = vmatpush.bf16.msra.mxu0 %v3272
    %3369 = vmatpush.bf16.msra.mxu0 %v3270
    %3370 = vmatmul.bf16.gmra.mxu0 %v2984
    %v3371 = vpop.f32.mrf.mxu0
    %v3372 = vadd.f32 %v3358, %v3371
    %v3373 = vpop.f32.mrf.mxu0
    %v3374 = vadd.f32 %v3360, %v3373
    %3375 = vdwg.mxu0
    %3376 = vmatpush.bf16.msra.mxu0 %v3253
    %3377 = vmatpush.bf16.msra.mxu0 %v3251
    %3378 = vmatpush.bf16.msra.mxu0 %v3249
    %3379 = vmatpush.bf16.msra.mxu0 %v3247
    %3380 = vmatpush.bf16.msra.mxu0 %v3245
    %3381 = vmatpush.bf16.msra.mxu0 %v3243
    %3382 = vmatpush.bf16.msra.mxu0 %v3241
    %3383 = vmatpush.bf16.msra.mxu0 %v3239
    %3384 = vmatmul.bf16.gmra.mxu0 %v2982
    %v3385 = vpop.f32.mrf.mxu0
    %v3386 = vadd.f32 0.0, %v3385
    %v3387 = vpop.f32.mrf.mxu0
    %v3388 = vadd.f32 0.0, %v3387
    %3389 = vdwg.mxu0
    %3390 = vmatpush.bf16.msra.mxu0 %v3269
    %3391 = vmatpush.bf16.msra.mxu0 %v3267
    %3392 = vmatpush.bf16.msra.mxu0 %v3265
    %3393 = vmatpush.bf16.msra.mxu0 %v3263
    %3394 = vmatpush.bf16.msra.mxu0 %v3261
    %3395 = vmatpush.bf16.msra.mxu0 %v3259
    %3396 = vmatpush.bf16.msra.mxu0 %v3257
    %3397 = vmatpush.bf16.msra.mxu0 %v3255
    %3398 = vmatmul.bf16.gmra.mxu0 %v2983
    %v3399 = vpop.f32.mrf.mxu0
    %v3400 = vadd.f32 %v3386, %v3399
    %v3401 = vpop.f32.mrf.mxu0
    %v3402 = vadd.f32 %v3388, %v3401
    %3403 = vdwg.mxu0
    %3404 = vmatpush.bf16.msra.mxu0 %v3285
    %3405 = vmatpush.bf16.msra.mxu0 %v3283
    %3406 = vmatpush.bf16.msra.mxu0 %v3281
    %3407 = vmatpush.bf16.msra.mxu0 %v3279
    %3408 = vmatpush.bf16.msra.mxu0 %v3277
    %3409 = vmatpush.bf16.msra.mxu0 %v3275
    %3410 = vmatpush.bf16.msra.mxu0 %v3273
    %3411 = vmatpush.bf16.msra.mxu0 %v3271
    %3412 = vmatmul.bf16.gmra.mxu0 %v2984
    %v3413 = vpop.f32.mrf.mxu0
    %v3414 = vadd.f32 %v3400, %v3413
    %v3415 = vpop.f32.mrf.mxu0
    %v3416 = vadd.f32 %v3402, %v3415
    %3417 = vdwg.mxu0
    %v3466 = vunpack.c.l.b16 %v160
    %v3467 = vunpack.c.h.b16 %v160
    %v3468 = vunpack.c.l.b16 %v161
    %v3469 = vunpack.c.h.b16 %v161
    %v3470 = vunpack.c.l.b16 %v162
    %v3471 = vunpack.c.h.b16 %v162
    %v3472 = vunpack.c.l.b16 %v163
    %v3473 = vunpack.c.h.b16 %v163
    %v3474 = vunpack.c.l.b16 %v164
    %v3475 = vunpack.c.h.b16 %v164
    %v3476 = vunpack.c.l.b16 %v165
    %v3477 = vunpack.c.h.b16 %v165
    %v3478 = vunpack.c.l.b16 %v166
    %v3479 = vunpack.c.h.b16 %v166
    %v3480 = vunpack.c.l.b16 %v167
    %v3481 = vunpack.c.h.b16 %v167
    %v3482 = vunpack.c.l.b16 %v168
    %v3483 = vunpack.c.h.b16 %v168
    %v3484 = vunpack.c.l.b16 %v169
    %v3485 = vunpack.c.h.b16 %v169
    %v3486 = vunpack.c.l.b16 %v170
    %v3487 = vunpack.c.h.b16 %v170
    %v3488 = vunpack.c.l.b16 %v171
    %v3489 = vunpack.c.h.b16 %v171
    %v3490 = vunpack.c.l.b16 %v172
    %v3491 = vunpack.c.h.b16 %v172
    %v3492 = vunpack.c.l.b16 %v173
    %v3493 = vunpack.c.h.b16 %v173
    %v3494 = vunpack.c.l.b16 %v174
    %v3495 = vunpack.c.h.b16 %v174
    %v3496 = vunpack.c.l.b16 %v175
    %v3497 = vunpack.c.h.b16 %v175
    %v3498 = vunpack.c.l.b16 %v176
    %v3499 = vunpack.c.h.b16 %v176
    %v3500 = vunpack.c.l.b16 %v177
    %v3501 = vunpack.c.h.b16 %v177
    %v3502 = vunpack.c.l.b16 %v178
    %v3503 = vunpack.c.h.b16 %v178
    %v3504 = vunpack.c.l.b16 %v179
    %v3505 = vunpack.c.h.b16 %v179
    %v3506 = vunpack.c.l.b16 %v180
    %v3507 = vunpack.c.h.b16 %v180
    %v3508 = vunpack.c.l.b16 %v181
    %v3509 = vunpack.c.h.b16 %v181
    %v3510 = vunpack.c.l.b16 %v182
    %v3511 = vunpack.c.h.b16 %v182
    %v3512 = vunpack.c.l.b16 %v183
    %v3513 = vunpack.c.h.b16 %v183
    %v3514 = vunpack.c.l.b16 %v184
    %v3515 = vunpack.c.h.b16 %v184
    %v3516 = vunpack.c.l.b16 %v185
    %v3517 = vunpack.c.h.b16 %v185
    %v3518 = vunpack.c.l.b16 %v186
    %v3519 = vunpack.c.h.b16 %v186
    %v3520 = vunpack.c.l.b16 %v187
    %v3521 = vunpack.c.h.b16 %v187
    %v3522 = vunpack.c.l.b16 %v188
    %v3523 = vunpack.c.h.b16 %v188
    %v3524 = vunpack.c.l.b16 %v189
    %v3525 = vunpack.c.h.b16 %v189
    %v3526 = vunpack.c.l.b16 %v190
    %v3527 = vunpack.c.h.b16 %v190
    %v3528 = vunpack.c.l.b16 %v191
    %v3529 = vunpack.c.h.b16 %v191
    %v3530 = vunpack.c.l.b16 %v192
    %v3531 = vunpack.c.h.b16 %v192
    %v3532 = vunpack.c.l.b16 %v193
    %v3533 = vunpack.c.h.b16 %v193
    %v3534 = vunpack.c.l.b16 %v194
    %v3535 = vunpack.c.h.b16 %v194
    %v3536 = vunpack.c.l.b16 %v195
    %v3537 = vunpack.c.h.b16 %v195
    %v3538 = vunpack.c.l.b16 %v196
    %v3539 = vunpack.c.h.b16 %v196
    %v3540 = vunpack.c.l.b16 %v197
    %v3541 = vunpack.c.h.b16 %v197
    %v3542 = vunpack.c.l.b16 %v198
    %v3543 = vunpack.c.h.b16 %v198
    %v3544 = vunpack.c.l.b16 %v199
    %v3545 = vunpack.c.h.b16 %v199
    %v3546 = vunpack.c.l.b16 %v200
    %v3547 = vunpack.c.h.b16 %v200
    %v3548 = vunpack.c.l.b16 %v201
    %v3549 = vunpack.c.h.b16 %v201
    %v3550 = vunpack.c.l.b16 %v202
    %v3551 = vunpack.c.h.b16 %v202
    %v3552 = vunpack.c.l.b16 %v203
    %v3553 = vunpack.c.h.b16 %v203
    %v3554 = vunpack.c.l.b16 %v204
    %v3555 = vunpack.c.h.b16 %v204
    %v3556 = vunpack.c.l.b16 %v205
    %v3557 = vunpack.c.h.b16 %v205
    %v3558 = vunpack.c.l.b16 %v206
    %v3559 = vunpack.c.h.b16 %v206
    %v3560 = vunpack.c.l.b16 %v207
    %v3561 = vunpack.c.h.b16 %v207
    %v3562 = vpack.c.b16 %v3468, %v3466
    %v3563 = vpack.c.b16 %v3469, %v3467
    %v3564 = vpack.c.b16 %v3472, %v3470
    %v3565 = vpack.c.b16 %v3473, %v3471
    %v3566 = vpack.c.b16 %v3476, %v3474
    %v3567 = vpack.c.b16 %v3477, %v3475
    %v3568 = vpack.c.b16 %v3480, %v3478
    %v3569 = vpack.c.b16 %v3481, %v3479
    %v3570 = vpack.c.b16 %v3484, %v3482
    %v3571 = vpack.c.b16 %v3485, %v3483
    %v3572 = vpack.c.b16 %v3488, %v3486
    %v3573 = vpack.c.b16 %v3489, %v3487
    %v3574 = vpack.c.b16 %v3492, %v3490
    %v3575 = vpack.c.b16 %v3493, %v3491
    %v3576 = vpack.c.b16 %v3496, %v3494
    %v3577 = vpack.c.b16 %v3497, %v3495
    %v3578 = vpack.c.b16 %v3500, %v3498
    %v3579 = vpack.c.b16 %v3501, %v3499
    %v3580 = vpack.c.b16 %v3504, %v3502
    %v3581 = vpack.c.b16 %v3505, %v3503
    %v3582 = vpack.c.b16 %v3508, %v3506
    %v3583 = vpack.c.b16 %v3509, %v3507
    %v3584 = vpack.c.b16 %v3512, %v3510
    %v3585 = vpack.c.b16 %v3513, %v3511
    %v3586 = vpack.c.b16 %v3516, %v3514
    %v3587 = vpack.c.b16 %v3517, %v3515
    %v3588 = vpack.c.b16 %v3520, %v3518
    %v3589 = vpack.c.b16 %v3521, %v3519
    %v3590 = vpack.c.b16 %v3524, %v3522
    %v3591 = vpack.c.b16 %v3525, %v3523
    %v3592 = vpack.c.b16 %v3528, %v3526
    %v3593 = vpack.c.b16 %v3529, %v3527
    %v3594 = vpack.c.b16 %v3532, %v3530
    %v3595 = vpack.c.b16 %v3533, %v3531
    %v3596 = vpack.c.b16 %v3536, %v3534
    %v3597 = vpack.c.b16 %v3537, %v3535
    %v3598 = vpack.c.b16 %v3540, %v3538
    %v3599 = vpack.c.b16 %v3541, %v3539
    %v3600 = vpack.c.b16 %v3544, %v3542
    %v3601 = vpack.c.b16 %v3545, %v3543
    %v3602 = vpack.c.b16 %v3548, %v3546
    %v3603 = vpack.c.b16 %v3549, %v3547
    %v3604 = vpack.c.b16 %v3552, %v3550
    %v3605 = vpack.c.b16 %v3553, %v3551
    %v3606 = vpack.c.b16 %v3556, %v3554
    %v3607 = vpack.c.b16 %v3557, %v3555
    %v3608 = vpack.c.b16 %v3560, %v3558
    %v3609 = vpack.c.b16 %v3561, %v3559
    %3658 = vmatpush.bf16.msra.mxu0 %v3576
    %3659 = vmatpush.bf16.msra.mxu0 %v3574
    %3660 = vmatpush.bf16.msra.mxu0 %v3572
    %3661 = vmatpush.bf16.msra.mxu0 %v3570
    %3662 = vmatpush.bf16.msra.mxu0 %v3568
    %3663 = vmatpush.bf16.msra.mxu0 %v3566
    %3664 = vmatpush.bf16.msra.mxu0 %v3564
    %3665 = vmatpush.bf16.msra.mxu0 %v3562
    %3666 = vmatmul.bf16.gmra.mxu0 %v2979
    %v3667 = vpop.f32.mrf.mxu0
    %v3668 = vadd.f32 %v3372, %v3667
    %v3669 = vpop.f32.mrf.mxu0
    %v3670 = vadd.f32 %v3374, %v3669
    %3671 = vdwg.mxu0
    %3672 = vmatpush.bf16.msra.mxu0 %v3592
    %3673 = vmatpush.bf16.msra.mxu0 %v3590
    %3674 = vmatpush.bf16.msra.mxu0 %v3588
    %3675 = vmatpush.bf16.msra.mxu0 %v3586
    %3676 = vmatpush.bf16.msra.mxu0 %v3584
    %3677 = vmatpush.bf16.msra.mxu0 %v3582
    %3678 = vmatpush.bf16.msra.mxu0 %v3580
    %3679 = vmatpush.bf16.msra.mxu0 %v3578
    %3680 = vmatmul.bf16.gmra.mxu0 %v2980
    %v3681 = vpop.f32.mrf.mxu0
    %v3682 = vadd.f32 %v3668, %v3681
    %v3683 = vpop.f32.mrf.mxu0
    %v3684 = vadd.f32 %v3670, %v3683
    %3685 = vdwg.mxu0
    %3686 = vmatpush.bf16.msra.mxu0 %v3608
    %3687 = vmatpush.bf16.msra.mxu0 %v3606
    %3688 = vmatpush.bf16.msra.mxu0 %v3604
    %3689 = vmatpush.bf16.msra.mxu0 %v3602
    %3690 = vmatpush.bf16.msra.mxu0 %v3600
    %3691 = vmatpush.bf16.msra.mxu0 %v3598
    %3692 = vmatpush.bf16.msra.mxu0 %v3596
    %3693 = vmatpush.bf16.msra.mxu0 %v3594
    %3694 = vmatmul.bf16.gmra.mxu0 %v2981
    %v3695 = vpop.f32.mrf.mxu0
    %v3696 = vadd.f32 %v3682, %v3695
    %v3697 = vpop.f32.mrf.mxu0
    %v3698 = vadd.f32 %v3684, %v3697
    %3699 = vdwg.mxu0
    %3700 = vmatpush.bf16.msra.mxu0 %v3577
    %3701 = vmatpush.bf16.msra.mxu0 %v3575
    %3702 = vmatpush.bf16.msra.mxu0 %v3573
    %3703 = vmatpush.bf16.msra.mxu0 %v3571
    %3704 = vmatpush.bf16.msra.mxu0 %v3569
    %3705 = vmatpush.bf16.msra.mxu0 %v3567
    %3706 = vmatpush.bf16.msra.mxu0 %v3565
    %3707 = vmatpush.bf16.msra.mxu0 %v3563
    %3708 = vmatmul.bf16.gmra.mxu0 %v2979
    %v3709 = vpop.f32.mrf.mxu0
    %v3710 = vadd.f32 %v3414, %v3709
    %v3711 = vpop.f32.mrf.mxu0
    %v3712 = vadd.f32 %v3416, %v3711
    %3713 = vdwg.mxu0
    %3714 = vmatpush.bf16.msra.mxu0 %v3593
    %3715 = vmatpush.bf16.msra.mxu0 %v3591
    %3716 = vmatpush.bf16.msra.mxu0 %v3589
    %3717 = vmatpush.bf16.msra.mxu0 %v3587
    %3718 = vmatpush.bf16.msra.mxu0 %v3585
    %3719 = vmatpush.bf16.msra.mxu0 %v3583
    %3720 = vmatpush.bf16.msra.mxu0 %v3581
    %3721 = vmatpush.bf16.msra.mxu0 %v3579
    %3722 = vmatmul.bf16.gmra.mxu0 %v2980
    %v3723 = vpop.f32.mrf.mxu0
    %v3724 = vadd.f32 %v3710, %v3723
    %v3725 = vpop.f32.mrf.mxu0
    %v3726 = vadd.f32 %v3712, %v3725
    %3727 = vdwg.mxu0
    %3728 = vmatpush.bf16.msra.mxu0 %v3609
    %3729 = vmatpush.bf16.msra.mxu0 %v3607
    %3730 = vmatpush.bf16.msra.mxu0 %v3605
    %3731 = vmatpush.bf16.msra.mxu0 %v3603
    %3732 = vmatpush.bf16.msra.mxu0 %v3601
    %3733 = vmatpush.bf16.msra.mxu0 %v3599
    %3734 = vmatpush.bf16.msra.mxu0 %v3597
    %3735 = vmatpush.bf16.msra.mxu0 %v3595
    %3736 = vmatmul.bf16.gmra.mxu0 %v2981
    %v3737 = vpop.f32.mrf.mxu0
    %v3738 = vadd.f32 %v3724, %v3737
    %v3739 = vpop.f32.mrf.mxu0
    %v3740 = vadd.f32 %v3726, %v3739
    %3741 = vdwg.mxu0
    %v3790 = vunpack.c.l.b16 %v352
    %v3791 = vunpack.c.h.b16 %v352
    %v3792 = vunpack.c.l.b16 %v353
    %v3793 = vunpack.c.h.b16 %v353
    %v3794 = vunpack.c.l.b16 %v354
    %v3795 = vunpack.c.h.b16 %v354
    %v3796 = vunpack.c.l.b16 %v355
    %v3797 = vunpack.c.h.b16 %v355
    %v3798 = vunpack.c.l.b16 %v356
    %v3799 = vunpack.c.h.b16 %v356
    %v3800 = vunpack.c.l.b16 %v357
    %v3801 = vunpack.c.h.b16 %v357
    %v3802 = vunpack.c.l.b16 %v358
    %v3803 = vunpack.c.h.b16 %v358
    %v3804 = vunpack.c.l.b16 %v359
    %v3805 = vunpack.c.h.b16 %v359
    %v3806 = vunpack.c.l.b16 %v360
    %v3807 = vunpack.c.h.b16 %v360
    %v3808 = vunpack.c.l.b16 %v361
    %v3809 = vunpack.c.h.b16 %v361
    %v3810 = vunpack.c.l.b16 %v362
    %v3811 = vunpack.c.h.b16 %v362
    %v3812 = vunpack.c.l.b16 %v363
    %v3813 = vunpack.c.h.b16 %v363
    %v3814 = vunpack.c.l.b16 %v364
    %v3815 = vunpack.c.h.b16 %v364
    %v3816 = vunpack.c.l.b16 %v365
    %v3817 = vunpack.c.h.b16 %v365
    %v3818 = vunpack.c.l.b16 %v366
    %v3819 = vunpack.c.h.b16 %v366
    %v3820 = vunpack.c.l.b16 %v367
    %v3821 = vunpack.c.h.b16 %v367
    %v3822 = vunpack.c.l.b16 %v368
    %v3823 = vunpack.c.h.b16 %v368
    %v3824 = vunpack.c.l.b16 %v369
    %v3825 = vunpack.c.h.b16 %v369
    %v3826 = vunpack.c.l.b16 %v370
    %v3827 = vunpack.c.h.b16 %v370
    %v3828 = vunpack.c.l.b16 %v371
    %v3829 = vunpack.c.h.b16 %v371
    %v3830 = vunpack.c.l.b16 %v372
    %v3831 = vunpack.c.h.b16 %v372
    %v3832 = vunpack.c.l.b16 %v373
    %v3833 = vunpack.c.h.b16 %v373
    %v3834 = vunpack.c.l.b16 %v374
    %v3835 = vunpack.c.h.b16 %v374
    %v3836 = vunpack.c.l.b16 %v375
    %v3837 = vunpack.c.h.b16 %v375
    %v3838 = vunpack.c.l.b16 %v376
    %v3839 = vunpack.c.h.b16 %v376
    %v3840 = vunpack.c.l.b16 %v377
    %v3841 = vunpack.c.h.b16 %v377
    %v3842 = vunpack.c.l.b16 %v378
    %v3843 = vunpack.c.h.b16 %v378
    %v3844 = vunpack.c.l.b16 %v379
    %v3845 = vunpack.c.h.b16 %v379
    %v3846 = vunpack.c.l.b16 %v380
    %v3847 = vunpack.c.h.b16 %v380
    %v3848 = vunpack.c.l.b16 %v381
    %v3849 = vunpack.c.h.b16 %v381
    %v3850 = vunpack.c.l.b16 %v382
    %v3851 = vunpack.c.h.b16 %v382
    %v3852 = vunpack.c.l.b16 %v383
    %v3853 = vunpack.c.h.b16 %v383
    %v3854 = vunpack.c.l.b16 %v384
    %v3855 = vunpack.c.h.b16 %v384
    %v3856 = vunpack.c.l.b16 %v385
    %v3857 = vunpack.c.h.b16 %v385
    %v3858 = vunpack.c.l.b16 %v386
    %v3859 = vunpack.c.h.b16 %v386
    %v3860 = vunpack.c.l.b16 %v387
    %v3861 = vunpack.c.h.b16 %v387
    %v3862 = vunpack.c.l.b16 %v388
    %v3863 = vunpack.c.h.b16 %v388
    %v3864 = vunpack.c.l.b16 %v389
    %v3865 = vunpack.c.h.b16 %v389
    %v3866 = vunpack.c.l.b16 %v390
    %v3867 = vunpack.c.h.b16 %v390
    %v3868 = vunpack.c.l.b16 %v391
    %v3869 = vunpack.c.h.b16 %v391
    %v3870 = vunpack.c.l.b16 %v392
    %v3871 = vunpack.c.h.b16 %v392
    %v3872 = vunpack.c.l.b16 %v393
    %v3873 = vunpack.c.h.b16 %v393
    %v3874 = vunpack.c.l.b16 %v394
    %v3875 = vunpack.c.h.b16 %v394
    %v3876 = vunpack.c.l.b16 %v395
    %v3877 = vunpack.c.h.b16 %v395
    %v3878 = vunpack.c.l.b16 %v396
    %v3879 = vunpack.c.h.b16 %v396
    %v3880 = vunpack.c.l.b16 %v397
    %v3881 = vunpack.c.h.b16 %v397
    %v3882 = vunpack.c.l.b16 %v398
    %v3883 = vunpack.c.h.b16 %v398
    %v3884 = vunpack.c.l.b16 %v399
    %v3885 = vunpack.c.h.b16 %v399
    %v3886 = vpack.c.b16 %v3792, %v3790
    %v3887 = vpack.c.b16 %v3793, %v3791
    %v3888 = vpack.c.b16 %v3796, %v3794
    %v3889 = vpack.c.b16 %v3797, %v3795
    %v3890 = vpack.c.b16 %v3800, %v3798
    %v3891 = vpack.c.b16 %v3801, %v3799
    %v3892 = vpack.c.b16 %v3804, %v3802
    %v3893 = vpack.c.b16 %v3805, %v3803
    %v3894 = vpack.c.b16 %v3808, %v3806
    %v3895 = vpack.c.b16 %v3809, %v3807
    %v3896 = vpack.c.b16 %v3812, %v3810
    %v3897 = vpack.c.b16 %v3813, %v3811
    %v3898 = vpack.c.b16 %v3816, %v3814
    %v3899 = vpack.c.b16 %v3817, %v3815
    %v3900 = vpack.c.b16 %v3820, %v3818
    %v3901 = vpack.c.b16 %v3821, %v3819
    %v3902 = vpack.c.b16 %v3824, %v3822
    %v3903 = vpack.c.b16 %v3825, %v3823
    %v3904 = vpack.c.b16 %v3828, %v3826
    %v3905 = vpack.c.b16 %v3829, %v3827
    %v3906 = vpack.c.b16 %v3832, %v3830
    %v3907 = vpack.c.b16 %v3833, %v3831
    %v3908 = vpack.c.b16 %v3836, %v3834
    %v3909 = vpack.c.b16 %v3837, %v3835
    %v3910 = vpack.c.b16 %v3840, %v3838
    %v3911 = vpack.c.b16 %v3841, %v3839
    %v3912 = vpack.c.b16 %v3844, %v3842
    %v3913 = vpack.c.b16 %v3845, %v3843
    %v3914 = vpack.c.b16 %v3848, %v3846
    %v3915 = vpack.c.b16 %v3849, %v3847
    %v3916 = vpack.c.b16 %v3852, %v3850
    %v3917 = vpack.c.b16 %v3853, %v3851
    %v3918 = vpack.c.b16 %v3856, %v3854
    %v3919 = vpack.c.b16 %v3857, %v3855
    %v3920 = vpack.c.b16 %v3860, %v3858
    %v3921 = vpack.c.b16 %v3861, %v3859
    %v3922 = vpack.c.b16 %v3864, %v3862
    %v3923 = vpack.c.b16 %v3865, %v3863
    %v3924 = vpack.c.b16 %v3868, %v3866
    %v3925 = vpack.c.b16 %v3869, %v3867
    %v3926 = vpack.c.b16 %v3872, %v3870
    %v3927 = vpack.c.b16 %v3873, %v3871
    %v3928 = vpack.c.b16 %v3876, %v3874
    %v3929 = vpack.c.b16 %v3877, %v3875
    %v3930 = vpack.c.b16 %v3880, %v3878
    %v3931 = vpack.c.b16 %v3881, %v3879
    %v3932 = vpack.c.b16 %v3884, %v3882
    %v3933 = vpack.c.b16 %v3885, %v3883
    %3982 = vmatpush.bf16.msra.mxu0 %v3900
    %3983 = vmatpush.bf16.msra.mxu0 %v3898
    %3984 = vmatpush.bf16.msra.mxu0 %v3896
    %3985 = vmatpush.bf16.msra.mxu0 %v3894
    %3986 = vmatpush.bf16.msra.mxu0 %v3892
    %3987 = vmatpush.bf16.msra.mxu0 %v3890
    %3988 = vmatpush.bf16.msra.mxu0 %v3888
    %3989 = vmatpush.bf16.msra.mxu0 %v3886
    %3990 = vmatmul.bf16.gmra.mxu0 %v3013
    %v3991 = vpop.f32.mrf.mxu0
    %v3992 = vadd.f32 0.0, %v3991
    %v3993 = vpop.f32.mrf.mxu0
    %v3994 = vadd.f32 0.0, %v3993
    %3995 = vdwg.mxu0
    %3996 = vmatpush.bf16.msra.mxu0 %v3916
    %3997 = vmatpush.bf16.msra.mxu0 %v3914
    %3998 = vmatpush.bf16.msra.mxu0 %v3912
    %3999 = vmatpush.bf16.msra.mxu0 %v3910
    %4000 = vmatpush.bf16.msra.mxu0 %v3908
    %4001 = vmatpush.bf16.msra.mxu0 %v3906
    %4002 = vmatpush.bf16.msra.mxu0 %v3904
    %4003 = vmatpush.bf16.msra.mxu0 %v3902
    %4004 = vmatmul.bf16.gmra.mxu0 %v3014
    %v4005 = vpop.f32.mrf.mxu0
    %v4006 = vadd.f32 %v3992, %v4005
    %v4007 = vpop.f32.mrf.mxu0
    %v4008 = vadd.f32 %v3994, %v4007
    %4009 = vdwg.mxu0
    %4010 = vmatpush.bf16.msra.mxu0 %v3932
    %4011 = vmatpush.bf16.msra.mxu0 %v3930
    %4012 = vmatpush.bf16.msra.mxu0 %v3928
    %4013 = vmatpush.bf16.msra.mxu0 %v3926
    %4014 = vmatpush.bf16.msra.mxu0 %v3924
    %4015 = vmatpush.bf16.msra.mxu0 %v3922
    %4016 = vmatpush.bf16.msra.mxu0 %v3920
    %4017 = vmatpush.bf16.msra.mxu0 %v3918
    %4018 = vmatmul.bf16.gmra.mxu0 %v3015
    %v4019 = vpop.f32.mrf.mxu0
    %v4020 = vadd.f32 %v4006, %v4019
    %v4021 = vpop.f32.mrf.mxu0
    %v4022 = vadd.f32 %v4008, %v4021
    %4023 = vdwg.mxu0
    %4024 = vmatpush.bf16.msra.mxu0 %v3901
    %4025 = vmatpush.bf16.msra.mxu0 %v3899
    %4026 = vmatpush.bf16.msra.mxu0 %v3897
    %4027 = vmatpush.bf16.msra.mxu0 %v3895
    %4028 = vmatpush.bf16.msra.mxu0 %v3893
    %4029 = vmatpush.bf16.msra.mxu0 %v3891
    %4030 = vmatpush.bf16.msra.mxu0 %v3889
    %4031 = vmatpush.bf16.msra.mxu0 %v3887
    %4032 = vmatmul.bf16.gmra.mxu0 %v3013
    %v4033 = vpop.f32.mrf.mxu0
    %v4034 = vadd.f32 0.0, %v4033
    %v4035 = vpop.f32.mrf.mxu0
    %v4036 = vadd.f32 0.0, %v4035
    %4037 = vdwg.mxu0
    %4038 = vmatpush.bf16.msra.mxu0 %v3917
    %4039 = vmatpush.bf16.msra.mxu0 %v3915
    %4040 = vmatpush.bf16.msra.mxu0 %v3913
    %4041 = vmatpush.bf16.msra.mxu0 %v3911
    %4042 = vmatpush.bf16.msra.mxu0 %v3909
    %4043 = vmatpush.bf16.msra.mxu0 %v3907
    %4044 = vmatpush.bf16.msra.mxu0 %v3905
    %4045 = vmatpush.bf16.msra.mxu0 %v3903
    %4046 = vmatmul.bf16.gmra.mxu0 %v3014
    %v4047 = vpop.f32.mrf.mxu0
    %v4048 = vadd.f32 %v4034, %v4047
    %v4049 = vpop.f32.mrf.mxu0
    %v4050 = vadd.f32 %v4036, %v4049
    %4051 = vdwg.mxu0
    %4052 = vmatpush.bf16.msra.mxu0 %v3933
    %4053 = vmatpush.bf16.msra.mxu0 %v3931
    %4054 = vmatpush.bf16.msra.mxu0 %v3929
    %4055 = vmatpush.bf16.msra.mxu0 %v3927
    %4056 = vmatpush.bf16.msra.mxu0 %v3925
    %4057 = vmatpush.bf16.msra.mxu0 %v3923
    %4058 = vmatpush.bf16.msra.mxu0 %v3921
    %4059 = vmatpush.bf16.msra.mxu0 %v3919
    %4060 = vmatmul.bf16.gmra.mxu0 %v3015
    %v4061 = vpop.f32.mrf.mxu0
    %v4062 = vadd.f32 %v4048, %v4061
    %v4063 = vpop.f32.mrf.mxu0
    %v4064 = vadd.f32 %v4050, %v4063
    %4065 = vdwg.mxu0
    %v4066 = vadd.f32 %v3696, %v4020
    %v4067 = vadd.f32 %v3738, %v4062
    %v4068 = vadd.f32 %v3698, %v4022
    %v4069 = vadd.f32 %v3740, %v4064
    %v4118 = vunpack.c.l.b16 %v448
    %v4119 = vunpack.c.h.b16 %v448
    %v4120 = vunpack.c.l.b16 %v449
    %v4121 = vunpack.c.h.b16 %v449
    %v4122 = vunpack.c.l.b16 %v450
    %v4123 = vunpack.c.h.b16 %v450
    %v4124 = vunpack.c.l.b16 %v451
    %v4125 = vunpack.c.h.b16 %v451
    %v4126 = vunpack.c.l.b16 %v452
    %v4127 = vunpack.c.h.b16 %v452
    %v4128 = vunpack.c.l.b16 %v453
    %v4129 = vunpack.c.h.b16 %v453
    %v4130 = vunpack.c.l.b16 %v454
    %v4131 = vunpack.c.h.b16 %v454
    %v4132 = vunpack.c.l.b16 %v455
    %v4133 = vunpack.c.h.b16 %v455
    %v4134 = vunpack.c.l.b16 %v456
    %v4135 = vunpack.c.h.b16 %v456
    %v4136 = vunpack.c.l.b16 %v457
    %v4137 = vunpack.c.h.b16 %v457
    %v4138 = vunpack.c.l.b16 %v458
    %v4139 = vunpack.c.h.b16 %v458
    %v4140 = vunpack.c.l.b16 %v459
    %v4141 = vunpack.c.h.b16 %v459
    %v4142 = vunpack.c.l.b16 %v460
    %v4143 = vunpack.c.h.b16 %v460
    %v4144 = vunpack.c.l.b16 %v461
    %v4145 = vunpack.c.h.b16 %v461
    %v4146 = vunpack.c.l.b16 %v462
    %v4147 = vunpack.c.h.b16 %v462
    %v4148 = vunpack.c.l.b16 %v463
    %v4149 = vunpack.c.h.b16 %v463
    %v4150 = vunpack.c.l.b16 %v464
    %v4151 = vunpack.c.h.b16 %v464
    %v4152 = vunpack.c.l.b16 %v465
    %v4153 = vunpack.c.h.b16 %v465
    %v4154 = vunpack.c.l.b16 %v466
    %v4155 = vunpack.c.h.b16 %v466
    %v4156 = vunpack.c.l.b16 %v467
    %v4157 = vunpack.c.h.b16 %v467
    %v4158 = vunpack.c.l.b16 %v468
    %v4159 = vunpack.c.h.b16 %v468
    %v4160 = vunpack.c.l.b16 %v469
    %v4161 = vunpack.c.h.b16 %v469
    %v4162 = vunpack.c.l.b16 %v470
    %v4163 = vunpack.c.h.b16 %v470
    %v4164 = vunpack.c.l.b16 %v471
    %v4165 = vunpack.c.h.b16 %v471
    %v4166 = vunpack.c.l.b16 %v472
    %v4167 = vunpack.c.h.b16 %v472
    %v4168 = vunpack.c.l.b16 %v473
    %v4169 = vunpack.c.h.b16 %v473
    %v4170 = vunpack.c.l.b16 %v474
    %v4171 = vunpack.c.h.b16 %v474
    %v4172 = vunpack.c.l.b16 %v475
    %v4173 = vunpack.c.h.b16 %v475
    %v4174 = vunpack.c.l.b16 %v476
    %v4175 = vunpack.c.h.b16 %v476
    %v4176 = vunpack.c.l.b16 %v477
    %v4177 = vunpack.c.h.b16 %v477
    %v4178 = vunpack.c.l.b16 %v478
    %v4179 = vunpack.c.h.b16 %v478
    %v4180 = vunpack.c.l.b16 %v479
    %v4181 = vunpack.c.h.b16 %v479
    %v4182 = vunpack.c.l.b16 %v480
    %v4183 = vunpack.c.h.b16 %v480
    %v4184 = vunpack.c.l.b16 %v481
    %v4185 = vunpack.c.h.b16 %v481
    %v4186 = vunpack.c.l.b16 %v482
    %v4187 = vunpack.c.h.b16 %v482
    %v4188 = vunpack.c.l.b16 %v483
    %v4189 = vunpack.c.h.b16 %v483
    %v4190 = vunpack.c.l.b16 %v484
    %v4191 = vunpack.c.h.b16 %v484
    %v4192 = vunpack.c.l.b16 %v485
    %v4193 = vunpack.c.h.b16 %v485
    %v4194 = vunpack.c.l.b16 %v486
    %v4195 = vunpack.c.h.b16 %v486
    %v4196 = vunpack.c.l.b16 %v487
    %v4197 = vunpack.c.h.b16 %v487
    %v4198 = vunpack.c.l.b16 %v488
    %v4199 = vunpack.c.h.b16 %v488
    %v4200 = vunpack.c.l.b16 %v489
    %v4201 = vunpack.c.h.b16 %v489
    %v4202 = vunpack.c.l.b16 %v490
    %v4203 = vunpack.c.h.b16 %v490
    %v4204 = vunpack.c.l.b16 %v491
    %v4205 = vunpack.c.h.b16 %v491
    %v4206 = vunpack.c.l.b16 %v492
    %v4207 = vunpack.c.h.b16 %v492
    %v4208 = vunpack.c.l.b16 %v493
    %v4209 = vunpack.c.h.b16 %v493
    %v4210 = vunpack.c.l.b16 %v494
    %v4211 = vunpack.c.h.b16 %v494
    %v4212 = vunpack.c.l.b16 %v495
    %v4213 = vunpack.c.h.b16 %v495
    %v4214 = vpack.c.b16 %v4120, %v4118
    %v4215 = vpack.c.b16 %v4121, %v4119
    %v4216 = vpack.c.b16 %v4124, %v4122
    %v4217 = vpack.c.b16 %v4125, %v4123
    %v4218 = vpack.c.b16 %v4128, %v4126
    %v4219 = vpack.c.b16 %v4129, %v4127
    %v4220 = vpack.c.b16 %v4132, %v4130
    %v4221 = vpack.c.b16 %v4133, %v4131
    %v4222 = vpack.c.b16 %v4136, %v4134
    %v4223 = vpack.c.b16 %v4137, %v4135
    %v4224 = vpack.c.b16 %v4140, %v4138
    %v4225 = vpack.c.b16 %v4141, %v4139
    %v4226 = vpack.c.b16 %v4144, %v4142
    %v4227 = vpack.c.b16 %v4145, %v4143
    %v4228 = vpack.c.b16 %v4148, %v4146
    %v4229 = vpack.c.b16 %v4149, %v4147
    %v4230 = vpack.c.b16 %v4152, %v4150
    %v4231 = vpack.c.b16 %v4153, %v4151
    %v4232 = vpack.c.b16 %v4156, %v4154
    %v4233 = vpack.c.b16 %v4157, %v4155
    %v4234 = vpack.c.b16 %v4160, %v4158
    %v4235 = vpack.c.b16 %v4161, %v4159
    %v4236 = vpack.c.b16 %v4164, %v4162
    %v4237 = vpack.c.b16 %v4165, %v4163
    %v4238 = vpack.c.b16 %v4168, %v4166
    %v4239 = vpack.c.b16 %v4169, %v4167
    %v4240 = vpack.c.b16 %v4172, %v4170
    %v4241 = vpack.c.b16 %v4173, %v4171
    %v4242 = vpack.c.b16 %v4176, %v4174
    %v4243 = vpack.c.b16 %v4177, %v4175
    %v4244 = vpack.c.b16 %v4180, %v4178
    %v4245 = vpack.c.b16 %v4181, %v4179
    %v4246 = vpack.c.b16 %v4184, %v4182
    %v4247 = vpack.c.b16 %v4185, %v4183
    %v4248 = vpack.c.b16 %v4188, %v4186
    %v4249 = vpack.c.b16 %v4189, %v4187
    %v4250 = vpack.c.b16 %v4192, %v4190
    %v4251 = vpack.c.b16 %v4193, %v4191
    %v4252 = vpack.c.b16 %v4196, %v4194
    %v4253 = vpack.c.b16 %v4197, %v4195
    %v4254 = vpack.c.b16 %v4200, %v4198
    %v4255 = vpack.c.b16 %v4201, %v4199
    %v4256 = vpack.c.b16 %v4204, %v4202
    %v4257 = vpack.c.b16 %v4205, %v4203
    %v4258 = vpack.c.b16 %v4208, %v4206
    %v4259 = vpack.c.b16 %v4209, %v4207
    %v4260 = vpack.c.b16 %v4212, %v4210
    %v4261 = vpack.c.b16 %v4213, %v4211
    %4310 = vmatpush.bf16.msra.mxu0 %v4228
    %4311 = vmatpush.bf16.msra.mxu0 %v4226
    %4312 = vmatpush.bf16.msra.mxu0 %v4224
    %4313 = vmatpush.bf16.msra.mxu0 %v4222
    %4314 = vmatpush.bf16.msra.mxu0 %v4220
    %4315 = vmatpush.bf16.msra.mxu0 %v4218
    %4316 = vmatpush.bf16.msra.mxu0 %v4216
    %4317 = vmatpush.bf16.msra.mxu0 %v4214
    %4318 = vmatmul.bf16.gmra.mxu0 %v3043
    %v4319 = vpop.f32.mrf.mxu0
    %v4320 = vadd.f32 0.0, %v4319
    %v4321 = vpop.f32.mrf.mxu0
    %v4322 = vadd.f32 0.0, %v4321
    %4323 = vdwg.mxu0
    %4324 = vmatpush.bf16.msra.mxu0 %v4244
    %4325 = vmatpush.bf16.msra.mxu0 %v4242
    %4326 = vmatpush.bf16.msra.mxu0 %v4240
    %4327 = vmatpush.bf16.msra.mxu0 %v4238
    %4328 = vmatpush.bf16.msra.mxu0 %v4236
    %4329 = vmatpush.bf16.msra.mxu0 %v4234
    %4330 = vmatpush.bf16.msra.mxu0 %v4232
    %4331 = vmatpush.bf16.msra.mxu0 %v4230
    %4332 = vmatmul.bf16.gmra.mxu0 %v3044
    %v4333 = vpop.f32.mrf.mxu0
    %v4334 = vadd.f32 %v4320, %v4333
    %v4335 = vpop.f32.mrf.mxu0
    %v4336 = vadd.f32 %v4322, %v4335
    %4337 = vdwg.mxu0
    %4338 = vmatpush.bf16.msra.mxu0 %v4260
    %4339 = vmatpush.bf16.msra.mxu0 %v4258
    %4340 = vmatpush.bf16.msra.mxu0 %v4256
    %4341 = vmatpush.bf16.msra.mxu0 %v4254
    %4342 = vmatpush.bf16.msra.mxu0 %v4252
    %4343 = vmatpush.bf16.msra.mxu0 %v4250
    %4344 = vmatpush.bf16.msra.mxu0 %v4248
    %4345 = vmatpush.bf16.msra.mxu0 %v4246
    %4346 = vmatmul.bf16.gmra.mxu0 %v3045
    %v4347 = vpop.f32.mrf.mxu0
    %v4348 = vadd.f32 %v4334, %v4347
    %v4349 = vpop.f32.mrf.mxu0
    %v4350 = vadd.f32 %v4336, %v4349
    %4351 = vdwg.mxu0
    %4352 = vmatpush.bf16.msra.mxu0 %v4229
    %4353 = vmatpush.bf16.msra.mxu0 %v4227
    %4354 = vmatpush.bf16.msra.mxu0 %v4225
    %4355 = vmatpush.bf16.msra.mxu0 %v4223
    %4356 = vmatpush.bf16.msra.mxu0 %v4221
    %4357 = vmatpush.bf16.msra.mxu0 %v4219
    %4358 = vmatpush.bf16.msra.mxu0 %v4217
    %4359 = vmatpush.bf16.msra.mxu0 %v4215
    %4360 = vmatmul.bf16.gmra.mxu0 %v3043
    %v4361 = vpop.f32.mrf.mxu0
    %v4362 = vadd.f32 0.0, %v4361
    %v4363 = vpop.f32.mrf.mxu0
    %v4364 = vadd.f32 0.0, %v4363
    %4365 = vdwg.mxu0
    %4366 = vmatpush.bf16.msra.mxu0 %v4245
    %4367 = vmatpush.bf16.msra.mxu0 %v4243
    %4368 = vmatpush.bf16.msra.mxu0 %v4241
    %4369 = vmatpush.bf16.msra.mxu0 %v4239
    %4370 = vmatpush.bf16.msra.mxu0 %v4237
    %4371 = vmatpush.bf16.msra.mxu0 %v4235
    %4372 = vmatpush.bf16.msra.mxu0 %v4233
    %4373 = vmatpush.bf16.msra.mxu0 %v4231
    %4374 = vmatmul.bf16.gmra.mxu0 %v3044
    %v4375 = vpop.f32.mrf.mxu0
    %v4376 = vadd.f32 %v4362, %v4375
    %v4377 = vpop.f32.mrf.mxu0
    %v4378 = vadd.f32 %v4364, %v4377
    %4379 = vdwg.mxu0
    %4380 = vmatpush.bf16.msra.mxu0 %v4261
    %4381 = vmatpush.bf16.msra.mxu0 %v4259
    %4382 = vmatpush.bf16.msra.mxu0 %v4257
    %4383 = vmatpush.bf16.msra.mxu0 %v4255
    %4384 = vmatpush.bf16.msra.mxu0 %v4253
    %4385 = vmatpush.bf16.msra.mxu0 %v4251
    %4386 = vmatpush.bf16.msra.mxu0 %v4249
    %4387 = vmatpush.bf16.msra.mxu0 %v4247
    %4388 = vmatmul.bf16.gmra.mxu0 %v3045
    %v4389 = vpop.f32.mrf.mxu0
    %v4390 = vadd.f32 %v4376, %v4389
    %v4391 = vpop.f32.mrf.mxu0
    %v4392 = vadd.f32 %v4378, %v4391
    %4393 = vdwg.mxu0
    %v4394 = vadd.f32 %v4066, %v4348
    %v4395 = vadd.f32 %v4067, %v4390
    %v4396 = vadd.f32 %v4068, %v4350
    %v4397 = vadd.f32 %v4069, %v4392
    %v4446 = vunpack.c.l.b16 %v544
    %v4447 = vunpack.c.h.b16 %v544
    %v4448 = vunpack.c.l.b16 %v545
    %v4449 = vunpack.c.h.b16 %v545
    %v4450 = vunpack.c.l.b16 %v546
    %v4451 = vunpack.c.h.b16 %v546
    %v4452 = vunpack.c.l.b16 %v547
    %v4453 = vunpack.c.h.b16 %v547
    %v4454 = vunpack.c.l.b16 %v548
    %v4455 = vunpack.c.h.b16 %v548
    %v4456 = vunpack.c.l.b16 %v549
    %v4457 = vunpack.c.h.b16 %v549
    %v4458 = vunpack.c.l.b16 %v550
    %v4459 = vunpack.c.h.b16 %v550
    %v4460 = vunpack.c.l.b16 %v551
    %v4461 = vunpack.c.h.b16 %v551
    %v4462 = vunpack.c.l.b16 %v552
    %v4463 = vunpack.c.h.b16 %v552
    %v4464 = vunpack.c.l.b16 %v553
    %v4465 = vunpack.c.h.b16 %v553
    %v4466 = vunpack.c.l.b16 %v554
    %v4467 = vunpack.c.h.b16 %v554
    %v4468 = vunpack.c.l.b16 %v555
    %v4469 = vunpack.c.h.b16 %v555
    %v4470 = vunpack.c.l.b16 %v556
    %v4471 = vunpack.c.h.b16 %v556
    %v4472 = vunpack.c.l.b16 %v557
    %v4473 = vunpack.c.h.b16 %v557
    %v4474 = vunpack.c.l.b16 %v558
    %v4475 = vunpack.c.h.b16 %v558
    %v4476 = vunpack.c.l.b16 %v559
    %v4477 = vunpack.c.h.b16 %v559
    %v4478 = vunpack.c.l.b16 %v560
    %v4479 = vunpack.c.h.b16 %v560
    %v4480 = vunpack.c.l.b16 %v561
    %v4481 = vunpack.c.h.b16 %v561
    %v4482 = vunpack.c.l.b16 %v562
    %v4483 = vunpack.c.h.b16 %v562
    %v4484 = vunpack.c.l.b16 %v563
    %v4485 = vunpack.c.h.b16 %v563
    %v4486 = vunpack.c.l.b16 %v564
    %v4487 = vunpack.c.h.b16 %v564
    %v4488 = vunpack.c.l.b16 %v565
    %v4489 = vunpack.c.h.b16 %v565
    %v4490 = vunpack.c.l.b16 %v566
    %v4491 = vunpack.c.h.b16 %v566
    %v4492 = vunpack.c.l.b16 %v567
    %v4493 = vunpack.c.h.b16 %v567
    %v4494 = vunpack.c.l.b16 %v568
    %v4495 = vunpack.c.h.b16 %v568
    %v4496 = vunpack.c.l.b16 %v569
    %v4497 = vunpack.c.h.b16 %v569
    %v4498 = vunpack.c.l.b16 %v570
    %v4499 = vunpack.c.h.b16 %v570
    %v4500 = vunpack.c.l.b16 %v571
    %v4501 = vunpack.c.h.b16 %v571
    %v4502 = vunpack.c.l.b16 %v572
    %v4503 = vunpack.c.h.b16 %v572
    %v4504 = vunpack.c.l.b16 %v573
    %v4505 = vunpack.c.h.b16 %v573
    %v4506 = vunpack.c.l.b16 %v574
    %v4507 = vunpack.c.h.b16 %v574
    %v4508 = vunpack.c.l.b16 %v575
    %v4509 = vunpack.c.h.b16 %v575
    %v4510 = vunpack.c.l.b16 %v576
    %v4511 = vunpack.c.h.b16 %v576
    %v4512 = vunpack.c.l.b16 %v577
    %v4513 = vunpack.c.h.b16 %v577
    %v4514 = vunpack.c.l.b16 %v578
    %v4515 = vunpack.c.h.b16 %v578
    %v4516 = vunpack.c.l.b16 %v579
    %v4517 = vunpack.c.h.b16 %v579
    %v4518 = vunpack.c.l.b16 %v580
    %v4519 = vunpack.c.h.b16 %v580
    %v4520 = vunpack.c.l.b16 %v581
    %v4521 = vunpack.c.h.b16 %v581
    %v4522 = vunpack.c.l.b16 %v582
    %v4523 = vunpack.c.h.b16 %v582
    %v4524 = vunpack.c.l.b16 %v583
    %v4525 = vunpack.c.h.b16 %v583
    %v4526 = vunpack.c.l.b16 %v584
    %v4527 = vunpack.c.h.b16 %v584
    %v4528 = vunpack.c.l.b16 %v585
    %v4529 = vunpack.c.h.b16 %v585
    %v4530 = vunpack.c.l.b16 %v586
    %v4531 = vunpack.c.h.b16 %v586
    %v4532 = vunpack.c.l.b16 %v587
    %v4533 = vunpack.c.h.b16 %v587
    %v4534 = vunpack.c.l.b16 %v588
    %v4535 = vunpack.c.h.b16 %v588
    %v4536 = vunpack.c.l.b16 %v589
    %v4537 = vunpack.c.h.b16 %v589
    %v4538 = vunpack.c.l.b16 %v590
    %v4539 = vunpack.c.h.b16 %v590
    %v4540 = vunpack.c.l.b16 %v591
    %v4541 = vunpack.c.h.b16 %v591
    %v4542 = vpack.c.b16 %v4448, %v4446
    %v4543 = vpack.c.b16 %v4449, %v4447
    %v4544 = vpack.c.b16 %v4452, %v4450
    %v4545 = vpack.c.b16 %v4453, %v4451
    %v4546 = vpack.c.b16 %v4456, %v4454
    %v4547 = vpack.c.b16 %v4457, %v4455
    %v4548 = vpack.c.b16 %v4460, %v4458
    %v4549 = vpack.c.b16 %v4461, %v4459
    %v4550 = vpack.c.b16 %v4464, %v4462
    %v4551 = vpack.c.b16 %v4465, %v4463
    %v4552 = vpack.c.b16 %v4468, %v4466
    %v4553 = vpack.c.b16 %v4469, %v4467
    %v4554 = vpack.c.b16 %v4472, %v4470
    %v4555 = vpack.c.b16 %v4473, %v4471
    %v4556 = vpack.c.b16 %v4476, %v4474
    %v4557 = vpack.c.b16 %v4477, %v4475
    %v4558 = vpack.c.b16 %v4480, %v4478
    %v4559 = vpack.c.b16 %v4481, %v4479
    %v4560 = vpack.c.b16 %v4484, %v4482
    %v4561 = vpack.c.b16 %v4485, %v4483
    %v4562 = vpack.c.b16 %v4488, %v4486
    %v4563 = vpack.c.b16 %v4489, %v4487
    %v4564 = vpack.c.b16 %v4492, %v4490
    %v4565 = vpack.c.b16 %v4493, %v4491
    %v4566 = vpack.c.b16 %v4496, %v4494
    %v4567 = vpack.c.b16 %v4497, %v4495
    %v4568 = vpack.c.b16 %v4500, %v4498
    %v4569 = vpack.c.b16 %v4501, %v4499
    %v4570 = vpack.c.b16 %v4504, %v4502
    %v4571 = vpack.c.b16 %v4505, %v4503
    %v4572 = vpack.c.b16 %v4508, %v4506
    %v4573 = vpack.c.b16 %v4509, %v4507
    %v4574 = vpack.c.b16 %v4512, %v4510
    %v4575 = vpack.c.b16 %v4513, %v4511
    %v4576 = vpack.c.b16 %v4516, %v4514
    %v4577 = vpack.c.b16 %v4517, %v4515
    %v4578 = vpack.c.b16 %v4520, %v4518
    %v4579 = vpack.c.b16 %v4521, %v4519
    %v4580 = vpack.c.b16 %v4524, %v4522
    %v4581 = vpack.c.b16 %v4525, %v4523
    %v4582 = vpack.c.b16 %v4528, %v4526
    %v4583 = vpack.c.b16 %v4529, %v4527
    %v4584 = vpack.c.b16 %v4532, %v4530
    %v4585 = vpack.c.b16 %v4533, %v4531
    %v4586 = vpack.c.b16 %v4536, %v4534
    %v4587 = vpack.c.b16 %v4537, %v4535
    %v4588 = vpack.c.b16 %v4540, %v4538
    %v4589 = vpack.c.b16 %v4541, %v4539
    %4638 = vmatpush.bf16.msra.mxu0 %v4556
    %4639 = vmatpush.bf16.msra.mxu0 %v4554
    %4640 = vmatpush.bf16.msra.mxu0 %v4552
    %4641 = vmatpush.bf16.msra.mxu0 %v4550
    %4642 = vmatpush.bf16.msra.mxu0 %v4548
    %4643 = vmatpush.bf16.msra.mxu0 %v4546
    %4644 = vmatpush.bf16.msra.mxu0 %v4544
    %4645 = vmatpush.bf16.msra.mxu0 %v4542
    %4646 = vmatmul.bf16.gmra.mxu0 %v3067
    %v4647 = vpop.f32.mrf.mxu0
    %v4648 = vadd.f32 0.0, %v4647
    %v4649 = vpop.f32.mrf.mxu0
    %v4650 = vadd.f32 0.0, %v4649
    %4651 = vdwg.mxu0
    %4652 = vmatpush.bf16.msra.mxu0 %v4572
    %4653 = vmatpush.bf16.msra.mxu0 %v4570
    %4654 = vmatpush.bf16.msra.mxu0 %v4568
    %4655 = vmatpush.bf16.msra.mxu0 %v4566
    %4656 = vmatpush.bf16.msra.mxu0 %v4564
    %4657 = vmatpush.bf16.msra.mxu0 %v4562
    %4658 = vmatpush.bf16.msra.mxu0 %v4560
    %4659 = vmatpush.bf16.msra.mxu0 %v4558
    %4660 = vmatmul.bf16.gmra.mxu0 %v3068
    %v4661 = vpop.f32.mrf.mxu0
    %v4662 = vadd.f32 %v4648, %v4661
    %v4663 = vpop.f32.mrf.mxu0
    %v4664 = vadd.f32 %v4650, %v4663
    %4665 = vdwg.mxu0
    %4666 = vmatpush.bf16.msra.mxu0 %v4588
    %4667 = vmatpush.bf16.msra.mxu0 %v4586
    %4668 = vmatpush.bf16.msra.mxu0 %v4584
    %4669 = vmatpush.bf16.msra.mxu0 %v4582
    %4670 = vmatpush.bf16.msra.mxu0 %v4580
    %4671 = vmatpush.bf16.msra.mxu0 %v4578
    %4672 = vmatpush.bf16.msra.mxu0 %v4576
    %4673 = vmatpush.bf16.msra.mxu0 %v4574
    %4674 = vmatmul.bf16.gmra.mxu0 %v3069
    %v4675 = vpop.f32.mrf.mxu0
    %v4676 = vadd.f32 %v4662, %v4675
    %v4677 = vpop.f32.mrf.mxu0
    %v4678 = vadd.f32 %v4664, %v4677
    %4679 = vdwg.mxu0
    %4680 = vmatpush.bf16.msra.mxu0 %v4557
    %4681 = vmatpush.bf16.msra.mxu0 %v4555
    %4682 = vmatpush.bf16.msra.mxu0 %v4553
    %4683 = vmatpush.bf16.msra.mxu0 %v4551
    %4684 = vmatpush.bf16.msra.mxu0 %v4549
    %4685 = vmatpush.bf16.msra.mxu0 %v4547
    %4686 = vmatpush.bf16.msra.mxu0 %v4545
    %4687 = vmatpush.bf16.msra.mxu0 %v4543
    %4688 = vmatmul.bf16.gmra.mxu0 %v3067
    %v4689 = vpop.f32.mrf.mxu0
    %v4690 = vadd.f32 0.0, %v4689
    %v4691 = vpop.f32.mrf.mxu0
    %v4692 = vadd.f32 0.0, %v4691
    %4693 = vdwg.mxu0
    %4694 = vmatpush.bf16.msra.mxu0 %v4573
    %4695 = vmatpush.bf16.msra.mxu0 %v4571
    %4696 = vmatpush.bf16.msra.mxu0 %v4569
    %4697 = vmatpush.bf16.msra.mxu0 %v4567
    %4698 = vmatpush.bf16.msra.mxu0 %v4565
    %4699 = vmatpush.bf16.msra.mxu0 %v4563
    %4700 = vmatpush.bf16.msra.mxu0 %v4561
    %4701 = vmatpush.bf16.msra.mxu0 %v4559
    %4702 = vmatmul.bf16.gmra.mxu0 %v3068
    %v4703 = vpop.f32.mrf.mxu0
    %v4704 = vadd.f32 %v4690, %v4703
    %v4705 = vpop.f32.mrf.mxu0
    %v4706 = vadd.f32 %v4692, %v4705
    %4707 = vdwg.mxu0
    %4708 = vmatpush.bf16.msra.mxu0 %v4589
    %4709 = vmatpush.bf16.msra.mxu0 %v4587
    %4710 = vmatpush.bf16.msra.mxu0 %v4585
    %4711 = vmatpush.bf16.msra.mxu0 %v4583
    %4712 = vmatpush.bf16.msra.mxu0 %v4581
    %4713 = vmatpush.bf16.msra.mxu0 %v4579
    %4714 = vmatpush.bf16.msra.mxu0 %v4577
    %4715 = vmatpush.bf16.msra.mxu0 %v4575
    %4716 = vmatmul.bf16.gmra.mxu0 %v3069
    %v4717 = vpop.f32.mrf.mxu0
    %v4718 = vadd.f32 %v4704, %v4717
    %v4719 = vpop.f32.mrf.mxu0
    %v4720 = vadd.f32 %v4706, %v4719
    %4721 = vdwg.mxu0
    %v4722 = vadd.f32 %v4394, %v4676
    %v4723 = vadd.f32 %v4395, %v4718
    %v4724 = vadd.f32 %v4396, %v4678
    %v4725 = vadd.f32 %v4397, %v4720
    %v4774 = vunpack.c.l.b16 %v304
    %v4775 = vunpack.c.h.b16 %v304
    %v4776 = vunpack.c.l.b16 %v305
    %v4777 = vunpack.c.h.b16 %v305
    %v4778 = vunpack.c.l.b16 %v306
    %v4779 = vunpack.c.h.b16 %v306
    %v4780 = vunpack.c.l.b16 %v307
    %v4781 = vunpack.c.h.b16 %v307
    %v4782 = vunpack.c.l.b16 %v308
    %v4783 = vunpack.c.h.b16 %v308
    %v4784 = vunpack.c.l.b16 %v309
    %v4785 = vunpack.c.h.b16 %v309
    %v4786 = vunpack.c.l.b16 %v310
    %v4787 = vunpack.c.h.b16 %v310
    %v4788 = vunpack.c.l.b16 %v311
    %v4789 = vunpack.c.h.b16 %v311
    %v4790 = vunpack.c.l.b16 %v312
    %v4791 = vunpack.c.h.b16 %v312
    %v4792 = vunpack.c.l.b16 %v313
    %v4793 = vunpack.c.h.b16 %v313
    %v4794 = vunpack.c.l.b16 %v314
    %v4795 = vunpack.c.h.b16 %v314
    %v4796 = vunpack.c.l.b16 %v315
    %v4797 = vunpack.c.h.b16 %v315
    %v4798 = vunpack.c.l.b16 %v316
    %v4799 = vunpack.c.h.b16 %v316
    %v4800 = vunpack.c.l.b16 %v317
    %v4801 = vunpack.c.h.b16 %v317
    %v4802 = vunpack.c.l.b16 %v318
    %v4803 = vunpack.c.h.b16 %v318
    %v4804 = vunpack.c.l.b16 %v319
    %v4805 = vunpack.c.h.b16 %v319
    %v4806 = vunpack.c.l.b16 %v320
    %v4807 = vunpack.c.h.b16 %v320
    %v4808 = vunpack.c.l.b16 %v321
    %v4809 = vunpack.c.h.b16 %v321
    %v4810 = vunpack.c.l.b16 %v322
    %v4811 = vunpack.c.h.b16 %v322
    %v4812 = vunpack.c.l.b16 %v323
    %v4813 = vunpack.c.h.b16 %v323
    %v4814 = vunpack.c.l.b16 %v324
    %v4815 = vunpack.c.h.b16 %v324
    %v4816 = vunpack.c.l.b16 %v325
    %v4817 = vunpack.c.h.b16 %v325
    %v4818 = vunpack.c.l.b16 %v326
    %v4819 = vunpack.c.h.b16 %v326
    %v4820 = vunpack.c.l.b16 %v327
    %v4821 = vunpack.c.h.b16 %v327
    %v4822 = vunpack.c.l.b16 %v328
    %v4823 = vunpack.c.h.b16 %v328
    %v4824 = vunpack.c.l.b16 %v329
    %v4825 = vunpack.c.h.b16 %v329
    %v4826 = vunpack.c.l.b16 %v330
    %v4827 = vunpack.c.h.b16 %v330
    %v4828 = vunpack.c.l.b16 %v331
    %v4829 = vunpack.c.h.b16 %v331
    %v4830 = vunpack.c.l.b16 %v332
    %v4831 = vunpack.c.h.b16 %v332
    %v4832 = vunpack.c.l.b16 %v333
    %v4833 = vunpack.c.h.b16 %v333
    %v4834 = vunpack.c.l.b16 %v334
    %v4835 = vunpack.c.h.b16 %v334
    %v4836 = vunpack.c.l.b16 %v335
    %v4837 = vunpack.c.h.b16 %v335
    %v4838 = vunpack.c.l.b16 %v336
    %v4839 = vunpack.c.h.b16 %v336
    %v4840 = vunpack.c.l.b16 %v337
    %v4841 = vunpack.c.h.b16 %v337
    %v4842 = vunpack.c.l.b16 %v338
    %v4843 = vunpack.c.h.b16 %v338
    %v4844 = vunpack.c.l.b16 %v339
    %v4845 = vunpack.c.h.b16 %v339
    %v4846 = vunpack.c.l.b16 %v340
    %v4847 = vunpack.c.h.b16 %v340
    %v4848 = vunpack.c.l.b16 %v341
    %v4849 = vunpack.c.h.b16 %v341
    %v4850 = vunpack.c.l.b16 %v342
    %v4851 = vunpack.c.h.b16 %v342
    %v4852 = vunpack.c.l.b16 %v343
    %v4853 = vunpack.c.h.b16 %v343
    %v4854 = vunpack.c.l.b16 %v344
    %v4855 = vunpack.c.h.b16 %v344
    %v4856 = vunpack.c.l.b16 %v345
    %v4857 = vunpack.c.h.b16 %v345
    %v4858 = vunpack.c.l.b16 %v346
    %v4859 = vunpack.c.h.b16 %v346
    %v4860 = vunpack.c.l.b16 %v347
    %v4861 = vunpack.c.h.b16 %v347
    %v4862 = vunpack.c.l.b16 %v348
    %v4863 = vunpack.c.h.b16 %v348
    %v4864 = vunpack.c.l.b16 %v349
    %v4865 = vunpack.c.h.b16 %v349
    %v4866 = vunpack.c.l.b16 %v350
    %v4867 = vunpack.c.h.b16 %v350
    %v4868 = vunpack.c.l.b16 %v351
    %v4869 = vunpack.c.h.b16 %v351
    %v4870 = vpack.c.b16 %v4776, %v4774
    %v4871 = vpack.c.b16 %v4777, %v4775
    %v4872 = vpack.c.b16 %v4780, %v4778
    %v4873 = vpack.c.b16 %v4781, %v4779
    %v4874 = vpack.c.b16 %v4784, %v4782
    %v4875 = vpack.c.b16 %v4785, %v4783
    %v4876 = vpack.c.b16 %v4788, %v4786
    %v4877 = vpack.c.b16 %v4789, %v4787
    %v4878 = vpack.c.b16 %v4792, %v4790
    %v4879 = vpack.c.b16 %v4793, %v4791
    %v4880 = vpack.c.b16 %v4796, %v4794
    %v4881 = vpack.c.b16 %v4797, %v4795
    %v4882 = vpack.c.b16 %v4800, %v4798
    %v4883 = vpack.c.b16 %v4801, %v4799
    %v4884 = vpack.c.b16 %v4804, %v4802
    %v4885 = vpack.c.b16 %v4805, %v4803
    %v4886 = vpack.c.b16 %v4808, %v4806
    %v4887 = vpack.c.b16 %v4809, %v4807
    %v4888 = vpack.c.b16 %v4812, %v4810
    %v4889 = vpack.c.b16 %v4813, %v4811
    %v4890 = vpack.c.b16 %v4816, %v4814
    %v4891 = vpack.c.b16 %v4817, %v4815
    %v4892 = vpack.c.b16 %v4820, %v4818
    %v4893 = vpack.c.b16 %v4821, %v4819
    %v4894 = vpack.c.b16 %v4824, %v4822
    %v4895 = vpack.c.b16 %v4825, %v4823
    %v4896 = vpack.c.b16 %v4828, %v4826
    %v4897 = vpack.c.b16 %v4829, %v4827
    %v4898 = vpack.c.b16 %v4832, %v4830
    %v4899 = vpack.c.b16 %v4833, %v4831
    %v4900 = vpack.c.b16 %v4836, %v4834
    %v4901 = vpack.c.b16 %v4837, %v4835
    %v4902 = vpack.c.b16 %v4840, %v4838
    %v4903 = vpack.c.b16 %v4841, %v4839
    %v4904 = vpack.c.b16 %v4844, %v4842
    %v4905 = vpack.c.b16 %v4845, %v4843
    %v4906 = vpack.c.b16 %v4848, %v4846
    %v4907 = vpack.c.b16 %v4849, %v4847
    %v4908 = vpack.c.b16 %v4852, %v4850
    %v4909 = vpack.c.b16 %v4853, %v4851
    %v4910 = vpack.c.b16 %v4856, %v4854
    %v4911 = vpack.c.b16 %v4857, %v4855
    %v4912 = vpack.c.b16 %v4860, %v4858
    %v4913 = vpack.c.b16 %v4861, %v4859
    %v4914 = vpack.c.b16 %v4864, %v4862
    %v4915 = vpack.c.b16 %v4865, %v4863
    %v4916 = vpack.c.b16 %v4868, %v4866
    %v4917 = vpack.c.b16 %v4869, %v4867
    %4966 = vmatpush.bf16.msra.mxu0 %v4884
    %4967 = vmatpush.bf16.msra.mxu0 %v4882
    %4968 = vmatpush.bf16.msra.mxu0 %v4880
    %4969 = vmatpush.bf16.msra.mxu0 %v4878
    %4970 = vmatpush.bf16.msra.mxu0 %v4876
    %4971 = vmatpush.bf16.msra.mxu0 %v4874
    %4972 = vmatpush.bf16.msra.mxu0 %v4872
    %4973 = vmatpush.bf16.msra.mxu0 %v4870
    %4974 = vmatmul.bf16.gmra.mxu0 %v2982
    %v4975 = vpop.f32.mrf.mxu0
    %v4976 = vadd.f32 0.0, %v4975
    %v4977 = vpop.f32.mrf.mxu0
    %v4978 = vadd.f32 0.0, %v4977
    %4979 = vdwg.mxu0
    %4980 = vmatpush.bf16.msra.mxu0 %v4900
    %4981 = vmatpush.bf16.msra.mxu0 %v4898
    %4982 = vmatpush.bf16.msra.mxu0 %v4896
    %4983 = vmatpush.bf16.msra.mxu0 %v4894
    %4984 = vmatpush.bf16.msra.mxu0 %v4892
    %4985 = vmatpush.bf16.msra.mxu0 %v4890
    %4986 = vmatpush.bf16.msra.mxu0 %v4888
    %4987 = vmatpush.bf16.msra.mxu0 %v4886
    %4988 = vmatmul.bf16.gmra.mxu0 %v2983
    %v4989 = vpop.f32.mrf.mxu0
    %v4990 = vadd.f32 %v4976, %v4989
    %v4991 = vpop.f32.mrf.mxu0
    %v4992 = vadd.f32 %v4978, %v4991
    %4993 = vdwg.mxu0
    %4994 = vmatpush.bf16.msra.mxu0 %v4916
    %4995 = vmatpush.bf16.msra.mxu0 %v4914
    %4996 = vmatpush.bf16.msra.mxu0 %v4912
    %4997 = vmatpush.bf16.msra.mxu0 %v4910
    %4998 = vmatpush.bf16.msra.mxu0 %v4908
    %4999 = vmatpush.bf16.msra.mxu0 %v4906
    %5000 = vmatpush.bf16.msra.mxu0 %v4904
    %5001 = vmatpush.bf16.msra.mxu0 %v4902
    %5002 = vmatmul.bf16.gmra.mxu0 %v2984
    %v5003 = vpop.f32.mrf.mxu0
    %v5004 = vadd.f32 %v4990, %v5003
    %v5005 = vpop.f32.mrf.mxu0
    %v5006 = vadd.f32 %v4992, %v5005
    %5007 = vdwg.mxu0
    %5008 = vmatpush.bf16.msra.mxu0 %v4885
    %5009 = vmatpush.bf16.msra.mxu0 %v4883
    %5010 = vmatpush.bf16.msra.mxu0 %v4881
    %5011 = vmatpush.bf16.msra.mxu0 %v4879
    %5012 = vmatpush.bf16.msra.mxu0 %v4877
    %5013 = vmatpush.bf16.msra.mxu0 %v4875
    %5014 = vmatpush.bf16.msra.mxu0 %v4873
    %5015 = vmatpush.bf16.msra.mxu0 %v4871
    %5016 = vmatmul.bf16.gmra.mxu0 %v2982
    %v5017 = vpop.f32.mrf.mxu0
    %v5018 = vadd.f32 0.0, %v5017
    %v5019 = vpop.f32.mrf.mxu0
    %v5020 = vadd.f32 0.0, %v5019
    %5021 = vdwg.mxu0
    %5022 = vmatpush.bf16.msra.mxu0 %v4901
    %5023 = vmatpush.bf16.msra.mxu0 %v4899
    %5024 = vmatpush.bf16.msra.mxu0 %v4897
    %5025 = vmatpush.bf16.msra.mxu0 %v4895
    %5026 = vmatpush.bf16.msra.mxu0 %v4893
    %5027 = vmatpush.bf16.msra.mxu0 %v4891
    %5028 = vmatpush.bf16.msra.mxu0 %v4889
    %5029 = vmatpush.bf16.msra.mxu0 %v4887
    %5030 = vmatmul.bf16.gmra.mxu0 %v2983
    %v5031 = vpop.f32.mrf.mxu0
    %v5032 = vadd.f32 %v5018, %v5031
    %v5033 = vpop.f32.mrf.mxu0
    %v5034 = vadd.f32 %v5020, %v5033
    %5035 = vdwg.mxu0
    %5036 = vmatpush.bf16.msra.mxu0 %v4917
    %5037 = vmatpush.bf16.msra.mxu0 %v4915
    %5038 = vmatpush.bf16.msra.mxu0 %v4913
    %5039 = vmatpush.bf16.msra.mxu0 %v4911
    %5040 = vmatpush.bf16.msra.mxu0 %v4909
    %5041 = vmatpush.bf16.msra.mxu0 %v4907
    %5042 = vmatpush.bf16.msra.mxu0 %v4905
    %5043 = vmatpush.bf16.msra.mxu0 %v4903
    %5044 = vmatmul.bf16.gmra.mxu0 %v2984
    %v5045 = vpop.f32.mrf.mxu0
    %v5046 = vadd.f32 %v5032, %v5045
    %v5047 = vpop.f32.mrf.mxu0
    %v5048 = vadd.f32 %v5034, %v5047
    %5049 = vdwg.mxu0
    %v5098 = vunpack.c.l.b16 %v208
    %v5099 = vunpack.c.h.b16 %v208
    %v5100 = vunpack.c.l.b16 %v209
    %v5101 = vunpack.c.h.b16 %v209
    %v5102 = vunpack.c.l.b16 %v210
    %v5103 = vunpack.c.h.b16 %v210
    %v5104 = vunpack.c.l.b16 %v211
    %v5105 = vunpack.c.h.b16 %v211
    %v5106 = vunpack.c.l.b16 %v212
    %v5107 = vunpack.c.h.b16 %v212
    %v5108 = vunpack.c.l.b16 %v213
    %v5109 = vunpack.c.h.b16 %v213
    %v5110 = vunpack.c.l.b16 %v214
    %v5111 = vunpack.c.h.b16 %v214
    %v5112 = vunpack.c.l.b16 %v215
    %v5113 = vunpack.c.h.b16 %v215
    %v5114 = vunpack.c.l.b16 %v216
    %v5115 = vunpack.c.h.b16 %v216
    %v5116 = vunpack.c.l.b16 %v217
    %v5117 = vunpack.c.h.b16 %v217
    %v5118 = vunpack.c.l.b16 %v218
    %v5119 = vunpack.c.h.b16 %v218
    %v5120 = vunpack.c.l.b16 %v219
    %v5121 = vunpack.c.h.b16 %v219
    %v5122 = vunpack.c.l.b16 %v220
    %v5123 = vunpack.c.h.b16 %v220
    %v5124 = vunpack.c.l.b16 %v221
    %v5125 = vunpack.c.h.b16 %v221
    %v5126 = vunpack.c.l.b16 %v222
    %v5127 = vunpack.c.h.b16 %v222
    %v5128 = vunpack.c.l.b16 %v223
    %v5129 = vunpack.c.h.b16 %v223
    %v5130 = vunpack.c.l.b16 %v224
    %v5131 = vunpack.c.h.b16 %v224
    %v5132 = vunpack.c.l.b16 %v225
    %v5133 = vunpack.c.h.b16 %v225
    %v5134 = vunpack.c.l.b16 %v226
    %v5135 = vunpack.c.h.b16 %v226
    %v5136 = vunpack.c.l.b16 %v227
    %v5137 = vunpack.c.h.b16 %v227
    %v5138 = vunpack.c.l.b16 %v228
    %v5139 = vunpack.c.h.b16 %v228
    %v5140 = vunpack.c.l.b16 %v229
    %v5141 = vunpack.c.h.b16 %v229
    %v5142 = vunpack.c.l.b16 %v230
    %v5143 = vunpack.c.h.b16 %v230
    %v5144 = vunpack.c.l.b16 %v231
    %v5145 = vunpack.c.h.b16 %v231
    %v5146 = vunpack.c.l.b16 %v232
    %v5147 = vunpack.c.h.b16 %v232
    %v5148 = vunpack.c.l.b16 %v233
    %v5149 = vunpack.c.h.b16 %v233
    %v5150 = vunpack.c.l.b16 %v234
    %v5151 = vunpack.c.h.b16 %v234
    %v5152 = vunpack.c.l.b16 %v235
    %v5153 = vunpack.c.h.b16 %v235
    %v5154 = vunpack.c.l.b16 %v236
    %v5155 = vunpack.c.h.b16 %v236
    %v5156 = vunpack.c.l.b16 %v237
    %v5157 = vunpack.c.h.b16 %v237
    %v5158 = vunpack.c.l.b16 %v238
    %v5159 = vunpack.c.h.b16 %v238
    %v5160 = vunpack.c.l.b16 %v239
    %v5161 = vunpack.c.h.b16 %v239
    %v5162 = vunpack.c.l.b16 %v240
    %v5163 = vunpack.c.h.b16 %v240
    %v5164 = vunpack.c.l.b16 %v241
    %v5165 = vunpack.c.h.b16 %v241
    %v5166 = vunpack.c.l.b16 %v242
    %v5167 = vunpack.c.h.b16 %v242
    %v5168 = vunpack.c.l.b16 %v243
    %v5169 = vunpack.c.h.b16 %v243
    %v5170 = vunpack.c.l.b16 %v244
    %v5171 = vunpack.c.h.b16 %v244
    %v5172 = vunpack.c.l.b16 %v245
    %v5173 = vunpack.c.h.b16 %v245
    %v5174 = vunpack.c.l.b16 %v246
    %v5175 = vunpack.c.h.b16 %v246
    %v5176 = vunpack.c.l.b16 %v247
    %v5177 = vunpack.c.h.b16 %v247
    %v5178 = vunpack.c.l.b16 %v248
    %v5179 = vunpack.c.h.b16 %v248
    %v5180 = vunpack.c.l.b16 %v249
    %v5181 = vunpack.c.h.b16 %v249
    %v5182 = vunpack.c.l.b16 %v250
    %v5183 = vunpack.c.h.b16 %v250
    %v5184 = vunpack.c.l.b16 %v251
    %v5185 = vunpack.c.h.b16 %v251
    %v5186 = vunpack.c.l.b16 %v252
    %v5187 = vunpack.c.h.b16 %v252
    %v5188 = vunpack.c.l.b16 %v253
    %v5189 = vunpack.c.h.b16 %v253
    %v5190 = vunpack.c.l.b16 %v254
    %v5191 = vunpack.c.h.b16 %v254
    %v5192 = vunpack.c.l.b16 %v255
    %v5193 = vunpack.c.h.b16 %v255
    %v5194 = vpack.c.b16 %v5100, %v5098
    %v5195 = vpack.c.b16 %v5101, %v5099
    %v5196 = vpack.c.b16 %v5104, %v5102
    %v5197 = vpack.c.b16 %v5105, %v5103
    %v5198 = vpack.c.b16 %v5108, %v5106
    %v5199 = vpack.c.b16 %v5109, %v5107
    %v5200 = vpack.c.b16 %v5112, %v5110
    %v5201 = vpack.c.b16 %v5113, %v5111
    %v5202 = vpack.c.b16 %v5116, %v5114
    %v5203 = vpack.c.b16 %v5117, %v5115
    %v5204 = vpack.c.b16 %v5120, %v5118
    %v5205 = vpack.c.b16 %v5121, %v5119
    %v5206 = vpack.c.b16 %v5124, %v5122
    %v5207 = vpack.c.b16 %v5125, %v5123
    %v5208 = vpack.c.b16 %v5128, %v5126
    %v5209 = vpack.c.b16 %v5129, %v5127
    %v5210 = vpack.c.b16 %v5132, %v5130
    %v5211 = vpack.c.b16 %v5133, %v5131
    %v5212 = vpack.c.b16 %v5136, %v5134
    %v5213 = vpack.c.b16 %v5137, %v5135
    %v5214 = vpack.c.b16 %v5140, %v5138
    %v5215 = vpack.c.b16 %v5141, %v5139
    %v5216 = vpack.c.b16 %v5144, %v5142
    %v5217 = vpack.c.b16 %v5145, %v5143
    %v5218 = vpack.c.b16 %v5148, %v5146
    %v5219 = vpack.c.b16 %v5149, %v5147
    %v5220 = vpack.c.b16 %v5152, %v5150
    %v5221 = vpack.c.b16 %v5153, %v5151
    %v5222 = vpack.c.b16 %v5156, %v5154
    %v5223 = vpack.c.b16 %v5157, %v5155
    %v5224 = vpack.c.b16 %v5160, %v5158
    %v5225 = vpack.c.b16 %v5161, %v5159
    %v5226 = vpack.c.b16 %v5164, %v5162
    %v5227 = vpack.c.b16 %v5165, %v5163
    %v5228 = vpack.c.b16 %v5168, %v5166
    %v5229 = vpack.c.b16 %v5169, %v5167
    %v5230 = vpack.c.b16 %v5172, %v5170
    %v5231 = vpack.c.b16 %v5173, %v5171
    %v5232 = vpack.c.b16 %v5176, %v5174
    %v5233 = vpack.c.b16 %v5177, %v5175
    %v5234 = vpack.c.b16 %v5180, %v5178
    %v5235 = vpack.c.b16 %v5181, %v5179
    %v5236 = vpack.c.b16 %v5184, %v5182
    %v5237 = vpack.c.b16 %v5185, %v5183
    %v5238 = vpack.c.b16 %v5188, %v5186
    %v5239 = vpack.c.b16 %v5189, %v5187
    %v5240 = vpack.c.b16 %v5192, %v5190
    %v5241 = vpack.c.b16 %v5193, %v5191
    %5290 = vmatpush.bf16.msra.mxu0 %v5208
    %5291 = vmatpush.bf16.msra.mxu0 %v5206
    %5292 = vmatpush.bf16.msra.mxu0 %v5204
    %5293 = vmatpush.bf16.msra.mxu0 %v5202
    %5294 = vmatpush.bf16.msra.mxu0 %v5200
    %5295 = vmatpush.bf16.msra.mxu0 %v5198
    %5296 = vmatpush.bf16.msra.mxu0 %v5196
    %5297 = vmatpush.bf16.msra.mxu0 %v5194
    %5298 = vmatmul.bf16.gmra.mxu0 %v2979
    %v5299 = vpop.f32.mrf.mxu0
    %v5300 = vadd.f32 %v5004, %v5299
    %v5301 = vpop.f32.mrf.mxu0
    %v5302 = vadd.f32 %v5006, %v5301
    %5303 = vdwg.mxu0
    %5304 = vmatpush.bf16.msra.mxu0 %v5224
    %5305 = vmatpush.bf16.msra.mxu0 %v5222
    %5306 = vmatpush.bf16.msra.mxu0 %v5220
    %5307 = vmatpush.bf16.msra.mxu0 %v5218
    %5308 = vmatpush.bf16.msra.mxu0 %v5216
    %5309 = vmatpush.bf16.msra.mxu0 %v5214
    %5310 = vmatpush.bf16.msra.mxu0 %v5212
    %5311 = vmatpush.bf16.msra.mxu0 %v5210
    %5312 = vmatmul.bf16.gmra.mxu0 %v2980
    %v5313 = vpop.f32.mrf.mxu0
    %v5314 = vadd.f32 %v5300, %v5313
    %v5315 = vpop.f32.mrf.mxu0
    %v5316 = vadd.f32 %v5302, %v5315
    %5317 = vdwg.mxu0
    %5318 = vmatpush.bf16.msra.mxu0 %v5240
    %5319 = vmatpush.bf16.msra.mxu0 %v5238
    %5320 = vmatpush.bf16.msra.mxu0 %v5236
    %5321 = vmatpush.bf16.msra.mxu0 %v5234
    %5322 = vmatpush.bf16.msra.mxu0 %v5232
    %5323 = vmatpush.bf16.msra.mxu0 %v5230
    %5324 = vmatpush.bf16.msra.mxu0 %v5228
    %5325 = vmatpush.bf16.msra.mxu0 %v5226
    %5326 = vmatmul.bf16.gmra.mxu0 %v2981
    %v5327 = vpop.f32.mrf.mxu0
    %v5328 = vadd.f32 %v5314, %v5327
    %v5329 = vpop.f32.mrf.mxu0
    %v5330 = vadd.f32 %v5316, %v5329
    %5331 = vdwg.mxu0
    %5332 = vmatpush.bf16.msra.mxu0 %v5209
    %5333 = vmatpush.bf16.msra.mxu0 %v5207
    %5334 = vmatpush.bf16.msra.mxu0 %v5205
    %5335 = vmatpush.bf16.msra.mxu0 %v5203
    %5336 = vmatpush.bf16.msra.mxu0 %v5201
    %5337 = vmatpush.bf16.msra.mxu0 %v5199
    %5338 = vmatpush.bf16.msra.mxu0 %v5197
    %5339 = vmatpush.bf16.msra.mxu0 %v5195
    %5340 = vmatmul.bf16.gmra.mxu0 %v2979
    %v5341 = vpop.f32.mrf.mxu0
    %v5342 = vadd.f32 %v5046, %v5341
    %v5343 = vpop.f32.mrf.mxu0
    %v5344 = vadd.f32 %v5048, %v5343
    %5345 = vdwg.mxu0
    %5346 = vmatpush.bf16.msra.mxu0 %v5225
    %5347 = vmatpush.bf16.msra.mxu0 %v5223
    %5348 = vmatpush.bf16.msra.mxu0 %v5221
    %5349 = vmatpush.bf16.msra.mxu0 %v5219
    %5350 = vmatpush.bf16.msra.mxu0 %v5217
    %5351 = vmatpush.bf16.msra.mxu0 %v5215
    %5352 = vmatpush.bf16.msra.mxu0 %v5213
    %5353 = vmatpush.bf16.msra.mxu0 %v5211
    %5354 = vmatmul.bf16.gmra.mxu0 %v2980
    %v5355 = vpop.f32.mrf.mxu0
    %v5356 = vadd.f32 %v5342, %v5355
    %v5357 = vpop.f32.mrf.mxu0
    %v5358 = vadd.f32 %v5344, %v5357
    %5359 = vdwg.mxu0
    %5360 = vmatpush.bf16.msra.mxu0 %v5241
    %5361 = vmatpush.bf16.msra.mxu0 %v5239
    %5362 = vmatpush.bf16.msra.mxu0 %v5237
    %5363 = vmatpush.bf16.msra.mxu0 %v5235
    %5364 = vmatpush.bf16.msra.mxu0 %v5233
    %5365 = vmatpush.bf16.msra.mxu0 %v5231
    %5366 = vmatpush.bf16.msra.mxu0 %v5229
    %5367 = vmatpush.bf16.msra.mxu0 %v5227
    %5368 = vmatmul.bf16.gmra.mxu0 %v2981
    %v5369 = vpop.f32.mrf.mxu0
    %v5370 = vadd.f32 %v5356, %v5369
    %v5371 = vpop.f32.mrf.mxu0
    %v5372 = vadd.f32 %v5358, %v5371
    %5373 = vdwg.mxu0
    %v5422 = vunpack.c.l.b16 %v400
    %v5423 = vunpack.c.h.b16 %v400
    %v5424 = vunpack.c.l.b16 %v401
    %v5425 = vunpack.c.h.b16 %v401
    %v5426 = vunpack.c.l.b16 %v402
    %v5427 = vunpack.c.h.b16 %v402
    %v5428 = vunpack.c.l.b16 %v403
    %v5429 = vunpack.c.h.b16 %v403
    %v5430 = vunpack.c.l.b16 %v404
    %v5431 = vunpack.c.h.b16 %v404
    %v5432 = vunpack.c.l.b16 %v405
    %v5433 = vunpack.c.h.b16 %v405
    %v5434 = vunpack.c.l.b16 %v406
    %v5435 = vunpack.c.h.b16 %v406
    %v5436 = vunpack.c.l.b16 %v407
    %v5437 = vunpack.c.h.b16 %v407
    %v5438 = vunpack.c.l.b16 %v408
    %v5439 = vunpack.c.h.b16 %v408
    %v5440 = vunpack.c.l.b16 %v409
    %v5441 = vunpack.c.h.b16 %v409
    %v5442 = vunpack.c.l.b16 %v410
    %v5443 = vunpack.c.h.b16 %v410
    %v5444 = vunpack.c.l.b16 %v411
    %v5445 = vunpack.c.h.b16 %v411
    %v5446 = vunpack.c.l.b16 %v412
    %v5447 = vunpack.c.h.b16 %v412
    %v5448 = vunpack.c.l.b16 %v413
    %v5449 = vunpack.c.h.b16 %v413
    %v5450 = vunpack.c.l.b16 %v414
    %v5451 = vunpack.c.h.b16 %v414
    %v5452 = vunpack.c.l.b16 %v415
    %v5453 = vunpack.c.h.b16 %v415
    %v5454 = vunpack.c.l.b16 %v416
    %v5455 = vunpack.c.h.b16 %v416
    %v5456 = vunpack.c.l.b16 %v417
    %v5457 = vunpack.c.h.b16 %v417
    %v5458 = vunpack.c.l.b16 %v418
    %v5459 = vunpack.c.h.b16 %v418
    %v5460 = vunpack.c.l.b16 %v419
    %v5461 = vunpack.c.h.b16 %v419
    %v5462 = vunpack.c.l.b16 %v420
    %v5463 = vunpack.c.h.b16 %v420
    %v5464 = vunpack.c.l.b16 %v421
    %v5465 = vunpack.c.h.b16 %v421
    %v5466 = vunpack.c.l.b16 %v422
    %v5467 = vunpack.c.h.b16 %v422
    %v5468 = vunpack.c.l.b16 %v423
    %v5469 = vunpack.c.h.b16 %v423
    %v5470 = vunpack.c.l.b16 %v424
    %v5471 = vunpack.c.h.b16 %v424
    %v5472 = vunpack.c.l.b16 %v425
    %v5473 = vunpack.c.h.b16 %v425
    %v5474 = vunpack.c.l.b16 %v426
    %v5475 = vunpack.c.h.b16 %v426
    %v5476 = vunpack.c.l.b16 %v427
    %v5477 = vunpack.c.h.b16 %v427
    %v5478 = vunpack.c.l.b16 %v428
    %v5479 = vunpack.c.h.b16 %v428
    %v5480 = vunpack.c.l.b16 %v429
    %v5481 = vunpack.c.h.b16 %v429
    %v5482 = vunpack.c.l.b16 %v430
    %v5483 = vunpack.c.h.b16 %v430
    %v5484 = vunpack.c.l.b16 %v431
    %v5485 = vunpack.c.h.b16 %v431
    %v5486 = vunpack.c.l.b16 %v432
    %v5487 = vunpack.c.h.b16 %v432
    %v5488 = vunpack.c.l.b16 %v433
    %v5489 = vunpack.c.h.b16 %v433
    %v5490 = vunpack.c.l.b16 %v434
    %v5491 = vunpack.c.h.b16 %v434
    %v5492 = vunpack.c.l.b16 %v435
    %v5493 = vunpack.c.h.b16 %v435
    %v5494 = vunpack.c.l.b16 %v436
    %v5495 = vunpack.c.h.b16 %v436
    %v5496 = vunpack.c.l.b16 %v437
    %v5497 = vunpack.c.h.b16 %v437
    %v5498 = vunpack.c.l.b16 %v438
    %v5499 = vunpack.c.h.b16 %v438
    %v5500 = vunpack.c.l.b16 %v439
    %v5501 = vunpack.c.h.b16 %v439
    %v5502 = vunpack.c.l.b16 %v440
    %v5503 = vunpack.c.h.b16 %v440
    %v5504 = vunpack.c.l.b16 %v441
    %v5505 = vunpack.c.h.b16 %v441
    %v5506 = vunpack.c.l.b16 %v442
    %v5507 = vunpack.c.h.b16 %v442
    %v5508 = vunpack.c.l.b16 %v443
    %v5509 = vunpack.c.h.b16 %v443
    %v5510 = vunpack.c.l.b16 %v444
    %v5511 = vunpack.c.h.b16 %v444
    %v5512 = vunpack.c.l.b16 %v445
    %v5513 = vunpack.c.h.b16 %v445
    %v5514 = vunpack.c.l.b16 %v446
    %v5515 = vunpack.c.h.b16 %v446
    %v5516 = vunpack.c.l.b16 %v447
    %v5517 = vunpack.c.h.b16 %v447
    %v5518 = vpack.c.b16 %v5424, %v5422
    %v5519 = vpack.c.b16 %v5425, %v5423
    %v5520 = vpack.c.b16 %v5428, %v5426
    %v5521 = vpack.c.b16 %v5429, %v5427
    %v5522 = vpack.c.b16 %v5432, %v5430
    %v5523 = vpack.c.b16 %v5433, %v5431
    %v5524 = vpack.c.b16 %v5436, %v5434
    %v5525 = vpack.c.b16 %v5437, %v5435
    %v5526 = vpack.c.b16 %v5440, %v5438
    %v5527 = vpack.c.b16 %v5441, %v5439
    %v5528 = vpack.c.b16 %v5444, %v5442
    %v5529 = vpack.c.b16 %v5445, %v5443
    %v5530 = vpack.c.b16 %v5448, %v5446
    %v5531 = vpack.c.b16 %v5449, %v5447
    %v5532 = vpack.c.b16 %v5452, %v5450
    %v5533 = vpack.c.b16 %v5453, %v5451
    %v5534 = vpack.c.b16 %v5456, %v5454
    %v5535 = vpack.c.b16 %v5457, %v5455
    %v5536 = vpack.c.b16 %v5460, %v5458
    %v5537 = vpack.c.b16 %v5461, %v5459
    %v5538 = vpack.c.b16 %v5464, %v5462
    %v5539 = vpack.c.b16 %v5465, %v5463
    %v5540 = vpack.c.b16 %v5468, %v5466
    %v5541 = vpack.c.b16 %v5469, %v5467
    %v5542 = vpack.c.b16 %v5472, %v5470
    %v5543 = vpack.c.b16 %v5473, %v5471
    %v5544 = vpack.c.b16 %v5476, %v5474
    %v5545 = vpack.c.b16 %v5477, %v5475
    %v5546 = vpack.c.b16 %v5480, %v5478
    %v5547 = vpack.c.b16 %v5481, %v5479
    %v5548 = vpack.c.b16 %v5484, %v5482
    %v5549 = vpack.c.b16 %v5485, %v5483
    %v5550 = vpack.c.b16 %v5488, %v5486
    %v5551 = vpack.c.b16 %v5489, %v5487
    %v5552 = vpack.c.b16 %v5492, %v5490
    %v5553 = vpack.c.b16 %v5493, %v5491
    %v5554 = vpack.c.b16 %v5496, %v5494
    %v5555 = vpack.c.b16 %v5497, %v5495
    %v5556 = vpack.c.b16 %v5500, %v5498
    %v5557 = vpack.c.b16 %v5501, %v5499
    %v5558 = vpack.c.b16 %v5504, %v5502
    %v5559 = vpack.c.b16 %v5505, %v5503
    %v5560 = vpack.c.b16 %v5508, %v5506
    %v5561 = vpack.c.b16 %v5509, %v5507
    %v5562 = vpack.c.b16 %v5512, %v5510
    %v5563 = vpack.c.b16 %v5513, %v5511
    %v5564 = vpack.c.b16 %v5516, %v5514
    %v5565 = vpack.c.b16 %v5517, %v5515
    %5614 = vmatpush.bf16.msra.mxu0 %v5532
    %5615 = vmatpush.bf16.msra.mxu0 %v5530
    %5616 = vmatpush.bf16.msra.mxu0 %v5528
    %5617 = vmatpush.bf16.msra.mxu0 %v5526
    %5618 = vmatpush.bf16.msra.mxu0 %v5524
    %5619 = vmatpush.bf16.msra.mxu0 %v5522
    %5620 = vmatpush.bf16.msra.mxu0 %v5520
    %5621 = vmatpush.bf16.msra.mxu0 %v5518
    %5622 = vmatmul.bf16.gmra.mxu0 %v3013
    %v5623 = vpop.f32.mrf.mxu0
    %v5624 = vadd.f32 0.0, %v5623
    %v5625 = vpop.f32.mrf.mxu0
    %v5626 = vadd.f32 0.0, %v5625
    %5627 = vdwg.mxu0
    %5628 = vmatpush.bf16.msra.mxu0 %v5548
    %5629 = vmatpush.bf16.msra.mxu0 %v5546
    %5630 = vmatpush.bf16.msra.mxu0 %v5544
    %5631 = vmatpush.bf16.msra.mxu0 %v5542
    %5632 = vmatpush.bf16.msra.mxu0 %v5540
    %5633 = vmatpush.bf16.msra.mxu0 %v5538
    %5634 = vmatpush.bf16.msra.mxu0 %v5536
    %5635 = vmatpush.bf16.msra.mxu0 %v5534
    %5636 = vmatmul.bf16.gmra.mxu0 %v3014
    %v5637 = vpop.f32.mrf.mxu0
    %v5638 = vadd.f32 %v5624, %v5637
    %v5639 = vpop.f32.mrf.mxu0
    %v5640 = vadd.f32 %v5626, %v5639
    %5641 = vdwg.mxu0
    %5642 = vmatpush.bf16.msra.mxu0 %v5564
    %5643 = vmatpush.bf16.msra.mxu0 %v5562
    %5644 = vmatpush.bf16.msra.mxu0 %v5560
    %5645 = vmatpush.bf16.msra.mxu0 %v5558
    %5646 = vmatpush.bf16.msra.mxu0 %v5556
    %5647 = vmatpush.bf16.msra.mxu0 %v5554
    %5648 = vmatpush.bf16.msra.mxu0 %v5552
    %5649 = vmatpush.bf16.msra.mxu0 %v5550
    %5650 = vmatmul.bf16.gmra.mxu0 %v3015
    %v5651 = vpop.f32.mrf.mxu0
    %v5652 = vadd.f32 %v5638, %v5651
    %v5653 = vpop.f32.mrf.mxu0
    %v5654 = vadd.f32 %v5640, %v5653
    %5655 = vdwg.mxu0
    %5656 = vmatpush.bf16.msra.mxu0 %v5533
    %5657 = vmatpush.bf16.msra.mxu0 %v5531
    %5658 = vmatpush.bf16.msra.mxu0 %v5529
    %5659 = vmatpush.bf16.msra.mxu0 %v5527
    %5660 = vmatpush.bf16.msra.mxu0 %v5525
    %5661 = vmatpush.bf16.msra.mxu0 %v5523
    %5662 = vmatpush.bf16.msra.mxu0 %v5521
    %5663 = vmatpush.bf16.msra.mxu0 %v5519
    %5664 = vmatmul.bf16.gmra.mxu0 %v3013
    %v5665 = vpop.f32.mrf.mxu0
    %v5666 = vadd.f32 0.0, %v5665
    %v5667 = vpop.f32.mrf.mxu0
    %v5668 = vadd.f32 0.0, %v5667
    %5669 = vdwg.mxu0
    %5670 = vmatpush.bf16.msra.mxu0 %v5549
    %5671 = vmatpush.bf16.msra.mxu0 %v5547
    %5672 = vmatpush.bf16.msra.mxu0 %v5545
    %5673 = vmatpush.bf16.msra.mxu0 %v5543
    %5674 = vmatpush.bf16.msra.mxu0 %v5541
    %5675 = vmatpush.bf16.msra.mxu0 %v5539
    %5676 = vmatpush.bf16.msra.mxu0 %v5537
    %5677 = vmatpush.bf16.msra.mxu0 %v5535
    %5678 = vmatmul.bf16.gmra.mxu0 %v3014
    %v5679 = vpop.f32.mrf.mxu0
    %v5680 = vadd.f32 %v5666, %v5679
    %v5681 = vpop.f32.mrf.mxu0
    %v5682 = vadd.f32 %v5668, %v5681
    %5683 = vdwg.mxu0
    %5684 = vmatpush.bf16.msra.mxu0 %v5565
    %5685 = vmatpush.bf16.msra.mxu0 %v5563
    %5686 = vmatpush.bf16.msra.mxu0 %v5561
    %5687 = vmatpush.bf16.msra.mxu0 %v5559
    %5688 = vmatpush.bf16.msra.mxu0 %v5557
    %5689 = vmatpush.bf16.msra.mxu0 %v5555
    %5690 = vmatpush.bf16.msra.mxu0 %v5553
    %5691 = vmatpush.bf16.msra.mxu0 %v5551
    %5692 = vmatmul.bf16.gmra.mxu0 %v3015
    %v5693 = vpop.f32.mrf.mxu0
    %v5694 = vadd.f32 %v5680, %v5693
    %v5695 = vpop.f32.mrf.mxu0
    %v5696 = vadd.f32 %v5682, %v5695
    %5697 = vdwg.mxu0
    %v5698 = vadd.f32 %v5328, %v5652
    %v5699 = vadd.f32 %v5370, %v5694
    %v5700 = vadd.f32 %v5330, %v5654
    %v5701 = vadd.f32 %v5372, %v5696
    %v5750 = vunpack.c.l.b16 %v496
    %v5751 = vunpack.c.h.b16 %v496
    %v5752 = vunpack.c.l.b16 %v497
    %v5753 = vunpack.c.h.b16 %v497
    %v5754 = vunpack.c.l.b16 %v498
    %v5755 = vunpack.c.h.b16 %v498
    %v5756 = vunpack.c.l.b16 %v499
    %v5757 = vunpack.c.h.b16 %v499
    %v5758 = vunpack.c.l.b16 %v500
    %v5759 = vunpack.c.h.b16 %v500
    %v5760 = vunpack.c.l.b16 %v501
    %v5761 = vunpack.c.h.b16 %v501
    %v5762 = vunpack.c.l.b16 %v502
    %v5763 = vunpack.c.h.b16 %v502
    %v5764 = vunpack.c.l.b16 %v503
    %v5765 = vunpack.c.h.b16 %v503
    %v5766 = vunpack.c.l.b16 %v504
    %v5767 = vunpack.c.h.b16 %v504
    %v5768 = vunpack.c.l.b16 %v505
    %v5769 = vunpack.c.h.b16 %v505
    %v5770 = vunpack.c.l.b16 %v506
    %v5771 = vunpack.c.h.b16 %v506
    %v5772 = vunpack.c.l.b16 %v507
    %v5773 = vunpack.c.h.b16 %v507
    %v5774 = vunpack.c.l.b16 %v508
    %v5775 = vunpack.c.h.b16 %v508
    %v5776 = vunpack.c.l.b16 %v509
    %v5777 = vunpack.c.h.b16 %v509
    %v5778 = vunpack.c.l.b16 %v510
    %v5779 = vunpack.c.h.b16 %v510
    %v5780 = vunpack.c.l.b16 %v511
    %v5781 = vunpack.c.h.b16 %v511
    %v5782 = vunpack.c.l.b16 %v512
    %v5783 = vunpack.c.h.b16 %v512
    %v5784 = vunpack.c.l.b16 %v513
    %v5785 = vunpack.c.h.b16 %v513
    %v5786 = vunpack.c.l.b16 %v514
    %v5787 = vunpack.c.h.b16 %v514
    %v5788 = vunpack.c.l.b16 %v515
    %v5789 = vunpack.c.h.b16 %v515
    %v5790 = vunpack.c.l.b16 %v516
    %v5791 = vunpack.c.h.b16 %v516
    %v5792 = vunpack.c.l.b16 %v517
    %v5793 = vunpack.c.h.b16 %v517
    %v5794 = vunpack.c.l.b16 %v518
    %v5795 = vunpack.c.h.b16 %v518
    %v5796 = vunpack.c.l.b16 %v519
    %v5797 = vunpack.c.h.b16 %v519
    %v5798 = vunpack.c.l.b16 %v520
    %v5799 = vunpack.c.h.b16 %v520
    %v5800 = vunpack.c.l.b16 %v521
    %v5801 = vunpack.c.h.b16 %v521
    %v5802 = vunpack.c.l.b16 %v522
    %v5803 = vunpack.c.h.b16 %v522
    %v5804 = vunpack.c.l.b16 %v523
    %v5805 = vunpack.c.h.b16 %v523
    %v5806 = vunpack.c.l.b16 %v524
    %v5807 = vunpack.c.h.b16 %v524
    %v5808 = vunpack.c.l.b16 %v525
    %v5809 = vunpack.c.h.b16 %v525
    %v5810 = vunpack.c.l.b16 %v526
    %v5811 = vunpack.c.h.b16 %v526
    %v5812 = vunpack.c.l.b16 %v527
    %v5813 = vunpack.c.h.b16 %v527
    %v5814 = vunpack.c.l.b16 %v528
    %v5815 = vunpack.c.h.b16 %v528
    %v5816 = vunpack.c.l.b16 %v529
    %v5817 = vunpack.c.h.b16 %v529
    %v5818 = vunpack.c.l.b16 %v530
    %v5819 = vunpack.c.h.b16 %v530
    %v5820 = vunpack.c.l.b16 %v531
    %v5821 = vunpack.c.h.b16 %v531
    %v5822 = vunpack.c.l.b16 %v532
    %v5823 = vunpack.c.h.b16 %v532
    %v5824 = vunpack.c.l.b16 %v533
    %v5825 = vunpack.c.h.b16 %v533
    %v5826 = vunpack.c.l.b16 %v534
    %v5827 = vunpack.c.h.b16 %v534
    %v5828 = vunpack.c.l.b16 %v535
    %v5829 = vunpack.c.h.b16 %v535
    %v5830 = vunpack.c.l.b16 %v536
    %v5831 = vunpack.c.h.b16 %v536
    %v5832 = vunpack.c.l.b16 %v537
    %v5833 = vunpack.c.h.b16 %v537
    %v5834 = vunpack.c.l.b16 %v538
    %v5835 = vunpack.c.h.b16 %v538
    %v5836 = vunpack.c.l.b16 %v539
    %v5837 = vunpack.c.h.b16 %v539
    %v5838 = vunpack.c.l.b16 %v540
    %v5839 = vunpack.c.h.b16 %v540
    %v5840 = vunpack.c.l.b16 %v541
    %v5841 = vunpack.c.h.b16 %v541
    %v5842 = vunpack.c.l.b16 %v542
    %v5843 = vunpack.c.h.b16 %v542
    %v5844 = vunpack.c.l.b16 %v543
    %v5845 = vunpack.c.h.b16 %v543
    %v5846 = vpack.c.b16 %v5752, %v5750
    %v5847 = vpack.c.b16 %v5753, %v5751
    %v5848 = vpack.c.b16 %v5756, %v5754
    %v5849 = vpack.c.b16 %v5757, %v5755
    %v5850 = vpack.c.b16 %v5760, %v5758
    %v5851 = vpack.c.b16 %v5761, %v5759
    %v5852 = vpack.c.b16 %v5764, %v5762
    %v5853 = vpack.c.b16 %v5765, %v5763
    %v5854 = vpack.c.b16 %v5768, %v5766
    %v5855 = vpack.c.b16 %v5769, %v5767
    %v5856 = vpack.c.b16 %v5772, %v5770
    %v5857 = vpack.c.b16 %v5773, %v5771
    %v5858 = vpack.c.b16 %v5776, %v5774
    %v5859 = vpack.c.b16 %v5777, %v5775
    %v5860 = vpack.c.b16 %v5780, %v5778
    %v5861 = vpack.c.b16 %v5781, %v5779
    %v5862 = vpack.c.b16 %v5784, %v5782
    %v5863 = vpack.c.b16 %v5785, %v5783
    %v5864 = vpack.c.b16 %v5788, %v5786
    %v5865 = vpack.c.b16 %v5789, %v5787
    %v5866 = vpack.c.b16 %v5792, %v5790
    %v5867 = vpack.c.b16 %v5793, %v5791
    %v5868 = vpack.c.b16 %v5796, %v5794
    %v5869 = vpack.c.b16 %v5797, %v5795
    %v5870 = vpack.c.b16 %v5800, %v5798
    %v5871 = vpack.c.b16 %v5801, %v5799
    %v5872 = vpack.c.b16 %v5804, %v5802
    %v5873 = vpack.c.b16 %v5805, %v5803
    %v5874 = vpack.c.b16 %v5808, %v5806
    %v5875 = vpack.c.b16 %v5809, %v5807
    %v5876 = vpack.c.b16 %v5812, %v5810
    %v5877 = vpack.c.b16 %v5813, %v5811
    %v5878 = vpack.c.b16 %v5816, %v5814
    %v5879 = vpack.c.b16 %v5817, %v5815
    %v5880 = vpack.c.b16 %v5820, %v5818
    %v5881 = vpack.c.b16 %v5821, %v5819
    %v5882 = vpack.c.b16 %v5824, %v5822
    %v5883 = vpack.c.b16 %v5825, %v5823
    %v5884 = vpack.c.b16 %v5828, %v5826
    %v5885 = vpack.c.b16 %v5829, %v5827
    %v5886 = vpack.c.b16 %v5832, %v5830
    %v5887 = vpack.c.b16 %v5833, %v5831
    %v5888 = vpack.c.b16 %v5836, %v5834
    %v5889 = vpack.c.b16 %v5837, %v5835
    %v5890 = vpack.c.b16 %v5840, %v5838
    %v5891 = vpack.c.b16 %v5841, %v5839
    %v5892 = vpack.c.b16 %v5844, %v5842
    %v5893 = vpack.c.b16 %v5845, %v5843
    %5942 = vmatpush.bf16.msra.mxu0 %v5860
    %5943 = vmatpush.bf16.msra.mxu0 %v5858
    %5944 = vmatpush.bf16.msra.mxu0 %v5856
    %5945 = vmatpush.bf16.msra.mxu0 %v5854
    %5946 = vmatpush.bf16.msra.mxu0 %v5852
    %5947 = vmatpush.bf16.msra.mxu0 %v5850
    %5948 = vmatpush.bf16.msra.mxu0 %v5848
    %5949 = vmatpush.bf16.msra.mxu0 %v5846
    %5950 = vmatmul.bf16.gmra.mxu0 %v3043
    %v5951 = vpop.f32.mrf.mxu0
    %v5952 = vadd.f32 0.0, %v5951
    %v5953 = vpop.f32.mrf.mxu0
    %v5954 = vadd.f32 0.0, %v5953
    %5955 = vdwg.mxu0
    %5956 = vmatpush.bf16.msra.mxu0 %v5876
    %5957 = vmatpush.bf16.msra.mxu0 %v5874
    %5958 = vmatpush.bf16.msra.mxu0 %v5872
    %5959 = vmatpush.bf16.msra.mxu0 %v5870
    %5960 = vmatpush.bf16.msra.mxu0 %v5868
    %5961 = vmatpush.bf16.msra.mxu0 %v5866
    %5962 = vmatpush.bf16.msra.mxu0 %v5864
    %5963 = vmatpush.bf16.msra.mxu0 %v5862
    %5964 = vmatmul.bf16.gmra.mxu0 %v3044
    %v5965 = vpop.f32.mrf.mxu0
    %v5966 = vadd.f32 %v5952, %v5965
    %v5967 = vpop.f32.mrf.mxu0
    %v5968 = vadd.f32 %v5954, %v5967
    %5969 = vdwg.mxu0
    %5970 = vmatpush.bf16.msra.mxu0 %v5892
    %5971 = vmatpush.bf16.msra.mxu0 %v5890
    %5972 = vmatpush.bf16.msra.mxu0 %v5888
    %5973 = vmatpush.bf16.msra.mxu0 %v5886
    %5974 = vmatpush.bf16.msra.mxu0 %v5884
    %5975 = vmatpush.bf16.msra.mxu0 %v5882
    %5976 = vmatpush.bf16.msra.mxu0 %v5880
    %5977 = vmatpush.bf16.msra.mxu0 %v5878
    %5978 = vmatmul.bf16.gmra.mxu0 %v3045
    %v5979 = vpop.f32.mrf.mxu0
    %v5980 = vadd.f32 %v5966, %v5979
    %v5981 = vpop.f32.mrf.mxu0
    %v5982 = vadd.f32 %v5968, %v5981
    %5983 = vdwg.mxu0
    %5984 = vmatpush.bf16.msra.mxu0 %v5861
    %5985 = vmatpush.bf16.msra.mxu0 %v5859
    %5986 = vmatpush.bf16.msra.mxu0 %v5857
    %5987 = vmatpush.bf16.msra.mxu0 %v5855
    %5988 = vmatpush.bf16.msra.mxu0 %v5853
    %5989 = vmatpush.bf16.msra.mxu0 %v5851
    %5990 = vmatpush.bf16.msra.mxu0 %v5849
    %5991 = vmatpush.bf16.msra.mxu0 %v5847
    %5992 = vmatmul.bf16.gmra.mxu0 %v3043
    %v5993 = vpop.f32.mrf.mxu0
    %v5994 = vadd.f32 0.0, %v5993
    %v5995 = vpop.f32.mrf.mxu0
    %v5996 = vadd.f32 0.0, %v5995
    %5997 = vdwg.mxu0
    %5998 = vmatpush.bf16.msra.mxu0 %v5877
    %5999 = vmatpush.bf16.msra.mxu0 %v5875
    %6000 = vmatpush.bf16.msra.mxu0 %v5873
    %6001 = vmatpush.bf16.msra.mxu0 %v5871
    %6002 = vmatpush.bf16.msra.mxu0 %v5869
    %6003 = vmatpush.bf16.msra.mxu0 %v5867
    %6004 = vmatpush.bf16.msra.mxu0 %v5865
    %6005 = vmatpush.bf16.msra.mxu0 %v5863
    %6006 = vmatmul.bf16.gmra.mxu0 %v3044
    %v6007 = vpop.f32.mrf.mxu0
    %v6008 = vadd.f32 %v5994, %v6007
    %v6009 = vpop.f32.mrf.mxu0
    %v6010 = vadd.f32 %v5996, %v6009
    %6011 = vdwg.mxu0
    %6012 = vmatpush.bf16.msra.mxu0 %v5893
    %6013 = vmatpush.bf16.msra.mxu0 %v5891
    %6014 = vmatpush.bf16.msra.mxu0 %v5889
    %6015 = vmatpush.bf16.msra.mxu0 %v5887
    %6016 = vmatpush.bf16.msra.mxu0 %v5885
    %6017 = vmatpush.bf16.msra.mxu0 %v5883
    %6018 = vmatpush.bf16.msra.mxu0 %v5881
    %6019 = vmatpush.bf16.msra.mxu0 %v5879
    %6020 = vmatmul.bf16.gmra.mxu0 %v3045
    %v6021 = vpop.f32.mrf.mxu0
    %v6022 = vadd.f32 %v6008, %v6021
    %v6023 = vpop.f32.mrf.mxu0
    %v6024 = vadd.f32 %v6010, %v6023
    %6025 = vdwg.mxu0
    %v6026 = vadd.f32 %v5698, %v5980
    %v6027 = vadd.f32 %v5699, %v6022
    %v6028 = vadd.f32 %v5700, %v5982
    %v6029 = vadd.f32 %v5701, %v6024
    %v6078 = vunpack.c.l.b16 %v592
    %v6079 = vunpack.c.h.b16 %v592
    %v6080 = vunpack.c.l.b16 %v593
    %v6081 = vunpack.c.h.b16 %v593
    %v6082 = vunpack.c.l.b16 %v594
    %v6083 = vunpack.c.h.b16 %v594
    %v6084 = vunpack.c.l.b16 %v595
    %v6085 = vunpack.c.h.b16 %v595
    %v6086 = vunpack.c.l.b16 %v596
    %v6087 = vunpack.c.h.b16 %v596
    %v6088 = vunpack.c.l.b16 %v597
    %v6089 = vunpack.c.h.b16 %v597
    %v6090 = vunpack.c.l.b16 %v598
    %v6091 = vunpack.c.h.b16 %v598
    %v6092 = vunpack.c.l.b16 %v599
    %v6093 = vunpack.c.h.b16 %v599
    %v6094 = vunpack.c.l.b16 %v600
    %v6095 = vunpack.c.h.b16 %v600
    %v6096 = vunpack.c.l.b16 %v601
    %v6097 = vunpack.c.h.b16 %v601
    %v6098 = vunpack.c.l.b16 %v602
    %v6099 = vunpack.c.h.b16 %v602
    %v6100 = vunpack.c.l.b16 %v603
    %v6101 = vunpack.c.h.b16 %v603
    %v6102 = vunpack.c.l.b16 %v604
    %v6103 = vunpack.c.h.b16 %v604
    %v6104 = vunpack.c.l.b16 %v605
    %v6105 = vunpack.c.h.b16 %v605
    %v6106 = vunpack.c.l.b16 %v606
    %v6107 = vunpack.c.h.b16 %v606
    %v6108 = vunpack.c.l.b16 %v607
    %v6109 = vunpack.c.h.b16 %v607
    %v6110 = vunpack.c.l.b16 %v608
    %v6111 = vunpack.c.h.b16 %v608
    %v6112 = vunpack.c.l.b16 %v609
    %v6113 = vunpack.c.h.b16 %v609
    %v6114 = vunpack.c.l.b16 %v610
    %v6115 = vunpack.c.h.b16 %v610
    %v6116 = vunpack.c.l.b16 %v611
    %v6117 = vunpack.c.h.b16 %v611
    %v6118 = vunpack.c.l.b16 %v612
    %v6119 = vunpack.c.h.b16 %v612
    %v6120 = vunpack.c.l.b16 %v613
    %v6121 = vunpack.c.h.b16 %v613
    %v6122 = vunpack.c.l.b16 %v614
    %v6123 = vunpack.c.h.b16 %v614
    %v6124 = vunpack.c.l.b16 %v615
    %v6125 = vunpack.c.h.b16 %v615
    %v6126 = vunpack.c.l.b16 %v616
    %v6127 = vunpack.c.h.b16 %v616
    %v6128 = vunpack.c.l.b16 %v617
    %v6129 = vunpack.c.h.b16 %v617
    %v6130 = vunpack.c.l.b16 %v618
    %v6131 = vunpack.c.h.b16 %v618
    %v6132 = vunpack.c.l.b16 %v619
    %v6133 = vunpack.c.h.b16 %v619
    %v6134 = vunpack.c.l.b16 %v620
    %v6135 = vunpack.c.h.b16 %v620
    %v6136 = vunpack.c.l.b16 %v621
    %v6137 = vunpack.c.h.b16 %v621
    %v6138 = vunpack.c.l.b16 %v622
    %v6139 = vunpack.c.h.b16 %v622
    %v6140 = vunpack.c.l.b16 %v623
    %v6141 = vunpack.c.h.b16 %v623
    %v6142 = vunpack.c.l.b16 %v624
    %v6143 = vunpack.c.h.b16 %v624
    %v6144 = vunpack.c.l.b16 %v625
    %v6145 = vunpack.c.h.b16 %v625
    %v6146 = vunpack.c.l.b16 %v626
    %v6147 = vunpack.c.h.b16 %v626
    %v6148 = vunpack.c.l.b16 %v627
    %v6149 = vunpack.c.h.b16 %v627
    %v6150 = vunpack.c.l.b16 %v628
    %v6151 = vunpack.c.h.b16 %v628
    %v6152 = vunpack.c.l.b16 %v629
    %v6153 = vunpack.c.h.b16 %v629
    %v6154 = vunpack.c.l.b16 %v630
    %v6155 = vunpack.c.h.b16 %v630
    %v6156 = vunpack.c.l.b16 %v631
    %v6157 = vunpack.c.h.b16 %v631
    %v6158 = vunpack.c.l.b16 %v632
    %v6159 = vunpack.c.h.b16 %v632
    %v6160 = vunpack.c.l.b16 %v633
    %v6161 = vunpack.c.h.b16 %v633
    %v6162 = vunpack.c.l.b16 %v634
    %v6163 = vunpack.c.h.b16 %v634
    %v6164 = vunpack.c.l.b16 %v635
    %v6165 = vunpack.c.h.b16 %v635
    %v6166 = vunpack.c.l.b16 %v636
    %v6167 = vunpack.c.h.b16 %v636
    %v6168 = vunpack.c.l.b16 %v637
    %v6169 = vunpack.c.h.b16 %v637
    %v6170 = vunpack.c.l.b16 %v638
    %v6171 = vunpack.c.h.b16 %v638
    %v6172 = vunpack.c.l.b16 %v639
    %v6173 = vunpack.c.h.b16 %v639
    %v6174 = vpack.c.b16 %v6080, %v6078
    %v6175 = vpack.c.b16 %v6081, %v6079
    %v6176 = vpack.c.b16 %v6084, %v6082
    %v6177 = vpack.c.b16 %v6085, %v6083
    %v6178 = vpack.c.b16 %v6088, %v6086
    %v6179 = vpack.c.b16 %v6089, %v6087
    %v6180 = vpack.c.b16 %v6092, %v6090
    %v6181 = vpack.c.b16 %v6093, %v6091
    %v6182 = vpack.c.b16 %v6096, %v6094
    %v6183 = vpack.c.b16 %v6097, %v6095
    %v6184 = vpack.c.b16 %v6100, %v6098
    %v6185 = vpack.c.b16 %v6101, %v6099
    %v6186 = vpack.c.b16 %v6104, %v6102
    %v6187 = vpack.c.b16 %v6105, %v6103
    %v6188 = vpack.c.b16 %v6108, %v6106
    %v6189 = vpack.c.b16 %v6109, %v6107
    %v6190 = vpack.c.b16 %v6112, %v6110
    %v6191 = vpack.c.b16 %v6113, %v6111
    %v6192 = vpack.c.b16 %v6116, %v6114
    %v6193 = vpack.c.b16 %v6117, %v6115
    %v6194 = vpack.c.b16 %v6120, %v6118
    %v6195 = vpack.c.b16 %v6121, %v6119
    %v6196 = vpack.c.b16 %v6124, %v6122
    %v6197 = vpack.c.b16 %v6125, %v6123
    %v6198 = vpack.c.b16 %v6128, %v6126
    %v6199 = vpack.c.b16 %v6129, %v6127
    %v6200 = vpack.c.b16 %v6132, %v6130
    %v6201 = vpack.c.b16 %v6133, %v6131
    %v6202 = vpack.c.b16 %v6136, %v6134
    %v6203 = vpack.c.b16 %v6137, %v6135
    %v6204 = vpack.c.b16 %v6140, %v6138
    %v6205 = vpack.c.b16 %v6141, %v6139
    %v6206 = vpack.c.b16 %v6144, %v6142
    %v6207 = vpack.c.b16 %v6145, %v6143
    %v6208 = vpack.c.b16 %v6148, %v6146
    %v6209 = vpack.c.b16 %v6149, %v6147
    %v6210 = vpack.c.b16 %v6152, %v6150
    %v6211 = vpack.c.b16 %v6153, %v6151
    %v6212 = vpack.c.b16 %v6156, %v6154
    %v6213 = vpack.c.b16 %v6157, %v6155
    %v6214 = vpack.c.b16 %v6160, %v6158
    %v6215 = vpack.c.b16 %v6161, %v6159
    %v6216 = vpack.c.b16 %v6164, %v6162
    %v6217 = vpack.c.b16 %v6165, %v6163
    %v6218 = vpack.c.b16 %v6168, %v6166
    %v6219 = vpack.c.b16 %v6169, %v6167
    %v6220 = vpack.c.b16 %v6172, %v6170
    %v6221 = vpack.c.b16 %v6173, %v6171
    %6270 = vmatpush.bf16.msra.mxu0 %v6188
    %6271 = vmatpush.bf16.msra.mxu0 %v6186
    %6272 = vmatpush.bf16.msra.mxu0 %v6184
    %6273 = vmatpush.bf16.msra.mxu0 %v6182
    %6274 = vmatpush.bf16.msra.mxu0 %v6180
    %6275 = vmatpush.bf16.msra.mxu0 %v6178
    %6276 = vmatpush.bf16.msra.mxu0 %v6176
    %6277 = vmatpush.bf16.msra.mxu0 %v6174
    %6278 = vmatmul.bf16.gmra.mxu0 %v3067
    %v6279 = vpop.f32.mrf.mxu0
    %v6280 = vadd.f32 0.0, %v6279
    %v6281 = vpop.f32.mrf.mxu0
    %v6282 = vadd.f32 0.0, %v6281
    %6283 = vdwg.mxu0
    %6284 = vmatpush.bf16.msra.mxu0 %v6204
    %6285 = vmatpush.bf16.msra.mxu0 %v6202
    %6286 = vmatpush.bf16.msra.mxu0 %v6200
    %6287 = vmatpush.bf16.msra.mxu0 %v6198
    %6288 = vmatpush.bf16.msra.mxu0 %v6196
    %6289 = vmatpush.bf16.msra.mxu0 %v6194
    %6290 = vmatpush.bf16.msra.mxu0 %v6192
    %6291 = vmatpush.bf16.msra.mxu0 %v6190
    %6292 = vmatmul.bf16.gmra.mxu0 %v3068
    %v6293 = vpop.f32.mrf.mxu0
    %v6294 = vadd.f32 %v6280, %v6293
    %v6295 = vpop.f32.mrf.mxu0
    %v6296 = vadd.f32 %v6282, %v6295
    %6297 = vdwg.mxu0
    %6298 = vmatpush.bf16.msra.mxu0 %v6220
    %6299 = vmatpush.bf16.msra.mxu0 %v6218
    %6300 = vmatpush.bf16.msra.mxu0 %v6216
    %6301 = vmatpush.bf16.msra.mxu0 %v6214
    %6302 = vmatpush.bf16.msra.mxu0 %v6212
    %6303 = vmatpush.bf16.msra.mxu0 %v6210
    %6304 = vmatpush.bf16.msra.mxu0 %v6208
    %6305 = vmatpush.bf16.msra.mxu0 %v6206
    %6306 = vmatmul.bf16.gmra.mxu0 %v3069
    %v6307 = vpop.f32.mrf.mxu0
    %v6308 = vadd.f32 %v6294, %v6307
    %v6309 = vpop.f32.mrf.mxu0
    %v6310 = vadd.f32 %v6296, %v6309
    %6311 = vdwg.mxu0
    %6312 = vmatpush.bf16.msra.mxu0 %v6189
    %6313 = vmatpush.bf16.msra.mxu0 %v6187
    %6314 = vmatpush.bf16.msra.mxu0 %v6185
    %6315 = vmatpush.bf16.msra.mxu0 %v6183
    %6316 = vmatpush.bf16.msra.mxu0 %v6181
    %6317 = vmatpush.bf16.msra.mxu0 %v6179
    %6318 = vmatpush.bf16.msra.mxu0 %v6177
    %6319 = vmatpush.bf16.msra.mxu0 %v6175
    %6320 = vmatmul.bf16.gmra.mxu0 %v3067
    %v6321 = vpop.f32.mrf.mxu0
    %v6322 = vadd.f32 0.0, %v6321
    %v6323 = vpop.f32.mrf.mxu0
    %v6324 = vadd.f32 0.0, %v6323
    %6325 = vdwg.mxu0
    %6326 = vmatpush.bf16.msra.mxu0 %v6205
    %6327 = vmatpush.bf16.msra.mxu0 %v6203
    %6328 = vmatpush.bf16.msra.mxu0 %v6201
    %6329 = vmatpush.bf16.msra.mxu0 %v6199
    %6330 = vmatpush.bf16.msra.mxu0 %v6197
    %6331 = vmatpush.bf16.msra.mxu0 %v6195
    %6332 = vmatpush.bf16.msra.mxu0 %v6193
    %6333 = vmatpush.bf16.msra.mxu0 %v6191
    %6334 = vmatmul.bf16.gmra.mxu0 %v3068
    %v6335 = vpop.f32.mrf.mxu0
    %v6336 = vadd.f32 %v6322, %v6335
    %v6337 = vpop.f32.mrf.mxu0
    %v6338 = vadd.f32 %v6324, %v6337
    %6339 = vdwg.mxu0
    %6340 = vmatpush.bf16.msra.mxu0 %v6221
    %6341 = vmatpush.bf16.msra.mxu0 %v6219
    %6342 = vmatpush.bf16.msra.mxu0 %v6217
    %6343 = vmatpush.bf16.msra.mxu0 %v6215
    %6344 = vmatpush.bf16.msra.mxu0 %v6213
    %6345 = vmatpush.bf16.msra.mxu0 %v6211
    %6346 = vmatpush.bf16.msra.mxu0 %v6209
    %6347 = vmatpush.bf16.msra.mxu0 %v6207
    %6348 = vmatmul.bf16.gmra.mxu0 %v3069
    %v6349 = vpop.f32.mrf.mxu0
    %v6350 = vadd.f32 %v6336, %v6349
    %v6351 = vpop.f32.mrf.mxu0
    %v6352 = vadd.f32 %v6338, %v6351
    %6353 = vdwg.mxu0
    %v6354 = vadd.f32 %v6026, %v6308
    %v6355 = vadd.f32 %v6027, %v6350
    %v6356 = vadd.f32 %v6028, %v6310
    %v6357 = vadd.f32 %v6029, %v6352
    %v6358 = vmax.f32 %v4722, %v6354
    %v6359 = vmax.f32 %v4723, %v6355
    %v6360 = vmax.f32 %v4724, %v6356
    %v6361 = vmax.f32 %v4725, %v6357
    %6362 = vmatpush.bf16.msra.mxu0 %v3252
    %6363 = vmatpush.bf16.msra.mxu0 %v3250
    %6364 = vmatpush.bf16.msra.mxu0 %v3248
    %6365 = vmatpush.bf16.msra.mxu0 %v3246
    %6366 = vmatpush.bf16.msra.mxu0 %v3244
    %6367 = vmatpush.bf16.msra.mxu0 %v3242
    %6368 = vmatpush.bf16.msra.mxu0 %v3240
    %6369 = vmatpush.bf16.msra.mxu0 %v3238
    %6370 = vmatmul.bf16.gmra.mxu0 %v3013
    %v6371 = vpop.f32.mrf.mxu0
    %v6372 = vadd.f32 0.0, %v6371
    %v6373 = vpop.f32.mrf.mxu0
    %v6374 = vadd.f32 0.0, %v6373
    %6375 = vdwg.mxu0
    %6376 = vmatpush.bf16.msra.mxu0 %v3268
    %6377 = vmatpush.bf16.msra.mxu0 %v3266
    %6378 = vmatpush.bf16.msra.mxu0 %v3264
    %6379 = vmatpush.bf16.msra.mxu0 %v3262
    %6380 = vmatpush.bf16.msra.mxu0 %v3260
    %6381 = vmatpush.bf16.msra.mxu0 %v3258
    %6382 = vmatpush.bf16.msra.mxu0 %v3256
    %6383 = vmatpush.bf16.msra.mxu0 %v3254
    %6384 = vmatmul.bf16.gmra.mxu0 %v3014
    %v6385 = vpop.f32.mrf.mxu0
    %v6386 = vadd.f32 %v6372, %v6385
    %v6387 = vpop.f32.mrf.mxu0
    %v6388 = vadd.f32 %v6374, %v6387
    %6389 = vdwg.mxu0
    %6390 = vmatpush.bf16.msra.mxu0 %v3284
    %6391 = vmatpush.bf16.msra.mxu0 %v3282
    %6392 = vmatpush.bf16.msra.mxu0 %v3280
    %6393 = vmatpush.bf16.msra.mxu0 %v3278
    %6394 = vmatpush.bf16.msra.mxu0 %v3276
    %6395 = vmatpush.bf16.msra.mxu0 %v3274
    %6396 = vmatpush.bf16.msra.mxu0 %v3272
    %6397 = vmatpush.bf16.msra.mxu0 %v3270
    %6398 = vmatmul.bf16.gmra.mxu0 %v3015
    %v6399 = vpop.f32.mrf.mxu0
    %v6400 = vadd.f32 %v6386, %v6399
    %v6401 = vpop.f32.mrf.mxu0
    %v6402 = vadd.f32 %v6388, %v6401
    %6403 = vdwg.mxu0
    %6404 = vmatpush.bf16.msra.mxu0 %v3253
    %6405 = vmatpush.bf16.msra.mxu0 %v3251
    %6406 = vmatpush.bf16.msra.mxu0 %v3249
    %6407 = vmatpush.bf16.msra.mxu0 %v3247
    %6408 = vmatpush.bf16.msra.mxu0 %v3245
    %6409 = vmatpush.bf16.msra.mxu0 %v3243
    %6410 = vmatpush.bf16.msra.mxu0 %v3241
    %6411 = vmatpush.bf16.msra.mxu0 %v3239
    %6412 = vmatmul.bf16.gmra.mxu0 %v3013
    %v6413 = vpop.f32.mrf.mxu0
    %v6414 = vadd.f32 0.0, %v6413
    %v6415 = vpop.f32.mrf.mxu0
    %v6416 = vadd.f32 0.0, %v6415
    %6417 = vdwg.mxu0
    %6418 = vmatpush.bf16.msra.mxu0 %v3269
    %6419 = vmatpush.bf16.msra.mxu0 %v3267
    %6420 = vmatpush.bf16.msra.mxu0 %v3265
    %6421 = vmatpush.bf16.msra.mxu0 %v3263
    %6422 = vmatpush.bf16.msra.mxu0 %v3261
    %6423 = vmatpush.bf16.msra.mxu0 %v3259
    %6424 = vmatpush.bf16.msra.mxu0 %v3257
    %6425 = vmatpush.bf16.msra.mxu0 %v3255
    %6426 = vmatmul.bf16.gmra.mxu0 %v3014
    %v6427 = vpop.f32.mrf.mxu0
    %v6428 = vadd.f32 %v6414, %v6427
    %v6429 = vpop.f32.mrf.mxu0
    %v6430 = vadd.f32 %v6416, %v6429
    %6431 = vdwg.mxu0
    %6432 = vmatpush.bf16.msra.mxu0 %v3285
    %6433 = vmatpush.bf16.msra.mxu0 %v3283
    %6434 = vmatpush.bf16.msra.mxu0 %v3281
    %6435 = vmatpush.bf16.msra.mxu0 %v3279
    %6436 = vmatpush.bf16.msra.mxu0 %v3277
    %6437 = vmatpush.bf16.msra.mxu0 %v3275
    %6438 = vmatpush.bf16.msra.mxu0 %v3273
    %6439 = vmatpush.bf16.msra.mxu0 %v3271
    %6440 = vmatmul.bf16.gmra.mxu0 %v3015
    %v6441 = vpop.f32.mrf.mxu0
    %v6442 = vadd.f32 %v6428, %v6441
    %v6443 = vpop.f32.mrf.mxu0
    %v6444 = vadd.f32 %v6430, %v6443
    %6445 = vdwg.mxu0
    %6446 = vmatpush.bf16.msra.mxu0 %v3576
    %6447 = vmatpush.bf16.msra.mxu0 %v3574
    %6448 = vmatpush.bf16.msra.mxu0 %v3572
    %6449 = vmatpush.bf16.msra.mxu0 %v3570
    %6450 = vmatpush.bf16.msra.mxu0 %v3568
    %6451 = vmatpush.bf16.msra.mxu0 %v3566
    %6452 = vmatpush.bf16.msra.mxu0 %v3564
    %6453 = vmatpush.bf16.msra.mxu0 %v3562
    %6454 = vmatmul.bf16.gmra.mxu0 %v2982
    %v6455 = vpop.f32.mrf.mxu0
    %v6456 = vadd.f32 %v6400, %v6455
    %v6457 = vpop.f32.mrf.mxu0
    %v6458 = vadd.f32 %v6402, %v6457
    %6459 = vdwg.mxu0
    %6460 = vmatpush.bf16.msra.mxu0 %v3592
    %6461 = vmatpush.bf16.msra.mxu0 %v3590
    %6462 = vmatpush.bf16.msra.mxu0 %v3588
    %6463 = vmatpush.bf16.msra.mxu0 %v3586
    %6464 = vmatpush.bf16.msra.mxu0 %v3584
    %6465 = vmatpush.bf16.msra.mxu0 %v3582
    %6466 = vmatpush.bf16.msra.mxu0 %v3580
    %6467 = vmatpush.bf16.msra.mxu0 %v3578
    %6468 = vmatmul.bf16.gmra.mxu0 %v2983
    %v6469 = vpop.f32.mrf.mxu0
    %v6470 = vadd.f32 %v6456, %v6469
    %v6471 = vpop.f32.mrf.mxu0
    %v6472 = vadd.f32 %v6458, %v6471
    %6473 = vdwg.mxu0
    %6474 = vmatpush.bf16.msra.mxu0 %v3608
    %6475 = vmatpush.bf16.msra.mxu0 %v3606
    %6476 = vmatpush.bf16.msra.mxu0 %v3604
    %6477 = vmatpush.bf16.msra.mxu0 %v3602
    %6478 = vmatpush.bf16.msra.mxu0 %v3600
    %6479 = vmatpush.bf16.msra.mxu0 %v3598
    %6480 = vmatpush.bf16.msra.mxu0 %v3596
    %6481 = vmatpush.bf16.msra.mxu0 %v3594
    %6482 = vmatmul.bf16.gmra.mxu0 %v2984
    %v6483 = vpop.f32.mrf.mxu0
    %v6484 = vadd.f32 %v6470, %v6483
    %v6485 = vpop.f32.mrf.mxu0
    %v6486 = vadd.f32 %v6472, %v6485
    %6487 = vdwg.mxu0
    %6488 = vmatpush.bf16.msra.mxu0 %v3577
    %6489 = vmatpush.bf16.msra.mxu0 %v3575
    %6490 = vmatpush.bf16.msra.mxu0 %v3573
    %6491 = vmatpush.bf16.msra.mxu0 %v3571
    %6492 = vmatpush.bf16.msra.mxu0 %v3569
    %6493 = vmatpush.bf16.msra.mxu0 %v3567
    %6494 = vmatpush.bf16.msra.mxu0 %v3565
    %6495 = vmatpush.bf16.msra.mxu0 %v3563
    %6496 = vmatmul.bf16.gmra.mxu0 %v2982
    %v6497 = vpop.f32.mrf.mxu0
    %v6498 = vadd.f32 %v6442, %v6497
    %v6499 = vpop.f32.mrf.mxu0
    %v6500 = vadd.f32 %v6444, %v6499
    %6501 = vdwg.mxu0
    %6502 = vmatpush.bf16.msra.mxu0 %v3593
    %6503 = vmatpush.bf16.msra.mxu0 %v3591
    %6504 = vmatpush.bf16.msra.mxu0 %v3589
    %6505 = vmatpush.bf16.msra.mxu0 %v3587
    %6506 = vmatpush.bf16.msra.mxu0 %v3585
    %6507 = vmatpush.bf16.msra.mxu0 %v3583
    %6508 = vmatpush.bf16.msra.mxu0 %v3581
    %6509 = vmatpush.bf16.msra.mxu0 %v3579
    %6510 = vmatmul.bf16.gmra.mxu0 %v2983
    %v6511 = vpop.f32.mrf.mxu0
    %v6512 = vadd.f32 %v6498, %v6511
    %v6513 = vpop.f32.mrf.mxu0
    %v6514 = vadd.f32 %v6500, %v6513
    %6515 = vdwg.mxu0
    %6516 = vmatpush.bf16.msra.mxu0 %v3609
    %6517 = vmatpush.bf16.msra.mxu0 %v3607
    %6518 = vmatpush.bf16.msra.mxu0 %v3605
    %6519 = vmatpush.bf16.msra.mxu0 %v3603
    %6520 = vmatpush.bf16.msra.mxu0 %v3601
    %6521 = vmatpush.bf16.msra.mxu0 %v3599
    %6522 = vmatpush.bf16.msra.mxu0 %v3597
    %6523 = vmatpush.bf16.msra.mxu0 %v3595
    %6524 = vmatmul.bf16.gmra.mxu0 %v2984
    %v6525 = vpop.f32.mrf.mxu0
    %v6526 = vadd.f32 %v6512, %v6525
    %v6527 = vpop.f32.mrf.mxu0
    %v6528 = vadd.f32 %v6514, %v6527
    %6529 = vdwg.mxu0
    %6530 = vmatpush.bf16.msra.mxu0 %v3900
    %6531 = vmatpush.bf16.msra.mxu0 %v3898
    %6532 = vmatpush.bf16.msra.mxu0 %v3896
    %6533 = vmatpush.bf16.msra.mxu0 %v3894
    %6534 = vmatpush.bf16.msra.mxu0 %v3892
    %6535 = vmatpush.bf16.msra.mxu0 %v3890
    %6536 = vmatpush.bf16.msra.mxu0 %v3888
    %6537 = vmatpush.bf16.msra.mxu0 %v3886
    %6538 = vmatmul.bf16.gmra.mxu0 %v3043
    %v6539 = vpop.f32.mrf.mxu0
    %v6540 = vadd.f32 0.0, %v6539
    %v6541 = vpop.f32.mrf.mxu0
    %v6542 = vadd.f32 0.0, %v6541
    %6543 = vdwg.mxu0
    %6544 = vmatpush.bf16.msra.mxu0 %v3916
    %6545 = vmatpush.bf16.msra.mxu0 %v3914
    %6546 = vmatpush.bf16.msra.mxu0 %v3912
    %6547 = vmatpush.bf16.msra.mxu0 %v3910
    %6548 = vmatpush.bf16.msra.mxu0 %v3908
    %6549 = vmatpush.bf16.msra.mxu0 %v3906
    %6550 = vmatpush.bf16.msra.mxu0 %v3904
    %6551 = vmatpush.bf16.msra.mxu0 %v3902
    %6552 = vmatmul.bf16.gmra.mxu0 %v3044
    %v6553 = vpop.f32.mrf.mxu0
    %v6554 = vadd.f32 %v6540, %v6553
    %v6555 = vpop.f32.mrf.mxu0
    %v6556 = vadd.f32 %v6542, %v6555
    %6557 = vdwg.mxu0
    %6558 = vmatpush.bf16.msra.mxu0 %v3932
    %6559 = vmatpush.bf16.msra.mxu0 %v3930
    %6560 = vmatpush.bf16.msra.mxu0 %v3928
    %6561 = vmatpush.bf16.msra.mxu0 %v3926
    %6562 = vmatpush.bf16.msra.mxu0 %v3924
    %6563 = vmatpush.bf16.msra.mxu0 %v3922
    %6564 = vmatpush.bf16.msra.mxu0 %v3920
    %6565 = vmatpush.bf16.msra.mxu0 %v3918
    %6566 = vmatmul.bf16.gmra.mxu0 %v3045
    %v6567 = vpop.f32.mrf.mxu0
    %v6568 = vadd.f32 %v6554, %v6567
    %v6569 = vpop.f32.mrf.mxu0
    %v6570 = vadd.f32 %v6556, %v6569
    %6571 = vdwg.mxu0
    %6572 = vmatpush.bf16.msra.mxu0 %v3901
    %6573 = vmatpush.bf16.msra.mxu0 %v3899
    %6574 = vmatpush.bf16.msra.mxu0 %v3897
    %6575 = vmatpush.bf16.msra.mxu0 %v3895
    %6576 = vmatpush.bf16.msra.mxu0 %v3893
    %6577 = vmatpush.bf16.msra.mxu0 %v3891
    %6578 = vmatpush.bf16.msra.mxu0 %v3889
    %6579 = vmatpush.bf16.msra.mxu0 %v3887
    %6580 = vmatmul.bf16.gmra.mxu0 %v3043
    %v6581 = vpop.f32.mrf.mxu0
    %v6582 = vadd.f32 0.0, %v6581
    %v6583 = vpop.f32.mrf.mxu0
    %v6584 = vadd.f32 0.0, %v6583
    %6585 = vdwg.mxu0
    %6586 = vmatpush.bf16.msra.mxu0 %v3917
    %6587 = vmatpush.bf16.msra.mxu0 %v3915
    %6588 = vmatpush.bf16.msra.mxu0 %v3913
    %6589 = vmatpush.bf16.msra.mxu0 %v3911
    %6590 = vmatpush.bf16.msra.mxu0 %v3909
    %6591 = vmatpush.bf16.msra.mxu0 %v3907
    %6592 = vmatpush.bf16.msra.mxu0 %v3905
    %6593 = vmatpush.bf16.msra.mxu0 %v3903
    %6594 = vmatmul.bf16.gmra.mxu0 %v3044
    %v6595 = vpop.f32.mrf.mxu0
    %v6596 = vadd.f32 %v6582, %v6595
    %v6597 = vpop.f32.mrf.mxu0
    %v6598 = vadd.f32 %v6584, %v6597
    %6599 = vdwg.mxu0
    %6600 = vmatpush.bf16.msra.mxu0 %v3933
    %6601 = vmatpush.bf16.msra.mxu0 %v3931
    %6602 = vmatpush.bf16.msra.mxu0 %v3929
    %6603 = vmatpush.bf16.msra.mxu0 %v3927
    %6604 = vmatpush.bf16.msra.mxu0 %v3925
    %6605 = vmatpush.bf16.msra.mxu0 %v3923
    %6606 = vmatpush.bf16.msra.mxu0 %v3921
    %6607 = vmatpush.bf16.msra.mxu0 %v3919
    %6608 = vmatmul.bf16.gmra.mxu0 %v3045
    %v6609 = vpop.f32.mrf.mxu0
    %v6610 = vadd.f32 %v6596, %v6609
    %v6611 = vpop.f32.mrf.mxu0
    %v6612 = vadd.f32 %v6598, %v6611
    %6613 = vdwg.mxu0
    %v6614 = vadd.f32 %v6484, %v6568
    %v6615 = vadd.f32 %v6526, %v6610
    %v6616 = vadd.f32 %v6486, %v6570
    %v6617 = vadd.f32 %v6528, %v6612
    %6618 = vmatpush.bf16.msra.mxu0 %v4228
    %6619 = vmatpush.bf16.msra.mxu0 %v4226
    %6620 = vmatpush.bf16.msra.mxu0 %v4224
    %6621 = vmatpush.bf16.msra.mxu0 %v4222
    %6622 = vmatpush.bf16.msra.mxu0 %v4220
    %6623 = vmatpush.bf16.msra.mxu0 %v4218
    %6624 = vmatpush.bf16.msra.mxu0 %v4216
    %6625 = vmatpush.bf16.msra.mxu0 %v4214
    %6626 = vmatmul.bf16.gmra.mxu0 %v3067
    %v6627 = vpop.f32.mrf.mxu0
    %v6628 = vadd.f32 0.0, %v6627
    %v6629 = vpop.f32.mrf.mxu0
    %v6630 = vadd.f32 0.0, %v6629
    %6631 = vdwg.mxu0
    %6632 = vmatpush.bf16.msra.mxu0 %v4244
    %6633 = vmatpush.bf16.msra.mxu0 %v4242
    %6634 = vmatpush.bf16.msra.mxu0 %v4240
    %6635 = vmatpush.bf16.msra.mxu0 %v4238
    %6636 = vmatpush.bf16.msra.mxu0 %v4236
    %6637 = vmatpush.bf16.msra.mxu0 %v4234
    %6638 = vmatpush.bf16.msra.mxu0 %v4232
    %6639 = vmatpush.bf16.msra.mxu0 %v4230
    %6640 = vmatmul.bf16.gmra.mxu0 %v3068
    %v6641 = vpop.f32.mrf.mxu0
    %v6642 = vadd.f32 %v6628, %v6641
    %v6643 = vpop.f32.mrf.mxu0
    %v6644 = vadd.f32 %v6630, %v6643
    %6645 = vdwg.mxu0
    %6646 = vmatpush.bf16.msra.mxu0 %v4260
    %6647 = vmatpush.bf16.msra.mxu0 %v4258
    %6648 = vmatpush.bf16.msra.mxu0 %v4256
    %6649 = vmatpush.bf16.msra.mxu0 %v4254
    %6650 = vmatpush.bf16.msra.mxu0 %v4252
    %6651 = vmatpush.bf16.msra.mxu0 %v4250
    %6652 = vmatpush.bf16.msra.mxu0 %v4248
    %6653 = vmatpush.bf16.msra.mxu0 %v4246
    %6654 = vmatmul.bf16.gmra.mxu0 %v3069
    %v6655 = vpop.f32.mrf.mxu0
    %v6656 = vadd.f32 %v6642, %v6655
    %v6657 = vpop.f32.mrf.mxu0
    %v6658 = vadd.f32 %v6644, %v6657
    %6659 = vdwg.mxu0
    %6660 = vmatpush.bf16.msra.mxu0 %v4229
    %6661 = vmatpush.bf16.msra.mxu0 %v4227
    %6662 = vmatpush.bf16.msra.mxu0 %v4225
    %6663 = vmatpush.bf16.msra.mxu0 %v4223
    %6664 = vmatpush.bf16.msra.mxu0 %v4221
    %6665 = vmatpush.bf16.msra.mxu0 %v4219
    %6666 = vmatpush.bf16.msra.mxu0 %v4217
    %6667 = vmatpush.bf16.msra.mxu0 %v4215
    %6668 = vmatmul.bf16.gmra.mxu0 %v3067
    %v6669 = vpop.f32.mrf.mxu0
    %v6670 = vadd.f32 0.0, %v6669
    %v6671 = vpop.f32.mrf.mxu0
    %v6672 = vadd.f32 0.0, %v6671
    %6673 = vdwg.mxu0
    %6674 = vmatpush.bf16.msra.mxu0 %v4245
    %6675 = vmatpush.bf16.msra.mxu0 %v4243
    %6676 = vmatpush.bf16.msra.mxu0 %v4241
    %6677 = vmatpush.bf16.msra.mxu0 %v4239
    %6678 = vmatpush.bf16.msra.mxu0 %v4237
    %6679 = vmatpush.bf16.msra.mxu0 %v4235
    %6680 = vmatpush.bf16.msra.mxu0 %v4233
    %6681 = vmatpush.bf16.msra.mxu0 %v4231
    %6682 = vmatmul.bf16.gmra.mxu0 %v3068
    %v6683 = vpop.f32.mrf.mxu0
    %v6684 = vadd.f32 %v6670, %v6683
    %v6685 = vpop.f32.mrf.mxu0
    %v6686 = vadd.f32 %v6672, %v6685
    %6687 = vdwg.mxu0
    %6688 = vmatpush.bf16.msra.mxu0 %v4261
    %6689 = vmatpush.bf16.msra.mxu0 %v4259
    %6690 = vmatpush.bf16.msra.mxu0 %v4257
    %6691 = vmatpush.bf16.msra.mxu0 %v4255
    %6692 = vmatpush.bf16.msra.mxu0 %v4253
    %6693 = vmatpush.bf16.msra.mxu0 %v4251
    %6694 = vmatpush.bf16.msra.mxu0 %v4249
    %6695 = vmatpush.bf16.msra.mxu0 %v4247
    %6696 = vmatmul.bf16.gmra.mxu0 %v3069
    %v6697 = vpop.f32.mrf.mxu0
    %v6698 = vadd.f32 %v6684, %v6697
    %v6699 = vpop.f32.mrf.mxu0
    %v6700 = vadd.f32 %v6686, %v6699
    %6701 = vdwg.mxu0
    %v6702 = vadd.f32 %v6614, %v6656
    %v6703 = vadd.f32 %v6615, %v6698
    %v6704 = vadd.f32 %v6616, %v6658
    %v6705 = vadd.f32 %v6617, %v6700
    %6706 = vmatpush.bf16.msra.mxu0 %v4556
    %6707 = vmatpush.bf16.msra.mxu0 %v4554
    %6708 = vmatpush.bf16.msra.mxu0 %v4552
    %6709 = vmatpush.bf16.msra.mxu0 %v4550
    %6710 = vmatpush.bf16.msra.mxu0 %v4548
    %6711 = vmatpush.bf16.msra.mxu0 %v4546
    %6712 = vmatpush.bf16.msra.mxu0 %v4544
    %6713 = vmatpush.bf16.msra.mxu0 %v4542
    %6714 = vmatmul.bf16.gmra.mxu0 %v3091
    %v6715 = vpop.f32.mrf.mxu0
    %v6716 = vadd.f32 0.0, %v6715
    %v6717 = vpop.f32.mrf.mxu0
    %v6718 = vadd.f32 0.0, %v6717
    %6719 = vdwg.mxu0
    %6720 = vmatpush.bf16.msra.mxu0 %v4572
    %6721 = vmatpush.bf16.msra.mxu0 %v4570
    %6722 = vmatpush.bf16.msra.mxu0 %v4568
    %6723 = vmatpush.bf16.msra.mxu0 %v4566
    %6724 = vmatpush.bf16.msra.mxu0 %v4564
    %6725 = vmatpush.bf16.msra.mxu0 %v4562
    %6726 = vmatpush.bf16.msra.mxu0 %v4560
    %6727 = vmatpush.bf16.msra.mxu0 %v4558
    %6728 = vmatmul.bf16.gmra.mxu0 %v3092
    %v6729 = vpop.f32.mrf.mxu0
    %v6730 = vadd.f32 %v6716, %v6729
    %v6731 = vpop.f32.mrf.mxu0
    %v6732 = vadd.f32 %v6718, %v6731
    %6733 = vdwg.mxu0
    %6734 = vmatpush.bf16.msra.mxu0 %v4588
    %6735 = vmatpush.bf16.msra.mxu0 %v4586
    %6736 = vmatpush.bf16.msra.mxu0 %v4584
    %6737 = vmatpush.bf16.msra.mxu0 %v4582
    %6738 = vmatpush.bf16.msra.mxu0 %v4580
    %6739 = vmatpush.bf16.msra.mxu0 %v4578
    %6740 = vmatpush.bf16.msra.mxu0 %v4576
    %6741 = vmatpush.bf16.msra.mxu0 %v4574
    %6742 = vmatmul.bf16.gmra.mxu0 %v3093
    %v6743 = vpop.f32.mrf.mxu0
    %v6744 = vadd.f32 %v6730, %v6743
    %v6745 = vpop.f32.mrf.mxu0
    %v6746 = vadd.f32 %v6732, %v6745
    %6747 = vdwg.mxu0
    %6748 = vmatpush.bf16.msra.mxu0 %v4557
    %6749 = vmatpush.bf16.msra.mxu0 %v4555
    %6750 = vmatpush.bf16.msra.mxu0 %v4553
    %6751 = vmatpush.bf16.msra.mxu0 %v4551
    %6752 = vmatpush.bf16.msra.mxu0 %v4549
    %6753 = vmatpush.bf16.msra.mxu0 %v4547
    %6754 = vmatpush.bf16.msra.mxu0 %v4545
    %6755 = vmatpush.bf16.msra.mxu0 %v4543
    %6756 = vmatmul.bf16.gmra.mxu0 %v3091
    %v6757 = vpop.f32.mrf.mxu0
    %v6758 = vadd.f32 0.0, %v6757
    %v6759 = vpop.f32.mrf.mxu0
    %v6760 = vadd.f32 0.0, %v6759
    %6761 = vdwg.mxu0
    %6762 = vmatpush.bf16.msra.mxu0 %v4573
    %6763 = vmatpush.bf16.msra.mxu0 %v4571
    %6764 = vmatpush.bf16.msra.mxu0 %v4569
    %6765 = vmatpush.bf16.msra.mxu0 %v4567
    %6766 = vmatpush.bf16.msra.mxu0 %v4565
    %6767 = vmatpush.bf16.msra.mxu0 %v4563
    %6768 = vmatpush.bf16.msra.mxu0 %v4561
    %6769 = vmatpush.bf16.msra.mxu0 %v4559
    %6770 = vmatmul.bf16.gmra.mxu0 %v3092
    %v6771 = vpop.f32.mrf.mxu0
    %v6772 = vadd.f32 %v6758, %v6771
    %v6773 = vpop.f32.mrf.mxu0
    %v6774 = vadd.f32 %v6760, %v6773
    %6775 = vdwg.mxu0
    %6776 = vmatpush.bf16.msra.mxu0 %v4589
    %6777 = vmatpush.bf16.msra.mxu0 %v4587
    %6778 = vmatpush.bf16.msra.mxu0 %v4585
    %6779 = vmatpush.bf16.msra.mxu0 %v4583
    %6780 = vmatpush.bf16.msra.mxu0 %v4581
    %6781 = vmatpush.bf16.msra.mxu0 %v4579
    %6782 = vmatpush.bf16.msra.mxu0 %v4577
    %6783 = vmatpush.bf16.msra.mxu0 %v4575
    %6784 = vmatmul.bf16.gmra.mxu0 %v3093
    %v6785 = vpop.f32.mrf.mxu0
    %v6786 = vadd.f32 %v6772, %v6785
    %v6787 = vpop.f32.mrf.mxu0
    %v6788 = vadd.f32 %v6774, %v6787
    %6789 = vdwg.mxu0
    %v6790 = vadd.f32 %v6702, %v6744
    %v6791 = vadd.f32 %v6703, %v6786
    %v6792 = vadd.f32 %v6704, %v6746
    %v6793 = vadd.f32 %v6705, %v6788
    %v6794 = vmax.f32 %v6358, %v6790
    %v6795 = vmax.f32 %v6359, %v6791
    %v6796 = vmax.f32 %v6360, %v6792
    %v6797 = vmax.f32 %v6361, %v6793
    %6798 = vmatpush.bf16.msra.mxu0 %v4884
    %6799 = vmatpush.bf16.msra.mxu0 %v4882
    %6800 = vmatpush.bf16.msra.mxu0 %v4880
    %6801 = vmatpush.bf16.msra.mxu0 %v4878
    %6802 = vmatpush.bf16.msra.mxu0 %v4876
    %6803 = vmatpush.bf16.msra.mxu0 %v4874
    %6804 = vmatpush.bf16.msra.mxu0 %v4872
    %6805 = vmatpush.bf16.msra.mxu0 %v4870
    %6806 = vmatmul.bf16.gmra.mxu0 %v3013
    %v6807 = vpop.f32.mrf.mxu0
    %v6808 = vadd.f32 0.0, %v6807
    %v6809 = vpop.f32.mrf.mxu0
    %v6810 = vadd.f32 0.0, %v6809
    %6811 = vdwg.mxu0
    %6812 = vmatpush.bf16.msra.mxu0 %v4900
    %6813 = vmatpush.bf16.msra.mxu0 %v4898
    %6814 = vmatpush.bf16.msra.mxu0 %v4896
    %6815 = vmatpush.bf16.msra.mxu0 %v4894
    %6816 = vmatpush.bf16.msra.mxu0 %v4892
    %6817 = vmatpush.bf16.msra.mxu0 %v4890
    %6818 = vmatpush.bf16.msra.mxu0 %v4888
    %6819 = vmatpush.bf16.msra.mxu0 %v4886
    %6820 = vmatmul.bf16.gmra.mxu0 %v3014
    %v6821 = vpop.f32.mrf.mxu0
    %v6822 = vadd.f32 %v6808, %v6821
    %v6823 = vpop.f32.mrf.mxu0
    %v6824 = vadd.f32 %v6810, %v6823
    %6825 = vdwg.mxu0
    %6826 = vmatpush.bf16.msra.mxu0 %v4916
    %6827 = vmatpush.bf16.msra.mxu0 %v4914
    %6828 = vmatpush.bf16.msra.mxu0 %v4912
    %6829 = vmatpush.bf16.msra.mxu0 %v4910
    %6830 = vmatpush.bf16.msra.mxu0 %v4908
    %6831 = vmatpush.bf16.msra.mxu0 %v4906
    %6832 = vmatpush.bf16.msra.mxu0 %v4904
    %6833 = vmatpush.bf16.msra.mxu0 %v4902
    %6834 = vmatmul.bf16.gmra.mxu0 %v3015
    %v6835 = vpop.f32.mrf.mxu0
    %v6836 = vadd.f32 %v6822, %v6835
    %v6837 = vpop.f32.mrf.mxu0
    %v6838 = vadd.f32 %v6824, %v6837
    %6839 = vdwg.mxu0
    %6840 = vmatpush.bf16.msra.mxu0 %v4885
    %6841 = vmatpush.bf16.msra.mxu0 %v4883
    %6842 = vmatpush.bf16.msra.mxu0 %v4881
    %6843 = vmatpush.bf16.msra.mxu0 %v4879
    %6844 = vmatpush.bf16.msra.mxu0 %v4877
    %6845 = vmatpush.bf16.msra.mxu0 %v4875
    %6846 = vmatpush.bf16.msra.mxu0 %v4873
    %6847 = vmatpush.bf16.msra.mxu0 %v4871
    %6848 = vmatmul.bf16.gmra.mxu0 %v3013
    %v6849 = vpop.f32.mrf.mxu0
    %v6850 = vadd.f32 0.0, %v6849
    %v6851 = vpop.f32.mrf.mxu0
    %v6852 = vadd.f32 0.0, %v6851
    %6853 = vdwg.mxu0
    %6854 = vmatpush.bf16.msra.mxu0 %v4901
    %6855 = vmatpush.bf16.msra.mxu0 %v4899
    %6856 = vmatpush.bf16.msra.mxu0 %v4897
    %6857 = vmatpush.bf16.msra.mxu0 %v4895
    %6858 = vmatpush.bf16.msra.mxu0 %v4893
    %6859 = vmatpush.bf16.msra.mxu0 %v4891
    %6860 = vmatpush.bf16.msra.mxu0 %v4889
    %6861 = vmatpush.bf16.msra.mxu0 %v4887
    %6862 = vmatmul.bf16.gmra.mxu0 %v3014
    %v6863 = vpop.f32.mrf.mxu0
    %v6864 = vadd.f32 %v6850, %v6863
    %v6865 = vpop.f32.mrf.mxu0
    %v6866 = vadd.f32 %v6852, %v6865
    %6867 = vdwg.mxu0
    %6868 = vmatpush.bf16.msra.mxu0 %v4917
    %6869 = vmatpush.bf16.msra.mxu0 %v4915
    %6870 = vmatpush.bf16.msra.mxu0 %v4913
    %6871 = vmatpush.bf16.msra.mxu0 %v4911
    %6872 = vmatpush.bf16.msra.mxu0 %v4909
    %6873 = vmatpush.bf16.msra.mxu0 %v4907
    %6874 = vmatpush.bf16.msra.mxu0 %v4905
    %6875 = vmatpush.bf16.msra.mxu0 %v4903
    %6876 = vmatmul.bf16.gmra.mxu0 %v3015
    %v6877 = vpop.f32.mrf.mxu0
    %v6878 = vadd.f32 %v6864, %v6877
    %v6879 = vpop.f32.mrf.mxu0
    %v6880 = vadd.f32 %v6866, %v6879
    %6881 = vdwg.mxu0
    %6882 = vmatpush.bf16.msra.mxu0 %v5208
    %6883 = vmatpush.bf16.msra.mxu0 %v5206
    %6884 = vmatpush.bf16.msra.mxu0 %v5204
    %6885 = vmatpush.bf16.msra.mxu0 %v5202
    %6886 = vmatpush.bf16.msra.mxu0 %v5200
    %6887 = vmatpush.bf16.msra.mxu0 %v5198
    %6888 = vmatpush.bf16.msra.mxu0 %v5196
    %6889 = vmatpush.bf16.msra.mxu0 %v5194
    %6890 = vmatmul.bf16.gmra.mxu0 %v2982
    %v6891 = vpop.f32.mrf.mxu0
    %v6892 = vadd.f32 %v6836, %v6891
    %v6893 = vpop.f32.mrf.mxu0
    %v6894 = vadd.f32 %v6838, %v6893
    %6895 = vdwg.mxu0
    %6896 = vmatpush.bf16.msra.mxu0 %v5224
    %6897 = vmatpush.bf16.msra.mxu0 %v5222
    %6898 = vmatpush.bf16.msra.mxu0 %v5220
    %6899 = vmatpush.bf16.msra.mxu0 %v5218
    %6900 = vmatpush.bf16.msra.mxu0 %v5216
    %6901 = vmatpush.bf16.msra.mxu0 %v5214
    %6902 = vmatpush.bf16.msra.mxu0 %v5212
    %6903 = vmatpush.bf16.msra.mxu0 %v5210
    %6904 = vmatmul.bf16.gmra.mxu0 %v2983
    %v6905 = vpop.f32.mrf.mxu0
    %v6906 = vadd.f32 %v6892, %v6905
    %v6907 = vpop.f32.mrf.mxu0
    %v6908 = vadd.f32 %v6894, %v6907
    %6909 = vdwg.mxu0
    %6910 = vmatpush.bf16.msra.mxu0 %v5240
    %6911 = vmatpush.bf16.msra.mxu0 %v5238
    %6912 = vmatpush.bf16.msra.mxu0 %v5236
    %6913 = vmatpush.bf16.msra.mxu0 %v5234
    %6914 = vmatpush.bf16.msra.mxu0 %v5232
    %6915 = vmatpush.bf16.msra.mxu0 %v5230
    %6916 = vmatpush.bf16.msra.mxu0 %v5228
    %6917 = vmatpush.bf16.msra.mxu0 %v5226
    %6918 = vmatmul.bf16.gmra.mxu0 %v2984
    %v6919 = vpop.f32.mrf.mxu0
    %v6920 = vadd.f32 %v6906, %v6919
    %v6921 = vpop.f32.mrf.mxu0
    %v6922 = vadd.f32 %v6908, %v6921
    %6923 = vdwg.mxu0
    %6924 = vmatpush.bf16.msra.mxu0 %v5209
    %6925 = vmatpush.bf16.msra.mxu0 %v5207
    %6926 = vmatpush.bf16.msra.mxu0 %v5205
    %6927 = vmatpush.bf16.msra.mxu0 %v5203
    %6928 = vmatpush.bf16.msra.mxu0 %v5201
    %6929 = vmatpush.bf16.msra.mxu0 %v5199
    %6930 = vmatpush.bf16.msra.mxu0 %v5197
    %6931 = vmatpush.bf16.msra.mxu0 %v5195
    %6932 = vmatmul.bf16.gmra.mxu0 %v2982
    %v6933 = vpop.f32.mrf.mxu0
    %v6934 = vadd.f32 %v6878, %v6933
    %v6935 = vpop.f32.mrf.mxu0
    %v6936 = vadd.f32 %v6880, %v6935
    %6937 = vdwg.mxu0
    %6938 = vmatpush.bf16.msra.mxu0 %v5225
    %6939 = vmatpush.bf16.msra.mxu0 %v5223
    %6940 = vmatpush.bf16.msra.mxu0 %v5221
    %6941 = vmatpush.bf16.msra.mxu0 %v5219
    %6942 = vmatpush.bf16.msra.mxu0 %v5217
    %6943 = vmatpush.bf16.msra.mxu0 %v5215
    %6944 = vmatpush.bf16.msra.mxu0 %v5213
    %6945 = vmatpush.bf16.msra.mxu0 %v5211
    %6946 = vmatmul.bf16.gmra.mxu0 %v2983
    %v6947 = vpop.f32.mrf.mxu0
    %v6948 = vadd.f32 %v6934, %v6947
    %v6949 = vpop.f32.mrf.mxu0
    %v6950 = vadd.f32 %v6936, %v6949
    %6951 = vdwg.mxu0
    %6952 = vmatpush.bf16.msra.mxu0 %v5241
    %6953 = vmatpush.bf16.msra.mxu0 %v5239
    %6954 = vmatpush.bf16.msra.mxu0 %v5237
    %6955 = vmatpush.bf16.msra.mxu0 %v5235
    %6956 = vmatpush.bf16.msra.mxu0 %v5233
    %6957 = vmatpush.bf16.msra.mxu0 %v5231
    %6958 = vmatpush.bf16.msra.mxu0 %v5229
    %6959 = vmatpush.bf16.msra.mxu0 %v5227
    %6960 = vmatmul.bf16.gmra.mxu0 %v2984
    %v6961 = vpop.f32.mrf.mxu0
    %v6962 = vadd.f32 %v6948, %v6961
    %v6963 = vpop.f32.mrf.mxu0
    %v6964 = vadd.f32 %v6950, %v6963
    %6965 = vdwg.mxu0
    %6966 = vmatpush.bf16.msra.mxu0 %v5532
    %6967 = vmatpush.bf16.msra.mxu0 %v5530
    %6968 = vmatpush.bf16.msra.mxu0 %v5528
    %6969 = vmatpush.bf16.msra.mxu0 %v5526
    %6970 = vmatpush.bf16.msra.mxu0 %v5524
    %6971 = vmatpush.bf16.msra.mxu0 %v5522
    %6972 = vmatpush.bf16.msra.mxu0 %v5520
    %6973 = vmatpush.bf16.msra.mxu0 %v5518
    %6974 = vmatmul.bf16.gmra.mxu0 %v3043
    %v6975 = vpop.f32.mrf.mxu0
    %v6976 = vadd.f32 0.0, %v6975
    %v6977 = vpop.f32.mrf.mxu0
    %v6978 = vadd.f32 0.0, %v6977
    %6979 = vdwg.mxu0
    %6980 = vmatpush.bf16.msra.mxu0 %v5548
    %6981 = vmatpush.bf16.msra.mxu0 %v5546
    %6982 = vmatpush.bf16.msra.mxu0 %v5544
    %6983 = vmatpush.bf16.msra.mxu0 %v5542
    %6984 = vmatpush.bf16.msra.mxu0 %v5540
    %6985 = vmatpush.bf16.msra.mxu0 %v5538
    %6986 = vmatpush.bf16.msra.mxu0 %v5536
    %6987 = vmatpush.bf16.msra.mxu0 %v5534
    %6988 = vmatmul.bf16.gmra.mxu0 %v3044
    %v6989 = vpop.f32.mrf.mxu0
    %v6990 = vadd.f32 %v6976, %v6989
    %v6991 = vpop.f32.mrf.mxu0
    %v6992 = vadd.f32 %v6978, %v6991
    %6993 = vdwg.mxu0
    %6994 = vmatpush.bf16.msra.mxu0 %v5564
    %6995 = vmatpush.bf16.msra.mxu0 %v5562
    %6996 = vmatpush.bf16.msra.mxu0 %v5560
    %6997 = vmatpush.bf16.msra.mxu0 %v5558
    %6998 = vmatpush.bf16.msra.mxu0 %v5556
    %6999 = vmatpush.bf16.msra.mxu0 %v5554
    %7000 = vmatpush.bf16.msra.mxu0 %v5552
    %7001 = vmatpush.bf16.msra.mxu0 %v5550
    %7002 = vmatmul.bf16.gmra.mxu0 %v3045
    %v7003 = vpop.f32.mrf.mxu0
    %v7004 = vadd.f32 %v6990, %v7003
    %v7005 = vpop.f32.mrf.mxu0
    %v7006 = vadd.f32 %v6992, %v7005
    %7007 = vdwg.mxu0
    %7008 = vmatpush.bf16.msra.mxu0 %v5533
    %7009 = vmatpush.bf16.msra.mxu0 %v5531
    %7010 = vmatpush.bf16.msra.mxu0 %v5529
    %7011 = vmatpush.bf16.msra.mxu0 %v5527
    %7012 = vmatpush.bf16.msra.mxu0 %v5525
    %7013 = vmatpush.bf16.msra.mxu0 %v5523
    %7014 = vmatpush.bf16.msra.mxu0 %v5521
    %7015 = vmatpush.bf16.msra.mxu0 %v5519
    %7016 = vmatmul.bf16.gmra.mxu0 %v3043
    %v7017 = vpop.f32.mrf.mxu0
    %v7018 = vadd.f32 0.0, %v7017
    %v7019 = vpop.f32.mrf.mxu0
    %v7020 = vadd.f32 0.0, %v7019
    %7021 = vdwg.mxu0
    %7022 = vmatpush.bf16.msra.mxu0 %v5549
    %7023 = vmatpush.bf16.msra.mxu0 %v5547
    %7024 = vmatpush.bf16.msra.mxu0 %v5545
    %7025 = vmatpush.bf16.msra.mxu0 %v5543
    %7026 = vmatpush.bf16.msra.mxu0 %v5541
    %7027 = vmatpush.bf16.msra.mxu0 %v5539
    %7028 = vmatpush.bf16.msra.mxu0 %v5537
    %7029 = vmatpush.bf16.msra.mxu0 %v5535
    %7030 = vmatmul.bf16.gmra.mxu0 %v3044
    %v7031 = vpop.f32.mrf.mxu0
    %v7032 = vadd.f32 %v7018, %v7031
    %v7033 = vpop.f32.mrf.mxu0
    %v7034 = vadd.f32 %v7020, %v7033
    %7035 = vdwg.mxu0
    %7036 = vmatpush.bf16.msra.mxu0 %v5565
    %7037 = vmatpush.bf16.msra.mxu0 %v5563
    %7038 = vmatpush.bf16.msra.mxu0 %v5561
    %7039 = vmatpush.bf16.msra.mxu0 %v5559
    %7040 = vmatpush.bf16.msra.mxu0 %v5557
    %7041 = vmatpush.bf16.msra.mxu0 %v5555
    %7042 = vmatpush.bf16.msra.mxu0 %v5553
    %7043 = vmatpush.bf16.msra.mxu0 %v5551
    %7044 = vmatmul.bf16.gmra.mxu0 %v3045
    %v7045 = vpop.f32.mrf.mxu0
    %v7046 = vadd.f32 %v7032, %v7045
    %v7047 = vpop.f32.mrf.mxu0
    %v7048 = vadd.f32 %v7034, %v7047
    %7049 = vdwg.mxu0
    %v7050 = vadd.f32 %v6920, %v7004
    %v7051 = vadd.f32 %v6962, %v7046
    %v7052 = vadd.f32 %v6922, %v7006
    %v7053 = vadd.f32 %v6964, %v7048
    %7054 = vmatpush.bf16.msra.mxu0 %v5860
    %7055 = vmatpush.bf16.msra.mxu0 %v5858
    %7056 = vmatpush.bf16.msra.mxu0 %v5856
    %7057 = vmatpush.bf16.msra.mxu0 %v5854
    %7058 = vmatpush.bf16.msra.mxu0 %v5852
    %7059 = vmatpush.bf16.msra.mxu0 %v5850
    %7060 = vmatpush.bf16.msra.mxu0 %v5848
    %7061 = vmatpush.bf16.msra.mxu0 %v5846
    %7062 = vmatmul.bf16.gmra.mxu0 %v3067
    %v7063 = vpop.f32.mrf.mxu0
    %v7064 = vadd.f32 0.0, %v7063
    %v7065 = vpop.f32.mrf.mxu0
    %v7066 = vadd.f32 0.0, %v7065
    %7067 = vdwg.mxu0
    %7068 = vmatpush.bf16.msra.mxu0 %v5876
    %7069 = vmatpush.bf16.msra.mxu0 %v5874
    %7070 = vmatpush.bf16.msra.mxu0 %v5872
    %7071 = vmatpush.bf16.msra.mxu0 %v5870
    %7072 = vmatpush.bf16.msra.mxu0 %v5868
    %7073 = vmatpush.bf16.msra.mxu0 %v5866
    %7074 = vmatpush.bf16.msra.mxu0 %v5864
    %7075 = vmatpush.bf16.msra.mxu0 %v5862
    %7076 = vmatmul.bf16.gmra.mxu0 %v3068
    %v7077 = vpop.f32.mrf.mxu0
    %v7078 = vadd.f32 %v7064, %v7077
    %v7079 = vpop.f32.mrf.mxu0
    %v7080 = vadd.f32 %v7066, %v7079
    %7081 = vdwg.mxu0
    %7082 = vmatpush.bf16.msra.mxu0 %v5892
    %7083 = vmatpush.bf16.msra.mxu0 %v5890
    %7084 = vmatpush.bf16.msra.mxu0 %v5888
    %7085 = vmatpush.bf16.msra.mxu0 %v5886
    %7086 = vmatpush.bf16.msra.mxu0 %v5884
    %7087 = vmatpush.bf16.msra.mxu0 %v5882
    %7088 = vmatpush.bf16.msra.mxu0 %v5880
    %7089 = vmatpush.bf16.msra.mxu0 %v5878
    %7090 = vmatmul.bf16.gmra.mxu0 %v3069
    %v7091 = vpop.f32.mrf.mxu0
    %v7092 = vadd.f32 %v7078, %v7091
    %v7093 = vpop.f32.mrf.mxu0
    %v7094 = vadd.f32 %v7080, %v7093
    %7095 = vdwg.mxu0
    %7096 = vmatpush.bf16.msra.mxu0 %v5861
    %7097 = vmatpush.bf16.msra.mxu0 %v5859
    %7098 = vmatpush.bf16.msra.mxu0 %v5857
    %7099 = vmatpush.bf16.msra.mxu0 %v5855
    %7100 = vmatpush.bf16.msra.mxu0 %v5853
    %7101 = vmatpush.bf16.msra.mxu0 %v5851
    %7102 = vmatpush.bf16.msra.mxu0 %v5849
    %7103 = vmatpush.bf16.msra.mxu0 %v5847
    %7104 = vmatmul.bf16.gmra.mxu0 %v3067
    %v7105 = vpop.f32.mrf.mxu0
    %v7106 = vadd.f32 0.0, %v7105
    %v7107 = vpop.f32.mrf.mxu0
    %v7108 = vadd.f32 0.0, %v7107
    %7109 = vdwg.mxu0
    %7110 = vmatpush.bf16.msra.mxu0 %v5877
    %7111 = vmatpush.bf16.msra.mxu0 %v5875
    %7112 = vmatpush.bf16.msra.mxu0 %v5873
    %7113 = vmatpush.bf16.msra.mxu0 %v5871
    %7114 = vmatpush.bf16.msra.mxu0 %v5869
    %7115 = vmatpush.bf16.msra.mxu0 %v5867
    %7116 = vmatpush.bf16.msra.mxu0 %v5865
    %7117 = vmatpush.bf16.msra.mxu0 %v5863
    %7118 = vmatmul.bf16.gmra.mxu0 %v3068
    %v7119 = vpop.f32.mrf.mxu0
    %v7120 = vadd.f32 %v7106, %v7119
    %v7121 = vpop.f32.mrf.mxu0
    %v7122 = vadd.f32 %v7108, %v7121
    %7123 = vdwg.mxu0
    %7124 = vmatpush.bf16.msra.mxu0 %v5893
    %7125 = vmatpush.bf16.msra.mxu0 %v5891
    %7126 = vmatpush.bf16.msra.mxu0 %v5889
    %7127 = vmatpush.bf16.msra.mxu0 %v5887
    %7128 = vmatpush.bf16.msra.mxu0 %v5885
    %7129 = vmatpush.bf16.msra.mxu0 %v5883
    %7130 = vmatpush.bf16.msra.mxu0 %v5881
    %7131 = vmatpush.bf16.msra.mxu0 %v5879
    %7132 = vmatmul.bf16.gmra.mxu0 %v3069
    %v7133 = vpop.f32.mrf.mxu0
    %v7134 = vadd.f32 %v7120, %v7133
    %v7135 = vpop.f32.mrf.mxu0
    %v7136 = vadd.f32 %v7122, %v7135
    %7137 = vdwg.mxu0
    %v7138 = vadd.f32 %v7050, %v7092
    %v7139 = vadd.f32 %v7051, %v7134
    %v7140 = vadd.f32 %v7052, %v7094
    %v7141 = vadd.f32 %v7053, %v7136
    %7142 = vmatpush.bf16.msra.mxu0 %v6188
    %7143 = vmatpush.bf16.msra.mxu0 %v6186
    %7144 = vmatpush.bf16.msra.mxu0 %v6184
    %7145 = vmatpush.bf16.msra.mxu0 %v6182
    %7146 = vmatpush.bf16.msra.mxu0 %v6180
    %7147 = vmatpush.bf16.msra.mxu0 %v6178
    %7148 = vmatpush.bf16.msra.mxu0 %v6176
    %7149 = vmatpush.bf16.msra.mxu0 %v6174
    %7150 = vmatmul.bf16.gmra.mxu0 %v3091
    %v7151 = vpop.f32.mrf.mxu0
    %v7152 = vadd.f32 0.0, %v7151
    %v7153 = vpop.f32.mrf.mxu0
    %v7154 = vadd.f32 0.0, %v7153
    %7155 = vdwg.mxu0
    %7156 = vmatpush.bf16.msra.mxu0 %v6204
    %7157 = vmatpush.bf16.msra.mxu0 %v6202
    %7158 = vmatpush.bf16.msra.mxu0 %v6200
    %7159 = vmatpush.bf16.msra.mxu0 %v6198
    %7160 = vmatpush.bf16.msra.mxu0 %v6196
    %7161 = vmatpush.bf16.msra.mxu0 %v6194
    %7162 = vmatpush.bf16.msra.mxu0 %v6192
    %7163 = vmatpush.bf16.msra.mxu0 %v6190
    %7164 = vmatmul.bf16.gmra.mxu0 %v3092
    %v7165 = vpop.f32.mrf.mxu0
    %v7166 = vadd.f32 %v7152, %v7165
    %v7167 = vpop.f32.mrf.mxu0
    %v7168 = vadd.f32 %v7154, %v7167
    %7169 = vdwg.mxu0
    %7170 = vmatpush.bf16.msra.mxu0 %v6220
    %7171 = vmatpush.bf16.msra.mxu0 %v6218
    %7172 = vmatpush.bf16.msra.mxu0 %v6216
    %7173 = vmatpush.bf16.msra.mxu0 %v6214
    %7174 = vmatpush.bf16.msra.mxu0 %v6212
    %7175 = vmatpush.bf16.msra.mxu0 %v6210
    %7176 = vmatpush.bf16.msra.mxu0 %v6208
    %7177 = vmatpush.bf16.msra.mxu0 %v6206
    %7178 = vmatmul.bf16.gmra.mxu0 %v3093
    %v7179 = vpop.f32.mrf.mxu0
    %v7180 = vadd.f32 %v7166, %v7179
    %v7181 = vpop.f32.mrf.mxu0
    %v7182 = vadd.f32 %v7168, %v7181
    %7183 = vdwg.mxu0
    %7184 = vmatpush.bf16.msra.mxu0 %v6189
    %7185 = vmatpush.bf16.msra.mxu0 %v6187
    %7186 = vmatpush.bf16.msra.mxu0 %v6185
    %7187 = vmatpush.bf16.msra.mxu0 %v6183
    %7188 = vmatpush.bf16.msra.mxu0 %v6181
    %7189 = vmatpush.bf16.msra.mxu0 %v6179
    %7190 = vmatpush.bf16.msra.mxu0 %v6177
    %7191 = vmatpush.bf16.msra.mxu0 %v6175
    %7192 = vmatmul.bf16.gmra.mxu0 %v3091
    %v7193 = vpop.f32.mrf.mxu0
    %v7194 = vadd.f32 0.0, %v7193
    %v7195 = vpop.f32.mrf.mxu0
    %v7196 = vadd.f32 0.0, %v7195
    %7197 = vdwg.mxu0
    %7198 = vmatpush.bf16.msra.mxu0 %v6205
    %7199 = vmatpush.bf16.msra.mxu0 %v6203
    %7200 = vmatpush.bf16.msra.mxu0 %v6201
    %7201 = vmatpush.bf16.msra.mxu0 %v6199
    %7202 = vmatpush.bf16.msra.mxu0 %v6197
    %7203 = vmatpush.bf16.msra.mxu0 %v6195
    %7204 = vmatpush.bf16.msra.mxu0 %v6193
    %7205 = vmatpush.bf16.msra.mxu0 %v6191
    %7206 = vmatmul.bf16.gmra.mxu0 %v3092
    %v7207 = vpop.f32.mrf.mxu0
    %v7208 = vadd.f32 %v7194, %v7207
    %v7209 = vpop.f32.mrf.mxu0
    %v7210 = vadd.f32 %v7196, %v7209
    %7211 = vdwg.mxu0
    %7212 = vmatpush.bf16.msra.mxu0 %v6221
    %7213 = vmatpush.bf16.msra.mxu0 %v6219
    %7214 = vmatpush.bf16.msra.mxu0 %v6217
    %7215 = vmatpush.bf16.msra.mxu0 %v6215
    %7216 = vmatpush.bf16.msra.mxu0 %v6213
    %7217 = vmatpush.bf16.msra.mxu0 %v6211
    %7218 = vmatpush.bf16.msra.mxu0 %v6209
    %7219 = vmatpush.bf16.msra.mxu0 %v6207
    %7220 = vmatmul.bf16.gmra.mxu0 %v3093
    %v7221 = vpop.f32.mrf.mxu0
    %v7222 = vadd.f32 %v7208, %v7221
    %v7223 = vpop.f32.mrf.mxu0
    %v7224 = vadd.f32 %v7210, %v7223
    %7225 = vdwg.mxu0
    %v7226 = vadd.f32 %v7138, %v7180
    %v7227 = vadd.f32 %v7139, %v7222
    %v7228 = vadd.f32 %v7140, %v7182
    %v7229 = vadd.f32 %v7141, %v7224
    %v7230 = vmax.f32 %v6794, %v7226
    %v7231 = vmax.f32 %v6795, %v7227
    %v7232 = vmax.f32 %v6796, %v7228
    %v7233 = vmax.f32 %v6797, %v7229
    %v7235 = vperm.slane %v641, 0
    %v7236 = vperm.slane %v641, 1
    %v7239 = vadd.f32 %v7230, %v7235
    %v7240 = vadd.f32 %v7231, %v7236
    %v7241 = vadd.f32 %v7232, %v7235
    %v7242 = vadd.f32 %v7233, %v7236
    %v7243 = vmax.f32 %v7239, 0.0
    %v7244 = vmax.f32 %v7240, 0.0
    %v7245 = vmax.f32 %v7241, 0.0
    %v7246 = vmax.f32 %v7242, 0.0
    %v7247 = vpack.c.bf16 %v7244, %v7243
    %v7248 = vpack.c.bf16 %v7246, %v7245
    %7249 = vst [vmem:[%s5] sm:$0xff] %v7247
    %7250 = vst [vmem:[%s5 + $0x8] sm:$0xff] %v7248
    // Predicated region
    $region34: #{_lambda_.2} parent=1 // pred_check
      _
    $region35: #{_lambda_.2} parent=1 // pred_check_branch
      %7252 = sbr.rel (0) target = $region37
    $region36: #{_lambda_.2} parent=1 // pred_region
      _
    $region37: #{_lambda_.2} parent=1 // pred_fallthru
      _
    // Predicated region
    $region38: #{_lambda_.2} parent=1 // pred_check
      _
    $region39: #{_lambda_.2} parent=1 // pred_check_branch
      %7254 = sbr.rel (0) target = $region41
    $region40: #{_lambda_.2} parent=1 // pred_region
      _
    $region41: #{_lambda_.2} parent=1 // pred_fallthru
      _
    %7255 = vsyncpa [#allocation3], 1
    %7256 = vsyncpa [#allocation5], 1

</llo_original>
